<compile_context>
chip_gen: v6e
topology: v6e:2x2x1
jax: 0.10.0
libtpu: 0.0.40
codegen_flags: <defaults>
</compile_context>

<pallas_src>
import functools

import jax
import jax.numpy as jnp
from jax.experimental import pallas as pl
from jax.experimental.pallas import tpu as pltpu

_BN_EPS = 1e-5


# ----------------------------------------------------------------------------
# Kernel
# ----------------------------------------------------------------------------
def stn3d_kernel(n_conv, n_fc, compute_dtype, x_ref, *refs):
    """One grid step == (one batch tile, one point chunk).

    refs = [W0, s0, W1, s1, ..., Wfc0, sfc0, ..., Wfinal, bfinal, out_ref, gmax]
      Wi: (Cin, Cout) in compute_dtype, BN scale pre-folded into columns
      si: (1, Cout) f32 shift = (bias - mean) * scale + beta
      Wfinal: (C_fc_last, 128) lane-padded; bfinal: (1, 128) = bias + identity.
    """
    gmax_ref = refs[-1]                  # (tb, c_last) f32 running max over point chunks
    out_ref = refs[-2]                   # (tb, 128)
    p = refs[:-2]

    k = pl.program_id(1)
    nk = pl.num_programs(1)
    tb, _, tn = x_ref.shape

    # Lane-dense (tb, 3, tn) tile -> one small XLU relayout to (tb*tn, 3).
    x = x_ref[...]                       # f32
    h = jnp.transpose(x, (0, 2, 1)).reshape(tb * tn, 3).astype(compute_dtype)

    # ---- conv stack: Conv1d(k=1) + folded BN + ReLU, all as MXU matmuls ----
    idx = 0
    for layer in range(n_conv):
        w = p[idx][...]                  # (Cin, Cout), compute_dtype
        sh = p[idx + 1][...]             # (1, Cout) f32 shift
        idx += 2
        h = jnp.dot(h, w, preferred_element_type=jnp.float32)
        h = jnp.maximum(h + sh, 0.0)     # f32 epilogue
        if layer + 1 < n_conv:
            h = h.astype(compute_dtype)

    c_last = h.shape[-1]

    # ---- running global max pool over points: torch.max(x, 2) ----
    chunk_max = jnp.max(h.reshape(tb, tn, c_last), axis=1)   # (tb, c_last)

    @pl.when(k == 0)
    def _():
        gmax_ref[...] = jnp.full_like(gmax_ref, -jnp.inf)

    gmax_ref[...] = jnp.maximum(gmax_ref[...], chunk_max)

    # ---- at the last point chunk: FC stack + final Linear (+ identity) ----
    @pl.when(k == nk - 1)
    def _():
        g = gmax_ref[...]                                     # (tb, c_last) f32
        i2 = idx
        for _ in range(n_fc):
            w = p[i2][...]
            sh = p[i2 + 1][...]
            i2 += 2
            g = jnp.dot(g.astype(compute_dtype), w, preferred_element_type=jnp.float32)
            g = jnp.maximum(g + sh, 0.0)
        w = p[i2][...]                                        # (C, 128) lane-padded
        b = p[i2 + 1][...]                                    # (1, 128) bias + identity
        out_ref[...] = jnp.dot(g.astype(compute_dtype), w,
                               preferred_element_type=jnp.float32) + b


# ----------------------------------------------------------------------------
# Parameter preparation (outside the kernel)
# ----------------------------------------------------------------------------
def prepare_params(raw, compute_dtype):
    """Fold eval-mode BN into the weights (f32 fold, then cast) and flatten.

    raw["conv"] / raw["fc"]: list of (W(Cout,Cin), bias, gamma, beta, mean, var)
    raw["final"]: (W9(9,C), b9(9,))
    """
    flat = []
    for (w, b, gamma, beta, mean, var) in list(raw["conv"]) + list(raw["fc"]):
        scale = gamma / jnp.sqrt(var + _BN_EPS)               # (Cout,)
        w_folded = (w * scale[:, None]).T                      # (Cin, Cout), f32 fold
        shift = (b - mean) * scale + beta                      # (Cout,)
        flat.append(w_folded.astype(compute_dtype))
        flat.append(shift.reshape(1, -1).astype(jnp.float32))

    w9, b9 = raw["final"]
    iden = jnp.eye(3, dtype=jnp.float32).reshape(9)
    w_pad = jnp.pad(w9.T.astype(jnp.float32), ((0, 0), (0, 128 - 9)))
    b_pad = jnp.pad((b9 + iden)[None, :], ((0, 0), (0, 128 - 9)))
    flat.append(w_pad.astype(compute_dtype))
    flat.append(b_pad.astype(jnp.float32))
    return flat


def init_raw_params(key, conv_channels, fc_channels):
    """Deterministic synthetic parameters in torch layout (eval-mode BN stats)."""
    def bn_layer(key, cin, cout):
        ks = jax.random.split(key, 6)
        w = 0.1 * jax.random.normal(ks[0], (cout, cin), jnp.float32)
        b = 0.05 * jax.random.normal(ks[1], (cout,), jnp.float32)
        gamma = 0.5 + jax.random.uniform(ks[2], (cout,), jnp.float32)
        beta = 0.1 * jax.random.normal(ks[3], (cout,), jnp.float32)
        mean = 0.1 * jax.random.normal(ks[4], (cout,), jnp.float32)
        var = 0.5 + jax.random.uniform(ks[5], (cout,), jnp.float32)
        return (w, b, gamma, beta, mean, var)

    conv, fc = [], []
    dims = [3] + list(conv_channels)
    for i in range(len(conv_channels)):
        key, sub = jax.random.split(key)
        conv.append(bn_layer(sub, dims[i], dims[i + 1]))
    fdims = [conv_channels[-1]] + list(fc_channels)
    for i in range(len(fc_channels)):
        key, sub = jax.random.split(key)
        fc.append(bn_layer(sub, fdims[i], fdims[i + 1]))
    key, sub = jax.random.split(key)
    k1, k2 = jax.random.split(sub)
    w9 = 0.1 * jax.random.normal(k1, (9, fc_channels[-1]), jnp.float32)
    b9 = 0.05 * jax.random.normal(k2, (9,), jnp.float32)
    return {"conv": conv, "fc": fc, "final": (w9, b9)}


# ----------------------------------------------------------------------------
# Tiling / VMEM heuristics
# ----------------------------------------------------------------------------
def _device_kind():
    try:
        return jax.devices()[0].device_kind.lower()
    except Exception:
        return ""


def _choose_tiles(B, N, c_last, batch_tile, point_tile):
    # Tiny configs (like the demo): whole problem fits in VMEM -> one grid step.
    if batch_tile is None and point_tile is None and B * N * c_last * 4 <= (2 << 20):
        return B, N

    if batch_tile is None:
        tb = min(8, B)
        # Keep an even number of batch grid steps (and avoid batch padding) so
        # both v7x TensorCores stay busy on the "parallel" axis.
        while tb > 1 and (pl.cdiv(B, tb) % 2 != 0 or B % tb != 0):
            tb -= 1
    else:
        tb = max(1, min(batch_tile, B))

    if point_tile is None:
        # v7x: smaller point chunks at big channel counts (64 MiB physical VMEM);
        # v5e/v6e: larger chunks amortize per-step overhead (128 MiB VMEM).
        point_tile = 256 if (c_last >= 512 and "7" in _device_kind()) else 512

    if point_tile >= N:
        tn = N
    else:
        tn = max(128, (point_tile // 128) * 128)   # point axis = lane axis: x128
        if tn >= N:
            tn = N
    return tb, tn


def _estimate_vmem_bytes(tb, tn, conv_channels, flat_params, compute_dtype):
    csize = jnp.dtype(compute_dtype).itemsize
    c_max = max(conv_channels)
    params = sum(int(p.size) * p.dtype.itemsize for p in flat_params)
    x_tile = tb * 3 * tn * 4 * 2                      # double-buffered input blocks
    act = tb * tn * c_max * (4 + csize) * 2           # f32 activations + compute-dtype copies
    out = tb * 128 * 4 * 2
    scr = tb * conv_channels[-1] * 4
    return 2 * params + x_tile + act + out + scr


def _vmem_limit_for(est_bytes):
    kind = _device_kind()
    physical_cap = (48 << 20) if "7" in kind else (96 << 20)   # v7x: 64 MiB physical
    if est_bytes <= (12 << 20):
        return None                                            # default scoped limit is fine
    return int(min(physical_cap, max(32 << 20, 2 * est_bytes)))


# ----------------------------------------------------------------------------
# Forward wrapper
# ----------------------------------------------------------------------------
def stn3d_forward(x, raw_params, conv_channels, fc_channels, *,
                  batch_tile=None, point_tile=None, compute_dtype=None):
    """x: (B, N, 3) as in the PyTorch module; returns (B, 3, 3)."""
    B, N, _ = x.shape
    n_conv = len(conv_channels)
    n_fc = len(fc_channels)
    c_last = conv_channels[-1]

    if compute_dtype is None:
        # bf16 MXU inputs for real STN3d channel sizes; f32 for tiny/numerics-check.
        compute_dtype = jnp.bfloat16 if max(list(conv_channels) + list(fc_channels)) >= 128 \
            else jnp.float32

    flat = prepare_params(raw_params, compute_dtype)   # fold BN + pre-cast in the wrapper

    tb, tn = _choose_tiles(B, N, c_last, batch_tile, point_tile)
    b_pad = pl.cdiv(B, tb) * tb
    n_pad = pl.cdiv(N, tn) * tn

    # Point axis on lanes: (B, N, 3) -> (B, 3, N).
    xt = jnp.transpose(x.astype(jnp.float32), (0, 2, 1))
    if n_pad != N:
        # pad points by replicating the last point: does not change the max-pool.
        pad = jnp.broadcast_to(xt[:, :, -1:], (B, 3, n_pad - N))
        xt = jnp.concatenate([xt, pad], axis=2)
    if b_pad != B:
        # padded batch rows are computed and discarded after the kernel.
        xt = jnp.concatenate([xt, jnp.zeros((b_pad - B, 3, n_pad), xt.dtype)], axis=0)

    grid = (b_pad // tb, n_pad // tn)
    vmem_limit = _vmem_limit_for(
        _estimate_vmem_bytes(tb, tn, conv_channels, flat, compute_dtype))

    def run(single_buffer_params):
        def const_spec(shape):
            if single_buffer_params:
                # Constant index_map -> double buffering buys nothing; halve VMEM.
                return pl.BlockSpec(shape, lambda b, k: (0, 0),
                                    pipeline_mode=pl.Buffered(1))
            return pl.BlockSpec(shape, lambda b, k: (0, 0))

        in_specs = [pl.BlockSpec((tb, 3, tn), lambda b, k: (b, 0, k))]
        in_specs += [const_spec(prm.shape) for prm in flat]

        return pl.pallas_call(
            functools.partial(stn3d_kernel, n_conv, n_fc, compute_dtype),
            out_shape=jax.ShapeDtypeStruct((b_pad, 128), jnp.float32),
            grid=grid,
            in_specs=in_specs,
            out_specs=pl.BlockSpec((tb, 128), lambda b, k: (b, 0)),
            scratch_shapes=[pltpu.VMEM((tb, c_last), jnp.float32)],
            compiler_params=pltpu.CompilerParams(
                dimension_semantics=("parallel", "arbitrary"),
                vmem_limit_bytes=vmem_limit),
        )(xt, *flat)

    try:
        out = run(True)
    except Exception:
        # Fallback if this JAX build rejects pipeline_mode=pl.Buffered(1).
        out = run(False)

    return out[:B, :9].reshape(B, 3, 3)


# ----------------------------------------------------------------------------
# Pure-JAX reference (mirrors the PyTorch eval-mode forward, unfolded BN)
# ----------------------------------------------------------------------------
def stn3d_ref(x, raw):
    h = x                                                    # (B, N, 3)
    for (w, b, g, bt, m, v) in raw["conv"]:
        h = h @ w.T + b
        h = (h - m) * (g / jnp.sqrt(v + _BN_EPS)) + bt
        h = jnp.maximum(h, 0.0)
    hm = jnp.max(h, axis=1)                                  # (B, C_last)
    for (w, b, g, bt, m, v) in raw["fc"]:
        hm = hm @ w.T + b
        hm = (hm - m) * (g / jnp.sqrt(v + _BN_EPS)) + bt
        hm = jnp.maximum(hm, 0.0)
    w9, b9 = raw["final"]
    out = hm @ w9.T + b9 + jnp.eye(3, dtype=jnp.float32).reshape(1, 9)
    return out.reshape(-1, 3, 3)


# ----------------------------------------------------------------------------
if __name__ == "__main__":
    # cfg: conv_channels=[16, 32, 64], fc_channels=[32, 16] (small synthetic config)
    conv_channels = [16, 32, 64]
    fc_channels = [32, 16]
    B, N = 4, 256

    key = jax.random.PRNGKey(0)
    kx, kp = jax.random.split(key)
    x = jax.random.normal(kx, (B, N, 3), dtype=jnp.float32)
    raw = init_raw_params(kp, conv_channels, fc_channels)

    ref = stn3d_ref(x, raw)

    # 1) auto tiling (single grid step at this tiny size), f32 numerics.
    out = stn3d_forward(x, raw, conv_channels, fc_channels)
    out = jax.block_until_ready(out)
    assert out.shape == (B, 3, 3)
    assert jnp.allclose(out, ref, atol=1e-4, rtol=1e-4), "f32 auto path mismatch"

    # 2) chunked path (2 batch tiles x 2 point chunks): exercises the
    #    running-max accumulator + pl.when init/finalize.
    out_c = stn3d_forward(x, raw, conv_channels, fc_channels,
                          batch_tile=2, point_tile=128)
    out_c = jax.block_until_ready(out_c)
    assert jnp.allclose(out_c, ref, atol=1e-4, rtol=1e-4), "f32 chunked path mismatch"

    # 3) bf16 matmul-input path (default at real STN3d channel sizes).
    out_b = stn3d_forward(x, raw, conv_channels, fc_channels,
                          batch_tile=2, point_tile=128,
                          compute_dtype=jnp.bfloat16)
    out_b = jax.block_until_ready(out_b)
    max_abs_err = float(jnp.max(jnp.abs(out_b - ref)))
    assert max_abs_err < 3e-2, f"bf16 path max abs error too large: {max_abs_err}"

    print("KERNEL_OK")
</pallas_src>

<mosaic_0001>
module attributes {stable_mosaic.version = 11 : i64} {
  func.func @stn3d_kernel(%arg0: i32, %arg1: i32, %arg2: memref<4x3x256xf32, #tpu.memory_space<vmem>>, %arg3: memref<3x16xf32, #tpu.memory_space<vmem>>, %arg4: memref<1x16xf32, #tpu.memory_space<vmem>>, %arg5: memref<16x32xf32, #tpu.memory_space<vmem>>, %arg6: memref<1x32xf32, #tpu.memory_space<vmem>>, %arg7: memref<32x64xf32, #tpu.memory_space<vmem>>, %arg8: memref<1x64xf32, #tpu.memory_space<vmem>>, %arg9: memref<64x32xf32, #tpu.memory_space<vmem>>, %arg10: memref<1x32xf32, #tpu.memory_space<vmem>>, %arg11: memref<32x16xf32, #tpu.memory_space<vmem>>, %arg12: memref<1x16xf32, #tpu.memory_space<vmem>>, %arg13: memref<16x128xf32, #tpu.memory_space<vmem>>, %arg14: memref<1x128xf32, #tpu.memory_space<vmem>>, %arg15: memref<4x128xf32, #tpu.memory_space<vmem>>, %arg16: memref<4x64xf32, #tpu.memory_space<vmem>>) attributes {dimension_semantics = [#tpu.dimension_semantics<parallel>, #tpu.dimension_semantics<arbitrary>], iteration_bounds = array<i64: 1, 1>, scalar_prefetch = 0 : i64, scratch_operands = 1 : i64, tpu.core_type = #tpu.core_type<tc>, window_params = [{transform_indices = @transform_0, window_bounds = array<i64: 4, 3, 256>}, {pipeline_mode = #tpu.pipeline_mode<synchronous>, transform_indices = @transform_1, window_bounds = array<i64: 3, 16>}, {pipeline_mode = #tpu.pipeline_mode<synchronous>, transform_indices = @transform_2, window_bounds = array<i64: 1, 16>}, {pipeline_mode = #tpu.pipeline_mode<synchronous>, transform_indices = @transform_3, window_bounds = array<i64: 16, 32>}, {pipeline_mode = #tpu.pipeline_mode<synchronous>, transform_indices = @transform_4, window_bounds = array<i64: 1, 32>}, {pipeline_mode = #tpu.pipeline_mode<synchronous>, transform_indices = @transform_5, window_bounds = array<i64: 32, 64>}, {pipeline_mode = #tpu.pipeline_mode<synchronous>, transform_indices = @transform_6, window_bounds = array<i64: 1, 64>}, {pipeline_mode = #tpu.pipeline_mode<synchronous>, transform_indices = @transform_7, window_bounds = array<i64: 64, 32>}, {pipeline_mode = #tpu.pipeline_mode<synchronous>, transform_indices = @transform_8, window_bounds = array<i64: 1, 32>}, {pipeline_mode = #tpu.pipeline_mode<synchronous>, transform_indices = @transform_9, window_bounds = array<i64: 32, 16>}, {pipeline_mode = #tpu.pipeline_mode<synchronous>, transform_indices = @transform_10, window_bounds = array<i64: 1, 16>}, {pipeline_mode = #tpu.pipeline_mode<synchronous>, transform_indices = @transform_11, window_bounds = array<i64: 16, 128>}, {pipeline_mode = #tpu.pipeline_mode<synchronous>, transform_indices = @transform_12, window_bounds = array<i64: 1, 128>}, {transform_indices = @transform_13, window_bounds = array<i64: 4, 128>}]} {
    %c0 = arith.constant 0 : index
    %c0_0 = arith.constant 0 : index
    %c0_1 = arith.constant 0 : index
    %0 = vector.load %arg2[%c0, %c0_0, %c0_1] : memref<4x3x256xf32, #tpu.memory_space<vmem>>, vector<4x3x256xf32>
    %1 = tpu.transpose %0, [0, 2, 1] : vector<4x3x256xf32> -> vector<4x256x3xf32>
    %2 = vector.shape_cast %1 : vector<4x256x3xf32> to vector<1024x3xf32>
    %c0_2 = arith.constant 0 : index
    %c0_3 = arith.constant 0 : index
    %3 = vector.load %arg3[%c0_2, %c0_3] : memref<3x16xf32, #tpu.memory_space<vmem>>, vector<3x16xf32>
    %c0_4 = arith.constant 0 : index
    %c0_5 = arith.constant 0 : index
    %4 = vector.load %arg4[%c0_4, %c0_5] : memref<1x16xf32, #tpu.memory_space<vmem>>, vector<1x16xf32>
    %cst = arith.constant dense<0.000000e+00> : vector<1024x16xf32>
    %5 = tpu.matmul %2, %3, %cst {dimension_numbers = #tpu.dot_dimension_numbers<[1], [0], [0], [1], [0, 0, 1, 1], [], []>} : vector<1024x3xf32>, vector<3x16xf32>, vector<1024x16xf32> -> vector<1024x16xf32>
    %6 = vector.broadcast %4 : vector<1x16xf32> to vector<1024x16xf32>
    %7 = arith.addf %5, %6 : vector<1024x16xf32>
    %cst_6 = arith.constant 0.000000e+00 : f32
    %8 = vector.broadcast %cst_6 : f32 to vector<1024x16xf32>
    %9 = arith.maximumf %7, %8 : vector<1024x16xf32>
    %c0_7 = arith.constant 0 : index
    %c0_8 = arith.constant 0 : index
    %10 = vector.load %arg5[%c0_7, %c0_8] : memref<16x32xf32, #tpu.memory_space<vmem>>, vector<16x32xf32>
    %c0_9 = arith.constant 0 : index
    %c0_10 = arith.constant 0 : index
    %11 = vector.load %arg6[%c0_9, %c0_10] : memref<1x32xf32, #tpu.memory_space<vmem>>, vector<1x32xf32>
    %cst_11 = arith.constant dense<0.000000e+00> : vector<1024x32xf32>
    %12 = tpu.matmul %9, %10, %cst_11 {dimension_numbers = #tpu.dot_dimension_numbers<[1], [0], [0], [1], [0, 0, 1, 1], [], []>} : vector<1024x16xf32>, vector<16x32xf32>, vector<1024x32xf32> -> vector<1024x32xf32>
    %13 = vector.broadcast %11 : vector<1x32xf32> to vector<1024x32xf32>
    %14 = arith.addf %12, %13 : vector<1024x32xf32>
    %cst_12 = arith.constant 0.000000e+00 : f32
    %15 = vector.broadcast %cst_12 : f32 to vector<1024x32xf32>
    %16 = arith.maximumf %14, %15 : vector<1024x32xf32>
    %c0_13 = arith.constant 0 : index
    %c0_14 = arith.constant 0 : index
    %17 = vector.load %arg7[%c0_13, %c0_14] : memref<32x64xf32, #tpu.memory_space<vmem>>, vector<32x64xf32>
    %c0_15 = arith.constant 0 : index
    %c0_16 = arith.constant 0 : index
    %18 = vector.load %arg8[%c0_15, %c0_16] : memref<1x64xf32, #tpu.memory_space<vmem>>, vector<1x64xf32>
    %cst_17 = arith.constant dense<0.000000e+00> : vector<1024x64xf32>
    %19 = tpu.matmul %16, %17, %cst_17 {dimension_numbers = #tpu.dot_dimension_numbers<[1], [0], [0], [1], [0, 0, 1, 1], [], []>} : vector<1024x32xf32>, vector<32x64xf32>, vector<1024x64xf32> -> vector<1024x64xf32>
    %20 = vector.broadcast %18 : vector<1x64xf32> to vector<1024x64xf32>
    %21 = arith.addf %19, %20 : vector<1024x64xf32>
    %cst_18 = arith.constant 0.000000e+00 : f32
    %22 = vector.broadcast %cst_18 : f32 to vector<1024x64xf32>
    %23 = arith.maximumf %21, %22 : vector<1024x64xf32>
    %24 = vector.shape_cast %23 : vector<1024x64xf32> to vector<4x256x64xf32>
    %cst_19 = arith.constant dense<0xFF800000> : vector<4x64xf32>
    %25 = vector.multi_reduction <maximumf>, %24, %cst_19 [1] : vector<4x256x64xf32> to vector<4x64xf32>
    %c0_i32 = arith.constant 0 : i32
    %26 = arith.cmpi eq, %arg1, %c0_i32 : i32
    %27 = arith.extui %26 : i1 to i32
    %c0_i32_20 = arith.constant 0 : i32
    %28 = arith.cmpi ne, %27, %c0_i32_20 : i32
    scf.if %28 {
      %cst_27 = arith.constant 0xFF800000 : f32
      %35 = vector.broadcast %cst_27 : f32 to vector<4x64xf32>
      %c0_28 = arith.constant 0 : index
      %c0_29 = arith.constant 0 : index
      %36 = vector.load %arg16[%c0_28, %c0_29] : memref<4x64xf32, #tpu.memory_space<vmem>>, vector<4x64xf32>
      tpu.vector_store %arg16[%c0_28, %c0_29], %35 {strides = array<i32>} : memref<4x64xf32, #tpu.memory_space<vmem>>, vector<4x64xf32>,
    } else {
    }
    %c0_21 = arith.constant 0 : index
    %c0_22 = arith.constant 0 : index
    %29 = vector.load %arg16[%c0_21, %c0_22] : memref<4x64xf32, #tpu.memory_space<vmem>>, vector<4x64xf32>
    %30 = arith.maximumf %29, %25 : vector<4x64xf32>
    %c0_23 = arith.constant 0 : index
    %c0_24 = arith.constant 0 : index
    %31 = vector.load %arg16[%c0_23, %c0_24] : memref<4x64xf32, #tpu.memory_space<vmem>>, vector<4x64xf32>
    tpu.vector_store %arg16[%c0_23, %c0_24], %30 {strides = array<i32>} : memref<4x64xf32, #tpu.memory_space<vmem>>, vector<4x64xf32>,
    %c0_i32_25 = arith.constant 0 : i32
    %32 = arith.cmpi eq, %arg1, %c0_i32_25 : i32
    %33 = arith.extui %32 : i1 to i32
    %c0_i32_26 = arith.constant 0 : i32
    %34 = arith.cmpi ne, %33, %c0_i32_26 : i32
    scf.if %34 {
      %c0_27 = arith.constant 0 : index
      %c0_28 = arith.constant 0 : index
      %35 = vector.load %arg16[%c0_27, %c0_28] : memref<4x64xf32, #tpu.memory_space<vmem>>, vector<4x64xf32>
      %c0_29 = arith.constant 0 : index
      %c0_30 = arith.constant 0 : index
      %36 = vector.load %arg9[%c0_29, %c0_30] : memref<64x32xf32, #tpu.memory_space<vmem>>, vector<64x32xf32>
      %c0_31 = arith.constant 0 : index
      %c0_32 = arith.constant 0 : index
      %37 = vector.load %arg10[%c0_31, %c0_32] : memref<1x32xf32, #tpu.memory_space<vmem>>, vector<1x32xf32>
      %cst_33 = arith.constant dense<0.000000e+00> : vector<4x32xf32>
      %38 = tpu.matmul %35, %36, %cst_33 {dimension_numbers = #tpu.dot_dimension_numbers<[1], [0], [0], [1], [0, 0, 1, 1], [], []>} : vector<4x64xf32>, vector<64x32xf32>, vector<4x32xf32> -> vector<4x32xf32>
      %39 = vector.broadcast %37 : vector<1x32xf32> to vector<4x32xf32>
      %40 = arith.addf %38, %39 : vector<4x32xf32>
      %cst_34 = arith.constant 0.000000e+00 : f32
      %41 = vector.broadcast %cst_34 : f32 to vector<4x32xf32>
      %42 = arith.maximumf %40, %41 : vector<4x32xf32>
      %c0_35 = arith.constant 0 : index
      %c0_36 = arith.constant 0 : index
      %43 = vector.load %arg11[%c0_35, %c0_36] : memref<32x16xf32, #tpu.memory_space<vmem>>, vector<32x16xf32>
      %c0_37 = arith.constant 0 : index
      %c0_38 = arith.constant 0 : index
      %44 = vector.load %arg12[%c0_37, %c0_38] : memref<1x16xf32, #tpu.memory_space<vmem>>, vector<1x16xf32>
      %cst_39 = arith.constant dense<0.000000e+00> : vector<4x16xf32>
      %45 = tpu.matmul %42, %43, %cst_39 {dimension_numbers = #tpu.dot_dimension_numbers<[1], [0], [0], [1], [0, 0, 1, 1], [], []>} : vector<4x32xf32>, vector<32x16xf32>, vector<4x16xf32> -> vector<4x16xf32>
      %46 = vector.broadcast %44 : vector<1x16xf32> to vector<4x16xf32>
      %47 = arith.addf %45, %46 : vector<4x16xf32>
      %cst_40 = arith.constant 0.000000e+00 : f32
      %48 = vector.broadcast %cst_40 : f32 to vector<4x16xf32>
      %49 = arith.maximumf %47, %48 : vector<4x16xf32>
      %c0_41 = arith.constant 0 : index
      %c0_42 = arith.constant 0 : index
      %50 = vector.load %arg13[%c0_41, %c0_42] : memref<16x128xf32, #tpu.memory_space<vmem>>, vector<16x128xf32>
      %c0_43 = arith.constant 0 : index
      %c0_44 = arith.constant 0 : index
      %51 = vector.load %arg14[%c0_43, %c0_44] : memref<1x128xf32, #tpu.memory_space<vmem>>, vector<1x128xf32>
      %cst_45 = arith.constant dense<0.000000e+00> : vector<4x128xf32>
      %52 = tpu.matmul %49, %50, %cst_45 {dimension_numbers = #tpu.dot_dimension_numbers<[1], [0], [0], [1], [0, 0, 1, 1], [], []>} : vector<4x16xf32>, vector<16x128xf32>, vector<4x128xf32> -> vector<4x128xf32>
      %53 = vector.broadcast %51 : vector<1x128xf32> to vector<4x128xf32>
      %54 = arith.addf %52, %53 : vector<4x128xf32>
      %c0_46 = arith.constant 0 : index
      %c0_47 = arith.constant 0 : index
      %55 = vector.load %arg15[%c0_46, %c0_47] : memref<4x128xf32, #tpu.memory_space<vmem>>, vector<4x128xf32>
      tpu.vector_store %arg15[%c0_46, %c0_47], %54 {strides = array<i32>} : memref<4x128xf32, #tpu.memory_space<vmem>>, vector<4x128xf32>,
    } else {
    }
    return
  }
  func.func @transform_0(%arg0: i32, %arg1: i32) -> (i32, i32, i32) {
    %c0_i32 = arith.constant 0 : i32
    %c0_i32_0 = arith.constant 0 : i32
    return %arg0, %c0_i32, %arg1 : i32, i32, i32
  }
  func.func @transform_1(%arg0: i32, %arg1: i32) -> (i32, i32) {
    %c0_i32 = arith.constant 0 : i32
    %c0_i32_0 = arith.constant 0 : i32
    %c0_i32_1 = arith.constant 0 : i32
    return %c0_i32, %c0_i32_0 : i32, i32
  }
  func.func @transform_2(%arg0: i32, %arg1: i32) -> (i32, i32) {
    %c0_i32 = arith.constant 0 : i32
    %c0_i32_0 = arith.constant 0 : i32
    %c0_i32_1 = arith.constant 0 : i32
    return %c0_i32, %c0_i32_0 : i32, i32
  }
  func.func @transform_3(%arg0: i32, %arg1: i32) -> (i32, i32) {
    %c0_i32 = arith.constant 0 : i32
    %c0_i32_0 = arith.constant 0 : i32
    %c0_i32_1 = arith.constant 0 : i32
    return %c0_i32, %c0_i32_0 : i32, i32
  }
  func.func @transform_4(%arg0: i32, %arg1: i32) -> (i32, i32) {
    %c0_i32 = arith.constant 0 : i32
    %c0_i32_0 = arith.constant 0 : i32
    %c0_i32_1 = arith.constant 0 : i32
    return %c0_i32, %c0_i32_0 : i32, i32
  }
  func.func @transform_5(%arg0: i32, %arg1: i32) -> (i32, i32) {
    %c0_i32 = arith.constant 0 : i32
    %c0_i32_0 = arith.constant 0 : i32
    %c0_i32_1 = arith.constant 0 : i32
    return %c0_i32, %c0_i32_0 : i32, i32
  }
  func.func @transform_6(%arg0: i32, %arg1: i32) -> (i32, i32) {
    %c0_i32 = arith.constant 0 : i32
    %c0_i32_0 = arith.constant 0 : i32
    %c0_i32_1 = arith.constant 0 : i32
    return %c0_i32, %c0_i32_0 : i32, i32
  }
  func.func @transform_7(%arg0: i32, %arg1: i32) -> (i32, i32) {
    %c0_i32 = arith.constant 0 : i32
    %c0_i32_0 = arith.constant 0 : i32
    %c0_i32_1 = arith.constant 0 : i32
    return %c0_i32, %c0_i32_0 : i32, i32
  }
  func.func @transform_8(%arg0: i32, %arg1: i32) -> (i32, i32) {
    %c0_i32 = arith.constant 0 : i32
    %c0_i32_0 = arith.constant 0 : i32
    %c0_i32_1 = arith.constant 0 : i32
    return %c0_i32, %c0_i32_0 : i32, i32
  }
  func.func @transform_9(%arg0: i32, %arg1: i32) -> (i32, i32) {
    %c0_i32 = arith.constant 0 : i32
    %c0_i32_0 = arith.constant 0 : i32
    %c0_i32_1 = arith.constant 0 : i32
    return %c0_i32, %c0_i32_0 : i32, i32
  }
  func.func @transform_10(%arg0: i32, %arg1: i32) -> (i32, i32) {
    %c0_i32 = arith.constant 0 : i32
    %c0_i32_0 = arith.constant 0 : i32
    %c0_i32_1 = arith.constant 0 : i32
    return %c0_i32, %c0_i32_0 : i32, i32
  }
  func.func @transform_11(%arg0: i32, %arg1: i32) -> (i32, i32) {
    %c0_i32 = arith.constant 0 : i32
    %c0_i32_0 = arith.constant 0 : i32
    %c0_i32_1 = arith.constant 0 : i32
    return %c0_i32, %c0_i32_0 : i32, i32
  }
  func.func @transform_12(%arg0: i32, %arg1: i32) -> (i32, i32) {
    %c0_i32 = arith.constant 0 : i32
    %c0_i32_0 = arith.constant 0 : i32
    %c0_i32_1 = arith.constant 0 : i32
    return %c0_i32, %c0_i32_0 : i32, i32
  }
  func.func @transform_13(%arg0: i32, %arg1: i32) -> (i32, i32) {
    %c0_i32 = arith.constant 0 : i32
    %c0_i32_0 = arith.constant 0 : i32
    return %arg0, %c0_i32 : i32, i32
  }
}

module attributes {stable_mosaic.version = 11 : i64} {
  func.func @stn3d_kernel(%arg0: i32, %arg1: i32, %arg2: memref<4x3x256xf32, #tpu.memory_space<vmem>>, %arg3: memref<3x16xf32, #tpu.memory_space<vmem>>, %arg4: memref<1x16xf32, #tpu.memory_space<vmem>>, %arg5: memref<16x32xf32, #tpu.memory_space<vmem>>, %arg6: memref<1x32xf32, #tpu.memory_space<vmem>>, %arg7: memref<32x64xf32, #tpu.memory_space<vmem>>, %arg8: memref<1x64xf32, #tpu.memory_space<vmem>>, %arg9: memref<64x32xf32, #tpu.memory_space<vmem>>, %arg10: memref<1x32xf32, #tpu.memory_space<vmem>>, %arg11: memref<32x16xf32, #tpu.memory_space<vmem>>, %arg12: memref<1x16xf32, #tpu.memory_space<vmem>>, %arg13: memref<16x128xf32, #tpu.memory_space<vmem>>, %arg14: memref<1x128xf32, #tpu.memory_space<vmem>>, %arg15: memref<4x128xf32, #tpu.memory_space<vmem>>, %arg16: memref<4x64xf32, #tpu.memory_space<vmem>>) attributes {dimension_semantics = [#tpu.dimension_semantics<parallel>, #tpu.dimension_semantics<arbitrary>], iteration_bounds = array<i64: 1, 1>, scalar_prefetch = 0 : i64, scratch_operands = 1 : i64, tpu.core_type = #tpu.core_type<tc>, window_params = [{transform_indices = @transform_0, window_bounds = array<i64: 4, 3, 256>}, {pipeline_mode = #tpu.pipeline_mode<synchronous>, transform_indices = @transform_1, window_bounds = array<i64: 3, 16>}, {pipeline_mode = #tpu.pipeline_mode<synchronous>, transform_indices = @transform_2, window_bounds = array<i64: 1, 16>}, {pipeline_mode = #tpu.pipeline_mode<synchronous>, transform_indices = @transform_3, window_bounds = array<i64: 16, 32>}, {pipeline_mode = #tpu.pipeline_mode<synchronous>, transform_indices = @transform_4, window_bounds = array<i64: 1, 32>}, {pipeline_mode = #tpu.pipeline_mode<synchronous>, transform_indices = @transform_5, window_bounds = array<i64: 32, 64>}, {pipeline_mode = #tpu.pipeline_mode<synchronous>, transform_indices = @transform_6, window_bounds = array<i64: 1, 64>}, {pipeline_mode = #tpu.pipeline_mode<synchronous>, transform_indices = @transform_7, window_bounds = array<i64: 64, 32>}, {pipeline_mode = #tpu.pipeline_mode<synchronous>, transform_indices = @transform_8, window_bounds = array<i64: 1, 32>}, {pipeline_mode = #tpu.pipeline_mode<synchronous>, transform_indices = @transform_9, window_bounds = array<i64: 32, 16>}, {pipeline_mode = #tpu.pipeline_mode<synchronous>, transform_indices = @transform_10, window_bounds = array<i64: 1, 16>}, {pipeline_mode = #tpu.pipeline_mode<synchronous>, transform_indices = @transform_11, window_bounds = array<i64: 16, 128>}, {pipeline_mode = #tpu.pipeline_mode<synchronous>, transform_indices = @transform_12, window_bounds = array<i64: 1, 128>}, {transform_indices = @transform_13, window_bounds = array<i64: 4, 128>}]} {
    %c0 = arith.constant 0 : index
    %c0_0 = arith.constant 0 : index
    %c0_1 = arith.constant 0 : index
    %0 = vector.load %arg2[%c0, %c0_0, %c0_1] : memref<4x3x256xf32, #tpu.memory_space<vmem>>, vector<4x3x256xf32>
    %1 = tpu.transpose %0, [0, 2, 1] : vector<4x3x256xf32> -> vector<4x256x3xf32>
    %2 = vector.shape_cast %1 : vector<4x256x3xf32> to vector<1024x3xf32>
    %c0_2 = arith.constant 0 : index
    %c0_3 = arith.constant 0 : index
    %3 = vector.load %arg3[%c0_2, %c0_3] : memref<3x16xf32, #tpu.memory_space<vmem>>, vector<3x16xf32>
    %c0_4 = arith.constant 0 : index
    %c0_5 = arith.constant 0 : index
    %4 = vector.load %arg4[%c0_4, %c0_5] : memref<1x16xf32, #tpu.memory_space<vmem>>, vector<1x16xf32>
    %cst = arith.constant dense<0.000000e+00> : vector<1024x16xf32>
    %5 = tpu.matmul %2, %3, %cst {dimension_numbers = #tpu.dot_dimension_numbers<[1], [0], [0], [1], [0, 0, 1, 1], [], []>} : vector<1024x3xf32>, vector<3x16xf32>, vector<1024x16xf32> -> vector<1024x16xf32>
    %6 = vector.broadcast %4 : vector<1x16xf32> to vector<1024x16xf32>
    %7 = arith.addf %5, %6 : vector<1024x16xf32>
    %cst_6 = arith.constant 0.000000e+00 : f32
    %8 = vector.broadcast %cst_6 : f32 to vector<1024x16xf32>
    %9 = arith.maximumf %7, %8 : vector<1024x16xf32>
    %c0_7 = arith.constant 0 : index
    %c0_8 = arith.constant 0 : index
    %10 = vector.load %arg5[%c0_7, %c0_8] : memref<16x32xf32, #tpu.memory_space<vmem>>, vector<16x32xf32>
    %c0_9 = arith.constant 0 : index
    %c0_10 = arith.constant 0 : index
    %11 = vector.load %arg6[%c0_9, %c0_10] : memref<1x32xf32, #tpu.memory_space<vmem>>, vector<1x32xf32>
    %cst_11 = arith.constant dense<0.000000e+00> : vector<1024x32xf32>
    %12 = tpu.matmul %9, %10, %cst_11 {dimension_numbers = #tpu.dot_dimension_numbers<[1], [0], [0], [1], [0, 0, 1, 1], [], []>} : vector<1024x16xf32>, vector<16x32xf32>, vector<1024x32xf32> -> vector<1024x32xf32>
    %13 = vector.broadcast %11 : vector<1x32xf32> to vector<1024x32xf32>
    %14 = arith.addf %12, %13 : vector<1024x32xf32>
    %cst_12 = arith.constant 0.000000e+00 : f32
    %15 = vector.broadcast %cst_12 : f32 to vector<1024x32xf32>
    %16 = arith.maximumf %14, %15 : vector<1024x32xf32>
    %c0_13 = arith.constant 0 : index
    %c0_14 = arith.constant 0 : index
    %17 = vector.load %arg7[%c0_13, %c0_14] : memref<32x64xf32, #tpu.memory_space<vmem>>, vector<32x64xf32>
    %c0_15 = arith.constant 0 : index
    %c0_16 = arith.constant 0 : index
    %18 = vector.load %arg8[%c0_15, %c0_16] : memref<1x64xf32, #tpu.memory_space<vmem>>, vector<1x64xf32>
    %cst_17 = arith.constant dense<0.000000e+00> : vector<1024x64xf32>
    %19 = tpu.matmul %16, %17, %cst_17 {dimension_numbers = #tpu.dot_dimension_numbers<[1], [0], [0], [1], [0, 0, 1, 1], [], []>} : vector<1024x32xf32>, vector<32x64xf32>, vector<1024x64xf32> -> vector<1024x64xf32>
    %20 = vector.broadcast %18 : vector<1x64xf32> to vector<1024x64xf32>
    %21 = arith.addf %19, %20 : vector<1024x64xf32>
    %cst_18 = arith.constant 0.000000e+00 : f32
    %22 = vector.broadcast %cst_18 : f32 to vector<1024x64xf32>
    %23 = arith.maximumf %21, %22 : vector<1024x64xf32>
    %24 = vector.shape_cast %23 : vector<1024x64xf32> to vector<4x256x64xf32>
    %cst_19 = arith.constant dense<0xFF800000> : vector<4x64xf32>
    %25 = vector.multi_reduction <maximumf>, %24, %cst_19 [1] : vector<4x256x64xf32> to vector<4x64xf32>
    %c0_i32 = arith.constant 0 : i32
    %26 = arith.cmpi eq, %arg1, %c0_i32 : i32
    %27 = arith.extui %26 : i1 to i32
    %c0_i32_20 = arith.constant 0 : i32
    %28 = arith.cmpi ne, %27, %c0_i32_20 : i32
    scf.if %28 {
      %cst_27 = arith.constant 0xFF800000 : f32
      %35 = vector.broadcast %cst_27 : f32 to vector<4x64xf32>
      %c0_28 = arith.constant 0 : index
      %c0_29 = arith.constant 0 : index
      %36 = vector.load %arg16[%c0_28, %c0_29] : memref<4x64xf32, #tpu.memory_space<vmem>>, vector<4x64xf32>
      tpu.vector_store %arg16[%c0_28, %c0_29], %35 {strides = array<i32>} : memref<4x64xf32, #tpu.memory_space<vmem>>, vector<4x64xf32>,
    } else {
    }
    %c0_21 = arith.constant 0 : index
    %c0_22 = arith.constant 0 : index
    %29 = vector.load %arg16[%c0_21, %c0_22] : memref<4x64xf32, #tpu.memory_space<vmem>>, vector<4x64xf32>
    %30 = arith.maximumf %29, %25 : vector<4x64xf32>
    %c0_23 = arith.constant 0 : index
    %c0_24 = arith.constant 0 : index
    %31 = vector.load %arg16[%c0_23, %c0_24] : memref<4x64xf32, #tpu.memory_space<vmem>>, vector<4x64xf32>
    tpu.vector_store %arg16[%c0_23, %c0_24], %30 {strides = array<i32>} : memref<4x64xf32, #tpu.memory_space<vmem>>, vector<4x64xf32>,
    %c0_i32_25 = arith.constant 0 : i32
    %32 = arith.cmpi eq, %arg1, %c0_i32_25 : i32
    %33 = arith.extui %32 : i1 to i32
    %c0_i32_26 = arith.constant 0 : i32
    %34 = arith.cmpi ne, %33, %c0_i32_26 : i32
    scf.if %34 {
      %c0_27 = arith.constant 0 : index
      %c0_28 = arith.constant 0 : index
      %35 = vector.load %arg16[%c0_27, %c0_28] : memref<4x64xf32, #tpu.memory_space<vmem>>, vector<4x64xf32>
      %c0_29 = arith.constant 0 : index
      %c0_30 = arith.constant 0 : index
      %36 = vector.load %arg9[%c0_29, %c0_30] : memref<64x32xf32, #tpu.memory_space<vmem>>, vector<64x32xf32>
      %c0_31 = arith.constant 0 : index
      %c0_32 = arith.constant 0 : index
      %37 = vector.load %arg10[%c0_31, %c0_32] : memref<1x32xf32, #tpu.memory_space<vmem>>, vector<1x32xf32>
      %cst_33 = arith.constant dense<0.000000e+00> : vector<4x32xf32>
      %38 = tpu.matmul %35, %36, %cst_33 {dimension_numbers = #tpu.dot_dimension_numbers<[1], [0], [0], [1], [0, 0, 1, 1], [], []>} : vector<4x64xf32>, vector<64x32xf32>, vector<4x32xf32> -> vector<4x32xf32>
      %39 = vector.broadcast %37 : vector<1x32xf32> to vector<4x32xf32>
      %40 = arith.addf %38, %39 : vector<4x32xf32>
      %cst_34 = arith.constant 0.000000e+00 : f32
      %41 = vector.broadcast %cst_34 : f32 to vector<4x32xf32>
      %42 = arith.maximumf %40, %41 : vector<4x32xf32>
      %c0_35 = arith.constant 0 : index
      %c0_36 = arith.constant 0 : index
      %43 = vector.load %arg11[%c0_35, %c0_36] : memref<32x16xf32, #tpu.memory_space<vmem>>, vector<32x16xf32>
      %c0_37 = arith.constant 0 : index
      %c0_38 = arith.constant 0 : index
      %44 = vector.load %arg12[%c0_37, %c0_38] : memref<1x16xf32, #tpu.memory_space<vmem>>, vector<1x16xf32>
      %cst_39 = arith.constant dense<0.000000e+00> : vector<4x16xf32>
      %45 = tpu.matmul %42, %43, %cst_39 {dimension_numbers = #tpu.dot_dimension_numbers<[1], [0], [0], [1], [0, 0, 1, 1], [], []>} : vector<4x32xf32>, vector<32x16xf32>, vector<4x16xf32> -> vector<4x16xf32>
      %46 = vector.broadcast %44 : vector<1x16xf32> to vector<4x16xf32>
      %47 = arith.addf %45, %46 : vector<4x16xf32>
      %cst_40 = arith.constant 0.000000e+00 : f32
      %48 = vector.broadcast %cst_40 : f32 to vector<4x16xf32>
      %49 = arith.maximumf %47, %48 : vector<4x16xf32>
      %c0_41 = arith.constant 0 : index
      %c0_42 = arith.constant 0 : index
      %50 = vector.load %arg13[%c0_41, %c0_42] : memref<16x128xf32, #tpu.memory_space<vmem>>, vector<16x128xf32>
      %c0_43 = arith.constant 0 : index
      %c0_44 = arith.constant 0 : index
      %51 = vector.load %arg14[%c0_43, %c0_44] : memref<1x128xf32, #tpu.memory_space<vmem>>, vector<1x128xf32>
      %cst_45 = arith.constant dense<0.000000e+00> : vector<4x128xf32>
      %52 = tpu.matmul %49, %50, %cst_45 {dimension_numbers = #tpu.dot_dimension_numbers<[1], [0], [0], [1], [0, 0, 1, 1], [], []>} : vector<4x16xf32>, vector<16x128xf32>, vector<4x128xf32> -> vector<4x128xf32>
      %53 = vector.broadcast %51 : vector<1x128xf32> to vector<4x128xf32>
      %54 = arith.addf %52, %53 : vector<4x128xf32>
      %c0_46 = arith.constant 0 : index
      %c0_47 = arith.constant 0 : index
      %55 = vector.load %arg15[%c0_46, %c0_47] : memref<4x128xf32, #tpu.memory_space<vmem>>, vector<4x128xf32>
      tpu.vector_store %arg15[%c0_46, %c0_47], %54 {strides = array<i32>} : memref<4x128xf32, #tpu.memory_space<vmem>>, vector<4x128xf32>,
    } else {
    }
    return
  }
  func.func @transform_0(%arg0: i32, %arg1: i32) -> (i32, i32, i32) {
    %c0_i32 = arith.constant 0 : i32
    %c0_i32_0 = arith.constant 0 : i32
    return %arg0, %c0_i32, %arg1 : i32, i32, i32
  }
  func.func @transform_1(%arg0: i32, %arg1: i32) -> (i32, i32) {
    %c0_i32 = arith.constant 0 : i32
    %c0_i32_0 = arith.constant 0 : i32
    %c0_i32_1 = arith.constant 0 : i32
    return %c0_i32, %c0_i32_0 : i32, i32
  }
  func.func @transform_2(%arg0: i32, %arg1: i32) -> (i32, i32) {
    %c0_i32 = arith.constant 0 : i32
    %c0_i32_0 = arith.constant 0 : i32
    %c0_i32_1 = arith.constant 0 : i32
    return %c0_i32, %c0_i32_0 : i32, i32
  }
  func.func @transform_3(%arg0: i32, %arg1: i32) -> (i32, i32) {
    %c0_i32 = arith.constant 0 : i32
    %c0_i32_0 = arith.constant 0 : i32
    %c0_i32_1 = arith.constant 0 : i32
    return %c0_i32, %c0_i32_0 : i32, i32
  }
  func.func @transform_4(%arg0: i32, %arg1: i32) -> (i32, i32) {
    %c0_i32 = arith.constant 0 : i32
    %c0_i32_0 = arith.constant 0 : i32
    %c0_i32_1 = arith.constant 0 : i32
    return %c0_i32, %c0_i32_0 : i32, i32
  }
  func.func @transform_5(%arg0: i32, %arg1: i32) -> (i32, i32) {
    %c0_i32 = arith.constant 0 : i32
    %c0_i32_0 = arith.constant 0 : i32
    %c0_i32_1 = arith.constant 0 : i32
    return %c0_i32, %c0_i32_0 : i32, i32
  }
  func.func @transform_6(%arg0: i32, %arg1: i32) -> (i32, i32) {
    %c0_i32 = arith.constant 0 : i32
    %c0_i32_0 = arith.constant 0 : i32
    %c0_i32_1 = arith.constant 0 : i32
    return %c0_i32, %c0_i32_0 : i32, i32
  }
  func.func @transform_7(%arg0: i32, %arg1: i32) -> (i32, i32) {
    %c0_i32 = arith.constant 0 : i32
    %c0_i32_0 = arith.constant 0 : i32
    %c0_i32_1 = arith.constant 0 : i32
    return %c0_i32, %c0_i32_0 : i32, i32
  }
  func.func @transform_8(%arg0: i32, %arg1: i32) -> (i32, i32) {
    %c0_i32 = arith.constant 0 : i32
    %c0_i32_0 = arith.constant 0 : i32
    %c0_i32_1 = arith.constant 0 : i32
    return %c0_i32, %c0_i32_0 : i32, i32
  }
  func.func @transform_9(%arg0: i32, %arg1: i32) -> (i32, i32) {
    %c0_i32 = arith.constant 0 : i32
    %c0_i32_0 = arith.constant 0 : i32
    %c0_i32_1 = arith.constant 0 : i32
    return %c0_i32, %c0_i32_0 : i32, i32
  }
  func.func @transform_10(%arg0: i32, %arg1: i32) -> (i32, i32) {
    %c0_i32 = arith.constant 0 : i32
    %c0_i32_0 = arith.constant 0 : i32
    %c0_i32_1 = arith.constant 0 : i32
    return %c0_i32, %c0_i32_0 : i32, i32
  }
  func.func @transform_11(%arg0: i32, %arg1: i32) -> (i32, i32) {
    %c0_i32 = arith.constant 0 : i32
    %c0_i32_0 = arith.constant 0 : i32
    %c0_i32_1 = arith.constant 0 : i32
    return %c0_i32, %c0_i32_0 : i32, i32
  }
  func.func @transform_12(%arg0: i32, %arg1: i32) -> (i32, i32) {
    %c0_i32 = arith.constant 0 : i32
    %c0_i32_0 = arith.constant 0 : i32
    %c0_i32_1 = arith.constant 0 : i32
    return %c0_i32, %c0_i32_0 : i32, i32
  }
  func.func @transform_13(%arg0: i32, %arg1: i32) -> (i32, i32) {
    %c0_i32 = arith.constant 0 : i32
    %c0_i32_0 = arith.constant 0 : i32
    return %arg0, %c0_i32 : i32, i32
  }
}

</mosaic_0001>

<llo_original>
// kernel: tpu_custom_call.1
$region0: #{tpu_custom_call.1}
  #allocation0 [shape = 'u32[]', space=smem, size = 0x4, offset = 0x4, fixed_abs, tag = 'smem constant byte address 0x4 - core index']
  #allocation1 [shape = 'u32[144,128]{1,0:T(1,128)}', space=vmem, size = 0x12000, scoped, tag = 'internal scratch']
  #allocation2 [shape = 'f32[4,64]{1,0:T(4,128)}', space=vmem, size = 0x800, scoped, tag = 'scratch operand']
  %s0 = inlined_call_operand.vmem [shape: f32[4,3,256], index: 0, kind: input, shape index: {}]
  %s1 = inlined_call_operand.vmem [shape: f32[3,16], index: 1, kind: input, shape index: {}]
  %s2 = inlined_call_operand.vmem [shape: f32[1,16], index: 2, kind: input, shape index: {}]
  %s3 = inlined_call_operand.vmem [shape: f32[16,32], index: 3, kind: input, shape index: {}]
  %s4 = inlined_call_operand.vmem [shape: f32[1,32], index: 4, kind: input, shape index: {}]
  %s5 = inlined_call_operand.vmem [shape: f32[32,64], index: 5, kind: input, shape index: {}]
  %s6 = inlined_call_operand.vmem [shape: f32[1,64], index: 6, kind: input, shape index: {}]
  %s7 = inlined_call_operand.vmem [shape: f32[64,32], index: 7, kind: input, shape index: {}]
  %s8 = inlined_call_operand.vmem [shape: f32[1,32], index: 8, kind: input, shape index: {}]
  %s9 = inlined_call_operand.vmem [shape: f32[32,16], index: 9, kind: input, shape index: {}]
  %s10 = inlined_call_operand.vmem [shape: f32[1,16], index: 10, kind: input, shape index: {}]
  %s11 = inlined_call_operand.vmem [shape: f32[16,128], index: 11, kind: input, shape index: {}]
  %s12 = inlined_call_operand.vmem [shape: f32[1,128], index: 12, kind: input, shape index: {}]
  %s13 = inlined_call_operand.hbm [shape: f32[4,128], index: 13, kind: output, shape index: {}]
  %s14 = sld [smem:[#allocation0]]
  $region70: #{tpu_custom_call.1} parent=0
    _
  %s16 = ssub.s32 1, %s14
  %s17 = scalar_select 0, %s16, %s14
  $region1: #{tpu_custom_call.1} parent=0
    #allocation3 [shape = 'u8[2048]{0}', space=vmem, size = 0x800, scoped, tag = 'output window, operand 0, single buffered']
    #allocation4 [shape = 's32[1]{0}', space=sflag, size = 0x4, scoped, tag = 'scoped memory for tpu_custom_call.1']
    %18 = vsyncpa [#allocation4], 0
    // Predicated region
    $region2: #{tpu_custom_call.1} parent=1 // pred_check
      _
    $region3: #{tpu_custom_call.1} parent=1 // pred_check_branch
      %20 = sbr.rel (0) target = $region5
    $region4: #{tpu_custom_call.1} parent=1 // pred_region
      _
    $region5: #{tpu_custom_call.1} parent=1 // pred_fallthru
      _
    // Predicated region
    $region6: #{tpu_custom_call.1} parent=1 // pred_check
      _
    $region7: #{tpu_custom_call.1} parent=1 // pred_check_branch
      %22 = sbr.rel (0) target = $region9
    $region8: #{tpu_custom_call.1} parent=1 // pred_region
      _
    $region9: #{tpu_custom_call.1} parent=1 // pred_fallthru
      _
    // Predicated region
    $region10: #{tpu_custom_call.1} parent=1 // pred_check
      _
    $region11: #{tpu_custom_call.1} parent=1 // pred_check_branch
      %24 = sbr.rel (0) target = $region13
    $region12: #{tpu_custom_call.1} parent=1 // pred_region
      _
    $region13: #{tpu_custom_call.1} parent=1 // pred_fallthru
      _
    // Predicated region
    $region14: #{tpu_custom_call.1} parent=1 // pred_check
      _
    $region15: #{tpu_custom_call.1} parent=1 // pred_check_branch
      %26 = sbr.rel (0) target = $region17
    $region16: #{tpu_custom_call.1} parent=1 // pred_region
      _
    $region17: #{tpu_custom_call.1} parent=1 // pred_fallthru
      _
    // Predicated region
    $region18: #{tpu_custom_call.1} parent=1 // pred_check
      _
    $region19: #{tpu_custom_call.1} parent=1 // pred_check_branch
      %28 = sbr.rel (0) target = $region21
    $region20: #{tpu_custom_call.1} parent=1 // pred_region
      _
    $region21: #{tpu_custom_call.1} parent=1 // pred_fallthru
      _
    // Predicated region
    $region22: #{tpu_custom_call.1} parent=1 // pred_check
      _
    $region23: #{tpu_custom_call.1} parent=1 // pred_check_branch
      %30 = sbr.rel (0) target = $region25
    $region24: #{tpu_custom_call.1} parent=1 // pred_region
      _
    $region25: #{tpu_custom_call.1} parent=1 // pred_fallthru
      _
    // Predicated region
    $region26: #{tpu_custom_call.1} parent=1 // pred_check
      _
    $region27: #{tpu_custom_call.1} parent=1 // pred_check_branch
      %32 = sbr.rel (0) target = $region29
    $region28: #{tpu_custom_call.1} parent=1 // pred_region
      _
    $region29: #{tpu_custom_call.1} parent=1 // pred_fallthru
      _
    // Predicated region
    $region30: #{tpu_custom_call.1} parent=1 // pred_check
      _
    $region31: #{tpu_custom_call.1} parent=1 // pred_check_branch
      %34 = sbr.rel (0) target = $region33
    $region32: #{tpu_custom_call.1} parent=1 // pred_region
      _
    $region33: #{tpu_custom_call.1} parent=1 // pred_fallthru
      _
    // Predicated region
    $region34: #{tpu_custom_call.1} parent=1 // pred_check
      _
    $region35: #{tpu_custom_call.1} parent=1 // pred_check_branch
      %36 = sbr.rel (0) target = $region37
    $region36: #{tpu_custom_call.1} parent=1 // pred_region
      _
    $region37: #{tpu_custom_call.1} parent=1 // pred_fallthru
      _
    // Predicated region
    $region38: #{tpu_custom_call.1} parent=1 // pred_check
      _
    $region39: #{tpu_custom_call.1} parent=1 // pred_check_branch
      %38 = sbr.rel (0) target = $region41
    $region40: #{tpu_custom_call.1} parent=1 // pred_region
      _
    $region41: #{tpu_custom_call.1} parent=1 // pred_fallthru
      _
    // Predicated region
    $region42: #{tpu_custom_call.1} parent=1 // pred_check
      _
    $region43: #{tpu_custom_call.1} parent=1 // pred_check_branch
      %40 = sbr.rel (0) target = $region45
    $region44: #{tpu_custom_call.1} parent=1 // pred_region
      _
    $region45: #{tpu_custom_call.1} parent=1 // pred_fallthru
      _
    // Predicated region
    $region46: #{tpu_custom_call.1} parent=1 // pred_check
      _
    $region47: #{tpu_custom_call.1} parent=1 // pred_check_branch
      %42 = sbr.rel (0) target = $region49
    $region48: #{tpu_custom_call.1} parent=1 // pred_region
      _
    $region49: #{tpu_custom_call.1} parent=1 // pred_fallthru
      _
    // Predicated region
    $region50: #{tpu_custom_call.1} parent=1 // pred_check
      _
    $region51: #{tpu_custom_call.1} parent=1 // pred_check_branch
      %44 = sbr.rel (0) target = $region53
    $region52: #{tpu_custom_call.1} parent=1 // pred_region
      _
    $region53: #{tpu_custom_call.1} parent=1 // pred_fallthru
      _
    %v45 = vld [vmem:[%s0] sm:$0x77]
    %v46 = vld [vmem:[%s0 + $0x8] sm:$0x77]
    %v47 = vld [vmem:[%s0 + $0x10] sm:$0x77]
    %v48 = vld [vmem:[%s0 + $0x18] sm:$0x77]
    %v53 = vcombine.high %v45, %v45
    %v54 = vcombine.high %v46, %v46
    %v55 = vcombine.high %v47, %v47
    %v56 = vcombine.high %v48, %v48
    %61 = vxpose.xlu0.b32.start [1/16] %v45, 128
    %62 = vxpose.xlu0.b32.cont [2/16] 0.0, 128
    %63 = vxpose.xlu0.b32.cont [3/16] 0.0, 128
    %64 = vxpose.xlu0.b32.cont [4/16] 0.0, 128
    %65 = vxpose.xlu0.b32.cont [5/16] 0.0, 128
    %66 = vxpose.xlu0.b32.cont [6/16] 0.0, 128
    %67 = vxpose.xlu0.b32.cont [7/16] 0.0, 128
    %68 = vxpose.xlu0.b32.cont [8/16] 0.0, 128
    %69 = vxpose.xlu0.b32.cont [9/16] 0.0, 128
    %70 = vxpose.xlu0.b32.cont [10/16] 0.0, 128
    %71 = vxpose.xlu0.b32.cont [11/16] 0.0, 128
    %72 = vxpose.xlu0.b32.cont [12/16] 0.0, 128
    %73 = vxpose.xlu0.b32.cont [13/16] 0.0, 128
    %74 = vxpose.xlu0.b32.cont [14/16] 0.0, 128
    %75 = vxpose.xlu0.b32.cont [15/16] 0.0, 128
    %76 = vxpose.xlu0.b32.end [16/16] 0.0, 128
    %v77 = vpop.trf.xlu0
    %v78 = vpop.trf.xlu0
    %v79 = vpop.trf.xlu0
    %v80 = vpop.trf.xlu0
    %v81 = vpop.trf.xlu0
    %v82 = vpop.trf.xlu0
    %v83 = vpop.trf.xlu0
    %v84 = vpop.trf.xlu0
    %v85 = vpop.trf.xlu0
    %v86 = vpop.trf.xlu0
    %v87 = vpop.trf.xlu0
    %v88 = vpop.trf.xlu0
    %v89 = vpop.trf.xlu0
    %v90 = vpop.trf.xlu0
    %v91 = vpop.trf.xlu0
    %v92 = vpop.trf.xlu0
    %93 = vxpose.xlu0.b32.start [1/16] %v53, 128
    %94 = vxpose.xlu0.b32.cont [2/16] 0.0, 128
    %95 = vxpose.xlu0.b32.cont [3/16] 0.0, 128
    %96 = vxpose.xlu0.b32.cont [4/16] 0.0, 128
    %97 = vxpose.xlu0.b32.cont [5/16] 0.0, 128
    %98 = vxpose.xlu0.b32.cont [6/16] 0.0, 128
    %99 = vxpose.xlu0.b32.cont [7/16] 0.0, 128
    %100 = vxpose.xlu0.b32.cont [8/16] 0.0, 128
    %101 = vxpose.xlu0.b32.cont [9/16] 0.0, 128
    %102 = vxpose.xlu0.b32.cont [10/16] 0.0, 128
    %103 = vxpose.xlu0.b32.cont [11/16] 0.0, 128
    %104 = vxpose.xlu0.b32.cont [12/16] 0.0, 128
    %105 = vxpose.xlu0.b32.cont [13/16] 0.0, 128
    %106 = vxpose.xlu0.b32.cont [14/16] 0.0, 128
    %107 = vxpose.xlu0.b32.cont [15/16] 0.0, 128
    %108 = vxpose.xlu0.b32.end [16/16] 0.0, 128
    %v109 = vpop.trf.xlu0
    %v110 = vpop.trf.xlu0
    %v111 = vpop.trf.xlu0
    %v112 = vpop.trf.xlu0
    %v113 = vpop.trf.xlu0
    %v114 = vpop.trf.xlu0
    %v115 = vpop.trf.xlu0
    %v116 = vpop.trf.xlu0
    %v117 = vpop.trf.xlu0
    %v118 = vpop.trf.xlu0
    %v119 = vpop.trf.xlu0
    %v120 = vpop.trf.xlu0
    %v121 = vpop.trf.xlu0
    %v122 = vpop.trf.xlu0
    %v123 = vpop.trf.xlu0
    %v124 = vpop.trf.xlu0
    %125 = vxpose.xlu0.b32.start [1/16] %v46, 128
    %126 = vxpose.xlu0.b32.cont [2/16] 0.0, 128
    %127 = vxpose.xlu0.b32.cont [3/16] 0.0, 128
    %128 = vxpose.xlu0.b32.cont [4/16] 0.0, 128
    %129 = vxpose.xlu0.b32.cont [5/16] 0.0, 128
    %130 = vxpose.xlu0.b32.cont [6/16] 0.0, 128
    %131 = vxpose.xlu0.b32.cont [7/16] 0.0, 128
    %132 = vxpose.xlu0.b32.cont [8/16] 0.0, 128
    %133 = vxpose.xlu0.b32.cont [9/16] 0.0, 128
    %134 = vxpose.xlu0.b32.cont [10/16] 0.0, 128
    %135 = vxpose.xlu0.b32.cont [11/16] 0.0, 128
    %136 = vxpose.xlu0.b32.cont [12/16] 0.0, 128
    %137 = vxpose.xlu0.b32.cont [13/16] 0.0, 128
    %138 = vxpose.xlu0.b32.cont [14/16] 0.0, 128
    %139 = vxpose.xlu0.b32.cont [15/16] 0.0, 128
    %140 = vxpose.xlu0.b32.end [16/16] 0.0, 128
    %v141 = vpop.trf.xlu0
    %v142 = vpop.trf.xlu0
    %v143 = vpop.trf.xlu0
    %v144 = vpop.trf.xlu0
    %v145 = vpop.trf.xlu0
    %v146 = vpop.trf.xlu0
    %v147 = vpop.trf.xlu0
    %v148 = vpop.trf.xlu0
    %v149 = vpop.trf.xlu0
    %v150 = vpop.trf.xlu0
    %v151 = vpop.trf.xlu0
    %v152 = vpop.trf.xlu0
    %v153 = vpop.trf.xlu0
    %v154 = vpop.trf.xlu0
    %v155 = vpop.trf.xlu0
    %v156 = vpop.trf.xlu0
    %157 = vxpose.xlu0.b32.start [1/16] %v54, 128
    %158 = vxpose.xlu0.b32.cont [2/16] 0.0, 128
    %159 = vxpose.xlu0.b32.cont [3/16] 0.0, 128
    %160 = vxpose.xlu0.b32.cont [4/16] 0.0, 128
    %161 = vxpose.xlu0.b32.cont [5/16] 0.0, 128
    %162 = vxpose.xlu0.b32.cont [6/16] 0.0, 128
    %163 = vxpose.xlu0.b32.cont [7/16] 0.0, 128
    %164 = vxpose.xlu0.b32.cont [8/16] 0.0, 128
    %165 = vxpose.xlu0.b32.cont [9/16] 0.0, 128
    %166 = vxpose.xlu0.b32.cont [10/16] 0.0, 128
    %167 = vxpose.xlu0.b32.cont [11/16] 0.0, 128
    %168 = vxpose.xlu0.b32.cont [12/16] 0.0, 128
    %169 = vxpose.xlu0.b32.cont [13/16] 0.0, 128
    %170 = vxpose.xlu0.b32.cont [14/16] 0.0, 128
    %171 = vxpose.xlu0.b32.cont [15/16] 0.0, 128
    %172 = vxpose.xlu0.b32.end [16/16] 0.0, 128
    %v173 = vpop.trf.xlu0
    %v174 = vpop.trf.xlu0
    %v175 = vpop.trf.xlu0
    %v176 = vpop.trf.xlu0
    %v177 = vpop.trf.xlu0
    %v178 = vpop.trf.xlu0
    %v179 = vpop.trf.xlu0
    %v180 = vpop.trf.xlu0
    %v181 = vpop.trf.xlu0
    %v182 = vpop.trf.xlu0
    %v183 = vpop.trf.xlu0
    %v184 = vpop.trf.xlu0
    %v185 = vpop.trf.xlu0
    %v186 = vpop.trf.xlu0
    %v187 = vpop.trf.xlu0
    %v188 = vpop.trf.xlu0
    %189 = vxpose.xlu0.b32.start [1/16] %v47, 128
    %190 = vxpose.xlu0.b32.cont [2/16] 0.0, 128
    %191 = vxpose.xlu0.b32.cont [3/16] 0.0, 128
    %192 = vxpose.xlu0.b32.cont [4/16] 0.0, 128
    %193 = vxpose.xlu0.b32.cont [5/16] 0.0, 128
    %194 = vxpose.xlu0.b32.cont [6/16] 0.0, 128
    %195 = vxpose.xlu0.b32.cont [7/16] 0.0, 128
    %196 = vxpose.xlu0.b32.cont [8/16] 0.0, 128
    %197 = vxpose.xlu0.b32.cont [9/16] 0.0, 128
    %198 = vxpose.xlu0.b32.cont [10/16] 0.0, 128
    %199 = vxpose.xlu0.b32.cont [11/16] 0.0, 128
    %200 = vxpose.xlu0.b32.cont [12/16] 0.0, 128
    %201 = vxpose.xlu0.b32.cont [13/16] 0.0, 128
    %202 = vxpose.xlu0.b32.cont [14/16] 0.0, 128
    %203 = vxpose.xlu0.b32.cont [15/16] 0.0, 128
    %204 = vxpose.xlu0.b32.end [16/16] 0.0, 128
    %v205 = vpop.trf.xlu0
    %v206 = vpop.trf.xlu0
    %v207 = vpop.trf.xlu0
    %v208 = vpop.trf.xlu0
    %v209 = vpop.trf.xlu0
    %v210 = vpop.trf.xlu0
    %v211 = vpop.trf.xlu0
    %v212 = vpop.trf.xlu0
    %v213 = vpop.trf.xlu0
    %v214 = vpop.trf.xlu0
    %v215 = vpop.trf.xlu0
    %v216 = vpop.trf.xlu0
    %v217 = vpop.trf.xlu0
    %v218 = vpop.trf.xlu0
    %v219 = vpop.trf.xlu0
    %v220 = vpop.trf.xlu0
    %221 = vxpose.xlu0.b32.start [1/16] %v55, 128
    %222 = vxpose.xlu0.b32.cont [2/16] 0.0, 128
    %223 = vxpose.xlu0.b32.cont [3/16] 0.0, 128
    %224 = vxpose.xlu0.b32.cont [4/16] 0.0, 128
    %225 = vxpose.xlu0.b32.cont [5/16] 0.0, 128
    %226 = vxpose.xlu0.b32.cont [6/16] 0.0, 128
    %227 = vxpose.xlu0.b32.cont [7/16] 0.0, 128
    %228 = vxpose.xlu0.b32.cont [8/16] 0.0, 128
    %229 = vxpose.xlu0.b32.cont [9/16] 0.0, 128
    %230 = vxpose.xlu0.b32.cont [10/16] 0.0, 128
    %231 = vxpose.xlu0.b32.cont [11/16] 0.0, 128
    %232 = vxpose.xlu0.b32.cont [12/16] 0.0, 128
    %233 = vxpose.xlu0.b32.cont [13/16] 0.0, 128
    %234 = vxpose.xlu0.b32.cont [14/16] 0.0, 128
    %235 = vxpose.xlu0.b32.cont [15/16] 0.0, 128
    %236 = vxpose.xlu0.b32.end [16/16] 0.0, 128
    %v237 = vpop.trf.xlu0
    %v238 = vpop.trf.xlu0
    %v239 = vpop.trf.xlu0
    %v240 = vpop.trf.xlu0
    %v241 = vpop.trf.xlu0
    %v242 = vpop.trf.xlu0
    %v243 = vpop.trf.xlu0
    %v244 = vpop.trf.xlu0
    %v245 = vpop.trf.xlu0
    %v246 = vpop.trf.xlu0
    %v247 = vpop.trf.xlu0
    %v248 = vpop.trf.xlu0
    %v249 = vpop.trf.xlu0
    %v250 = vpop.trf.xlu0
    %v251 = vpop.trf.xlu0
    %v252 = vpop.trf.xlu0
    %253 = vxpose.xlu0.b32.start [1/16] %v48, 128
    %254 = vxpose.xlu0.b32.cont [2/16] 0.0, 128
    %255 = vxpose.xlu0.b32.cont [3/16] 0.0, 128
    %256 = vxpose.xlu0.b32.cont [4/16] 0.0, 128
    %257 = vxpose.xlu0.b32.cont [5/16] 0.0, 128
    %258 = vxpose.xlu0.b32.cont [6/16] 0.0, 128
    %259 = vxpose.xlu0.b32.cont [7/16] 0.0, 128
    %260 = vxpose.xlu0.b32.cont [8/16] 0.0, 128
    %261 = vxpose.xlu0.b32.cont [9/16] 0.0, 128
    %262 = vxpose.xlu0.b32.cont [10/16] 0.0, 128
    %263 = vxpose.xlu0.b32.cont [11/16] 0.0, 128
    %264 = vxpose.xlu0.b32.cont [12/16] 0.0, 128
    %265 = vxpose.xlu0.b32.cont [13/16] 0.0, 128
    %266 = vxpose.xlu0.b32.cont [14/16] 0.0, 128
    %267 = vxpose.xlu0.b32.cont [15/16] 0.0, 128
    %268 = vxpose.xlu0.b32.end [16/16] 0.0, 128
    %v269 = vpop.trf.xlu0
    %v270 = vpop.trf.xlu0
    %v271 = vpop.trf.xlu0
    %v272 = vpop.trf.xlu0
    %v273 = vpop.trf.xlu0
    %v274 = vpop.trf.xlu0
    %v275 = vpop.trf.xlu0
    %v276 = vpop.trf.xlu0
    %v277 = vpop.trf.xlu0
    %v278 = vpop.trf.xlu0
    %v279 = vpop.trf.xlu0
    %v280 = vpop.trf.xlu0
    %v281 = vpop.trf.xlu0
    %v282 = vpop.trf.xlu0
    %v283 = vpop.trf.xlu0
    %v284 = vpop.trf.xlu0
    %285 = vxpose.xlu0.b32.start [1/16] %v56, 128
    %286 = vxpose.xlu0.b32.cont [2/16] 0.0, 128
    %287 = vxpose.xlu0.b32.cont [3/16] 0.0, 128
    %288 = vxpose.xlu0.b32.cont [4/16] 0.0, 128
    %289 = vxpose.xlu0.b32.cont [5/16] 0.0, 128
    %290 = vxpose.xlu0.b32.cont [6/16] 0.0, 128
    %291 = vxpose.xlu0.b32.cont [7/16] 0.0, 128
    %292 = vxpose.xlu0.b32.cont [8/16] 0.0, 128
    %293 = vxpose.xlu0.b32.cont [9/16] 0.0, 128
    %294 = vxpose.xlu0.b32.cont [10/16] 0.0, 128
    %295 = vxpose.xlu0.b32.cont [11/16] 0.0, 128
    %296 = vxpose.xlu0.b32.cont [12/16] 0.0, 128
    %297 = vxpose.xlu0.b32.cont [13/16] 0.0, 128
    %298 = vxpose.xlu0.b32.cont [14/16] 0.0, 128
    %299 = vxpose.xlu0.b32.cont [15/16] 0.0, 128
    %300 = vxpose.xlu0.b32.end [16/16] 0.0, 128
    %v301 = vpop.trf.xlu0
    %v302 = vpop.trf.xlu0
    %v303 = vpop.trf.xlu0
    %v304 = vpop.trf.xlu0
    %v305 = vpop.trf.xlu0
    %v306 = vpop.trf.xlu0
    %v307 = vpop.trf.xlu0
    %v308 = vpop.trf.xlu0
    %v309 = vpop.trf.xlu0
    %v310 = vpop.trf.xlu0
    %v311 = vpop.trf.xlu0
    %v312 = vpop.trf.xlu0
    %v313 = vpop.trf.xlu0
    %v314 = vpop.trf.xlu0
    %v315 = vpop.trf.xlu0
    %v316 = vpop.trf.xlu0
    %v317 = vld [vmem:[%s1] sm:$0x7]
    %v318 = vld [vmem:[%s2] sm:$0x1]
    %v320 = vlaneseq
    %v321 = vshrl.u32 %v320, 7
    %v322 = vsub.s32 0, %v321
    %v323 = vrot.slane %v318, %v322
    %vm325 = vcmask 23552
    %v327 = vsel %vm325, %v77, 0
    %v330 = vsel %vm325, %v78, 0
    %v333 = vsel %vm325, %v79, 0
    %v336 = vsel %vm325, %v80, 0
    %v339 = vsel %vm325, %v81, 0
    %v342 = vsel %vm325, %v82, 0
    %v345 = vsel %vm325, %v83, 0
    %v348 = vsel %vm325, %v84, 0
    %v351 = vsel %vm325, %v85, 0
    %v354 = vsel %vm325, %v86, 0
    %v357 = vsel %vm325, %v87, 0
    %v360 = vsel %vm325, %v88, 0
    %v363 = vsel %vm325, %v89, 0
    %v366 = vsel %vm325, %v90, 0
    %v369 = vsel %vm325, %v91, 0
    %v372 = vsel %vm325, %v92, 0
    %v375 = vsel %vm325, %v109, 0
    %v378 = vsel %vm325, %v110, 0
    %v381 = vsel %vm325, %v111, 0
    %v384 = vsel %vm325, %v112, 0
    %v387 = vsel %vm325, %v113, 0
    %v390 = vsel %vm325, %v114, 0
    %v393 = vsel %vm325, %v115, 0
    %v396 = vsel %vm325, %v116, 0
    %v399 = vsel %vm325, %v117, 0
    %v402 = vsel %vm325, %v118, 0
    %v405 = vsel %vm325, %v119, 0
    %v408 = vsel %vm325, %v120, 0
    %v411 = vsel %vm325, %v121, 0
    %v414 = vsel %vm325, %v122, 0
    %v417 = vsel %vm325, %v123, 0
    %v420 = vsel %vm325, %v124, 0
    %v423 = vsel %vm325, %v141, 0
    %v426 = vsel %vm325, %v142, 0
    %v429 = vsel %vm325, %v143, 0
    %v432 = vsel %vm325, %v144, 0
    %v435 = vsel %vm325, %v145, 0
    %v438 = vsel %vm325, %v146, 0
    %v441 = vsel %vm325, %v147, 0
    %v444 = vsel %vm325, %v148, 0
    %v447 = vsel %vm325, %v149, 0
    %v450 = vsel %vm325, %v150, 0
    %v453 = vsel %vm325, %v151, 0
    %v456 = vsel %vm325, %v152, 0
    %v459 = vsel %vm325, %v153, 0
    %v462 = vsel %vm325, %v154, 0
    %v465 = vsel %vm325, %v155, 0
    %v468 = vsel %vm325, %v156, 0
    %v471 = vsel %vm325, %v173, 0
    %v474 = vsel %vm325, %v174, 0
    %v477 = vsel %vm325, %v175, 0
    %v480 = vsel %vm325, %v176, 0
    %v483 = vsel %vm325, %v177, 0
    %v486 = vsel %vm325, %v178, 0
    %v489 = vsel %vm325, %v179, 0
    %v492 = vsel %vm325, %v180, 0
    %v495 = vsel %vm325, %v181, 0
    %v498 = vsel %vm325, %v182, 0
    %v501 = vsel %vm325, %v183, 0
    %v504 = vsel %vm325, %v184, 0
    %v507 = vsel %vm325, %v185, 0
    %v510 = vsel %vm325, %v186, 0
    %v513 = vsel %vm325, %v187, 0
    %v516 = vsel %vm325, %v188, 0
    %v519 = vsel %vm325, %v205, 0
    %v522 = vsel %vm325, %v206, 0
    %v525 = vsel %vm325, %v207, 0
    %v528 = vsel %vm325, %v208, 0
    %v531 = vsel %vm325, %v209, 0
    %v534 = vsel %vm325, %v210, 0
    %v537 = vsel %vm325, %v211, 0
    %v540 = vsel %vm325, %v212, 0
    %v543 = vsel %vm325, %v213, 0
    %v546 = vsel %vm325, %v214, 0
    %v549 = vsel %vm325, %v215, 0
    %v552 = vsel %vm325, %v216, 0
    %v555 = vsel %vm325, %v217, 0
    %v558 = vsel %vm325, %v218, 0
    %v561 = vsel %vm325, %v219, 0
    %v564 = vsel %vm325, %v220, 0
    %v567 = vsel %vm325, %v237, 0
    %v570 = vsel %vm325, %v238, 0
    %v573 = vsel %vm325, %v239, 0
    %v576 = vsel %vm325, %v240, 0
    %v579 = vsel %vm325, %v241, 0
    %v582 = vsel %vm325, %v242, 0
    %v585 = vsel %vm325, %v243, 0
    %v588 = vsel %vm325, %v244, 0
    %v591 = vsel %vm325, %v245, 0
    %v594 = vsel %vm325, %v246, 0
    %v597 = vsel %vm325, %v247, 0
    %v600 = vsel %vm325, %v248, 0
    %v603 = vsel %vm325, %v249, 0
    %v606 = vsel %vm325, %v250, 0
    %v609 = vsel %vm325, %v251, 0
    %v612 = vsel %vm325, %v252, 0
    %v615 = vsel %vm325, %v269, 0
    %v618 = vsel %vm325, %v270, 0
    %v621 = vsel %vm325, %v271, 0
    %v624 = vsel %vm325, %v272, 0
    %v627 = vsel %vm325, %v273, 0
    %v630 = vsel %vm325, %v274, 0
    %v633 = vsel %vm325, %v275, 0
    %v636 = vsel %vm325, %v276, 0
    %v639 = vsel %vm325, %v277, 0
    %v642 = vsel %vm325, %v278, 0
    %v645 = vsel %vm325, %v279, 0
    %v648 = vsel %vm325, %v280, 0
    %v651 = vsel %vm325, %v281, 0
    %v654 = vsel %vm325, %v282, 0
    %v657 = vsel %vm325, %v283, 0
    %v660 = vsel %vm325, %v284, 0
    %v663 = vsel %vm325, %v301, 0
    %v666 = vsel %vm325, %v302, 0
    %v669 = vsel %vm325, %v303, 0
    %v672 = vsel %vm325, %v304, 0
    %v675 = vsel %vm325, %v305, 0
    %v678 = vsel %vm325, %v306, 0
    %v681 = vsel %vm325, %v307, 0
    %v684 = vsel %vm325, %v308, 0
    %v687 = vsel %vm325, %v309, 0
    %v690 = vsel %vm325, %v310, 0
    %v693 = vsel %vm325, %v311, 0
    %v696 = vsel %vm325, %v312, 0
    %v699 = vsel %vm325, %v313, 0
    %v702 = vsel %vm325, %v314, 0
    %v705 = vsel %vm325, %v315, 0
    %v708 = vsel %vm325, %v316, 0
    %vm710 = vcmask 1042432
    %v712 = vsel %vm710, %v317, 0
    %714 = vmatprep.subr.mxu0 0.0
    %715 = vmatpush1.msra.mxu0 0.0
    %716 = vmatprep.subr.mxu0 0.0
    %717 = vmatpush1.msra.mxu0 0.0
    %718 = vmatprep.subr.mxu0 0.0
    %719 = vmatpush1.msra.mxu0 0.0
    %720 = vmatprep.subr.mxu0 0.0
    %721 = vmatpush1.msra.mxu0 0.0
    %722 = vmatprep.subr.mxu0 0.0
    %723 = vmatpush1.msra.mxu0 0.0
    %724 = vmatprep.subr.mxu0 0.0
    %725 = vmatpush1.msra.mxu0 0.0
    %726 = vmatprep.subr.mxu0 0.0
    %727 = vmatpush1.msra.mxu0 0.0
    %728 = vmatprep.subr.mxu0 0.0
    %729 = vmatpush1.msra.mxu0 0.0
    %730 = vmatprep.subr.mxu0 0.0
    %731 = vmatpush1.msra.mxu0 0.0
    %732 = vmatprep.subr.mxu0 0.0
    %733 = vmatpush1.msra.mxu0 0.0
    %734 = vmatprep.subr.mxu0 0.0
    %735 = vmatpush1.msra.mxu0 0.0
    %736 = vmatprep.subr.mxu0 0.0
    %737 = vmatpush1.msra.mxu0 0.0
    %738 = vmatprep.subr.mxu0 0.0
    %739 = vmatpush1.msra.mxu0 0.0
    %740 = vmatprep.subr.mxu0 0.0
    %741 = vmatpush1.msra.mxu0 0.0
    %742 = vmatprep.subr.mxu0 0.0
    %743 = vmatpush1.msra.mxu0 0.0
    %744 = vmatprep.subr.mxu0 0.0
    %745 = vmatpush1.msra.mxu0 %v712
    %746 = vmatprep.subr.mxu0 0.0
    %747 = vmatpush2.msra.mxu0 0.0
    %748 = vmatprep.subr.mxu0 0.0
    %749 = vmatpush2.msra.mxu0 0.0
    %750 = vmatprep.subr.mxu0 0.0
    %751 = vmatpush2.msra.mxu0 0.0
    %752 = vmatprep.subr.mxu0 0.0
    %753 = vmatpush2.msra.mxu0 0.0
    %754 = vmatprep.subr.mxu0 0.0
    %755 = vmatpush2.msra.mxu0 0.0
    %756 = vmatprep.subr.mxu0 0.0
    %757 = vmatpush2.msra.mxu0 0.0
    %758 = vmatprep.subr.mxu0 0.0
    %759 = vmatpush2.msra.mxu0 0.0
    %760 = vmatprep.subr.mxu0 0.0
    %761 = vmatpush2.msra.mxu0 0.0
    %762 = vmatprep.subr.mxu0 0.0
    %763 = vmatpush2.msra.mxu0 0.0
    %764 = vmatprep.subr.mxu0 0.0
    %765 = vmatpush2.msra.mxu0 0.0
    %766 = vmatprep.subr.mxu0 0.0
    %767 = vmatpush2.msra.mxu0 0.0
    %768 = vmatprep.subr.mxu0 0.0
    %769 = vmatpush2.msra.mxu0 0.0
    %770 = vmatprep.subr.mxu0 0.0
    %771 = vmatpush2.msra.mxu0 0.0
    %772 = vmatprep.subr.mxu0 0.0
    %773 = vmatpush2.msra.mxu0 0.0
    %774 = vmatprep.subr.mxu0 0.0
    %775 = vmatpush2.msra.mxu0 0.0
    %776 = vmatprep.subr.mxu0 0.0
    %777 = vmatpush2.msra.mxu0 0.0
    %778 = vmatprep.mubr.f32.mxu0 0.0
    %779 = vmatmul.mubr.f32.gmra.mxu0 %v327
    %v780 = vpop.f32.mrf.mxu0
    %v781 = vadd.f32 %v323, %v780
    %v782 = vpop.f32.mrf.mxu0
    %783 = vmatprep.mubr.f32.mxu0 0.0
    %784 = vmatmul.mubr.f32.gmra.mxu0 %v330
    %v785 = vpop.f32.mrf.mxu0
    %v786 = vadd.f32 %v323, %v785
    %v787 = vpop.f32.mrf.mxu0
    %788 = vmatprep.mubr.f32.mxu0 0.0
    %789 = vmatmul.mubr.f32.gmra.mxu0 %v333
    %v790 = vpop.f32.mrf.mxu0
    %v791 = vadd.f32 %v323, %v790
    %v792 = vpop.f32.mrf.mxu0
    %793 = vmatprep.mubr.f32.mxu0 0.0
    %794 = vmatmul.mubr.f32.gmra.mxu0 %v336
    %v795 = vpop.f32.mrf.mxu0
    %v796 = vadd.f32 %v323, %v795
    %v797 = vpop.f32.mrf.mxu0
    %798 = vmatprep.mubr.f32.mxu0 0.0
    %799 = vmatmul.mubr.f32.gmra.mxu0 %v339
    %v800 = vpop.f32.mrf.mxu0
    %v801 = vadd.f32 %v323, %v800
    %v802 = vpop.f32.mrf.mxu0
    %803 = vmatprep.mubr.f32.mxu0 0.0
    %804 = vmatmul.mubr.f32.gmra.mxu0 %v342
    %v805 = vpop.f32.mrf.mxu0
    %v806 = vadd.f32 %v323, %v805
    %v807 = vpop.f32.mrf.mxu0
    %808 = vmatprep.mubr.f32.mxu0 0.0
    %809 = vmatmul.mubr.f32.gmra.mxu0 %v345
    %v810 = vpop.f32.mrf.mxu0
    %v811 = vadd.f32 %v323, %v810
    %v812 = vpop.f32.mrf.mxu0
    %813 = vmatprep.mubr.f32.mxu0 0.0
    %814 = vmatmul.mubr.f32.gmra.mxu0 %v348
    %v815 = vpop.f32.mrf.mxu0
    %v816 = vadd.f32 %v323, %v815
    %v817 = vpop.f32.mrf.mxu0
    %818 = vmatprep.mubr.f32.mxu0 0.0
    %819 = vmatmul.mubr.f32.gmra.mxu0 %v351
    %v820 = vpop.f32.mrf.mxu0
    %v821 = vadd.f32 %v323, %v820
    %v822 = vpop.f32.mrf.mxu0
    %823 = vmatprep.mubr.f32.mxu0 0.0
    %824 = vmatmul.mubr.f32.gmra.mxu0 %v354
    %v825 = vpop.f32.mrf.mxu0
    %v826 = vadd.f32 %v323, %v825
    %v827 = vpop.f32.mrf.mxu0
    %828 = vmatprep.mubr.f32.mxu0 0.0
    %829 = vmatmul.mubr.f32.gmra.mxu0 %v357
    %v830 = vpop.f32.mrf.mxu0
    %v831 = vadd.f32 %v323, %v830
    %v832 = vpop.f32.mrf.mxu0
    %833 = vmatprep.mubr.f32.mxu0 0.0
    %834 = vmatmul.mubr.f32.gmra.mxu0 %v360
    %v835 = vpop.f32.mrf.mxu0
    %v836 = vadd.f32 %v323, %v835
    %v837 = vpop.f32.mrf.mxu0
    %838 = vmatprep.mubr.f32.mxu0 0.0
    %839 = vmatmul.mubr.f32.gmra.mxu0 %v363
    %v840 = vpop.f32.mrf.mxu0
    %v841 = vadd.f32 %v323, %v840
    %v842 = vpop.f32.mrf.mxu0
    %843 = vmatprep.mubr.f32.mxu0 0.0
    %844 = vmatmul.mubr.f32.gmra.mxu0 %v366
    %v845 = vpop.f32.mrf.mxu0
    %v846 = vadd.f32 %v323, %v845
    %v847 = vpop.f32.mrf.mxu0
    %848 = vmatprep.mubr.f32.mxu0 0.0
    %849 = vmatmul.mubr.f32.gmra.mxu0 %v369
    %v850 = vpop.f32.mrf.mxu0
    %v851 = vadd.f32 %v323, %v850
    %v852 = vpop.f32.mrf.mxu0
    %853 = vmatprep.mubr.f32.mxu0 0.0
    %854 = vmatmul.mubr.f32.gmra.mxu0 %v372
    %v855 = vpop.f32.mrf.mxu0
    %v856 = vadd.f32 %v323, %v855
    %v857 = vpop.f32.mrf.mxu0
    %858 = vmatprep.mubr.f32.mxu0 0.0
    %859 = vmatmul.mubr.f32.gmra.mxu0 %v375
    %v860 = vpop.f32.mrf.mxu0
    %v861 = vadd.f32 %v323, %v860
    %v862 = vpop.f32.mrf.mxu0
    %863 = vmatprep.mubr.f32.mxu0 0.0
    %864 = vmatmul.mubr.f32.gmra.mxu0 %v378
    %v865 = vpop.f32.mrf.mxu0
    %v866 = vadd.f32 %v323, %v865
    %v867 = vpop.f32.mrf.mxu0
    %868 = vmatprep.mubr.f32.mxu0 0.0
    %869 = vmatmul.mubr.f32.gmra.mxu0 %v381
    %v870 = vpop.f32.mrf.mxu0
    %v871 = vadd.f32 %v323, %v870
    %v872 = vpop.f32.mrf.mxu0
    %873 = vmatprep.mubr.f32.mxu0 0.0
    %874 = vmatmul.mubr.f32.gmra.mxu0 %v384
    %v875 = vpop.f32.mrf.mxu0
    %v876 = vadd.f32 %v323, %v875
    %v877 = vpop.f32.mrf.mxu0
    %878 = vmatprep.mubr.f32.mxu0 0.0
    %879 = vmatmul.mubr.f32.gmra.mxu0 %v387
    %v880 = vpop.f32.mrf.mxu0
    %v881 = vadd.f32 %v323, %v880
    %v882 = vpop.f32.mrf.mxu0
    %883 = vmatprep.mubr.f32.mxu0 0.0
    %884 = vmatmul.mubr.f32.gmra.mxu0 %v390
    %v885 = vpop.f32.mrf.mxu0
    %v886 = vadd.f32 %v323, %v885
    %v887 = vpop.f32.mrf.mxu0
    %888 = vmatprep.mubr.f32.mxu0 0.0
    %889 = vmatmul.mubr.f32.gmra.mxu0 %v393
    %v890 = vpop.f32.mrf.mxu0
    %v891 = vadd.f32 %v323, %v890
    %v892 = vpop.f32.mrf.mxu0
    %893 = vmatprep.mubr.f32.mxu0 0.0
    %894 = vmatmul.mubr.f32.gmra.mxu0 %v396
    %v895 = vpop.f32.mrf.mxu0
    %v896 = vadd.f32 %v323, %v895
    %v897 = vpop.f32.mrf.mxu0
    %898 = vmatprep.mubr.f32.mxu0 0.0
    %899 = vmatmul.mubr.f32.gmra.mxu0 %v399
    %v900 = vpop.f32.mrf.mxu0
    %v901 = vadd.f32 %v323, %v900
    %v902 = vpop.f32.mrf.mxu0
    %903 = vmatprep.mubr.f32.mxu0 0.0
    %904 = vmatmul.mubr.f32.gmra.mxu0 %v402
    %v905 = vpop.f32.mrf.mxu0
    %v906 = vadd.f32 %v323, %v905
    %v907 = vpop.f32.mrf.mxu0
    %908 = vmatprep.mubr.f32.mxu0 0.0
    %909 = vmatmul.mubr.f32.gmra.mxu0 %v405
    %v910 = vpop.f32.mrf.mxu0
    %v911 = vadd.f32 %v323, %v910
    %v912 = vpop.f32.mrf.mxu0
    %913 = vmatprep.mubr.f32.mxu0 0.0
    %914 = vmatmul.mubr.f32.gmra.mxu0 %v408
    %v915 = vpop.f32.mrf.mxu0
    %v916 = vadd.f32 %v323, %v915
    %v917 = vpop.f32.mrf.mxu0
    %918 = vmatprep.mubr.f32.mxu0 0.0
    %919 = vmatmul.mubr.f32.gmra.mxu0 %v411
    %v920 = vpop.f32.mrf.mxu0
    %v921 = vadd.f32 %v323, %v920
    %v922 = vpop.f32.mrf.mxu0
    %923 = vmatprep.mubr.f32.mxu0 0.0
    %924 = vmatmul.mubr.f32.gmra.mxu0 %v414
    %v925 = vpop.f32.mrf.mxu0
    %v926 = vadd.f32 %v323, %v925
    %v927 = vpop.f32.mrf.mxu0
    %928 = vmatprep.mubr.f32.mxu0 0.0
    %929 = vmatmul.mubr.f32.gmra.mxu0 %v417
    %v930 = vpop.f32.mrf.mxu0
    %v931 = vadd.f32 %v323, %v930
    %v932 = vpop.f32.mrf.mxu0
    %933 = vmatprep.mubr.f32.mxu0 0.0
    %934 = vmatmul.mubr.f32.gmra.mxu0 %v420
    %v935 = vpop.f32.mrf.mxu0
    %v936 = vadd.f32 %v323, %v935
    %v937 = vpop.f32.mrf.mxu0
    %938 = vmatprep.mubr.f32.mxu0 0.0
    %939 = vmatmul.mubr.f32.gmra.mxu0 %v423
    %v940 = vpop.f32.mrf.mxu0
    %v941 = vadd.f32 %v323, %v940
    %v942 = vpop.f32.mrf.mxu0
    %943 = vmatprep.mubr.f32.mxu0 0.0
    %944 = vmatmul.mubr.f32.gmra.mxu0 %v426
    %v945 = vpop.f32.mrf.mxu0
    %v946 = vadd.f32 %v323, %v945
    %v947 = vpop.f32.mrf.mxu0
    %948 = vmatprep.mubr.f32.mxu0 0.0
    %949 = vmatmul.mubr.f32.gmra.mxu0 %v429
    %v950 = vpop.f32.mrf.mxu0
    %v951 = vadd.f32 %v323, %v950
    %v952 = vpop.f32.mrf.mxu0
    %953 = vmatprep.mubr.f32.mxu0 0.0
    %954 = vmatmul.mubr.f32.gmra.mxu0 %v432
    %v955 = vpop.f32.mrf.mxu0
    %v956 = vadd.f32 %v323, %v955
    %v957 = vpop.f32.mrf.mxu0
    %958 = vmatprep.mubr.f32.mxu0 0.0
    %959 = vmatmul.mubr.f32.gmra.mxu0 %v435
    %v960 = vpop.f32.mrf.mxu0
    %v961 = vadd.f32 %v323, %v960
    %v962 = vpop.f32.mrf.mxu0
    %963 = vmatprep.mubr.f32.mxu0 0.0
    %964 = vmatmul.mubr.f32.gmra.mxu0 %v438
    %v965 = vpop.f32.mrf.mxu0
    %v966 = vadd.f32 %v323, %v965
    %v967 = vpop.f32.mrf.mxu0
    %968 = vmatprep.mubr.f32.mxu0 0.0
    %969 = vmatmul.mubr.f32.gmra.mxu0 %v441
    %v970 = vpop.f32.mrf.mxu0
    %v971 = vadd.f32 %v323, %v970
    %v972 = vpop.f32.mrf.mxu0
    %973 = vmatprep.mubr.f32.mxu0 0.0
    %974 = vmatmul.mubr.f32.gmra.mxu0 %v444
    %v975 = vpop.f32.mrf.mxu0
    %v976 = vadd.f32 %v323, %v975
    %v977 = vpop.f32.mrf.mxu0
    %978 = vmatprep.mubr.f32.mxu0 0.0
    %979 = vmatmul.mubr.f32.gmra.mxu0 %v447
    %v980 = vpop.f32.mrf.mxu0
    %v981 = vadd.f32 %v323, %v980
    %v982 = vpop.f32.mrf.mxu0
    %983 = vmatprep.mubr.f32.mxu0 0.0
    %984 = vmatmul.mubr.f32.gmra.mxu0 %v450
    %v985 = vpop.f32.mrf.mxu0
    %v986 = vadd.f32 %v323, %v985
    %v987 = vpop.f32.mrf.mxu0
    %988 = vmatprep.mubr.f32.mxu0 0.0
    %989 = vmatmul.mubr.f32.gmra.mxu0 %v453
    %v990 = vpop.f32.mrf.mxu0
    %v991 = vadd.f32 %v323, %v990
    %v992 = vpop.f32.mrf.mxu0
    %993 = vmatprep.mubr.f32.mxu0 0.0
    %994 = vmatmul.mubr.f32.gmra.mxu0 %v456
    %v995 = vpop.f32.mrf.mxu0
    %v996 = vadd.f32 %v323, %v995
    %v997 = vpop.f32.mrf.mxu0
    %998 = vmatprep.mubr.f32.mxu0 0.0
    %999 = vmatmul.mubr.f32.gmra.mxu0 %v459
    %v1000 = vpop.f32.mrf.mxu0
    %v1001 = vadd.f32 %v323, %v1000
    %v1002 = vpop.f32.mrf.mxu0
    %1003 = vmatprep.mubr.f32.mxu0 0.0
    %1004 = vmatmul.mubr.f32.gmra.mxu0 %v462
    %v1005 = vpop.f32.mrf.mxu0
    %v1006 = vadd.f32 %v323, %v1005
    %v1007 = vpop.f32.mrf.mxu0
    %1008 = vmatprep.mubr.f32.mxu0 0.0
    %1009 = vmatmul.mubr.f32.gmra.mxu0 %v465
    %v1010 = vpop.f32.mrf.mxu0
    %v1011 = vadd.f32 %v323, %v1010
    %v1012 = vpop.f32.mrf.mxu0
    %1013 = vmatprep.mubr.f32.mxu0 0.0
    %1014 = vmatmul.mubr.f32.gmra.mxu0 %v468
    %v1015 = vpop.f32.mrf.mxu0
    %v1016 = vadd.f32 %v323, %v1015
    %v1017 = vpop.f32.mrf.mxu0
    %1018 = vmatprep.mubr.f32.mxu0 0.0
    %1019 = vmatmul.mubr.f32.gmra.mxu0 %v471
    %v1020 = vpop.f32.mrf.mxu0
    %v1021 = vadd.f32 %v323, %v1020
    %v1022 = vpop.f32.mrf.mxu0
    %1023 = vmatprep.mubr.f32.mxu0 0.0
    %1024 = vmatmul.mubr.f32.gmra.mxu0 %v474
    %v1025 = vpop.f32.mrf.mxu0
    %v1026 = vadd.f32 %v323, %v1025
    %v1027 = vpop.f32.mrf.mxu0
    %1028 = vmatprep.mubr.f32.mxu0 0.0
    %1029 = vmatmul.mubr.f32.gmra.mxu0 %v477
    %v1030 = vpop.f32.mrf.mxu0
    %v1031 = vadd.f32 %v323, %v1030
    %v1032 = vpop.f32.mrf.mxu0
    %1033 = vmatprep.mubr.f32.mxu0 0.0
    %1034 = vmatmul.mubr.f32.gmra.mxu0 %v480
    %v1035 = vpop.f32.mrf.mxu0
    %v1036 = vadd.f32 %v323, %v1035
    %v1037 = vpop.f32.mrf.mxu0
    %1038 = vmatprep.mubr.f32.mxu0 0.0
    %1039 = vmatmul.mubr.f32.gmra.mxu0 %v483
    %v1040 = vpop.f32.mrf.mxu0
    %v1041 = vadd.f32 %v323, %v1040
    %v1042 = vpop.f32.mrf.mxu0
    %1043 = vmatprep.mubr.f32.mxu0 0.0
    %1044 = vmatmul.mubr.f32.gmra.mxu0 %v486
    %v1045 = vpop.f32.mrf.mxu0
    %v1046 = vadd.f32 %v323, %v1045
    %v1047 = vpop.f32.mrf.mxu0
    %1048 = vmatprep.mubr.f32.mxu0 0.0
    %1049 = vmatmul.mubr.f32.gmra.mxu0 %v489
    %v1050 = vpop.f32.mrf.mxu0
    %v1051 = vadd.f32 %v323, %v1050
    %v1052 = vpop.f32.mrf.mxu0
    %1053 = vmatprep.mubr.f32.mxu0 0.0
    %1054 = vmatmul.mubr.f32.gmra.mxu0 %v492
    %v1055 = vpop.f32.mrf.mxu0
    %v1056 = vadd.f32 %v323, %v1055
    %v1057 = vpop.f32.mrf.mxu0
    %1058 = vmatprep.mubr.f32.mxu0 0.0
    %1059 = vmatmul.mubr.f32.gmra.mxu0 %v495
    %v1060 = vpop.f32.mrf.mxu0
    %v1061 = vadd.f32 %v323, %v1060
    %v1062 = vpop.f32.mrf.mxu0
    %1063 = vmatprep.mubr.f32.mxu0 0.0
    %1064 = vmatmul.mubr.f32.gmra.mxu0 %v498
    %v1065 = vpop.f32.mrf.mxu0
    %v1066 = vadd.f32 %v323, %v1065
    %v1067 = vpop.f32.mrf.mxu0
    %1068 = vmatprep.mubr.f32.mxu0 0.0
    %1069 = vmatmul.mubr.f32.gmra.mxu0 %v501
    %v1070 = vpop.f32.mrf.mxu0
    %v1071 = vadd.f32 %v323, %v1070
    %v1072 = vpop.f32.mrf.mxu0
    %1073 = vmatprep.mubr.f32.mxu0 0.0
    %1074 = vmatmul.mubr.f32.gmra.mxu0 %v504
    %v1075 = vpop.f32.mrf.mxu0
    %v1076 = vadd.f32 %v323, %v1075
    %v1077 = vpop.f32.mrf.mxu0
    %1078 = vmatprep.mubr.f32.mxu0 0.0
    %1079 = vmatmul.mubr.f32.gmra.mxu0 %v507
    %v1080 = vpop.f32.mrf.mxu0
    %v1081 = vadd.f32 %v323, %v1080
    %v1082 = vpop.f32.mrf.mxu0
    %1083 = vmatprep.mubr.f32.mxu0 0.0
    %1084 = vmatmul.mubr.f32.gmra.mxu0 %v510
    %v1085 = vpop.f32.mrf.mxu0
    %v1086 = vadd.f32 %v323, %v1085
    %v1087 = vpop.f32.mrf.mxu0
    %1088 = vmatprep.mubr.f32.mxu0 0.0
    %1089 = vmatmul.mubr.f32.gmra.mxu0 %v513
    %v1090 = vpop.f32.mrf.mxu0
    %v1091 = vadd.f32 %v323, %v1090
    %v1092 = vpop.f32.mrf.mxu0
    %1093 = vmatprep.mubr.f32.mxu0 0.0
    %1094 = vmatmul.mubr.f32.gmra.mxu0 %v516
    %v1095 = vpop.f32.mrf.mxu0
    %v1096 = vadd.f32 %v323, %v1095
    %v1097 = vpop.f32.mrf.mxu0
    %1098 = vmatprep.mubr.f32.mxu0 0.0
    %1099 = vmatmul.mubr.f32.gmra.mxu0 %v519
    %v1100 = vpop.f32.mrf.mxu0
    %v1101 = vadd.f32 %v323, %v1100
    %v1102 = vpop.f32.mrf.mxu0
    %1103 = vmatprep.mubr.f32.mxu0 0.0
    %1104 = vmatmul.mubr.f32.gmra.mxu0 %v522
    %v1105 = vpop.f32.mrf.mxu0
    %v1106 = vadd.f32 %v323, %v1105
    %v1107 = vpop.f32.mrf.mxu0
    %1108 = vmatprep.mubr.f32.mxu0 0.0
    %1109 = vmatmul.mubr.f32.gmra.mxu0 %v525
    %v1110 = vpop.f32.mrf.mxu0
    %v1111 = vadd.f32 %v323, %v1110
    %v1112 = vpop.f32.mrf.mxu0
    %1113 = vmatprep.mubr.f32.mxu0 0.0
    %1114 = vmatmul.mubr.f32.gmra.mxu0 %v528
    %v1115 = vpop.f32.mrf.mxu0
    %v1116 = vadd.f32 %v323, %v1115
    %v1117 = vpop.f32.mrf.mxu0
    %1118 = vmatprep.mubr.f32.mxu0 0.0
    %1119 = vmatmul.mubr.f32.gmra.mxu0 %v531
    %v1120 = vpop.f32.mrf.mxu0
    %v1121 = vadd.f32 %v323, %v1120
    %v1122 = vpop.f32.mrf.mxu0
    %1123 = vmatprep.mubr.f32.mxu0 0.0
    %1124 = vmatmul.mubr.f32.gmra.mxu0 %v534
    %v1125 = vpop.f32.mrf.mxu0
    %v1126 = vadd.f32 %v323, %v1125
    %v1127 = vpop.f32.mrf.mxu0
    %1128 = vmatprep.mubr.f32.mxu0 0.0
    %1129 = vmatmul.mubr.f32.gmra.mxu0 %v537
    %v1130 = vpop.f32.mrf.mxu0
    %v1131 = vadd.f32 %v323, %v1130
    %v1132 = vpop.f32.mrf.mxu0
    %1133 = vmatprep.mubr.f32.mxu0 0.0
    %1134 = vmatmul.mubr.f32.gmra.mxu0 %v540
    %v1135 = vpop.f32.mrf.mxu0
    %v1136 = vadd.f32 %v323, %v1135
    %v1137 = vpop.f32.mrf.mxu0
    %1138 = vmatprep.mubr.f32.mxu0 0.0
    %1139 = vmatmul.mubr.f32.gmra.mxu0 %v543
    %v1140 = vpop.f32.mrf.mxu0
    %v1141 = vadd.f32 %v323, %v1140
    %v1142 = vpop.f32.mrf.mxu0
    %1143 = vmatprep.mubr.f32.mxu0 0.0
    %1144 = vmatmul.mubr.f32.gmra.mxu0 %v546
    %v1145 = vpop.f32.mrf.mxu0
    %v1146 = vadd.f32 %v323, %v1145
    %v1147 = vpop.f32.mrf.mxu0
    %1148 = vmatprep.mubr.f32.mxu0 0.0
    %1149 = vmatmul.mubr.f32.gmra.mxu0 %v549
    %v1150 = vpop.f32.mrf.mxu0
    %v1151 = vadd.f32 %v323, %v1150
    %v1152 = vpop.f32.mrf.mxu0
    %1153 = vmatprep.mubr.f32.mxu0 0.0
    %1154 = vmatmul.mubr.f32.gmra.mxu0 %v552
    %v1155 = vpop.f32.mrf.mxu0
    %v1156 = vadd.f32 %v323, %v1155
    %v1157 = vpop.f32.mrf.mxu0
    %1158 = vmatprep.mubr.f32.mxu0 0.0
    %1159 = vmatmul.mubr.f32.gmra.mxu0 %v555
    %v1160 = vpop.f32.mrf.mxu0
    %v1161 = vadd.f32 %v323, %v1160
    %v1162 = vpop.f32.mrf.mxu0
    %1163 = vmatprep.mubr.f32.mxu0 0.0
    %1164 = vmatmul.mubr.f32.gmra.mxu0 %v558
    %v1165 = vpop.f32.mrf.mxu0
    %v1166 = vadd.f32 %v323, %v1165
    %v1167 = vpop.f32.mrf.mxu0
    %1168 = vmatprep.mubr.f32.mxu0 0.0
    %1169 = vmatmul.mubr.f32.gmra.mxu0 %v561
    %v1170 = vpop.f32.mrf.mxu0
    %v1171 = vadd.f32 %v323, %v1170
    %v1172 = vpop.f32.mrf.mxu0
    %1173 = vmatprep.mubr.f32.mxu0 0.0
    %1174 = vmatmul.mubr.f32.gmra.mxu0 %v564
    %v1175 = vpop.f32.mrf.mxu0
    %v1176 = vadd.f32 %v323, %v1175
    %v1177 = vpop.f32.mrf.mxu0
    %1178 = vmatprep.mubr.f32.mxu0 0.0
    %1179 = vmatmul.mubr.f32.gmra.mxu0 %v567
    %v1180 = vpop.f32.mrf.mxu0
    %v1181 = vadd.f32 %v323, %v1180
    %v1182 = vpop.f32.mrf.mxu0
    %1183 = vmatprep.mubr.f32.mxu0 0.0
    %1184 = vmatmul.mubr.f32.gmra.mxu0 %v570
    %v1185 = vpop.f32.mrf.mxu0
    %v1186 = vadd.f32 %v323, %v1185
    %v1187 = vpop.f32.mrf.mxu0
    %1188 = vmatprep.mubr.f32.mxu0 0.0
    %1189 = vmatmul.mubr.f32.gmra.mxu0 %v573
    %v1190 = vpop.f32.mrf.mxu0
    %v1191 = vadd.f32 %v323, %v1190
    %v1192 = vpop.f32.mrf.mxu0
    %1193 = vmatprep.mubr.f32.mxu0 0.0
    %1194 = vmatmul.mubr.f32.gmra.mxu0 %v576
    %v1195 = vpop.f32.mrf.mxu0
    %v1196 = vadd.f32 %v323, %v1195
    %v1197 = vpop.f32.mrf.mxu0
    %1198 = vmatprep.mubr.f32.mxu0 0.0
    %1199 = vmatmul.mubr.f32.gmra.mxu0 %v579
    %v1200 = vpop.f32.mrf.mxu0
    %v1201 = vadd.f32 %v323, %v1200
    %v1202 = vpop.f32.mrf.mxu0
    %1203 = vmatprep.mubr.f32.mxu0 0.0
    %1204 = vmatmul.mubr.f32.gmra.mxu0 %v582
    %v1205 = vpop.f32.mrf.mxu0
    %v1206 = vadd.f32 %v323, %v1205
    %v1207 = vpop.f32.mrf.mxu0
    %1208 = vmatprep.mubr.f32.mxu0 0.0
    %1209 = vmatmul.mubr.f32.gmra.mxu0 %v585
    %v1210 = vpop.f32.mrf.mxu0
    %v1211 = vadd.f32 %v323, %v1210
    %v1212 = vpop.f32.mrf.mxu0
    %1213 = vmatprep.mubr.f32.mxu0 0.0
    %1214 = vmatmul.mubr.f32.gmra.mxu0 %v588
    %v1215 = vpop.f32.mrf.mxu0
    %v1216 = vadd.f32 %v323, %v1215
    %v1217 = vpop.f32.mrf.mxu0
    %1218 = vmatprep.mubr.f32.mxu0 0.0
    %1219 = vmatmul.mubr.f32.gmra.mxu0 %v591
    %v1220 = vpop.f32.mrf.mxu0
    %v1221 = vadd.f32 %v323, %v1220
    %v1222 = vpop.f32.mrf.mxu0
    %1223 = vmatprep.mubr.f32.mxu0 0.0
    %1224 = vmatmul.mubr.f32.gmra.mxu0 %v594
    %v1225 = vpop.f32.mrf.mxu0
    %v1226 = vadd.f32 %v323, %v1225
    %v1227 = vpop.f32.mrf.mxu0
    %1228 = vmatprep.mubr.f32.mxu0 0.0
    %1229 = vmatmul.mubr.f32.gmra.mxu0 %v597
    %v1230 = vpop.f32.mrf.mxu0
    %v1231 = vadd.f32 %v323, %v1230
    %v1232 = vpop.f32.mrf.mxu0
    %1233 = vmatprep.mubr.f32.mxu0 0.0
    %1234 = vmatmul.mubr.f32.gmra.mxu0 %v600
    %v1235 = vpop.f32.mrf.mxu0
    %v1236 = vadd.f32 %v323, %v1235
    %v1237 = vpop.f32.mrf.mxu0
    %1238 = vmatprep.mubr.f32.mxu0 0.0
    %1239 = vmatmul.mubr.f32.gmra.mxu0 %v603
    %v1240 = vpop.f32.mrf.mxu0
    %v1241 = vadd.f32 %v323, %v1240
    %v1242 = vpop.f32.mrf.mxu0
    %1243 = vmatprep.mubr.f32.mxu0 0.0
    %1244 = vmatmul.mubr.f32.gmra.mxu0 %v606
    %v1245 = vpop.f32.mrf.mxu0
    %v1246 = vadd.f32 %v323, %v1245
    %v1247 = vpop.f32.mrf.mxu0
    %1248 = vmatprep.mubr.f32.mxu0 0.0
    %1249 = vmatmul.mubr.f32.gmra.mxu0 %v609
    %v1250 = vpop.f32.mrf.mxu0
    %v1251 = vadd.f32 %v323, %v1250
    %v1252 = vpop.f32.mrf.mxu0
    %1253 = vmatprep.mubr.f32.mxu0 0.0
    %1254 = vmatmul.mubr.f32.gmra.mxu0 %v612
    %v1255 = vpop.f32.mrf.mxu0
    %v1256 = vadd.f32 %v323, %v1255
    %v1257 = vpop.f32.mrf.mxu0
    %1258 = vmatprep.mubr.f32.mxu0 0.0
    %1259 = vmatmul.mubr.f32.gmra.mxu0 %v615
    %v1260 = vpop.f32.mrf.mxu0
    %v1261 = vadd.f32 %v323, %v1260
    %v1262 = vpop.f32.mrf.mxu0
    %1263 = vmatprep.mubr.f32.mxu0 0.0
    %1264 = vmatmul.mubr.f32.gmra.mxu0 %v618
    %v1265 = vpop.f32.mrf.mxu0
    %v1266 = vadd.f32 %v323, %v1265
    %v1267 = vpop.f32.mrf.mxu0
    %1268 = vmatprep.mubr.f32.mxu0 0.0
    %1269 = vmatmul.mubr.f32.gmra.mxu0 %v621
    %v1270 = vpop.f32.mrf.mxu0
    %v1271 = vadd.f32 %v323, %v1270
    %v1272 = vpop.f32.mrf.mxu0
    %1273 = vmatprep.mubr.f32.mxu0 0.0
    %1274 = vmatmul.mubr.f32.gmra.mxu0 %v624
    %v1275 = vpop.f32.mrf.mxu0
    %v1276 = vadd.f32 %v323, %v1275
    %v1277 = vpop.f32.mrf.mxu0
    %1278 = vmatprep.mubr.f32.mxu0 0.0
    %1279 = vmatmul.mubr.f32.gmra.mxu0 %v627
    %v1280 = vpop.f32.mrf.mxu0
    %v1281 = vadd.f32 %v323, %v1280
    %v1282 = vpop.f32.mrf.mxu0
    %1283 = vmatprep.mubr.f32.mxu0 0.0
    %1284 = vmatmul.mubr.f32.gmra.mxu0 %v630
    %v1285 = vpop.f32.mrf.mxu0
    %v1286 = vadd.f32 %v323, %v1285
    %v1287 = vpop.f32.mrf.mxu0
    %1288 = vmatprep.mubr.f32.mxu0 0.0
    %1289 = vmatmul.mubr.f32.gmra.mxu0 %v633
    %v1290 = vpop.f32.mrf.mxu0
    %v1291 = vadd.f32 %v323, %v1290
    %v1292 = vpop.f32.mrf.mxu0
    %1293 = vmatprep.mubr.f32.mxu0 0.0
    %1294 = vmatmul.mubr.f32.gmra.mxu0 %v636
    %v1295 = vpop.f32.mrf.mxu0
    %v1296 = vadd.f32 %v323, %v1295
    %v1297 = vpop.f32.mrf.mxu0
    %1298 = vmatprep.mubr.f32.mxu0 0.0
    %1299 = vmatmul.mubr.f32.gmra.mxu0 %v639
    %v1300 = vpop.f32.mrf.mxu0
    %v1301 = vadd.f32 %v323, %v1300
    %v1302 = vpop.f32.mrf.mxu0
    %1303 = vmatprep.mubr.f32.mxu0 0.0
    %1304 = vmatmul.mubr.f32.gmra.mxu0 %v642
    %v1305 = vpop.f32.mrf.mxu0
    %v1306 = vadd.f32 %v323, %v1305
    %v1307 = vpop.f32.mrf.mxu0
    %1308 = vmatprep.mubr.f32.mxu0 0.0
    %1309 = vmatmul.mubr.f32.gmra.mxu0 %v645
    %v1310 = vpop.f32.mrf.mxu0
    %v1311 = vadd.f32 %v323, %v1310
    %v1312 = vpop.f32.mrf.mxu0
    %1313 = vmatprep.mubr.f32.mxu0 0.0
    %1314 = vmatmul.mubr.f32.gmra.mxu0 %v648
    %v1315 = vpop.f32.mrf.mxu0
    %v1316 = vadd.f32 %v323, %v1315
    %v1317 = vpop.f32.mrf.mxu0
    %1318 = vmatprep.mubr.f32.mxu0 0.0
    %1319 = vmatmul.mubr.f32.gmra.mxu0 %v651
    %v1320 = vpop.f32.mrf.mxu0
    %v1321 = vadd.f32 %v323, %v1320
    %v1322 = vpop.f32.mrf.mxu0
    %1323 = vmatprep.mubr.f32.mxu0 0.0
    %1324 = vmatmul.mubr.f32.gmra.mxu0 %v654
    %v1325 = vpop.f32.mrf.mxu0
    %v1326 = vadd.f32 %v323, %v1325
    %v1327 = vpop.f32.mrf.mxu0
    %1328 = vmatprep.mubr.f32.mxu0 0.0
    %1329 = vmatmul.mubr.f32.gmra.mxu0 %v657
    %v1330 = vpop.f32.mrf.mxu0
    %v1331 = vadd.f32 %v323, %v1330
    %v1332 = vpop.f32.mrf.mxu0
    %1333 = vmatprep.mubr.f32.mxu0 0.0
    %1334 = vmatmul.mubr.f32.gmra.mxu0 %v660
    %v1335 = vpop.f32.mrf.mxu0
    %v1336 = vadd.f32 %v323, %v1335
    %v1337 = vpop.f32.mrf.mxu0
    %1338 = vmatprep.mubr.f32.mxu0 0.0
    %1339 = vmatmul.mubr.f32.gmra.mxu0 %v663
    %v1340 = vpop.f32.mrf.mxu0
    %v1341 = vadd.f32 %v323, %v1340
    %v1342 = vpop.f32.mrf.mxu0
    %1343 = vmatprep.mubr.f32.mxu0 0.0
    %1344 = vmatmul.mubr.f32.gmra.mxu0 %v666
    %v1345 = vpop.f32.mrf.mxu0
    %v1346 = vadd.f32 %v323, %v1345
    %v1347 = vpop.f32.mrf.mxu0
    %1348 = vmatprep.mubr.f32.mxu0 0.0
    %1349 = vmatmul.mubr.f32.gmra.mxu0 %v669
    %v1350 = vpop.f32.mrf.mxu0
    %v1351 = vadd.f32 %v323, %v1350
    %v1352 = vpop.f32.mrf.mxu0
    %1353 = vmatprep.mubr.f32.mxu0 0.0
    %1354 = vmatmul.mubr.f32.gmra.mxu0 %v672
    %v1355 = vpop.f32.mrf.mxu0
    %v1356 = vadd.f32 %v323, %v1355
    %v1357 = vpop.f32.mrf.mxu0
    %1358 = vmatprep.mubr.f32.mxu0 0.0
    %1359 = vmatmul.mubr.f32.gmra.mxu0 %v675
    %v1360 = vpop.f32.mrf.mxu0
    %v1361 = vadd.f32 %v323, %v1360
    %v1362 = vpop.f32.mrf.mxu0
    %1363 = vmatprep.mubr.f32.mxu0 0.0
    %1364 = vmatmul.mubr.f32.gmra.mxu0 %v678
    %v1365 = vpop.f32.mrf.mxu0
    %v1366 = vadd.f32 %v323, %v1365
    %v1367 = vpop.f32.mrf.mxu0
    %1368 = vmatprep.mubr.f32.mxu0 0.0
    %1369 = vmatmul.mubr.f32.gmra.mxu0 %v681
    %v1370 = vpop.f32.mrf.mxu0
    %v1371 = vadd.f32 %v323, %v1370
    %v1372 = vpop.f32.mrf.mxu0
    %1373 = vmatprep.mubr.f32.mxu0 0.0
    %1374 = vmatmul.mubr.f32.gmra.mxu0 %v684
    %v1375 = vpop.f32.mrf.mxu0
    %v1376 = vadd.f32 %v323, %v1375
    %v1377 = vpop.f32.mrf.mxu0
    %1378 = vmatprep.mubr.f32.mxu0 0.0
    %1379 = vmatmul.mubr.f32.gmra.mxu0 %v687
    %v1380 = vpop.f32.mrf.mxu0
    %v1381 = vadd.f32 %v323, %v1380
    %v1382 = vpop.f32.mrf.mxu0
    %1383 = vmatprep.mubr.f32.mxu0 0.0
    %1384 = vmatmul.mubr.f32.gmra.mxu0 %v690
    %v1385 = vpop.f32.mrf.mxu0
    %v1386 = vadd.f32 %v323, %v1385
    %v1387 = vpop.f32.mrf.mxu0
    %1388 = vmatprep.mubr.f32.mxu0 0.0
    %1389 = vmatmul.mubr.f32.gmra.mxu0 %v693
    %v1390 = vpop.f32.mrf.mxu0
    %v1391 = vadd.f32 %v323, %v1390
    %v1392 = vpop.f32.mrf.mxu0
    %1393 = vmatprep.mubr.f32.mxu0 0.0
    %1394 = vmatmul.mubr.f32.gmra.mxu0 %v696
    %v1395 = vpop.f32.mrf.mxu0
    %v1396 = vadd.f32 %v323, %v1395
    %v1397 = vpop.f32.mrf.mxu0
    %1398 = vmatprep.mubr.f32.mxu0 0.0
    %1399 = vmatmul.mubr.f32.gmra.mxu0 %v699
    %v1400 = vpop.f32.mrf.mxu0
    %v1401 = vadd.f32 %v323, %v1400
    %v1402 = vpop.f32.mrf.mxu0
    %1403 = vmatprep.mubr.f32.mxu0 0.0
    %1404 = vmatmul.mubr.f32.gmra.mxu0 %v702
    %v1405 = vpop.f32.mrf.mxu0
    %v1406 = vadd.f32 %v323, %v1405
    %v1407 = vpop.f32.mrf.mxu0
    %1408 = vmatprep.mubr.f32.mxu0 0.0
    %1409 = vmatmul.mubr.f32.gmra.mxu0 %v705
    %v1410 = vpop.f32.mrf.mxu0
    %v1411 = vadd.f32 %v323, %v1410
    %v1412 = vpop.f32.mrf.mxu0
    %1413 = vmatprep.mubr.f32.mxu0 0.0
    %1414 = vmatmul.mubr.f32.gmra.mxu0 %v708
    %v1415 = vpop.f32.mrf.mxu0
    %v1416 = vadd.f32 %v323, %v1415
    %v1417 = vpop.f32.mrf.mxu0
    %1418 = vdwg.mxu0
    %v1419 = vmax.f32 %v781, 0.0
    %v1420 = vmax.f32 %v786, 0.0
    %v1421 = vmax.f32 %v791, 0.0
    %v1422 = vmax.f32 %v796, 0.0
    %v1423 = vmax.f32 %v801, 0.0
    %v1424 = vmax.f32 %v806, 0.0
    %v1425 = vmax.f32 %v811, 0.0
    %v1426 = vmax.f32 %v816, 0.0
    %v1427 = vmax.f32 %v821, 0.0
    %v1428 = vmax.f32 %v826, 0.0
    %v1429 = vmax.f32 %v831, 0.0
    %v1430 = vmax.f32 %v836, 0.0
    %v1431 = vmax.f32 %v841, 0.0
    %v1432 = vmax.f32 %v846, 0.0
    %v1433 = vmax.f32 %v851, 0.0
    %v1434 = vmax.f32 %v856, 0.0
    %v1435 = vmax.f32 %v861, 0.0
    %v1436 = vmax.f32 %v866, 0.0
    %v1437 = vmax.f32 %v871, 0.0
    %v1438 = vmax.f32 %v876, 0.0
    %v1439 = vmax.f32 %v881, 0.0
    %v1440 = vmax.f32 %v886, 0.0
    %v1441 = vmax.f32 %v891, 0.0
    %v1442 = vmax.f32 %v896, 0.0
    %v1443 = vmax.f32 %v901, 0.0
    %v1444 = vmax.f32 %v906, 0.0
    %v1445 = vmax.f32 %v911, 0.0
    %v1446 = vmax.f32 %v916, 0.0
    %v1447 = vmax.f32 %v921, 0.0
    %v1448 = vmax.f32 %v926, 0.0
    %v1449 = vmax.f32 %v931, 0.0
    %v1450 = vmax.f32 %v936, 0.0
    %v1451 = vmax.f32 %v941, 0.0
    %v1452 = vmax.f32 %v946, 0.0
    %v1453 = vmax.f32 %v951, 0.0
    %v1454 = vmax.f32 %v956, 0.0
    %v1455 = vmax.f32 %v961, 0.0
    %v1456 = vmax.f32 %v966, 0.0
    %v1457 = vmax.f32 %v971, 0.0
    %v1458 = vmax.f32 %v976, 0.0
    %v1459 = vmax.f32 %v981, 0.0
    %v1460 = vmax.f32 %v986, 0.0
    %v1461 = vmax.f32 %v991, 0.0
    %v1462 = vmax.f32 %v996, 0.0
    %v1463 = vmax.f32 %v1001, 0.0
    %v1464 = vmax.f32 %v1006, 0.0
    %v1465 = vmax.f32 %v1011, 0.0
    %v1466 = vmax.f32 %v1016, 0.0
    %v1467 = vmax.f32 %v1021, 0.0
    %v1468 = vmax.f32 %v1026, 0.0
    %v1469 = vmax.f32 %v1031, 0.0
    %v1470 = vmax.f32 %v1036, 0.0
    %v1471 = vmax.f32 %v1041, 0.0
    %v1472 = vmax.f32 %v1046, 0.0
    %v1473 = vmax.f32 %v1051, 0.0
    %v1474 = vmax.f32 %v1056, 0.0
    %v1475 = vmax.f32 %v1061, 0.0
    %v1476 = vmax.f32 %v1066, 0.0
    %v1477 = vmax.f32 %v1071, 0.0
    %v1478 = vmax.f32 %v1076, 0.0
    %v1479 = vmax.f32 %v1081, 0.0
    %v1480 = vmax.f32 %v1086, 0.0
    %v1481 = vmax.f32 %v1091, 0.0
    %v1482 = vmax.f32 %v1096, 0.0
    %v1483 = vmax.f32 %v1101, 0.0
    %v1484 = vmax.f32 %v1106, 0.0
    %v1485 = vmax.f32 %v1111, 0.0
    %v1486 = vmax.f32 %v1116, 0.0
    %v1487 = vmax.f32 %v1121, 0.0
    %v1488 = vmax.f32 %v1126, 0.0
    %v1489 = vmax.f32 %v1131, 0.0
    %v1490 = vmax.f32 %v1136, 0.0
    %v1491 = vmax.f32 %v1141, 0.0
    %v1492 = vmax.f32 %v1146, 0.0
    %v1493 = vmax.f32 %v1151, 0.0
    %v1494 = vmax.f32 %v1156, 0.0
    %v1495 = vmax.f32 %v1161, 0.0
    %v1496 = vmax.f32 %v1166, 0.0
    %v1497 = vmax.f32 %v1171, 0.0
    %v1498 = vmax.f32 %v1176, 0.0
    %v1499 = vmax.f32 %v1181, 0.0
    %v1500 = vmax.f32 %v1186, 0.0
    %v1501 = vmax.f32 %v1191, 0.0
    %v1502 = vmax.f32 %v1196, 0.0
    %v1503 = vmax.f32 %v1201, 0.0
    %v1504 = vmax.f32 %v1206, 0.0
    %v1505 = vmax.f32 %v1211, 0.0
    %v1506 = vmax.f32 %v1216, 0.0
    %v1507 = vmax.f32 %v1221, 0.0
    %v1508 = vmax.f32 %v1226, 0.0
    %v1509 = vmax.f32 %v1231, 0.0
    %v1510 = vmax.f32 %v1236, 0.0
    %v1511 = vmax.f32 %v1241, 0.0
    %v1512 = vmax.f32 %v1246, 0.0
    %v1513 = vmax.f32 %v1251, 0.0
    %v1514 = vmax.f32 %v1256, 0.0
    %v1515 = vmax.f32 %v1261, 0.0
    %v1516 = vmax.f32 %v1266, 0.0
    %v1517 = vmax.f32 %v1271, 0.0
    %v1518 = vmax.f32 %v1276, 0.0
    %v1519 = vmax.f32 %v1281, 0.0
    %v1520 = vmax.f32 %v1286, 0.0
    %v1521 = vmax.f32 %v1291, 0.0
    %v1522 = vmax.f32 %v1296, 0.0
    %v1523 = vmax.f32 %v1301, 0.0
    %v1524 = vmax.f32 %v1306, 0.0
    %v1525 = vmax.f32 %v1311, 0.0
    %v1526 = vmax.f32 %v1316, 0.0
    %v1527 = vmax.f32 %v1321, 0.0
    %v1528 = vmax.f32 %v1326, 0.0
    %v1529 = vmax.f32 %v1331, 0.0
    %v1530 = vmax.f32 %v1336, 0.0
    %v1531 = vmax.f32 %v1341, 0.0
    %v1532 = vmax.f32 %v1346, 0.0
    %v1533 = vmax.f32 %v1351, 0.0
    %v1534 = vmax.f32 %v1356, 0.0
    %v1535 = vmax.f32 %v1361, 0.0
    %v1536 = vmax.f32 %v1366, 0.0
    %v1537 = vmax.f32 %v1371, 0.0
    %v1538 = vmax.f32 %v1376, 0.0
    %v1539 = vmax.f32 %v1381, 0.0
    %v1540 = vmax.f32 %v1386, 0.0
    %v1541 = vmax.f32 %v1391, 0.0
    %v1542 = vmax.f32 %v1396, 0.0
    %v1543 = vmax.f32 %v1401, 0.0
    %v1544 = vmax.f32 %v1406, 0.0
    %v1545 = vmax.f32 %v1411, 0.0
    %v1546 = vmax.f32 %v1416, 0.0
    %v1547 = vld [vmem:[%s3] sm:$0xff]
    %v1548 = vld [vmem:[%s3 + $0x8] sm:$0xff]
    %v1549 = vld [vmem:[%s4] sm:$0x1]
    %v1551 = vlaneseq
    %v1552 = vshrl.u32 %v1551, 7
    %v1553 = vsub.s32 0, %v1552
    %v1554 = vrot.slane %v1549, %v1553
    %vm1556 = vcmask 130048
    %v1558 = vsel %vm1556, %v1419, 0
    %v1561 = vsel %vm1556, %v1420, 0
    %v1564 = vsel %vm1556, %v1421, 0
    %v1567 = vsel %vm1556, %v1422, 0
    %v1570 = vsel %vm1556, %v1423, 0
    %v1573 = vsel %vm1556, %v1424, 0
    %v1576 = vsel %vm1556, %v1425, 0
    %v1579 = vsel %vm1556, %v1426, 0
    %v1582 = vsel %vm1556, %v1427, 0
    %v1585 = vsel %vm1556, %v1428, 0
    %v1588 = vsel %vm1556, %v1429, 0
    %v1591 = vsel %vm1556, %v1430, 0
    %v1594 = vsel %vm1556, %v1431, 0
    %v1597 = vsel %vm1556, %v1432, 0
    %v1600 = vsel %vm1556, %v1433, 0
    %v1603 = vsel %vm1556, %v1434, 0
    %v1606 = vsel %vm1556, %v1435, 0
    %v1609 = vsel %vm1556, %v1436, 0
    %v1612 = vsel %vm1556, %v1437, 0
    %v1615 = vsel %vm1556, %v1438, 0
    %v1618 = vsel %vm1556, %v1439, 0
    %v1621 = vsel %vm1556, %v1440, 0
    %v1624 = vsel %vm1556, %v1441, 0
    %v1627 = vsel %vm1556, %v1442, 0
    %v1630 = vsel %vm1556, %v1443, 0
    %v1633 = vsel %vm1556, %v1444, 0
    %v1636 = vsel %vm1556, %v1445, 0
    %v1639 = vsel %vm1556, %v1446, 0
    %v1642 = vsel %vm1556, %v1447, 0
    %v1645 = vsel %vm1556, %v1448, 0
    %v1648 = vsel %vm1556, %v1449, 0
    %v1651 = vsel %vm1556, %v1450, 0
    %v1654 = vsel %vm1556, %v1451, 0
    %v1657 = vsel %vm1556, %v1452, 0
    %v1660 = vsel %vm1556, %v1453, 0
    %v1663 = vsel %vm1556, %v1454, 0
    %v1666 = vsel %vm1556, %v1455, 0
    %v1669 = vsel %vm1556, %v1456, 0
    %v1672 = vsel %vm1556, %v1457, 0
    %v1675 = vsel %vm1556, %v1458, 0
    %v1678 = vsel %vm1556, %v1459, 0
    %v1681 = vsel %vm1556, %v1460, 0
    %v1684 = vsel %vm1556, %v1461, 0
    %v1687 = vsel %vm1556, %v1462, 0
    %v1690 = vsel %vm1556, %v1463, 0
    %v1693 = vsel %vm1556, %v1464, 0
    %v1696 = vsel %vm1556, %v1465, 0
    %v1699 = vsel %vm1556, %v1466, 0
    %v1702 = vsel %vm1556, %v1467, 0
    %v1705 = vsel %vm1556, %v1468, 0
    %v1708 = vsel %vm1556, %v1469, 0
    %v1711 = vsel %vm1556, %v1470, 0
    %v1714 = vsel %vm1556, %v1471, 0
    %v1717 = vsel %vm1556, %v1472, 0
    %v1720 = vsel %vm1556, %v1473, 0
    %v1723 = vsel %vm1556, %v1474, 0
    %v1726 = vsel %vm1556, %v1475, 0
    %v1729 = vsel %vm1556, %v1476, 0
    %v1732 = vsel %vm1556, %v1477, 0
    %v1735 = vsel %vm1556, %v1478, 0
    %v1738 = vsel %vm1556, %v1479, 0
    %v1741 = vsel %vm1556, %v1480, 0
    %v1744 = vsel %vm1556, %v1481, 0
    %v1747 = vsel %vm1556, %v1482, 0
    %v1750 = vsel %vm1556, %v1483, 0
    %v1753 = vsel %vm1556, %v1484, 0
    %v1756 = vsel %vm1556, %v1485, 0
    %v1759 = vsel %vm1556, %v1486, 0
    %v1762 = vsel %vm1556, %v1487, 0
    %v1765 = vsel %vm1556, %v1488, 0
    %v1768 = vsel %vm1556, %v1489, 0
    %v1771 = vsel %vm1556, %v1490, 0
    %v1774 = vsel %vm1556, %v1491, 0
    %v1777 = vsel %vm1556, %v1492, 0
    %v1780 = vsel %vm1556, %v1493, 0
    %v1783 = vsel %vm1556, %v1494, 0
    %v1786 = vsel %vm1556, %v1495, 0
    %v1789 = vsel %vm1556, %v1496, 0
    %v1792 = vsel %vm1556, %v1497, 0
    %v1795 = vsel %vm1556, %v1498, 0
    %v1798 = vsel %vm1556, %v1499, 0
    %v1801 = vsel %vm1556, %v1500, 0
    %v1804 = vsel %vm1556, %v1501, 0
    %v1807 = vsel %vm1556, %v1502, 0
    %v1810 = vsel %vm1556, %v1503, 0
    %v1813 = vsel %vm1556, %v1504, 0
    %v1816 = vsel %vm1556, %v1505, 0
    %v1819 = vsel %vm1556, %v1506, 0
    %v1822 = vsel %vm1556, %v1507, 0
    %v1825 = vsel %vm1556, %v1508, 0
    %v1828 = vsel %vm1556, %v1509, 0
    %v1831 = vsel %vm1556, %v1510, 0
    %v1834 = vsel %vm1556, %v1511, 0
    %v1837 = vsel %vm1556, %v1512, 0
    %v1840 = vsel %vm1556, %v1513, 0
    %v1843 = vsel %vm1556, %v1514, 0
    %v1846 = vsel %vm1556, %v1515, 0
    %v1849 = vsel %vm1556, %v1516, 0
    %v1852 = vsel %vm1556, %v1517, 0
    %v1855 = vsel %vm1556, %v1518, 0
    %v1858 = vsel %vm1556, %v1519, 0
    %v1861 = vsel %vm1556, %v1520, 0
    %v1864 = vsel %vm1556, %v1521, 0
    %v1867 = vsel %vm1556, %v1522, 0
    %v1870 = vsel %vm1556, %v1523, 0
    %v1873 = vsel %vm1556, %v1524, 0
    %v1876 = vsel %vm1556, %v1525, 0
    %v1879 = vsel %vm1556, %v1526, 0
    %v1882 = vsel %vm1556, %v1527, 0
    %v1885 = vsel %vm1556, %v1528, 0
    %v1888 = vsel %vm1556, %v1529, 0
    %v1891 = vsel %vm1556, %v1530, 0
    %v1894 = vsel %vm1556, %v1531, 0
    %v1897 = vsel %vm1556, %v1532, 0
    %v1900 = vsel %vm1556, %v1533, 0
    %v1903 = vsel %vm1556, %v1534, 0
    %v1906 = vsel %vm1556, %v1535, 0
    %v1909 = vsel %vm1556, %v1536, 0
    %v1912 = vsel %vm1556, %v1537, 0
    %v1915 = vsel %vm1556, %v1538, 0
    %v1918 = vsel %vm1556, %v1539, 0
    %v1921 = vsel %vm1556, %v1540, 0
    %v1924 = vsel %vm1556, %v1541, 0
    %v1927 = vsel %vm1556, %v1542, 0
    %v1930 = vsel %vm1556, %v1543, 0
    %v1933 = vsel %vm1556, %v1544, 0
    %v1936 = vsel %vm1556, %v1545, 0
    %v1939 = vsel %vm1556, %v1546, 0
    %1941 = vmatprep.subr.mxu0 0.0
    %1942 = vmatpush1.msra.mxu0 0.0
    %1943 = vmatprep.subr.mxu0 0.0
    %1944 = vmatpush1.msra.mxu0 0.0
    %1945 = vmatprep.subr.mxu0 0.0
    %1946 = vmatpush1.msra.mxu0 0.0
    %1947 = vmatprep.subr.mxu0 0.0
    %1948 = vmatpush1.msra.mxu0 0.0
    %1949 = vmatprep.subr.mxu0 0.0
    %1950 = vmatpush1.msra.mxu0 0.0
    %1951 = vmatprep.subr.mxu0 0.0
    %1952 = vmatpush1.msra.mxu0 0.0
    %1953 = vmatprep.subr.mxu0 0.0
    %1954 = vmatpush1.msra.mxu0 0.0
    %1955 = vmatprep.subr.mxu0 0.0
    %1956 = vmatpush1.msra.mxu0 0.0
    %1957 = vmatprep.subr.mxu0 0.0
    %1958 = vmatpush1.msra.mxu0 0.0
    %1959 = vmatprep.subr.mxu0 0.0
    %1960 = vmatpush1.msra.mxu0 0.0
    %1961 = vmatprep.subr.mxu0 0.0
    %1962 = vmatpush1.msra.mxu0 0.0
    %1963 = vmatprep.subr.mxu0 0.0
    %1964 = vmatpush1.msra.mxu0 0.0
    %1965 = vmatprep.subr.mxu0 0.0
    %1966 = vmatpush1.msra.mxu0 0.0
    %1967 = vmatprep.subr.mxu0 0.0
    %1968 = vmatpush1.msra.mxu0 0.0
    %1969 = vmatprep.subr.mxu0 0.0
    %1970 = vmatpush1.msra.mxu0 %v1548
    %1971 = vmatprep.subr.mxu0 0.0
    %1972 = vmatpush1.msra.mxu0 %v1547
    %1973 = vmatprep.subr.mxu0 0.0
    %1974 = vmatpush2.msra.mxu0 0.0
    %1975 = vmatprep.subr.mxu0 0.0
    %1976 = vmatpush2.msra.mxu0 0.0
    %1977 = vmatprep.subr.mxu0 0.0
    %1978 = vmatpush2.msra.mxu0 0.0
    %1979 = vmatprep.subr.mxu0 0.0
    %1980 = vmatpush2.msra.mxu0 0.0
    %1981 = vmatprep.subr.mxu0 0.0
    %1982 = vmatpush2.msra.mxu0 0.0
    %1983 = vmatprep.subr.mxu0 0.0
    %1984 = vmatpush2.msra.mxu0 0.0
    %1985 = vmatprep.subr.mxu0 0.0
    %1986 = vmatpush2.msra.mxu0 0.0
    %1987 = vmatprep.subr.mxu0 0.0
    %1988 = vmatpush2.msra.mxu0 0.0
    %1989 = vmatprep.subr.mxu0 0.0
    %1990 = vmatpush2.msra.mxu0 0.0
    %1991 = vmatprep.subr.mxu0 0.0
    %1992 = vmatpush2.msra.mxu0 0.0
    %1993 = vmatprep.subr.mxu0 0.0
    %1994 = vmatpush2.msra.mxu0 0.0
    %1995 = vmatprep.subr.mxu0 0.0
    %1996 = vmatpush2.msra.mxu0 0.0
    %1997 = vmatprep.subr.mxu0 0.0
    %1998 = vmatpush2.msra.mxu0 0.0
    %1999 = vmatprep.subr.mxu0 0.0
    %2000 = vmatpush2.msra.mxu0 0.0
    %2001 = vmatprep.subr.mxu0 0.0
    %2002 = vmatpush2.msra.mxu0 0.0
    %2003 = vmatprep.subr.mxu0 0.0
    %2004 = vmatpush2.msra.mxu0 0.0
    %2005 = vmatprep.mubr.f32.mxu0 0.0
    %2006 = vmatmul.mubr.f32.gmra.mxu0 %v1558
    %v2007 = vpop.f32.mrf.mxu0
    %v2008 = vadd.f32 %v1554, %v2007
    %v2009 = vpop.f32.mrf.mxu0
    %2010 = vmatprep.mubr.f32.mxu0 0.0
    %2011 = vmatmul.mubr.f32.gmra.mxu0 %v1561
    %v2012 = vpop.f32.mrf.mxu0
    %v2013 = vadd.f32 %v1554, %v2012
    %v2014 = vpop.f32.mrf.mxu0
    %2015 = vmatprep.mubr.f32.mxu0 0.0
    %2016 = vmatmul.mubr.f32.gmra.mxu0 %v1564
    %v2017 = vpop.f32.mrf.mxu0
    %v2018 = vadd.f32 %v1554, %v2017
    %v2019 = vpop.f32.mrf.mxu0
    %2020 = vmatprep.mubr.f32.mxu0 0.0
    %2021 = vmatmul.mubr.f32.gmra.mxu0 %v1567
    %v2022 = vpop.f32.mrf.mxu0
    %v2023 = vadd.f32 %v1554, %v2022
    %v2024 = vpop.f32.mrf.mxu0
    %2025 = vmatprep.mubr.f32.mxu0 0.0
    %2026 = vmatmul.mubr.f32.gmra.mxu0 %v1570
    %v2027 = vpop.f32.mrf.mxu0
    %v2028 = vadd.f32 %v1554, %v2027
    %v2029 = vpop.f32.mrf.mxu0
    %2030 = vmatprep.mubr.f32.mxu0 0.0
    %2031 = vmatmul.mubr.f32.gmra.mxu0 %v1573
    %v2032 = vpop.f32.mrf.mxu0
    %v2033 = vadd.f32 %v1554, %v2032
    %v2034 = vpop.f32.mrf.mxu0
    %2035 = vmatprep.mubr.f32.mxu0 0.0
    %2036 = vmatmul.mubr.f32.gmra.mxu0 %v1576
    %v2037 = vpop.f32.mrf.mxu0
    %v2038 = vadd.f32 %v1554, %v2037
    %v2039 = vpop.f32.mrf.mxu0
    %2040 = vmatprep.mubr.f32.mxu0 0.0
    %2041 = vmatmul.mubr.f32.gmra.mxu0 %v1579
    %v2042 = vpop.f32.mrf.mxu0
    %v2043 = vadd.f32 %v1554, %v2042
    %v2044 = vpop.f32.mrf.mxu0
    %2045 = vmatprep.mubr.f32.mxu0 0.0
    %2046 = vmatmul.mubr.f32.gmra.mxu0 %v1582
    %v2047 = vpop.f32.mrf.mxu0
    %v2048 = vadd.f32 %v1554, %v2047
    %v2049 = vpop.f32.mrf.mxu0
    %2050 = vmatprep.mubr.f32.mxu0 0.0
    %2051 = vmatmul.mubr.f32.gmra.mxu0 %v1585
    %v2052 = vpop.f32.mrf.mxu0
    %v2053 = vadd.f32 %v1554, %v2052
    %v2054 = vpop.f32.mrf.mxu0
    %2055 = vmatprep.mubr.f32.mxu0 0.0
    %2056 = vmatmul.mubr.f32.gmra.mxu0 %v1588
    %v2057 = vpop.f32.mrf.mxu0
    %v2058 = vadd.f32 %v1554, %v2057
    %v2059 = vpop.f32.mrf.mxu0
    %2060 = vmatprep.mubr.f32.mxu0 0.0
    %2061 = vmatmul.mubr.f32.gmra.mxu0 %v1591
    %v2062 = vpop.f32.mrf.mxu0
    %v2063 = vadd.f32 %v1554, %v2062
    %v2064 = vpop.f32.mrf.mxu0
    %2065 = vmatprep.mubr.f32.mxu0 0.0
    %2066 = vmatmul.mubr.f32.gmra.mxu0 %v1594
    %v2067 = vpop.f32.mrf.mxu0
    %v2068 = vadd.f32 %v1554, %v2067
    %v2069 = vpop.f32.mrf.mxu0
    %2070 = vmatprep.mubr.f32.mxu0 0.0
    %2071 = vmatmul.mubr.f32.gmra.mxu0 %v1597
    %v2072 = vpop.f32.mrf.mxu0
    %v2073 = vadd.f32 %v1554, %v2072
    %v2074 = vpop.f32.mrf.mxu0
    %2075 = vmatprep.mubr.f32.mxu0 0.0
    %2076 = vmatmul.mubr.f32.gmra.mxu0 %v1600
    %v2077 = vpop.f32.mrf.mxu0
    %v2078 = vadd.f32 %v1554, %v2077
    %v2079 = vpop.f32.mrf.mxu0
    %2080 = vmatprep.mubr.f32.mxu0 0.0
    %2081 = vmatmul.mubr.f32.gmra.mxu0 %v1603
    %v2082 = vpop.f32.mrf.mxu0
    %v2083 = vadd.f32 %v1554, %v2082
    %v2084 = vpop.f32.mrf.mxu0
    %2085 = vmatprep.mubr.f32.mxu0 0.0
    %2086 = vmatmul.mubr.f32.gmra.mxu0 %v1606
    %v2087 = vpop.f32.mrf.mxu0
    %v2088 = vadd.f32 %v1554, %v2087
    %v2089 = vpop.f32.mrf.mxu0
    %2090 = vmatprep.mubr.f32.mxu0 0.0
    %2091 = vmatmul.mubr.f32.gmra.mxu0 %v1609
    %v2092 = vpop.f32.mrf.mxu0
    %v2093 = vadd.f32 %v1554, %v2092
    %v2094 = vpop.f32.mrf.mxu0
    %2095 = vmatprep.mubr.f32.mxu0 0.0
    %2096 = vmatmul.mubr.f32.gmra.mxu0 %v1612
    %v2097 = vpop.f32.mrf.mxu0
    %v2098 = vadd.f32 %v1554, %v2097
    %v2099 = vpop.f32.mrf.mxu0
    %2100 = vmatprep.mubr.f32.mxu0 0.0
    %2101 = vmatmul.mubr.f32.gmra.mxu0 %v1615
    %v2102 = vpop.f32.mrf.mxu0
    %v2103 = vadd.f32 %v1554, %v2102
    %v2104 = vpop.f32.mrf.mxu0
    %2105 = vmatprep.mubr.f32.mxu0 0.0
    %2106 = vmatmul.mubr.f32.gmra.mxu0 %v1618
    %v2107 = vpop.f32.mrf.mxu0
    %v2108 = vadd.f32 %v1554, %v2107
    %v2109 = vpop.f32.mrf.mxu0
    %2110 = vmatprep.mubr.f32.mxu0 0.0
    %2111 = vmatmul.mubr.f32.gmra.mxu0 %v1621
    %v2112 = vpop.f32.mrf.mxu0
    %v2113 = vadd.f32 %v1554, %v2112
    %v2114 = vpop.f32.mrf.mxu0
    %2115 = vmatprep.mubr.f32.mxu0 0.0
    %2116 = vmatmul.mubr.f32.gmra.mxu0 %v1624
    %v2117 = vpop.f32.mrf.mxu0
    %v2118 = vadd.f32 %v1554, %v2117
    %v2119 = vpop.f32.mrf.mxu0
    %2120 = vmatprep.mubr.f32.mxu0 0.0
    %2121 = vmatmul.mubr.f32.gmra.mxu0 %v1627
    %v2122 = vpop.f32.mrf.mxu0
    %v2123 = vadd.f32 %v1554, %v2122
    %v2124 = vpop.f32.mrf.mxu0
    %2125 = vmatprep.mubr.f32.mxu0 0.0
    %2126 = vmatmul.mubr.f32.gmra.mxu0 %v1630
    %v2127 = vpop.f32.mrf.mxu0
    %v2128 = vadd.f32 %v1554, %v2127
    %v2129 = vpop.f32.mrf.mxu0
    %2130 = vmatprep.mubr.f32.mxu0 0.0
    %2131 = vmatmul.mubr.f32.gmra.mxu0 %v1633
    %v2132 = vpop.f32.mrf.mxu0
    %v2133 = vadd.f32 %v1554, %v2132
    %v2134 = vpop.f32.mrf.mxu0
    %2135 = vmatprep.mubr.f32.mxu0 0.0
    %2136 = vmatmul.mubr.f32.gmra.mxu0 %v1636
    %v2137 = vpop.f32.mrf.mxu0
    %v2138 = vadd.f32 %v1554, %v2137
    %v2139 = vpop.f32.mrf.mxu0
    %2140 = vmatprep.mubr.f32.mxu0 0.0
    %2141 = vmatmul.mubr.f32.gmra.mxu0 %v1639
    %v2142 = vpop.f32.mrf.mxu0
    %v2143 = vadd.f32 %v1554, %v2142
    %v2144 = vpop.f32.mrf.mxu0
    %2145 = vmatprep.mubr.f32.mxu0 0.0
    %2146 = vmatmul.mubr.f32.gmra.mxu0 %v1642
    %v2147 = vpop.f32.mrf.mxu0
    %v2148 = vadd.f32 %v1554, %v2147
    %v2149 = vpop.f32.mrf.mxu0
    %2150 = vmatprep.mubr.f32.mxu0 0.0
    %2151 = vmatmul.mubr.f32.gmra.mxu0 %v1645
    %v2152 = vpop.f32.mrf.mxu0
    %v2153 = vadd.f32 %v1554, %v2152
    %v2154 = vpop.f32.mrf.mxu0
    %2155 = vmatprep.mubr.f32.mxu0 0.0
    %2156 = vmatmul.mubr.f32.gmra.mxu0 %v1648
    %v2157 = vpop.f32.mrf.mxu0
    %v2158 = vadd.f32 %v1554, %v2157
    %v2159 = vpop.f32.mrf.mxu0
    %2160 = vmatprep.mubr.f32.mxu0 0.0
    %2161 = vmatmul.mubr.f32.gmra.mxu0 %v1651
    %v2162 = vpop.f32.mrf.mxu0
    %v2163 = vadd.f32 %v1554, %v2162
    %v2164 = vpop.f32.mrf.mxu0
    %2165 = vmatprep.mubr.f32.mxu0 0.0
    %2166 = vmatmul.mubr.f32.gmra.mxu0 %v1654
    %v2167 = vpop.f32.mrf.mxu0
    %v2168 = vadd.f32 %v1554, %v2167
    %v2169 = vpop.f32.mrf.mxu0
    %2170 = vmatprep.mubr.f32.mxu0 0.0
    %2171 = vmatmul.mubr.f32.gmra.mxu0 %v1657
    %v2172 = vpop.f32.mrf.mxu0
    %v2173 = vadd.f32 %v1554, %v2172
    %v2174 = vpop.f32.mrf.mxu0
    %2175 = vmatprep.mubr.f32.mxu0 0.0
    %2176 = vmatmul.mubr.f32.gmra.mxu0 %v1660
    %v2177 = vpop.f32.mrf.mxu0
    %v2178 = vadd.f32 %v1554, %v2177
    %v2179 = vpop.f32.mrf.mxu0
    %2180 = vmatprep.mubr.f32.mxu0 0.0
    %2181 = vmatmul.mubr.f32.gmra.mxu0 %v1663
    %v2182 = vpop.f32.mrf.mxu0
    %v2183 = vadd.f32 %v1554, %v2182
    %v2184 = vpop.f32.mrf.mxu0
    %2185 = vmatprep.mubr.f32.mxu0 0.0
    %2186 = vmatmul.mubr.f32.gmra.mxu0 %v1666
    %v2187 = vpop.f32.mrf.mxu0
    %v2188 = vadd.f32 %v1554, %v2187
    %v2189 = vpop.f32.mrf.mxu0
    %2190 = vmatprep.mubr.f32.mxu0 0.0
    %2191 = vmatmul.mubr.f32.gmra.mxu0 %v1669
    %v2192 = vpop.f32.mrf.mxu0
    %v2193 = vadd.f32 %v1554, %v2192
    %v2194 = vpop.f32.mrf.mxu0
    %2195 = vmatprep.mubr.f32.mxu0 0.0
    %2196 = vmatmul.mubr.f32.gmra.mxu0 %v1672
    %v2197 = vpop.f32.mrf.mxu0
    %v2198 = vadd.f32 %v1554, %v2197
    %v2199 = vpop.f32.mrf.mxu0
    %2200 = vmatprep.mubr.f32.mxu0 0.0
    %2201 = vmatmul.mubr.f32.gmra.mxu0 %v1675
    %v2202 = vpop.f32.mrf.mxu0
    %v2203 = vadd.f32 %v1554, %v2202
    %v2204 = vpop.f32.mrf.mxu0
    %2205 = vmatprep.mubr.f32.mxu0 0.0
    %2206 = vmatmul.mubr.f32.gmra.mxu0 %v1678
    %v2207 = vpop.f32.mrf.mxu0
    %v2208 = vadd.f32 %v1554, %v2207
    %v2209 = vpop.f32.mrf.mxu0
    %2210 = vmatprep.mubr.f32.mxu0 0.0
    %2211 = vmatmul.mubr.f32.gmra.mxu0 %v1681
    %v2212 = vpop.f32.mrf.mxu0
    %v2213 = vadd.f32 %v1554, %v2212
    %v2214 = vpop.f32.mrf.mxu0
    %2215 = vmatprep.mubr.f32.mxu0 0.0
    %2216 = vmatmul.mubr.f32.gmra.mxu0 %v1684
    %v2217 = vpop.f32.mrf.mxu0
    %v2218 = vadd.f32 %v1554, %v2217
    %v2219 = vpop.f32.mrf.mxu0
    %2220 = vmatprep.mubr.f32.mxu0 0.0
    %2221 = vmatmul.mubr.f32.gmra.mxu0 %v1687
    %v2222 = vpop.f32.mrf.mxu0
    %v2223 = vadd.f32 %v1554, %v2222
    %v2224 = vpop.f32.mrf.mxu0
    %2225 = vmatprep.mubr.f32.mxu0 0.0
    %2226 = vmatmul.mubr.f32.gmra.mxu0 %v1690
    %v2227 = vpop.f32.mrf.mxu0
    %v2228 = vadd.f32 %v1554, %v2227
    %v2229 = vpop.f32.mrf.mxu0
    %2230 = vmatprep.mubr.f32.mxu0 0.0
    %2231 = vmatmul.mubr.f32.gmra.mxu0 %v1693
    %v2232 = vpop.f32.mrf.mxu0
    %v2233 = vadd.f32 %v1554, %v2232
    %v2234 = vpop.f32.mrf.mxu0
    %2235 = vmatprep.mubr.f32.mxu0 0.0
    %2236 = vmatmul.mubr.f32.gmra.mxu0 %v1696
    %v2237 = vpop.f32.mrf.mxu0
    %v2238 = vadd.f32 %v1554, %v2237
    %v2239 = vpop.f32.mrf.mxu0
    %2240 = vmatprep.mubr.f32.mxu0 0.0
    %2241 = vmatmul.mubr.f32.gmra.mxu0 %v1699
    %v2242 = vpop.f32.mrf.mxu0
    %v2243 = vadd.f32 %v1554, %v2242
    %v2244 = vpop.f32.mrf.mxu0
    %2245 = vmatprep.mubr.f32.mxu0 0.0
    %2246 = vmatmul.mubr.f32.gmra.mxu0 %v1702
    %v2247 = vpop.f32.mrf.mxu0
    %v2248 = vadd.f32 %v1554, %v2247
    %v2249 = vpop.f32.mrf.mxu0
    %2250 = vmatprep.mubr.f32.mxu0 0.0
    %2251 = vmatmul.mubr.f32.gmra.mxu0 %v1705
    %v2252 = vpop.f32.mrf.mxu0
    %v2253 = vadd.f32 %v1554, %v2252
    %v2254 = vpop.f32.mrf.mxu0
    %2255 = vmatprep.mubr.f32.mxu0 0.0
    %2256 = vmatmul.mubr.f32.gmra.mxu0 %v1708
    %v2257 = vpop.f32.mrf.mxu0
    %v2258 = vadd.f32 %v1554, %v2257
    %v2259 = vpop.f32.mrf.mxu0
    %2260 = vmatprep.mubr.f32.mxu0 0.0
    %2261 = vmatmul.mubr.f32.gmra.mxu0 %v1711
    %v2262 = vpop.f32.mrf.mxu0
    %v2263 = vadd.f32 %v1554, %v2262
    %v2264 = vpop.f32.mrf.mxu0
    %2265 = vmatprep.mubr.f32.mxu0 0.0
    %2266 = vmatmul.mubr.f32.gmra.mxu0 %v1714
    %v2267 = vpop.f32.mrf.mxu0
    %v2268 = vadd.f32 %v1554, %v2267
    %v2269 = vpop.f32.mrf.mxu0
    %2270 = vmatprep.mubr.f32.mxu0 0.0
    %2271 = vmatmul.mubr.f32.gmra.mxu0 %v1717
    %v2272 = vpop.f32.mrf.mxu0
    %v2273 = vadd.f32 %v1554, %v2272
    %v2274 = vpop.f32.mrf.mxu0
    %2275 = vmatprep.mubr.f32.mxu0 0.0
    %2276 = vmatmul.mubr.f32.gmra.mxu0 %v1720
    %v2277 = vpop.f32.mrf.mxu0
    %v2278 = vadd.f32 %v1554, %v2277
    %v2279 = vpop.f32.mrf.mxu0
    %2280 = vmatprep.mubr.f32.mxu0 0.0
    %2281 = vmatmul.mubr.f32.gmra.mxu0 %v1723
    %v2282 = vpop.f32.mrf.mxu0
    %v2283 = vadd.f32 %v1554, %v2282
    %v2284 = vpop.f32.mrf.mxu0
    %2285 = vmatprep.mubr.f32.mxu0 0.0
    %2286 = vmatmul.mubr.f32.gmra.mxu0 %v1726
    %v2287 = vpop.f32.mrf.mxu0
    %v2288 = vadd.f32 %v1554, %v2287
    %v2289 = vpop.f32.mrf.mxu0
    %2290 = vmatprep.mubr.f32.mxu0 0.0
    %2291 = vmatmul.mubr.f32.gmra.mxu0 %v1729
    %v2292 = vpop.f32.mrf.mxu0
    %v2293 = vadd.f32 %v1554, %v2292
    %v2294 = vpop.f32.mrf.mxu0
    %2295 = vmatprep.mubr.f32.mxu0 0.0
    %2296 = vmatmul.mubr.f32.gmra.mxu0 %v1732
    %v2297 = vpop.f32.mrf.mxu0
    %v2298 = vadd.f32 %v1554, %v2297
    %v2299 = vpop.f32.mrf.mxu0
    %2300 = vmatprep.mubr.f32.mxu0 0.0
    %2301 = vmatmul.mubr.f32.gmra.mxu0 %v1735
    %v2302 = vpop.f32.mrf.mxu0
    %v2303 = vadd.f32 %v1554, %v2302
    %v2304 = vpop.f32.mrf.mxu0
    %2305 = vmatprep.mubr.f32.mxu0 0.0
    %2306 = vmatmul.mubr.f32.gmra.mxu0 %v1738
    %v2307 = vpop.f32.mrf.mxu0
    %v2308 = vadd.f32 %v1554, %v2307
    %v2309 = vpop.f32.mrf.mxu0
    %2310 = vmatprep.mubr.f32.mxu0 0.0
    %2311 = vmatmul.mubr.f32.gmra.mxu0 %v1741
    %v2312 = vpop.f32.mrf.mxu0
    %v2313 = vadd.f32 %v1554, %v2312
    %v2314 = vpop.f32.mrf.mxu0
    %2315 = vmatprep.mubr.f32.mxu0 0.0
    %2316 = vmatmul.mubr.f32.gmra.mxu0 %v1744
    %v2317 = vpop.f32.mrf.mxu0
    %v2318 = vadd.f32 %v1554, %v2317
    %v2319 = vpop.f32.mrf.mxu0
    %2320 = vmatprep.mubr.f32.mxu0 0.0
    %2321 = vmatmul.mubr.f32.gmra.mxu0 %v1747
    %v2322 = vpop.f32.mrf.mxu0
    %v2323 = vadd.f32 %v1554, %v2322
    %v2324 = vpop.f32.mrf.mxu0
    %2325 = vmatprep.mubr.f32.mxu0 0.0
    %2326 = vmatmul.mubr.f32.gmra.mxu0 %v1750
    %v2327 = vpop.f32.mrf.mxu0
    %v2328 = vadd.f32 %v1554, %v2327
    %v2329 = vpop.f32.mrf.mxu0
    %2330 = vmatprep.mubr.f32.mxu0 0.0
    %2331 = vmatmul.mubr.f32.gmra.mxu0 %v1753
    %v2332 = vpop.f32.mrf.mxu0
    %v2333 = vadd.f32 %v1554, %v2332
    %v2334 = vpop.f32.mrf.mxu0
    %2335 = vmatprep.mubr.f32.mxu0 0.0
    %2336 = vmatmul.mubr.f32.gmra.mxu0 %v1756
    %v2337 = vpop.f32.mrf.mxu0
    %v2338 = vadd.f32 %v1554, %v2337
    %v2339 = vpop.f32.mrf.mxu0
    %2340 = vmatprep.mubr.f32.mxu0 0.0
    %2341 = vmatmul.mubr.f32.gmra.mxu0 %v1759
    %v2342 = vpop.f32.mrf.mxu0
    %v2343 = vadd.f32 %v1554, %v2342
    %v2344 = vpop.f32.mrf.mxu0
    %2345 = vmatprep.mubr.f32.mxu0 0.0
    %2346 = vmatmul.mubr.f32.gmra.mxu0 %v1762
    %v2347 = vpop.f32.mrf.mxu0
    %v2348 = vadd.f32 %v1554, %v2347
    %v2349 = vpop.f32.mrf.mxu0
    %2350 = vmatprep.mubr.f32.mxu0 0.0
    %2351 = vmatmul.mubr.f32.gmra.mxu0 %v1765
    %v2352 = vpop.f32.mrf.mxu0
    %v2353 = vadd.f32 %v1554, %v2352
    %v2354 = vpop.f32.mrf.mxu0
    %2355 = vmatprep.mubr.f32.mxu0 0.0
    %2356 = vmatmul.mubr.f32.gmra.mxu0 %v1768
    %v2357 = vpop.f32.mrf.mxu0
    %v2358 = vadd.f32 %v1554, %v2357
    %v2359 = vpop.f32.mrf.mxu0
    %2360 = vmatprep.mubr.f32.mxu0 0.0
    %2361 = vmatmul.mubr.f32.gmra.mxu0 %v1771
    %v2362 = vpop.f32.mrf.mxu0
    %v2363 = vadd.f32 %v1554, %v2362
    %v2364 = vpop.f32.mrf.mxu0
    %2365 = vmatprep.mubr.f32.mxu0 0.0
    %2366 = vmatmul.mubr.f32.gmra.mxu0 %v1774
    %v2367 = vpop.f32.mrf.mxu0
    %v2368 = vadd.f32 %v1554, %v2367
    %v2369 = vpop.f32.mrf.mxu0
    %2370 = vmatprep.mubr.f32.mxu0 0.0
    %2371 = vmatmul.mubr.f32.gmra.mxu0 %v1777
    %v2372 = vpop.f32.mrf.mxu0
    %v2373 = vadd.f32 %v1554, %v2372
    %v2374 = vpop.f32.mrf.mxu0
    %2375 = vmatprep.mubr.f32.mxu0 0.0
    %2376 = vmatmul.mubr.f32.gmra.mxu0 %v1780
    %v2377 = vpop.f32.mrf.mxu0
    %v2378 = vadd.f32 %v1554, %v2377
    %v2379 = vpop.f32.mrf.mxu0
    %2380 = vmatprep.mubr.f32.mxu0 0.0
    %2381 = vmatmul.mubr.f32.gmra.mxu0 %v1783
    %v2382 = vpop.f32.mrf.mxu0
    %v2383 = vadd.f32 %v1554, %v2382
    %v2384 = vpop.f32.mrf.mxu0
    %2385 = vmatprep.mubr.f32.mxu0 0.0
    %2386 = vmatmul.mubr.f32.gmra.mxu0 %v1786
    %v2387 = vpop.f32.mrf.mxu0
    %v2388 = vadd.f32 %v1554, %v2387
    %v2389 = vpop.f32.mrf.mxu0
    %2390 = vmatprep.mubr.f32.mxu0 0.0
    %2391 = vmatmul.mubr.f32.gmra.mxu0 %v1789
    %v2392 = vpop.f32.mrf.mxu0
    %v2393 = vadd.f32 %v1554, %v2392
    %v2394 = vpop.f32.mrf.mxu0
    %2395 = vmatprep.mubr.f32.mxu0 0.0
    %2396 = vmatmul.mubr.f32.gmra.mxu0 %v1792
    %v2397 = vpop.f32.mrf.mxu0
    %v2398 = vadd.f32 %v1554, %v2397
    %v2399 = vpop.f32.mrf.mxu0
    %2400 = vmatprep.mubr.f32.mxu0 0.0
    %2401 = vmatmul.mubr.f32.gmra.mxu0 %v1795
    %v2402 = vpop.f32.mrf.mxu0
    %v2403 = vadd.f32 %v1554, %v2402
    %v2404 = vpop.f32.mrf.mxu0
    %2405 = vmatprep.mubr.f32.mxu0 0.0
    %2406 = vmatmul.mubr.f32.gmra.mxu0 %v1798
    %v2407 = vpop.f32.mrf.mxu0
    %v2408 = vadd.f32 %v1554, %v2407
    %v2409 = vpop.f32.mrf.mxu0
    %2410 = vmatprep.mubr.f32.mxu0 0.0
    %2411 = vmatmul.mubr.f32.gmra.mxu0 %v1801
    %v2412 = vpop.f32.mrf.mxu0
    %v2413 = vadd.f32 %v1554, %v2412
    %v2414 = vpop.f32.mrf.mxu0
    %2415 = vmatprep.mubr.f32.mxu0 0.0
    %2416 = vmatmul.mubr.f32.gmra.mxu0 %v1804
    %v2417 = vpop.f32.mrf.mxu0
    %v2418 = vadd.f32 %v1554, %v2417
    %v2419 = vpop.f32.mrf.mxu0
    %2420 = vmatprep.mubr.f32.mxu0 0.0
    %2421 = vmatmul.mubr.f32.gmra.mxu0 %v1807
    %v2422 = vpop.f32.mrf.mxu0
    %v2423 = vadd.f32 %v1554, %v2422
    %v2424 = vpop.f32.mrf.mxu0
    %2425 = vmatprep.mubr.f32.mxu0 0.0
    %2426 = vmatmul.mubr.f32.gmra.mxu0 %v1810
    %v2427 = vpop.f32.mrf.mxu0
    %v2428 = vadd.f32 %v1554, %v2427
    %v2429 = vpop.f32.mrf.mxu0
    %2430 = vmatprep.mubr.f32.mxu0 0.0
    %2431 = vmatmul.mubr.f32.gmra.mxu0 %v1813
    %v2432 = vpop.f32.mrf.mxu0
    %v2433 = vadd.f32 %v1554, %v2432
    %v2434 = vpop.f32.mrf.mxu0
    %2435 = vmatprep.mubr.f32.mxu0 0.0
    %2436 = vmatmul.mubr.f32.gmra.mxu0 %v1816
    %v2437 = vpop.f32.mrf.mxu0
    %v2438 = vadd.f32 %v1554, %v2437
    %v2439 = vpop.f32.mrf.mxu0
    %2440 = vmatprep.mubr.f32.mxu0 0.0
    %2441 = vmatmul.mubr.f32.gmra.mxu0 %v1819
    %v2442 = vpop.f32.mrf.mxu0
    %v2443 = vadd.f32 %v1554, %v2442
    %v2444 = vpop.f32.mrf.mxu0
    %2445 = vmatprep.mubr.f32.mxu0 0.0
    %2446 = vmatmul.mubr.f32.gmra.mxu0 %v1822
    %v2447 = vpop.f32.mrf.mxu0
    %v2448 = vadd.f32 %v1554, %v2447
    %v2449 = vpop.f32.mrf.mxu0
    %2450 = vmatprep.mubr.f32.mxu0 0.0
    %2451 = vmatmul.mubr.f32.gmra.mxu0 %v1825
    %v2452 = vpop.f32.mrf.mxu0
    %v2453 = vadd.f32 %v1554, %v2452
    %v2454 = vpop.f32.mrf.mxu0
    %2455 = vmatprep.mubr.f32.mxu0 0.0
    %2456 = vmatmul.mubr.f32.gmra.mxu0 %v1828
    %v2457 = vpop.f32.mrf.mxu0
    %v2458 = vadd.f32 %v1554, %v2457
    %v2459 = vpop.f32.mrf.mxu0
    %2460 = vmatprep.mubr.f32.mxu0 0.0
    %2461 = vmatmul.mubr.f32.gmra.mxu0 %v1831
    %v2462 = vpop.f32.mrf.mxu0
    %v2463 = vadd.f32 %v1554, %v2462
    %v2464 = vpop.f32.mrf.mxu0
    %2465 = vmatprep.mubr.f32.mxu0 0.0
    %2466 = vmatmul.mubr.f32.gmra.mxu0 %v1834
    %v2467 = vpop.f32.mrf.mxu0
    %v2468 = vadd.f32 %v1554, %v2467
    %v2469 = vpop.f32.mrf.mxu0
    %2470 = vmatprep.mubr.f32.mxu0 0.0
    %2471 = vmatmul.mubr.f32.gmra.mxu0 %v1837
    %v2472 = vpop.f32.mrf.mxu0
    %v2473 = vadd.f32 %v1554, %v2472
    %v2474 = vpop.f32.mrf.mxu0
    %2475 = vmatprep.mubr.f32.mxu0 0.0
    %2476 = vmatmul.mubr.f32.gmra.mxu0 %v1840
    %v2477 = vpop.f32.mrf.mxu0
    %v2478 = vadd.f32 %v1554, %v2477
    %v2479 = vpop.f32.mrf.mxu0
    %2480 = vmatprep.mubr.f32.mxu0 0.0
    %2481 = vmatmul.mubr.f32.gmra.mxu0 %v1843
    %v2482 = vpop.f32.mrf.mxu0
    %v2483 = vadd.f32 %v1554, %v2482
    %v2484 = vpop.f32.mrf.mxu0
    %2485 = vmatprep.mubr.f32.mxu0 0.0
    %2486 = vmatmul.mubr.f32.gmra.mxu0 %v1846
    %v2487 = vpop.f32.mrf.mxu0
    %v2488 = vadd.f32 %v1554, %v2487
    %v2489 = vpop.f32.mrf.mxu0
    %2490 = vmatprep.mubr.f32.mxu0 0.0
    %2491 = vmatmul.mubr.f32.gmra.mxu0 %v1849
    %v2492 = vpop.f32.mrf.mxu0
    %v2493 = vadd.f32 %v1554, %v2492
    %v2494 = vpop.f32.mrf.mxu0
    %2495 = vmatprep.mubr.f32.mxu0 0.0
    %2496 = vmatmul.mubr.f32.gmra.mxu0 %v1852
    %v2497 = vpop.f32.mrf.mxu0
    %v2498 = vadd.f32 %v1554, %v2497
    %v2499 = vpop.f32.mrf.mxu0
    %2500 = vmatprep.mubr.f32.mxu0 0.0
    %2501 = vmatmul.mubr.f32.gmra.mxu0 %v1855
    %v2502 = vpop.f32.mrf.mxu0
    %v2503 = vadd.f32 %v1554, %v2502
    %v2504 = vpop.f32.mrf.mxu0
    %2505 = vmatprep.mubr.f32.mxu0 0.0
    %2506 = vmatmul.mubr.f32.gmra.mxu0 %v1858
    %v2507 = vpop.f32.mrf.mxu0
    %v2508 = vadd.f32 %v1554, %v2507
    %v2509 = vpop.f32.mrf.mxu0
    %2510 = vmatprep.mubr.f32.mxu0 0.0
    %2511 = vmatmul.mubr.f32.gmra.mxu0 %v1861
    %v2512 = vpop.f32.mrf.mxu0
    %v2513 = vadd.f32 %v1554, %v2512
    %v2514 = vpop.f32.mrf.mxu0
    %2515 = vmatprep.mubr.f32.mxu0 0.0
    %2516 = vmatmul.mubr.f32.gmra.mxu0 %v1864
    %v2517 = vpop.f32.mrf.mxu0
    %v2518 = vadd.f32 %v1554, %v2517
    %v2519 = vpop.f32.mrf.mxu0
    %2520 = vmatprep.mubr.f32.mxu0 0.0
    %2521 = vmatmul.mubr.f32.gmra.mxu0 %v1867
    %v2522 = vpop.f32.mrf.mxu0
    %v2523 = vadd.f32 %v1554, %v2522
    %v2524 = vpop.f32.mrf.mxu0
    %2525 = vmatprep.mubr.f32.mxu0 0.0
    %2526 = vmatmul.mubr.f32.gmra.mxu0 %v1870
    %v2527 = vpop.f32.mrf.mxu0
    %v2528 = vadd.f32 %v1554, %v2527
    %v2529 = vpop.f32.mrf.mxu0
    %2530 = vmatprep.mubr.f32.mxu0 0.0
    %2531 = vmatmul.mubr.f32.gmra.mxu0 %v1873
    %v2532 = vpop.f32.mrf.mxu0
    %v2533 = vadd.f32 %v1554, %v2532
    %v2534 = vpop.f32.mrf.mxu0
    %2535 = vmatprep.mubr.f32.mxu0 0.0
    %2536 = vmatmul.mubr.f32.gmra.mxu0 %v1876
    %v2537 = vpop.f32.mrf.mxu0
    %v2538 = vadd.f32 %v1554, %v2537
    %v2539 = vpop.f32.mrf.mxu0
    %2540 = vmatprep.mubr.f32.mxu0 0.0
    %2541 = vmatmul.mubr.f32.gmra.mxu0 %v1879
    %v2542 = vpop.f32.mrf.mxu0
    %v2543 = vadd.f32 %v1554, %v2542
    %v2544 = vpop.f32.mrf.mxu0
    %2545 = vmatprep.mubr.f32.mxu0 0.0
    %2546 = vmatmul.mubr.f32.gmra.mxu0 %v1882
    %v2547 = vpop.f32.mrf.mxu0
    %v2548 = vadd.f32 %v1554, %v2547
    %v2549 = vpop.f32.mrf.mxu0
    %2550 = vmatprep.mubr.f32.mxu0 0.0
    %2551 = vmatmul.mubr.f32.gmra.mxu0 %v1885
    %v2552 = vpop.f32.mrf.mxu0
    %v2553 = vadd.f32 %v1554, %v2552
    %v2554 = vpop.f32.mrf.mxu0
    %2555 = vmatprep.mubr.f32.mxu0 0.0
    %2556 = vmatmul.mubr.f32.gmra.mxu0 %v1888
    %v2557 = vpop.f32.mrf.mxu0
    %v2558 = vadd.f32 %v1554, %v2557
    %v2559 = vpop.f32.mrf.mxu0
    %2560 = vmatprep.mubr.f32.mxu0 0.0
    %2561 = vmatmul.mubr.f32.gmra.mxu0 %v1891
    %v2562 = vpop.f32.mrf.mxu0
    %v2563 = vadd.f32 %v1554, %v2562
    %v2564 = vpop.f32.mrf.mxu0
    %2565 = vmatprep.mubr.f32.mxu0 0.0
    %2566 = vmatmul.mubr.f32.gmra.mxu0 %v1894
    %v2567 = vpop.f32.mrf.mxu0
    %v2568 = vadd.f32 %v1554, %v2567
    %v2569 = vpop.f32.mrf.mxu0
    %2570 = vmatprep.mubr.f32.mxu0 0.0
    %2571 = vmatmul.mubr.f32.gmra.mxu0 %v1897
    %v2572 = vpop.f32.mrf.mxu0
    %v2573 = vadd.f32 %v1554, %v2572
    %v2574 = vpop.f32.mrf.mxu0
    %2575 = vmatprep.mubr.f32.mxu0 0.0
    %2576 = vmatmul.mubr.f32.gmra.mxu0 %v1900
    %v2577 = vpop.f32.mrf.mxu0
    %v2578 = vadd.f32 %v1554, %v2577
    %v2579 = vpop.f32.mrf.mxu0
    %2580 = vmatprep.mubr.f32.mxu0 0.0
    %2581 = vmatmul.mubr.f32.gmra.mxu0 %v1903
    %v2582 = vpop.f32.mrf.mxu0
    %v2583 = vadd.f32 %v1554, %v2582
    %v2584 = vpop.f32.mrf.mxu0
    %2585 = vmatprep.mubr.f32.mxu0 0.0
    %2586 = vmatmul.mubr.f32.gmra.mxu0 %v1906
    %v2587 = vpop.f32.mrf.mxu0
    %v2588 = vadd.f32 %v1554, %v2587
    %v2589 = vpop.f32.mrf.mxu0
    %2590 = vmatprep.mubr.f32.mxu0 0.0
    %2591 = vmatmul.mubr.f32.gmra.mxu0 %v1909
    %v2592 = vpop.f32.mrf.mxu0
    %v2593 = vadd.f32 %v1554, %v2592
    %v2594 = vpop.f32.mrf.mxu0
    %2595 = vmatprep.mubr.f32.mxu0 0.0
    %2596 = vmatmul.mubr.f32.gmra.mxu0 %v1912
    %v2597 = vpop.f32.mrf.mxu0
    %v2598 = vadd.f32 %v1554, %v2597
    %v2599 = vpop.f32.mrf.mxu0
    %2600 = vmatprep.mubr.f32.mxu0 0.0
    %2601 = vmatmul.mubr.f32.gmra.mxu0 %v1915
    %v2602 = vpop.f32.mrf.mxu0
    %v2603 = vadd.f32 %v1554, %v2602
    %v2604 = vpop.f32.mrf.mxu0
    %2605 = vmatprep.mubr.f32.mxu0 0.0
    %2606 = vmatmul.mubr.f32.gmra.mxu0 %v1918
    %v2607 = vpop.f32.mrf.mxu0
    %v2608 = vadd.f32 %v1554, %v2607
    %v2609 = vpop.f32.mrf.mxu0
    %2610 = vmatprep.mubr.f32.mxu0 0.0
    %2611 = vmatmul.mubr.f32.gmra.mxu0 %v1921
    %v2612 = vpop.f32.mrf.mxu0
    %v2613 = vadd.f32 %v1554, %v2612
    %v2614 = vpop.f32.mrf.mxu0
    %2615 = vmatprep.mubr.f32.mxu0 0.0
    %2616 = vmatmul.mubr.f32.gmra.mxu0 %v1924
    %v2617 = vpop.f32.mrf.mxu0
    %v2618 = vadd.f32 %v1554, %v2617
    %v2619 = vpop.f32.mrf.mxu0
    %2620 = vmatprep.mubr.f32.mxu0 0.0
    %2621 = vmatmul.mubr.f32.gmra.mxu0 %v1927
    %v2622 = vpop.f32.mrf.mxu0
    %v2623 = vadd.f32 %v1554, %v2622
    %v2624 = vpop.f32.mrf.mxu0
    %2625 = vmatprep.mubr.f32.mxu0 0.0
    %2626 = vmatmul.mubr.f32.gmra.mxu0 %v1930
    %v2627 = vpop.f32.mrf.mxu0
    %v2628 = vadd.f32 %v1554, %v2627
    %v2629 = vpop.f32.mrf.mxu0
    %2630 = vmatprep.mubr.f32.mxu0 0.0
    %2631 = vmatmul.mubr.f32.gmra.mxu0 %v1933
    %v2632 = vpop.f32.mrf.mxu0
    %v2633 = vadd.f32 %v1554, %v2632
    %v2634 = vpop.f32.mrf.mxu0
    %2635 = vmatprep.mubr.f32.mxu0 0.0
    %2636 = vmatmul.mubr.f32.gmra.mxu0 %v1936
    %v2637 = vpop.f32.mrf.mxu0
    %v2638 = vadd.f32 %v1554, %v2637
    %v2639 = vpop.f32.mrf.mxu0
    %2640 = vmatprep.mubr.f32.mxu0 0.0
    %2641 = vmatmul.mubr.f32.gmra.mxu0 %v1939
    %v2642 = vpop.f32.mrf.mxu0
    %v2643 = vadd.f32 %v1554, %v2642
    %v2644 = vpop.f32.mrf.mxu0
    %2645 = vdwg.mxu0
    %v2646 = vmax.f32 %v2008, 0.0
    %v2647 = vmax.f32 %v2013, 0.0
    %v2648 = vmax.f32 %v2018, 0.0
    %v2649 = vmax.f32 %v2023, 0.0
    %v2650 = vmax.f32 %v2028, 0.0
    %v2651 = vmax.f32 %v2033, 0.0
    %v2652 = vmax.f32 %v2038, 0.0
    %v2653 = vmax.f32 %v2043, 0.0
    %v2654 = vmax.f32 %v2048, 0.0
    %v2655 = vmax.f32 %v2053, 0.0
    %v2656 = vmax.f32 %v2058, 0.0
    %v2657 = vmax.f32 %v2063, 0.0
    %v2658 = vmax.f32 %v2068, 0.0
    %v2659 = vmax.f32 %v2073, 0.0
    %v2660 = vmax.f32 %v2078, 0.0
    %v2661 = vmax.f32 %v2083, 0.0
    %v2662 = vmax.f32 %v2088, 0.0
    %v2663 = vmax.f32 %v2093, 0.0
    %v2664 = vmax.f32 %v2098, 0.0
    %v2665 = vmax.f32 %v2103, 0.0
    %v2666 = vmax.f32 %v2108, 0.0
    %v2667 = vmax.f32 %v2113, 0.0
    %v2668 = vmax.f32 %v2118, 0.0
    %v2669 = vmax.f32 %v2123, 0.0
    %v2670 = vmax.f32 %v2128, 0.0
    %v2671 = vmax.f32 %v2133, 0.0
    %v2672 = vmax.f32 %v2138, 0.0
    %v2673 = vmax.f32 %v2143, 0.0
    %v2674 = vmax.f32 %v2148, 0.0
    %v2675 = vmax.f32 %v2153, 0.0
    %v2676 = vmax.f32 %v2158, 0.0
    %v2677 = vmax.f32 %v2163, 0.0
    %v2678 = vmax.f32 %v2168, 0.0
    %v2679 = vmax.f32 %v2173, 0.0
    %v2680 = vmax.f32 %v2178, 0.0
    %v2681 = vmax.f32 %v2183, 0.0
    %v2682 = vmax.f32 %v2188, 0.0
    %v2683 = vmax.f32 %v2193, 0.0
    %v2684 = vmax.f32 %v2198, 0.0
    %v2685 = vmax.f32 %v2203, 0.0
    %v2686 = vmax.f32 %v2208, 0.0
    %v2687 = vmax.f32 %v2213, 0.0
    %v2688 = vmax.f32 %v2218, 0.0
    %v2689 = vmax.f32 %v2223, 0.0
    %v2690 = vmax.f32 %v2228, 0.0
    %v2691 = vmax.f32 %v2233, 0.0
    %v2692 = vmax.f32 %v2238, 0.0
    %v2693 = vmax.f32 %v2243, 0.0
    %v2694 = vmax.f32 %v2248, 0.0
    %v2695 = vmax.f32 %v2253, 0.0
    %v2696 = vmax.f32 %v2258, 0.0
    %v2697 = vmax.f32 %v2263, 0.0
    %v2698 = vmax.f32 %v2268, 0.0
    %v2699 = vmax.f32 %v2273, 0.0
    %v2700 = vmax.f32 %v2278, 0.0
    %v2701 = vmax.f32 %v2283, 0.0
    %v2702 = vmax.f32 %v2288, 0.0
    %v2703 = vmax.f32 %v2293, 0.0
    %v2704 = vmax.f32 %v2298, 0.0
    %v2705 = vmax.f32 %v2303, 0.0
    %v2706 = vmax.f32 %v2308, 0.0
    %v2707 = vmax.f32 %v2313, 0.0
    %v2708 = vmax.f32 %v2318, 0.0
    %v2709 = vmax.f32 %v2323, 0.0
    %v2710 = vmax.f32 %v2328, 0.0
    %v2711 = vmax.f32 %v2333, 0.0
    %v2712 = vmax.f32 %v2338, 0.0
    %v2713 = vmax.f32 %v2343, 0.0
    %v2714 = vmax.f32 %v2348, 0.0
    %v2715 = vmax.f32 %v2353, 0.0
    %v2716 = vmax.f32 %v2358, 0.0
    %v2717 = vmax.f32 %v2363, 0.0
    %v2718 = vmax.f32 %v2368, 0.0
    %v2719 = vmax.f32 %v2373, 0.0
    %v2720 = vmax.f32 %v2378, 0.0
    %v2721 = vmax.f32 %v2383, 0.0
    %v2722 = vmax.f32 %v2388, 0.0
    %v2723 = vmax.f32 %v2393, 0.0
    %v2724 = vmax.f32 %v2398, 0.0
    %v2725 = vmax.f32 %v2403, 0.0
    %v2726 = vmax.f32 %v2408, 0.0
    %v2727 = vmax.f32 %v2413, 0.0
    %v2728 = vmax.f32 %v2418, 0.0
    %v2729 = vmax.f32 %v2423, 0.0
    %v2730 = vmax.f32 %v2428, 0.0
    %v2731 = vmax.f32 %v2433, 0.0
    %v2732 = vmax.f32 %v2438, 0.0
    %v2733 = vmax.f32 %v2443, 0.0
    %v2734 = vmax.f32 %v2448, 0.0
    %v2735 = vmax.f32 %v2453, 0.0
    %v2736 = vmax.f32 %v2458, 0.0
    %v2737 = vmax.f32 %v2463, 0.0
    %v2738 = vmax.f32 %v2468, 0.0
    %v2739 = vmax.f32 %v2473, 0.0
    %v2740 = vmax.f32 %v2478, 0.0
    %v2741 = vmax.f32 %v2483, 0.0
    %v2742 = vmax.f32 %v2488, 0.0
    %v2743 = vmax.f32 %v2493, 0.0
    %v2744 = vmax.f32 %v2498, 0.0
    %v2745 = vmax.f32 %v2503, 0.0
    %v2746 = vmax.f32 %v2508, 0.0
    %v2747 = vmax.f32 %v2513, 0.0
    %v2748 = vmax.f32 %v2518, 0.0
    %v2749 = vmax.f32 %v2523, 0.0
    %v2750 = vmax.f32 %v2528, 0.0
    %v2751 = vmax.f32 %v2533, 0.0
    %v2752 = vmax.f32 %v2538, 0.0
    %v2753 = vmax.f32 %v2543, 0.0
    %v2754 = vmax.f32 %v2548, 0.0
    %v2755 = vmax.f32 %v2553, 0.0
    %v2756 = vmax.f32 %v2558, 0.0
    %v2757 = vmax.f32 %v2563, 0.0
    %v2758 = vmax.f32 %v2568, 0.0
    %v2759 = vmax.f32 %v2573, 0.0
    %v2760 = vmax.f32 %v2578, 0.0
    %v2761 = vmax.f32 %v2583, 0.0
    %v2762 = vmax.f32 %v2588, 0.0
    %v2763 = vmax.f32 %v2593, 0.0
    %v2764 = vmax.f32 %v2598, 0.0
    %v2765 = vmax.f32 %v2603, 0.0
    %v2766 = vmax.f32 %v2608, 0.0
    %v2767 = vmax.f32 %v2613, 0.0
    %v2768 = vmax.f32 %v2618, 0.0
    %v2769 = vmax.f32 %v2623, 0.0
    %v2770 = vmax.f32 %v2628, 0.0
    %v2771 = vmax.f32 %v2633, 0.0
    %v2772 = vmax.f32 %v2638, 0.0
    %v2773 = vmax.f32 %v2643, 0.0
    %v2774 = vld [vmem:[%s5] sm:$0xff]
    %v2775 = vld [vmem:[%s5 + $0x8] sm:$0xff]
    %v2776 = vld [vmem:[%s5 + $0x10] sm:$0xff]
    %v2777 = vld [vmem:[%s5 + $0x18] sm:$0xff]
    %v2778 = vld [vmem:[%s6] sm:$0x1]
    %v2780 = vlaneseq
    %v2781 = vshrl.u32 %v2780, 7
    %v2782 = vsub.s32 0, %v2781
    %v2783 = vrot.slane %v2778, %v2782
    %vm2785 = vcmask 261120
    %v2787 = vsel %vm2785, %v2646, 0
    %v2790 = vsel %vm2785, %v2647, 0
    %v2793 = vsel %vm2785, %v2648, 0
    %v2796 = vsel %vm2785, %v2649, 0
    %v2799 = vsel %vm2785, %v2650, 0
    %v2802 = vsel %vm2785, %v2651, 0
    %v2805 = vsel %vm2785, %v2652, 0
    %v2808 = vsel %vm2785, %v2653, 0
    %v2811 = vsel %vm2785, %v2654, 0
    %v2814 = vsel %vm2785, %v2655, 0
    %v2817 = vsel %vm2785, %v2656, 0
    %v2820 = vsel %vm2785, %v2657, 0
    %v2823 = vsel %vm2785, %v2658, 0
    %v2826 = vsel %vm2785, %v2659, 0
    %v2829 = vsel %vm2785, %v2660, 0
    %v2832 = vsel %vm2785, %v2661, 0
    %v2835 = vsel %vm2785, %v2662, 0
    %v2838 = vsel %vm2785, %v2663, 0
    %v2841 = vsel %vm2785, %v2664, 0
    %v2844 = vsel %vm2785, %v2665, 0
    %v2847 = vsel %vm2785, %v2666, 0
    %v2850 = vsel %vm2785, %v2667, 0
    %v2853 = vsel %vm2785, %v2668, 0
    %v2856 = vsel %vm2785, %v2669, 0
    %v2859 = vsel %vm2785, %v2670, 0
    %v2862 = vsel %vm2785, %v2671, 0
    %v2865 = vsel %vm2785, %v2672, 0
    %v2868 = vsel %vm2785, %v2673, 0
    %v2871 = vsel %vm2785, %v2674, 0
    %v2874 = vsel %vm2785, %v2675, 0
    %v2877 = vsel %vm2785, %v2676, 0
    %v2880 = vsel %vm2785, %v2677, 0
    %v2883 = vsel %vm2785, %v2678, 0
    %v2886 = vsel %vm2785, %v2679, 0
    %v2889 = vsel %vm2785, %v2680, 0
    %v2892 = vsel %vm2785, %v2681, 0
    %v2895 = vsel %vm2785, %v2682, 0
    %v2898 = vsel %vm2785, %v2683, 0
    %v2901 = vsel %vm2785, %v2684, 0
    %v2904 = vsel %vm2785, %v2685, 0
    %v2907 = vsel %vm2785, %v2686, 0
    %v2910 = vsel %vm2785, %v2687, 0
    %v2913 = vsel %vm2785, %v2688, 0
    %v2916 = vsel %vm2785, %v2689, 0
    %v2919 = vsel %vm2785, %v2690, 0
    %v2922 = vsel %vm2785, %v2691, 0
    %v2925 = vsel %vm2785, %v2692, 0
    %v2928 = vsel %vm2785, %v2693, 0
    %v2931 = vsel %vm2785, %v2694, 0
    %v2934 = vsel %vm2785, %v2695, 0
    %v2937 = vsel %vm2785, %v2696, 0
    %v2940 = vsel %vm2785, %v2697, 0
    %v2943 = vsel %vm2785, %v2698, 0
    %v2946 = vsel %vm2785, %v2699, 0
    %v2949 = vsel %vm2785, %v2700, 0
    %v2952 = vsel %vm2785, %v2701, 0
    %v2955 = vsel %vm2785, %v2702, 0
    %v2958 = vsel %vm2785, %v2703, 0
    %v2961 = vsel %vm2785, %v2704, 0
    %v2964 = vsel %vm2785, %v2705, 0
    %v2967 = vsel %vm2785, %v2706, 0
    %v2970 = vsel %vm2785, %v2707, 0
    %v2973 = vsel %vm2785, %v2708, 0
    %v2976 = vsel %vm2785, %v2709, 0
    %v2979 = vsel %vm2785, %v2710, 0
    %v2982 = vsel %vm2785, %v2711, 0
    %v2985 = vsel %vm2785, %v2712, 0
    %v2988 = vsel %vm2785, %v2713, 0
    %v2991 = vsel %vm2785, %v2714, 0
    %v2994 = vsel %vm2785, %v2715, 0
    %v2997 = vsel %vm2785, %v2716, 0
    %v3000 = vsel %vm2785, %v2717, 0
    %v3003 = vsel %vm2785, %v2718, 0
    %v3006 = vsel %vm2785, %v2719, 0
    %v3009 = vsel %vm2785, %v2720, 0
    %v3012 = vsel %vm2785, %v2721, 0
    %v3015 = vsel %vm2785, %v2722, 0
    %v3018 = vsel %vm2785, %v2723, 0
    %v3021 = vsel %vm2785, %v2724, 0
    %v3024 = vsel %vm2785, %v2725, 0
    %v3027 = vsel %vm2785, %v2726, 0
    %v3030 = vsel %vm2785, %v2727, 0
    %v3033 = vsel %vm2785, %v2728, 0
    %v3036 = vsel %vm2785, %v2729, 0
    %v3039 = vsel %vm2785, %v2730, 0
    %v3042 = vsel %vm2785, %v2731, 0
    %v3045 = vsel %vm2785, %v2732, 0
    %v3048 = vsel %vm2785, %v2733, 0
    %v3051 = vsel %vm2785, %v2734, 0
    %v3054 = vsel %vm2785, %v2735, 0
    %v3057 = vsel %vm2785, %v2736, 0
    %v3060 = vsel %vm2785, %v2737, 0
    %v3063 = vsel %vm2785, %v2738, 0
    %v3066 = vsel %vm2785, %v2739, 0
    %v3069 = vsel %vm2785, %v2740, 0
    %v3072 = vsel %vm2785, %v2741, 0
    %v3075 = vsel %vm2785, %v2742, 0
    %v3078 = vsel %vm2785, %v2743, 0
    %v3081 = vsel %vm2785, %v2744, 0
    %v3084 = vsel %vm2785, %v2745, 0
    %v3087 = vsel %vm2785, %v2746, 0
    %v3090 = vsel %vm2785, %v2747, 0
    %v3093 = vsel %vm2785, %v2748, 0
    %v3096 = vsel %vm2785, %v2749, 0
    %v3099 = vsel %vm2785, %v2750, 0
    %v3102 = vsel %vm2785, %v2751, 0
    %v3105 = vsel %vm2785, %v2752, 0
    %v3108 = vsel %vm2785, %v2753, 0
    %v3111 = vsel %vm2785, %v2754, 0
    %v3114 = vsel %vm2785, %v2755, 0
    %v3117 = vsel %vm2785, %v2756, 0
    %v3120 = vsel %vm2785, %v2757, 0
    %v3123 = vsel %vm2785, %v2758, 0
    %v3126 = vsel %vm2785, %v2759, 0
    %v3129 = vsel %vm2785, %v2760, 0
    %v3132 = vsel %vm2785, %v2761, 0
    %v3135 = vsel %vm2785, %v2762, 0
    %v3138 = vsel %vm2785, %v2763, 0
    %v3141 = vsel %vm2785, %v2764, 0
    %v3144 = vsel %vm2785, %v2765, 0
    %v3147 = vsel %vm2785, %v2766, 0
    %v3150 = vsel %vm2785, %v2767, 0
    %v3153 = vsel %vm2785, %v2768, 0
    %v3156 = vsel %vm2785, %v2769, 0
    %v3159 = vsel %vm2785, %v2770, 0
    %v3162 = vsel %vm2785, %v2771, 0
    %v3165 = vsel %vm2785, %v2772, 0
    %v3168 = vsel %vm2785, %v2773, 0
    %3170 = vmatprep.subr.mxu0 0.0
    %3171 = vmatpush1.msra.mxu0 0.0
    %3172 = vmatprep.subr.mxu0 0.0
    %3173 = vmatpush1.msra.mxu0 0.0
    %3174 = vmatprep.subr.mxu0 0.0
    %3175 = vmatpush1.msra.mxu0 0.0
    %3176 = vmatprep.subr.mxu0 0.0
    %3177 = vmatpush1.msra.mxu0 0.0
    %3178 = vmatprep.subr.mxu0 0.0
    %3179 = vmatpush1.msra.mxu0 0.0
    %3180 = vmatprep.subr.mxu0 0.0
    %3181 = vmatpush1.msra.mxu0 0.0
    %3182 = vmatprep.subr.mxu0 0.0
    %3183 = vmatpush1.msra.mxu0 0.0
    %3184 = vmatprep.subr.mxu0 0.0
    %3185 = vmatpush1.msra.mxu0 0.0
    %3186 = vmatprep.subr.mxu0 0.0
    %3187 = vmatpush1.msra.mxu0 0.0
    %3188 = vmatprep.subr.mxu0 0.0
    %3189 = vmatpush1.msra.mxu0 0.0
    %3190 = vmatprep.subr.mxu0 0.0
    %3191 = vmatpush1.msra.mxu0 0.0
    %3192 = vmatprep.subr.mxu0 0.0
    %3193 = vmatpush1.msra.mxu0 0.0
    %3194 = vmatprep.subr.mxu0 0.0
    %3195 = vmatpush1.msra.mxu0 %v2777
    %3196 = vmatprep.subr.mxu0 0.0
    %3197 = vmatpush1.msra.mxu0 %v2776
    %3198 = vmatprep.subr.mxu0 0.0
    %3199 = vmatpush1.msra.mxu0 %v2775
    %3200 = vmatprep.subr.mxu0 0.0
    %3201 = vmatpush1.msra.mxu0 %v2774
    %3202 = vmatprep.subr.mxu0 0.0
    %3203 = vmatpush2.msra.mxu0 0.0
    %3204 = vmatprep.subr.mxu0 0.0
    %3205 = vmatpush2.msra.mxu0 0.0
    %3206 = vmatprep.subr.mxu0 0.0
    %3207 = vmatpush2.msra.mxu0 0.0
    %3208 = vmatprep.subr.mxu0 0.0
    %3209 = vmatpush2.msra.mxu0 0.0
    %3210 = vmatprep.subr.mxu0 0.0
    %3211 = vmatpush2.msra.mxu0 0.0
    %3212 = vmatprep.subr.mxu0 0.0
    %3213 = vmatpush2.msra.mxu0 0.0
    %3214 = vmatprep.subr.mxu0 0.0
    %3215 = vmatpush2.msra.mxu0 0.0
    %3216 = vmatprep.subr.mxu0 0.0
    %3217 = vmatpush2.msra.mxu0 0.0
    %3218 = vmatprep.subr.mxu0 0.0
    %3219 = vmatpush2.msra.mxu0 0.0
    %3220 = vmatprep.subr.mxu0 0.0
    %3221 = vmatpush2.msra.mxu0 0.0
    %3222 = vmatprep.subr.mxu0 0.0
    %3223 = vmatpush2.msra.mxu0 0.0
    %3224 = vmatprep.subr.mxu0 0.0
    %3225 = vmatpush2.msra.mxu0 0.0
    %3226 = vmatprep.subr.mxu0 0.0
    %3227 = vmatpush2.msra.mxu0 0.0
    %3228 = vmatprep.subr.mxu0 0.0
    %3229 = vmatpush2.msra.mxu0 0.0
    %3230 = vmatprep.subr.mxu0 0.0
    %3231 = vmatpush2.msra.mxu0 0.0
    %3232 = vmatprep.subr.mxu0 0.0
    %3233 = vmatpush2.msra.mxu0 0.0
    %3234 = vmatprep.mubr.f32.mxu0 0.0
    %3235 = vmatmul.mubr.f32.gmra.mxu0 %v2787
    %v3236 = vpop.f32.mrf.mxu0
    %v3237 = vadd.f32 %v2783, %v3236
    %v3238 = vpop.f32.mrf.mxu0
    %3239 = vmatprep.mubr.f32.mxu0 0.0
    %3240 = vmatmul.mubr.f32.gmra.mxu0 %v2790
    %v3241 = vpop.f32.mrf.mxu0
    %v3242 = vadd.f32 %v2783, %v3241
    %v3243 = vpop.f32.mrf.mxu0
    %3244 = vmatprep.mubr.f32.mxu0 0.0
    %3245 = vmatmul.mubr.f32.gmra.mxu0 %v2793
    %v3246 = vpop.f32.mrf.mxu0
    %v3247 = vadd.f32 %v2783, %v3246
    %v3248 = vpop.f32.mrf.mxu0
    %3249 = vmatprep.mubr.f32.mxu0 0.0
    %3250 = vmatmul.mubr.f32.gmra.mxu0 %v2796
    %v3251 = vpop.f32.mrf.mxu0
    %v3252 = vadd.f32 %v2783, %v3251
    %v3253 = vpop.f32.mrf.mxu0
    %3254 = vmatprep.mubr.f32.mxu0 0.0
    %3255 = vmatmul.mubr.f32.gmra.mxu0 %v2799
    %v3256 = vpop.f32.mrf.mxu0
    %v3257 = vadd.f32 %v2783, %v3256
    %v3258 = vpop.f32.mrf.mxu0
    %3259 = vmatprep.mubr.f32.mxu0 0.0
    %3260 = vmatmul.mubr.f32.gmra.mxu0 %v2802
    %v3261 = vpop.f32.mrf.mxu0
    %v3262 = vadd.f32 %v2783, %v3261
    %v3263 = vpop.f32.mrf.mxu0
    %3264 = vmatprep.mubr.f32.mxu0 0.0
    %3265 = vmatmul.mubr.f32.gmra.mxu0 %v2805
    %v3266 = vpop.f32.mrf.mxu0
    %v3267 = vadd.f32 %v2783, %v3266
    %v3268 = vpop.f32.mrf.mxu0
    %3269 = vmatprep.mubr.f32.mxu0 0.0
    %3270 = vmatmul.mubr.f32.gmra.mxu0 %v2808
    %v3271 = vpop.f32.mrf.mxu0
    %v3272 = vadd.f32 %v2783, %v3271
    %v3273 = vpop.f32.mrf.mxu0
    %3274 = vmatprep.mubr.f32.mxu0 0.0
    %3275 = vmatmul.mubr.f32.gmra.mxu0 %v2811
    %v3276 = vpop.f32.mrf.mxu0
    %v3277 = vadd.f32 %v2783, %v3276
    %v3278 = vpop.f32.mrf.mxu0
    %3279 = vmatprep.mubr.f32.mxu0 0.0
    %3280 = vmatmul.mubr.f32.gmra.mxu0 %v2814
    %v3281 = vpop.f32.mrf.mxu0
    %v3282 = vadd.f32 %v2783, %v3281
    %v3283 = vpop.f32.mrf.mxu0
    %3284 = vmatprep.mubr.f32.mxu0 0.0
    %3285 = vmatmul.mubr.f32.gmra.mxu0 %v2817
    %v3286 = vpop.f32.mrf.mxu0
    %v3287 = vadd.f32 %v2783, %v3286
    %v3288 = vpop.f32.mrf.mxu0
    %3289 = vmatprep.mubr.f32.mxu0 0.0
    %3290 = vmatmul.mubr.f32.gmra.mxu0 %v2820
    %v3291 = vpop.f32.mrf.mxu0
    %v3292 = vadd.f32 %v2783, %v3291
    %v3293 = vpop.f32.mrf.mxu0
    %3294 = vmatprep.mubr.f32.mxu0 0.0
    %3295 = vmatmul.mubr.f32.gmra.mxu0 %v2823
    %v3296 = vpop.f32.mrf.mxu0
    %v3297 = vadd.f32 %v2783, %v3296
    %v3298 = vpop.f32.mrf.mxu0
    %3299 = vmatprep.mubr.f32.mxu0 0.0
    %3300 = vmatmul.mubr.f32.gmra.mxu0 %v2826
    %v3301 = vpop.f32.mrf.mxu0
    %v3302 = vadd.f32 %v2783, %v3301
    %v3303 = vpop.f32.mrf.mxu0
    %3304 = vmatprep.mubr.f32.mxu0 0.0
    %3305 = vmatmul.mubr.f32.gmra.mxu0 %v2829
    %v3306 = vpop.f32.mrf.mxu0
    %v3307 = vadd.f32 %v2783, %v3306
    %v3308 = vpop.f32.mrf.mxu0
    %3309 = vmatprep.mubr.f32.mxu0 0.0
    %3310 = vmatmul.mubr.f32.gmra.mxu0 %v2832
    %v3311 = vpop.f32.mrf.mxu0
    %v3312 = vadd.f32 %v2783, %v3311
    %v3313 = vpop.f32.mrf.mxu0
    %3314 = vmatprep.mubr.f32.mxu0 0.0
    %3315 = vmatmul.mubr.f32.gmra.mxu0 %v2835
    %v3316 = vpop.f32.mrf.mxu0
    %v3317 = vadd.f32 %v2783, %v3316
    %v3318 = vpop.f32.mrf.mxu0
    %3319 = vmatprep.mubr.f32.mxu0 0.0
    %3320 = vmatmul.mubr.f32.gmra.mxu0 %v2838
    %v3321 = vpop.f32.mrf.mxu0
    %v3322 = vadd.f32 %v2783, %v3321
    %v3323 = vpop.f32.mrf.mxu0
    %3324 = vmatprep.mubr.f32.mxu0 0.0
    %3325 = vmatmul.mubr.f32.gmra.mxu0 %v2841
    %v3326 = vpop.f32.mrf.mxu0
    %v3327 = vadd.f32 %v2783, %v3326
    %v3328 = vpop.f32.mrf.mxu0
    %3329 = vmatprep.mubr.f32.mxu0 0.0
    %3330 = vmatmul.mubr.f32.gmra.mxu0 %v2844
    %v3331 = vpop.f32.mrf.mxu0
    %v3332 = vadd.f32 %v2783, %v3331
    %v3333 = vpop.f32.mrf.mxu0
    %3334 = vmatprep.mubr.f32.mxu0 0.0
    %3335 = vmatmul.mubr.f32.gmra.mxu0 %v2847
    %v3336 = vpop.f32.mrf.mxu0
    %v3337 = vadd.f32 %v2783, %v3336
    %v3338 = vpop.f32.mrf.mxu0
    %3339 = vmatprep.mubr.f32.mxu0 0.0
    %3340 = vmatmul.mubr.f32.gmra.mxu0 %v2850
    %v3341 = vpop.f32.mrf.mxu0
    %v3342 = vadd.f32 %v2783, %v3341
    %v3343 = vpop.f32.mrf.mxu0
    %3344 = vmatprep.mubr.f32.mxu0 0.0
    %3345 = vmatmul.mubr.f32.gmra.mxu0 %v2853
    %v3346 = vpop.f32.mrf.mxu0
    %v3347 = vadd.f32 %v2783, %v3346
    %v3348 = vpop.f32.mrf.mxu0
    %3349 = vmatprep.mubr.f32.mxu0 0.0
    %3350 = vmatmul.mubr.f32.gmra.mxu0 %v2856
    %v3351 = vpop.f32.mrf.mxu0
    %v3352 = vadd.f32 %v2783, %v3351
    %v3353 = vpop.f32.mrf.mxu0
    %3354 = vmatprep.mubr.f32.mxu0 0.0
    %3355 = vmatmul.mubr.f32.gmra.mxu0 %v2859
    %v3356 = vpop.f32.mrf.mxu0
    %v3357 = vadd.f32 %v2783, %v3356
    %v3358 = vpop.f32.mrf.mxu0
    %3359 = vmatprep.mubr.f32.mxu0 0.0
    %3360 = vmatmul.mubr.f32.gmra.mxu0 %v2862
    %v3361 = vpop.f32.mrf.mxu0
    %v3362 = vadd.f32 %v2783, %v3361
    %v3363 = vpop.f32.mrf.mxu0
    %3364 = vmatprep.mubr.f32.mxu0 0.0
    %3365 = vmatmul.mubr.f32.gmra.mxu0 %v2865
    %v3366 = vpop.f32.mrf.mxu0
    %v3367 = vadd.f32 %v2783, %v3366
    %v3368 = vpop.f32.mrf.mxu0
    %3369 = vmatprep.mubr.f32.mxu0 0.0
    %3370 = vmatmul.mubr.f32.gmra.mxu0 %v2868
    %v3371 = vpop.f32.mrf.mxu0
    %v3372 = vadd.f32 %v2783, %v3371
    %v3373 = vpop.f32.mrf.mxu0
    %3374 = vmatprep.mubr.f32.mxu0 0.0
    %3375 = vmatmul.mubr.f32.gmra.mxu0 %v2871
    %v3376 = vpop.f32.mrf.mxu0
    %v3377 = vadd.f32 %v2783, %v3376
    %v3378 = vpop.f32.mrf.mxu0
    %3379 = vmatprep.mubr.f32.mxu0 0.0
    %3380 = vmatmul.mubr.f32.gmra.mxu0 %v2874
    %v3381 = vpop.f32.mrf.mxu0
    %v3382 = vadd.f32 %v2783, %v3381
    %v3383 = vpop.f32.mrf.mxu0
    %3384 = vmatprep.mubr.f32.mxu0 0.0
    %3385 = vmatmul.mubr.f32.gmra.mxu0 %v2877
    %v3386 = vpop.f32.mrf.mxu0
    %v3387 = vadd.f32 %v2783, %v3386
    %v3388 = vpop.f32.mrf.mxu0
    %3389 = vmatprep.mubr.f32.mxu0 0.0
    %3390 = vmatmul.mubr.f32.gmra.mxu0 %v2880
    %v3391 = vpop.f32.mrf.mxu0
    %v3392 = vadd.f32 %v2783, %v3391
    %v3393 = vpop.f32.mrf.mxu0
    %3394 = vmatprep.mubr.f32.mxu0 0.0
    %3395 = vmatmul.mubr.f32.gmra.mxu0 %v2883
    %v3396 = vpop.f32.mrf.mxu0
    %v3397 = vadd.f32 %v2783, %v3396
    %v3398 = vpop.f32.mrf.mxu0
    %3399 = vmatprep.mubr.f32.mxu0 0.0
    %3400 = vmatmul.mubr.f32.gmra.mxu0 %v2886
    %v3401 = vpop.f32.mrf.mxu0
    %v3402 = vadd.f32 %v2783, %v3401
    %v3403 = vpop.f32.mrf.mxu0
    %3404 = vmatprep.mubr.f32.mxu0 0.0
    %3405 = vmatmul.mubr.f32.gmra.mxu0 %v2889
    %v3406 = vpop.f32.mrf.mxu0
    %v3407 = vadd.f32 %v2783, %v3406
    %v3408 = vpop.f32.mrf.mxu0
    %3409 = vmatprep.mubr.f32.mxu0 0.0
    %3410 = vmatmul.mubr.f32.gmra.mxu0 %v2892
    %v3411 = vpop.f32.mrf.mxu0
    %v3412 = vadd.f32 %v2783, %v3411
    %v3413 = vpop.f32.mrf.mxu0
    %3414 = vmatprep.mubr.f32.mxu0 0.0
    %3415 = vmatmul.mubr.f32.gmra.mxu0 %v2895
    %v3416 = vpop.f32.mrf.mxu0
    %v3417 = vadd.f32 %v2783, %v3416
    %v3418 = vpop.f32.mrf.mxu0
    %3419 = vmatprep.mubr.f32.mxu0 0.0
    %3420 = vmatmul.mubr.f32.gmra.mxu0 %v2898
    %v3421 = vpop.f32.mrf.mxu0
    %v3422 = vadd.f32 %v2783, %v3421
    %v3423 = vpop.f32.mrf.mxu0
    %3424 = vmatprep.mubr.f32.mxu0 0.0
    %3425 = vmatmul.mubr.f32.gmra.mxu0 %v2901
    %v3426 = vpop.f32.mrf.mxu0
    %v3427 = vadd.f32 %v2783, %v3426
    %v3428 = vpop.f32.mrf.mxu0
    %3429 = vmatprep.mubr.f32.mxu0 0.0
    %3430 = vmatmul.mubr.f32.gmra.mxu0 %v2904
    %v3431 = vpop.f32.mrf.mxu0
    %v3432 = vadd.f32 %v2783, %v3431
    %v3433 = vpop.f32.mrf.mxu0
    %3434 = vmatprep.mubr.f32.mxu0 0.0
    %3435 = vmatmul.mubr.f32.gmra.mxu0 %v2907
    %v3436 = vpop.f32.mrf.mxu0
    %v3437 = vadd.f32 %v2783, %v3436
    %v3438 = vpop.f32.mrf.mxu0
    %3439 = vmatprep.mubr.f32.mxu0 0.0
    %3440 = vmatmul.mubr.f32.gmra.mxu0 %v2910
    %v3441 = vpop.f32.mrf.mxu0
    %v3442 = vadd.f32 %v2783, %v3441
    %v3443 = vpop.f32.mrf.mxu0
    %3444 = vmatprep.mubr.f32.mxu0 0.0
    %3445 = vmatmul.mubr.f32.gmra.mxu0 %v2913
    %v3446 = vpop.f32.mrf.mxu0
    %v3447 = vadd.f32 %v2783, %v3446
    %v3448 = vpop.f32.mrf.mxu0
    %3449 = vmatprep.mubr.f32.mxu0 0.0
    %3450 = vmatmul.mubr.f32.gmra.mxu0 %v2916
    %v3451 = vpop.f32.mrf.mxu0
    %v3452 = vadd.f32 %v2783, %v3451
    %v3453 = vpop.f32.mrf.mxu0
    %3454 = vmatprep.mubr.f32.mxu0 0.0
    %3455 = vmatmul.mubr.f32.gmra.mxu0 %v2919
    %v3456 = vpop.f32.mrf.mxu0
    %v3457 = vadd.f32 %v2783, %v3456
    %v3458 = vpop.f32.mrf.mxu0
    %3459 = vmatprep.mubr.f32.mxu0 0.0
    %3460 = vmatmul.mubr.f32.gmra.mxu0 %v2922
    %v3461 = vpop.f32.mrf.mxu0
    %v3462 = vadd.f32 %v2783, %v3461
    %v3463 = vpop.f32.mrf.mxu0
    %3464 = vmatprep.mubr.f32.mxu0 0.0
    %3465 = vmatmul.mubr.f32.gmra.mxu0 %v2925
    %v3466 = vpop.f32.mrf.mxu0
    %v3467 = vadd.f32 %v2783, %v3466
    %v3468 = vpop.f32.mrf.mxu0
    %3469 = vmatprep.mubr.f32.mxu0 0.0
    %3470 = vmatmul.mubr.f32.gmra.mxu0 %v2928
    %v3471 = vpop.f32.mrf.mxu0
    %v3472 = vadd.f32 %v2783, %v3471
    %v3473 = vpop.f32.mrf.mxu0
    %3474 = vmatprep.mubr.f32.mxu0 0.0
    %3475 = vmatmul.mubr.f32.gmra.mxu0 %v2931
    %v3476 = vpop.f32.mrf.mxu0
    %v3477 = vadd.f32 %v2783, %v3476
    %v3478 = vpop.f32.mrf.mxu0
    %3479 = vmatprep.mubr.f32.mxu0 0.0
    %3480 = vmatmul.mubr.f32.gmra.mxu0 %v2934
    %v3481 = vpop.f32.mrf.mxu0
    %v3482 = vadd.f32 %v2783, %v3481
    %v3483 = vpop.f32.mrf.mxu0
    %3484 = vmatprep.mubr.f32.mxu0 0.0
    %3485 = vmatmul.mubr.f32.gmra.mxu0 %v2937
    %v3486 = vpop.f32.mrf.mxu0
    %v3487 = vadd.f32 %v2783, %v3486
    %v3488 = vpop.f32.mrf.mxu0
    %3489 = vmatprep.mubr.f32.mxu0 0.0
    %3490 = vmatmul.mubr.f32.gmra.mxu0 %v2940
    %v3491 = vpop.f32.mrf.mxu0
    %v3492 = vadd.f32 %v2783, %v3491
    %v3493 = vpop.f32.mrf.mxu0
    %3494 = vmatprep.mubr.f32.mxu0 0.0
    %3495 = vmatmul.mubr.f32.gmra.mxu0 %v2943
    %v3496 = vpop.f32.mrf.mxu0
    %v3497 = vadd.f32 %v2783, %v3496
    %v3498 = vpop.f32.mrf.mxu0
    %3499 = vmatprep.mubr.f32.mxu0 0.0
    %3500 = vmatmul.mubr.f32.gmra.mxu0 %v2946
    %v3501 = vpop.f32.mrf.mxu0
    %v3502 = vadd.f32 %v2783, %v3501
    %v3503 = vpop.f32.mrf.mxu0
    %3504 = vmatprep.mubr.f32.mxu0 0.0
    %3505 = vmatmul.mubr.f32.gmra.mxu0 %v2949
    %v3506 = vpop.f32.mrf.mxu0
    %v3507 = vadd.f32 %v2783, %v3506
    %v3508 = vpop.f32.mrf.mxu0
    %3509 = vmatprep.mubr.f32.mxu0 0.0
    %3510 = vmatmul.mubr.f32.gmra.mxu0 %v2952
    %v3511 = vpop.f32.mrf.mxu0
    %v3512 = vadd.f32 %v2783, %v3511
    %v3513 = vpop.f32.mrf.mxu0
    %3514 = vmatprep.mubr.f32.mxu0 0.0
    %3515 = vmatmul.mubr.f32.gmra.mxu0 %v2955
    %v3516 = vpop.f32.mrf.mxu0
    %v3517 = vadd.f32 %v2783, %v3516
    %v3518 = vpop.f32.mrf.mxu0
    %3519 = vmatprep.mubr.f32.mxu0 0.0
    %3520 = vmatmul.mubr.f32.gmra.mxu0 %v2958
    %v3521 = vpop.f32.mrf.mxu0
    %v3522 = vadd.f32 %v2783, %v3521
    %v3523 = vpop.f32.mrf.mxu0
    %3524 = vmatprep.mubr.f32.mxu0 0.0
    %3525 = vmatmul.mubr.f32.gmra.mxu0 %v2961
    %v3526 = vpop.f32.mrf.mxu0
    %v3527 = vadd.f32 %v2783, %v3526
    %v3528 = vpop.f32.mrf.mxu0
    %3529 = vmatprep.mubr.f32.mxu0 0.0
    %3530 = vmatmul.mubr.f32.gmra.mxu0 %v2964
    %v3531 = vpop.f32.mrf.mxu0
    %v3532 = vadd.f32 %v2783, %v3531
    %v3533 = vpop.f32.mrf.mxu0
    %3534 = vmatprep.mubr.f32.mxu0 0.0
    %3535 = vmatmul.mubr.f32.gmra.mxu0 %v2967
    %v3536 = vpop.f32.mrf.mxu0
    %v3537 = vadd.f32 %v2783, %v3536
    %v3538 = vpop.f32.mrf.mxu0
    %3539 = vmatprep.mubr.f32.mxu0 0.0
    %3540 = vmatmul.mubr.f32.gmra.mxu0 %v2970
    %v3541 = vpop.f32.mrf.mxu0
    %v3542 = vadd.f32 %v2783, %v3541
    %v3543 = vpop.f32.mrf.mxu0
    %3544 = vmatprep.mubr.f32.mxu0 0.0
    %3545 = vmatmul.mubr.f32.gmra.mxu0 %v2973
    %v3546 = vpop.f32.mrf.mxu0
    %v3547 = vadd.f32 %v2783, %v3546
    %v3548 = vpop.f32.mrf.mxu0
    %3549 = vmatprep.mubr.f32.mxu0 0.0
    %3550 = vmatmul.mubr.f32.gmra.mxu0 %v2976
    %v3551 = vpop.f32.mrf.mxu0
    %v3552 = vadd.f32 %v2783, %v3551
    %v3553 = vpop.f32.mrf.mxu0
    %3554 = vmatprep.mubr.f32.mxu0 0.0
    %3555 = vmatmul.mubr.f32.gmra.mxu0 %v2979
    %v3556 = vpop.f32.mrf.mxu0
    %v3557 = vadd.f32 %v2783, %v3556
    %v3558 = vpop.f32.mrf.mxu0
    %3559 = vmatprep.mubr.f32.mxu0 0.0
    %3560 = vmatmul.mubr.f32.gmra.mxu0 %v2982
    %v3561 = vpop.f32.mrf.mxu0
    %v3562 = vadd.f32 %v2783, %v3561
    %v3563 = vpop.f32.mrf.mxu0
    %3564 = vmatprep.mubr.f32.mxu0 0.0
    %3565 = vmatmul.mubr.f32.gmra.mxu0 %v2985
    %v3566 = vpop.f32.mrf.mxu0
    %v3567 = vadd.f32 %v2783, %v3566
    %v3568 = vpop.f32.mrf.mxu0
    %3569 = vmatprep.mubr.f32.mxu0 0.0
    %3570 = vmatmul.mubr.f32.gmra.mxu0 %v2988
    %v3571 = vpop.f32.mrf.mxu0
    %v3572 = vadd.f32 %v2783, %v3571
    %v3573 = vpop.f32.mrf.mxu0
    %3574 = vmatprep.mubr.f32.mxu0 0.0
    %3575 = vmatmul.mubr.f32.gmra.mxu0 %v2991
    %v3576 = vpop.f32.mrf.mxu0
    %v3577 = vadd.f32 %v2783, %v3576
    %v3578 = vpop.f32.mrf.mxu0
    %3579 = vmatprep.mubr.f32.mxu0 0.0
    %3580 = vmatmul.mubr.f32.gmra.mxu0 %v2994
    %v3581 = vpop.f32.mrf.mxu0
    %v3582 = vadd.f32 %v2783, %v3581
    %v3583 = vpop.f32.mrf.mxu0
    %3584 = vmatprep.mubr.f32.mxu0 0.0
    %3585 = vmatmul.mubr.f32.gmra.mxu0 %v2997
    %v3586 = vpop.f32.mrf.mxu0
    %v3587 = vadd.f32 %v2783, %v3586
    %v3588 = vpop.f32.mrf.mxu0
    %3589 = vmatprep.mubr.f32.mxu0 0.0
    %3590 = vmatmul.mubr.f32.gmra.mxu0 %v3000
    %v3591 = vpop.f32.mrf.mxu0
    %v3592 = vadd.f32 %v2783, %v3591
    %v3593 = vpop.f32.mrf.mxu0
    %3594 = vmatprep.mubr.f32.mxu0 0.0
    %3595 = vmatmul.mubr.f32.gmra.mxu0 %v3003
    %v3596 = vpop.f32.mrf.mxu0
    %v3597 = vadd.f32 %v2783, %v3596
    %v3598 = vpop.f32.mrf.mxu0
    %3599 = vmatprep.mubr.f32.mxu0 0.0
    %3600 = vmatmul.mubr.f32.gmra.mxu0 %v3006
    %v3601 = vpop.f32.mrf.mxu0
    %v3602 = vadd.f32 %v2783, %v3601
    %v3603 = vpop.f32.mrf.mxu0
    %3604 = vmatprep.mubr.f32.mxu0 0.0
    %3605 = vmatmul.mubr.f32.gmra.mxu0 %v3009
    %v3606 = vpop.f32.mrf.mxu0
    %v3607 = vadd.f32 %v2783, %v3606
    %v3608 = vpop.f32.mrf.mxu0
    %3609 = vmatprep.mubr.f32.mxu0 0.0
    %3610 = vmatmul.mubr.f32.gmra.mxu0 %v3012
    %v3611 = vpop.f32.mrf.mxu0
    %v3612 = vadd.f32 %v2783, %v3611
    %v3613 = vpop.f32.mrf.mxu0
    %3614 = vmatprep.mubr.f32.mxu0 0.0
    %3615 = vmatmul.mubr.f32.gmra.mxu0 %v3015
    %v3616 = vpop.f32.mrf.mxu0
    %v3617 = vadd.f32 %v2783, %v3616
    %v3618 = vpop.f32.mrf.mxu0
    %3619 = vmatprep.mubr.f32.mxu0 0.0
    %3620 = vmatmul.mubr.f32.gmra.mxu0 %v3018
    %v3621 = vpop.f32.mrf.mxu0
    %v3622 = vadd.f32 %v2783, %v3621
    %v3623 = vpop.f32.mrf.mxu0
    %3624 = vmatprep.mubr.f32.mxu0 0.0
    %3625 = vmatmul.mubr.f32.gmra.mxu0 %v3021
    %v3626 = vpop.f32.mrf.mxu0
    %v3627 = vadd.f32 %v2783, %v3626
    %v3628 = vpop.f32.mrf.mxu0
    %3629 = vmatprep.mubr.f32.mxu0 0.0
    %3630 = vmatmul.mubr.f32.gmra.mxu0 %v3024
    %v3631 = vpop.f32.mrf.mxu0
    %v3632 = vadd.f32 %v2783, %v3631
    %v3633 = vpop.f32.mrf.mxu0
    %3634 = vmatprep.mubr.f32.mxu0 0.0
    %3635 = vmatmul.mubr.f32.gmra.mxu0 %v3027
    %v3636 = vpop.f32.mrf.mxu0
    %v3637 = vadd.f32 %v2783, %v3636
    %v3638 = vpop.f32.mrf.mxu0
    %3639 = vmatprep.mubr.f32.mxu0 0.0
    %3640 = vmatmul.mubr.f32.gmra.mxu0 %v3030
    %v3641 = vpop.f32.mrf.mxu0
    %v3642 = vadd.f32 %v2783, %v3641
    %v3643 = vpop.f32.mrf.mxu0
    %3644 = vmatprep.mubr.f32.mxu0 0.0
    %3645 = vmatmul.mubr.f32.gmra.mxu0 %v3033
    %v3646 = vpop.f32.mrf.mxu0
    %v3647 = vadd.f32 %v2783, %v3646
    %v3648 = vpop.f32.mrf.mxu0
    %3649 = vmatprep.mubr.f32.mxu0 0.0
    %3650 = vmatmul.mubr.f32.gmra.mxu0 %v3036
    %v3651 = vpop.f32.mrf.mxu0
    %v3652 = vadd.f32 %v2783, %v3651
    %v3653 = vpop.f32.mrf.mxu0
    %3654 = vmatprep.mubr.f32.mxu0 0.0
    %3655 = vmatmul.mubr.f32.gmra.mxu0 %v3039
    %v3656 = vpop.f32.mrf.mxu0
    %v3657 = vadd.f32 %v2783, %v3656
    %v3658 = vpop.f32.mrf.mxu0
    %3659 = vmatprep.mubr.f32.mxu0 0.0
    %3660 = vmatmul.mubr.f32.gmra.mxu0 %v3042
    %v3661 = vpop.f32.mrf.mxu0
    %v3662 = vadd.f32 %v2783, %v3661
    %v3663 = vpop.f32.mrf.mxu0
    %3664 = vmatprep.mubr.f32.mxu0 0.0
    %3665 = vmatmul.mubr.f32.gmra.mxu0 %v3045
    %v3666 = vpop.f32.mrf.mxu0
    %v3667 = vadd.f32 %v2783, %v3666
    %v3668 = vpop.f32.mrf.mxu0
    %3669 = vmatprep.mubr.f32.mxu0 0.0
    %3670 = vmatmul.mubr.f32.gmra.mxu0 %v3048
    %v3671 = vpop.f32.mrf.mxu0
    %v3672 = vadd.f32 %v2783, %v3671
    %v3673 = vpop.f32.mrf.mxu0
    %3674 = vmatprep.mubr.f32.mxu0 0.0
    %3675 = vmatmul.mubr.f32.gmra.mxu0 %v3051
    %v3676 = vpop.f32.mrf.mxu0
    %v3677 = vadd.f32 %v2783, %v3676
    %v3678 = vpop.f32.mrf.mxu0
    %3679 = vmatprep.mubr.f32.mxu0 0.0
    %3680 = vmatmul.mubr.f32.gmra.mxu0 %v3054
    %v3681 = vpop.f32.mrf.mxu0
    %v3682 = vadd.f32 %v2783, %v3681
    %v3683 = vpop.f32.mrf.mxu0
    %3684 = vmatprep.mubr.f32.mxu0 0.0
    %3685 = vmatmul.mubr.f32.gmra.mxu0 %v3057
    %v3686 = vpop.f32.mrf.mxu0
    %v3687 = vadd.f32 %v2783, %v3686
    %v3688 = vpop.f32.mrf.mxu0
    %3689 = vmatprep.mubr.f32.mxu0 0.0
    %3690 = vmatmul.mubr.f32.gmra.mxu0 %v3060
    %v3691 = vpop.f32.mrf.mxu0
    %v3692 = vadd.f32 %v2783, %v3691
    %v3693 = vpop.f32.mrf.mxu0
    %3694 = vmatprep.mubr.f32.mxu0 0.0
    %3695 = vmatmul.mubr.f32.gmra.mxu0 %v3063
    %v3696 = vpop.f32.mrf.mxu0
    %v3697 = vadd.f32 %v2783, %v3696
    %v3698 = vpop.f32.mrf.mxu0
    %3699 = vmatprep.mubr.f32.mxu0 0.0
    %3700 = vmatmul.mubr.f32.gmra.mxu0 %v3066
    %v3701 = vpop.f32.mrf.mxu0
    %v3702 = vadd.f32 %v2783, %v3701
    %v3703 = vpop.f32.mrf.mxu0
    %3704 = vmatprep.mubr.f32.mxu0 0.0
    %3705 = vmatmul.mubr.f32.gmra.mxu0 %v3069
    %v3706 = vpop.f32.mrf.mxu0
    %v3707 = vadd.f32 %v2783, %v3706
    %v3708 = vpop.f32.mrf.mxu0
    %3709 = vmatprep.mubr.f32.mxu0 0.0
    %3710 = vmatmul.mubr.f32.gmra.mxu0 %v3072
    %v3711 = vpop.f32.mrf.mxu0
    %v3712 = vadd.f32 %v2783, %v3711
    %v3713 = vpop.f32.mrf.mxu0
    %3714 = vmatprep.mubr.f32.mxu0 0.0
    %3715 = vmatmul.mubr.f32.gmra.mxu0 %v3075
    %v3716 = vpop.f32.mrf.mxu0
    %v3717 = vadd.f32 %v2783, %v3716
    %v3718 = vpop.f32.mrf.mxu0
    %3719 = vmatprep.mubr.f32.mxu0 0.0
    %3720 = vmatmul.mubr.f32.gmra.mxu0 %v3078
    %v3721 = vpop.f32.mrf.mxu0
    %v3722 = vadd.f32 %v2783, %v3721
    %v3723 = vpop.f32.mrf.mxu0
    %3724 = vmatprep.mubr.f32.mxu0 0.0
    %3725 = vmatmul.mubr.f32.gmra.mxu0 %v3081
    %v3726 = vpop.f32.mrf.mxu0
    %v3727 = vadd.f32 %v2783, %v3726
    %v3728 = vpop.f32.mrf.mxu0
    %3729 = vmatprep.mubr.f32.mxu0 0.0
    %3730 = vmatmul.mubr.f32.gmra.mxu0 %v3084
    %v3731 = vpop.f32.mrf.mxu0
    %v3732 = vadd.f32 %v2783, %v3731
    %v3733 = vpop.f32.mrf.mxu0
    %3734 = vmatprep.mubr.f32.mxu0 0.0
    %3735 = vmatmul.mubr.f32.gmra.mxu0 %v3087
    %v3736 = vpop.f32.mrf.mxu0
    %v3737 = vadd.f32 %v2783, %v3736
    %v3738 = vpop.f32.mrf.mxu0
    %3739 = vmatprep.mubr.f32.mxu0 0.0
    %3740 = vmatmul.mubr.f32.gmra.mxu0 %v3090
    %v3741 = vpop.f32.mrf.mxu0
    %v3742 = vadd.f32 %v2783, %v3741
    %v3743 = vpop.f32.mrf.mxu0
    %3744 = vmatprep.mubr.f32.mxu0 0.0
    %3745 = vmatmul.mubr.f32.gmra.mxu0 %v3093
    %v3746 = vpop.f32.mrf.mxu0
    %v3747 = vadd.f32 %v2783, %v3746
    %v3748 = vpop.f32.mrf.mxu0
    %3749 = vmatprep.mubr.f32.mxu0 0.0
    %3750 = vmatmul.mubr.f32.gmra.mxu0 %v3096
    %v3751 = vpop.f32.mrf.mxu0
    %v3752 = vadd.f32 %v2783, %v3751
    %v3753 = vpop.f32.mrf.mxu0
    %3754 = vmatprep.mubr.f32.mxu0 0.0
    %3755 = vmatmul.mubr.f32.gmra.mxu0 %v3099
    %v3756 = vpop.f32.mrf.mxu0
    %v3757 = vadd.f32 %v2783, %v3756
    %v3758 = vpop.f32.mrf.mxu0
    %3759 = vmatprep.mubr.f32.mxu0 0.0
    %3760 = vmatmul.mubr.f32.gmra.mxu0 %v3102
    %v3761 = vpop.f32.mrf.mxu0
    %v3762 = vadd.f32 %v2783, %v3761
    %v3763 = vpop.f32.mrf.mxu0
    %3764 = vmatprep.mubr.f32.mxu0 0.0
    %3765 = vmatmul.mubr.f32.gmra.mxu0 %v3105
    %v3766 = vpop.f32.mrf.mxu0
    %v3767 = vadd.f32 %v2783, %v3766
    %v3768 = vpop.f32.mrf.mxu0
    %3769 = vmatprep.mubr.f32.mxu0 0.0
    %3770 = vmatmul.mubr.f32.gmra.mxu0 %v3108
    %v3771 = vpop.f32.mrf.mxu0
    %v3772 = vadd.f32 %v2783, %v3771
    %v3773 = vpop.f32.mrf.mxu0
    %3774 = vmatprep.mubr.f32.mxu0 0.0
    %3775 = vmatmul.mubr.f32.gmra.mxu0 %v3111
    %v3776 = vpop.f32.mrf.mxu0
    %v3777 = vadd.f32 %v2783, %v3776
    %v3778 = vpop.f32.mrf.mxu0
    %3779 = vmatprep.mubr.f32.mxu0 0.0
    %3780 = vmatmul.mubr.f32.gmra.mxu0 %v3114
    %v3781 = vpop.f32.mrf.mxu0
    %v3782 = vadd.f32 %v2783, %v3781
    %v3783 = vpop.f32.mrf.mxu0
    %3784 = vmatprep.mubr.f32.mxu0 0.0
    %3785 = vmatmul.mubr.f32.gmra.mxu0 %v3117
    %v3786 = vpop.f32.mrf.mxu0
    %v3787 = vadd.f32 %v2783, %v3786
    %v3788 = vpop.f32.mrf.mxu0
    %3789 = vmatprep.mubr.f32.mxu0 0.0
    %3790 = vmatmul.mubr.f32.gmra.mxu0 %v3120
    %v3791 = vpop.f32.mrf.mxu0
    %v3792 = vadd.f32 %v2783, %v3791
    %v3793 = vpop.f32.mrf.mxu0
    %3794 = vmatprep.mubr.f32.mxu0 0.0
    %3795 = vmatmul.mubr.f32.gmra.mxu0 %v3123
    %v3796 = vpop.f32.mrf.mxu0
    %v3797 = vadd.f32 %v2783, %v3796
    %v3798 = vpop.f32.mrf.mxu0
    %3799 = vmatprep.mubr.f32.mxu0 0.0
    %3800 = vmatmul.mubr.f32.gmra.mxu0 %v3126
    %v3801 = vpop.f32.mrf.mxu0
    %v3802 = vadd.f32 %v2783, %v3801
    %v3803 = vpop.f32.mrf.mxu0
    %3804 = vmatprep.mubr.f32.mxu0 0.0
    %3805 = vmatmul.mubr.f32.gmra.mxu0 %v3129
    %v3806 = vpop.f32.mrf.mxu0
    %v3807 = vadd.f32 %v2783, %v3806
    %v3808 = vpop.f32.mrf.mxu0
    %3809 = vmatprep.mubr.f32.mxu0 0.0
    %3810 = vmatmul.mubr.f32.gmra.mxu0 %v3132
    %v3811 = vpop.f32.mrf.mxu0
    %v3812 = vadd.f32 %v2783, %v3811
    %v3813 = vpop.f32.mrf.mxu0
    %3814 = vmatprep.mubr.f32.mxu0 0.0
    %3815 = vmatmul.mubr.f32.gmra.mxu0 %v3135
    %v3816 = vpop.f32.mrf.mxu0
    %v3817 = vadd.f32 %v2783, %v3816
    %v3818 = vpop.f32.mrf.mxu0
    %3819 = vmatprep.mubr.f32.mxu0 0.0
    %3820 = vmatmul.mubr.f32.gmra.mxu0 %v3138
    %v3821 = vpop.f32.mrf.mxu0
    %v3822 = vadd.f32 %v2783, %v3821
    %v3823 = vpop.f32.mrf.mxu0
    %3824 = vmatprep.mubr.f32.mxu0 0.0
    %3825 = vmatmul.mubr.f32.gmra.mxu0 %v3141
    %v3826 = vpop.f32.mrf.mxu0
    %v3827 = vadd.f32 %v2783, %v3826
    %v3828 = vpop.f32.mrf.mxu0
    %3829 = vmatprep.mubr.f32.mxu0 0.0
    %3830 = vmatmul.mubr.f32.gmra.mxu0 %v3144
    %v3831 = vpop.f32.mrf.mxu0
    %v3832 = vadd.f32 %v2783, %v3831
    %v3833 = vpop.f32.mrf.mxu0
    %3834 = vmatprep.mubr.f32.mxu0 0.0
    %3835 = vmatmul.mubr.f32.gmra.mxu0 %v3147
    %v3836 = vpop.f32.mrf.mxu0
    %v3837 = vadd.f32 %v2783, %v3836
    %v3838 = vpop.f32.mrf.mxu0
    %3839 = vmatprep.mubr.f32.mxu0 0.0
    %3840 = vmatmul.mubr.f32.gmra.mxu0 %v3150
    %v3841 = vpop.f32.mrf.mxu0
    %v3842 = vadd.f32 %v2783, %v3841
    %v3843 = vpop.f32.mrf.mxu0
    %3844 = vmatprep.mubr.f32.mxu0 0.0
    %3845 = vmatmul.mubr.f32.gmra.mxu0 %v3153
    %v3846 = vpop.f32.mrf.mxu0
    %v3847 = vadd.f32 %v2783, %v3846
    %v3848 = vpop.f32.mrf.mxu0
    %3849 = vmatprep.mubr.f32.mxu0 0.0
    %3850 = vmatmul.mubr.f32.gmra.mxu0 %v3156
    %v3851 = vpop.f32.mrf.mxu0
    %v3852 = vadd.f32 %v2783, %v3851
    %v3853 = vpop.f32.mrf.mxu0
    %3854 = vmatprep.mubr.f32.mxu0 0.0
    %3855 = vmatmul.mubr.f32.gmra.mxu0 %v3159
    %v3856 = vpop.f32.mrf.mxu0
    %v3857 = vadd.f32 %v2783, %v3856
    %v3858 = vpop.f32.mrf.mxu0
    %3859 = vmatprep.mubr.f32.mxu0 0.0
    %3860 = vmatmul.mubr.f32.gmra.mxu0 %v3162
    %v3861 = vpop.f32.mrf.mxu0
    %v3862 = vadd.f32 %v2783, %v3861
    %v3863 = vpop.f32.mrf.mxu0
    %3864 = vmatprep.mubr.f32.mxu0 0.0
    %3865 = vmatmul.mubr.f32.gmra.mxu0 %v3165
    %v3866 = vpop.f32.mrf.mxu0
    %v3867 = vadd.f32 %v2783, %v3866
    %v3868 = vpop.f32.mrf.mxu0
    %3869 = vmatprep.mubr.f32.mxu0 0.0
    %3870 = vmatmul.mubr.f32.gmra.mxu0 %v3168
    %v3871 = vpop.f32.mrf.mxu0
    %v3872 = vadd.f32 %v2783, %v3871
    %v3873 = vpop.f32.mrf.mxu0
    %3874 = vdwg.mxu0
    %v3875 = vmax.f32 %v3237, 0.0
    %v3876 = vmax.f32 %v3242, 0.0
    %v3877 = vmax.f32 %v3247, 0.0
    %v3878 = vmax.f32 %v3252, 0.0
    %v3879 = vmax.f32 %v3257, 0.0
    %v3880 = vmax.f32 %v3262, 0.0
    %v3881 = vmax.f32 %v3267, 0.0
    %v3882 = vmax.f32 %v3272, 0.0
    %v3883 = vmax.f32 %v3277, 0.0
    %v3884 = vmax.f32 %v3282, 0.0
    %v3885 = vmax.f32 %v3287, 0.0
    %v3886 = vmax.f32 %v3292, 0.0
    %v3887 = vmax.f32 %v3297, 0.0
    %v3888 = vmax.f32 %v3302, 0.0
    %v3889 = vmax.f32 %v3307, 0.0
    %v3890 = vmax.f32 %v3312, 0.0
    %v3891 = vmax.f32 %v3317, 0.0
    %v3892 = vmax.f32 %v3322, 0.0
    %v3893 = vmax.f32 %v3327, 0.0
    %v3894 = vmax.f32 %v3332, 0.0
    %v3895 = vmax.f32 %v3337, 0.0
    %v3896 = vmax.f32 %v3342, 0.0
    %v3897 = vmax.f32 %v3347, 0.0
    %v3898 = vmax.f32 %v3352, 0.0
    %v3899 = vmax.f32 %v3357, 0.0
    %v3900 = vmax.f32 %v3362, 0.0
    %v3901 = vmax.f32 %v3367, 0.0
    %v3902 = vmax.f32 %v3372, 0.0
    %v3903 = vmax.f32 %v3377, 0.0
    %v3904 = vmax.f32 %v3382, 0.0
    %v3905 = vmax.f32 %v3387, 0.0
    %v3906 = vmax.f32 %v3392, 0.0
    %v3907 = vmax.f32 %v3397, 0.0
    %v3908 = vmax.f32 %v3402, 0.0
    %v3909 = vmax.f32 %v3407, 0.0
    %v3910 = vmax.f32 %v3412, 0.0
    %v3911 = vmax.f32 %v3417, 0.0
    %v3912 = vmax.f32 %v3422, 0.0
    %v3913 = vmax.f32 %v3427, 0.0
    %v3914 = vmax.f32 %v3432, 0.0
    %v3915 = vmax.f32 %v3437, 0.0
    %v3916 = vmax.f32 %v3442, 0.0
    %v3917 = vmax.f32 %v3447, 0.0
    %v3918 = vmax.f32 %v3452, 0.0
    %v3919 = vmax.f32 %v3457, 0.0
    %v3920 = vmax.f32 %v3462, 0.0
    %v3921 = vmax.f32 %v3467, 0.0
    %v3922 = vmax.f32 %v3472, 0.0
    %v3923 = vmax.f32 %v3477, 0.0
    %v3924 = vmax.f32 %v3482, 0.0
    %v3925 = vmax.f32 %v3487, 0.0
    %v3926 = vmax.f32 %v3492, 0.0
    %v3927 = vmax.f32 %v3497, 0.0
    %v3928 = vmax.f32 %v3502, 0.0
    %v3929 = vmax.f32 %v3507, 0.0
    %v3930 = vmax.f32 %v3512, 0.0
    %v3931 = vmax.f32 %v3517, 0.0
    %v3932 = vmax.f32 %v3522, 0.0
    %v3933 = vmax.f32 %v3527, 0.0
    %v3934 = vmax.f32 %v3532, 0.0
    %v3935 = vmax.f32 %v3537, 0.0
    %v3936 = vmax.f32 %v3542, 0.0
    %v3937 = vmax.f32 %v3547, 0.0
    %v3938 = vmax.f32 %v3552, 0.0
    %v3939 = vmax.f32 %v3557, 0.0
    %v3940 = vmax.f32 %v3562, 0.0
    %v3941 = vmax.f32 %v3567, 0.0
    %v3942 = vmax.f32 %v3572, 0.0
    %v3943 = vmax.f32 %v3577, 0.0
    %v3944 = vmax.f32 %v3582, 0.0
    %v3945 = vmax.f32 %v3587, 0.0
    %v3946 = vmax.f32 %v3592, 0.0
    %v3947 = vmax.f32 %v3597, 0.0
    %v3948 = vmax.f32 %v3602, 0.0
    %v3949 = vmax.f32 %v3607, 0.0
    %v3950 = vmax.f32 %v3612, 0.0
    %v3951 = vmax.f32 %v3617, 0.0
    %v3952 = vmax.f32 %v3622, 0.0
    %v3953 = vmax.f32 %v3627, 0.0
    %v3954 = vmax.f32 %v3632, 0.0
    %v3955 = vmax.f32 %v3637, 0.0
    %v3956 = vmax.f32 %v3642, 0.0
    %v3957 = vmax.f32 %v3647, 0.0
    %v3958 = vmax.f32 %v3652, 0.0
    %v3959 = vmax.f32 %v3657, 0.0
    %v3960 = vmax.f32 %v3662, 0.0
    %v3961 = vmax.f32 %v3667, 0.0
    %v3962 = vmax.f32 %v3672, 0.0
    %v3963 = vmax.f32 %v3677, 0.0
    %v3964 = vmax.f32 %v3682, 0.0
    %v3965 = vmax.f32 %v3687, 0.0
    %v3966 = vmax.f32 %v3692, 0.0
    %v3967 = vmax.f32 %v3697, 0.0
    %v3968 = vmax.f32 %v3702, 0.0
    %v3969 = vmax.f32 %v3707, 0.0
    %v3970 = vmax.f32 %v3712, 0.0
    %v3971 = vmax.f32 %v3717, 0.0
    %v3972 = vmax.f32 %v3722, 0.0
    %v3973 = vmax.f32 %v3727, 0.0
    %v3974 = vmax.f32 %v3732, 0.0
    %v3975 = vmax.f32 %v3737, 0.0
    %v3976 = vmax.f32 %v3742, 0.0
    %v3977 = vmax.f32 %v3747, 0.0
    %v3978 = vmax.f32 %v3752, 0.0
    %v3979 = vmax.f32 %v3757, 0.0
    %v3980 = vmax.f32 %v3762, 0.0
    %v3981 = vmax.f32 %v3767, 0.0
    %v3982 = vmax.f32 %v3772, 0.0
    %v3983 = vmax.f32 %v3777, 0.0
    %v3984 = vmax.f32 %v3782, 0.0
    %v3985 = vmax.f32 %v3787, 0.0
    %v3986 = vmax.f32 %v3792, 0.0
    %v3987 = vmax.f32 %v3797, 0.0
    %v3988 = vmax.f32 %v3802, 0.0
    %v3989 = vmax.f32 %v3807, 0.0
    %v3990 = vmax.f32 %v3812, 0.0
    %v3991 = vmax.f32 %v3817, 0.0
    %v3992 = vmax.f32 %v3822, 0.0
    %v3993 = vmax.f32 %v3827, 0.0
    %v3994 = vmax.f32 %v3832, 0.0
    %v3995 = vmax.f32 %v3837, 0.0
    %v3996 = vmax.f32 %v3842, 0.0
    %v3997 = vmax.f32 %v3847, 0.0
    %v3998 = vmax.f32 %v3852, 0.0
    %v3999 = vmax.f32 %v3857, 0.0
    %v4000 = vmax.f32 %v3862, 0.0
    %v4001 = vmax.f32 %v3867, 0.0
    %v4002 = vmax.f32 %v3872, 0.0
    %vm4003 = vcmask 523264
    %v4004 = vsel %vm4003, %v3875, -inf
    %v4005 = vsel %vm4003, %v3876, -inf
    %v4006 = vmax.f32 %v4004, %v4005
    %v4007 = vsel %vm4003, %v3877, -inf
    %v4008 = vmax.f32 %v4006, %v4007
    %v4009 = vsel %vm4003, %v3878, -inf
    %v4010 = vmax.f32 %v4008, %v4009
    %v4011 = vsel %vm4003, %v3879, -inf
    %v4012 = vmax.f32 %v4010, %v4011
    %v4013 = vsel %vm4003, %v3880, -inf
    %v4014 = vmax.f32 %v4012, %v4013
    %v4015 = vsel %vm4003, %v3881, -inf
    %v4016 = vmax.f32 %v4014, %v4015
    %v4017 = vsel %vm4003, %v3882, -inf
    %v4018 = vmax.f32 %v4016, %v4017
    %v4019 = vsel %vm4003, %v3883, -inf
    %v4020 = vmax.f32 %v4018, %v4019
    %v4021 = vsel %vm4003, %v3884, -inf
    %v4022 = vmax.f32 %v4020, %v4021
    %v4023 = vsel %vm4003, %v3885, -inf
    %v4024 = vmax.f32 %v4022, %v4023
    %v4025 = vsel %vm4003, %v3886, -inf
    %v4026 = vmax.f32 %v4024, %v4025
    %v4027 = vsel %vm4003, %v3887, -inf
    %v4028 = vmax.f32 %v4026, %v4027
    %v4029 = vsel %vm4003, %v3888, -inf
    %v4030 = vmax.f32 %v4028, %v4029
    %v4031 = vsel %vm4003, %v3889, -inf
    %v4032 = vmax.f32 %v4030, %v4031
    %v4033 = vsel %vm4003, %v3890, -inf
    %v4034 = vmax.f32 %v4032, %v4033
    %v4035 = vsel %vm4003, %v3891, -inf
    %v4036 = vmax.f32 %v4034, %v4035
    %v4037 = vsel %vm4003, %v3892, -inf
    %v4038 = vmax.f32 %v4036, %v4037
    %v4039 = vsel %vm4003, %v3893, -inf
    %v4040 = vmax.f32 %v4038, %v4039
    %v4041 = vsel %vm4003, %v3894, -inf
    %v4042 = vmax.f32 %v4040, %v4041
    %v4043 = vsel %vm4003, %v3895, -inf
    %v4044 = vmax.f32 %v4042, %v4043
    %v4045 = vsel %vm4003, %v3896, -inf
    %v4046 = vmax.f32 %v4044, %v4045
    %v4047 = vsel %vm4003, %v3897, -inf
    %v4048 = vmax.f32 %v4046, %v4047
    %v4049 = vsel %vm4003, %v3898, -inf
    %v4050 = vmax.f32 %v4048, %v4049
    %v4051 = vsel %vm4003, %v3899, -inf
    %v4052 = vmax.f32 %v4050, %v4051
    %v4053 = vsel %vm4003, %v3900, -inf
    %v4054 = vmax.f32 %v4052, %v4053
    %v4055 = vsel %vm4003, %v3901, -inf
    %v4056 = vmax.f32 %v4054, %v4055
    %v4057 = vsel %vm4003, %v3902, -inf
    %v4058 = vmax.f32 %v4056, %v4057
    %v4059 = vsel %vm4003, %v3903, -inf
    %v4060 = vmax.f32 %v4058, %v4059
    %v4061 = vsel %vm4003, %v3904, -inf
    %v4062 = vmax.f32 %v4060, %v4061
    %v4063 = vsel %vm4003, %v3905, -inf
    %v4064 = vmax.f32 %v4062, %v4063
    %v4065 = vsel %vm4003, %v3906, -inf
    %v4066 = vmax.f32 %v4064, %v4065
    %v4067 = vrot.slane %v4066, 4
    %v4068 = vmax.f32 %v4066, %v4067
    %v4069 = vrot.slane %v4068, 2
    %v4070 = vmax.f32 %v4068, %v4069
    %v4071 = vrot.slane %v4070, 1
    %v4072 = vmax.f32 %v4070, %v4071
    %v4073 = vsel %vm4003, %v3907, -inf
    %v4074 = vsel %vm4003, %v3908, -inf
    %v4075 = vmax.f32 %v4073, %v4074
    %v4076 = vsel %vm4003, %v3909, -inf
    %v4077 = vmax.f32 %v4075, %v4076
    %v4078 = vsel %vm4003, %v3910, -inf
    %v4079 = vmax.f32 %v4077, %v4078
    %v4080 = vsel %vm4003, %v3911, -inf
    %v4081 = vmax.f32 %v4079, %v4080
    %v4082 = vsel %vm4003, %v3912, -inf
    %v4083 = vmax.f32 %v4081, %v4082
    %v4084 = vsel %vm4003, %v3913, -inf
    %v4085 = vmax.f32 %v4083, %v4084
    %v4086 = vsel %vm4003, %v3914, -inf
    %v4087 = vmax.f32 %v4085, %v4086
    %v4088 = vsel %vm4003, %v3915, -inf
    %v4089 = vmax.f32 %v4087, %v4088
    %v4090 = vsel %vm4003, %v3916, -inf
    %v4091 = vmax.f32 %v4089, %v4090
    %v4092 = vsel %vm4003, %v3917, -inf
    %v4093 = vmax.f32 %v4091, %v4092
    %v4094 = vsel %vm4003, %v3918, -inf
    %v4095 = vmax.f32 %v4093, %v4094
    %v4096 = vsel %vm4003, %v3919, -inf
    %v4097 = vmax.f32 %v4095, %v4096
    %v4098 = vsel %vm4003, %v3920, -inf
    %v4099 = vmax.f32 %v4097, %v4098
    %v4100 = vsel %vm4003, %v3921, -inf
    %v4101 = vmax.f32 %v4099, %v4100
    %v4102 = vsel %vm4003, %v3922, -inf
    %v4103 = vmax.f32 %v4101, %v4102
    %v4104 = vsel %vm4003, %v3923, -inf
    %v4105 = vmax.f32 %v4103, %v4104
    %v4106 = vsel %vm4003, %v3924, -inf
    %v4107 = vmax.f32 %v4105, %v4106
    %v4108 = vsel %vm4003, %v3925, -inf
    %v4109 = vmax.f32 %v4107, %v4108
    %v4110 = vsel %vm4003, %v3926, -inf
    %v4111 = vmax.f32 %v4109, %v4110
    %v4112 = vsel %vm4003, %v3927, -inf
    %v4113 = vmax.f32 %v4111, %v4112
    %v4114 = vsel %vm4003, %v3928, -inf
    %v4115 = vmax.f32 %v4113, %v4114
    %v4116 = vsel %vm4003, %v3929, -inf
    %v4117 = vmax.f32 %v4115, %v4116
    %v4118 = vsel %vm4003, %v3930, -inf
    %v4119 = vmax.f32 %v4117, %v4118
    %v4120 = vsel %vm4003, %v3931, -inf
    %v4121 = vmax.f32 %v4119, %v4120
    %v4122 = vsel %vm4003, %v3932, -inf
    %v4123 = vmax.f32 %v4121, %v4122
    %v4124 = vsel %vm4003, %v3933, -inf
    %v4125 = vmax.f32 %v4123, %v4124
    %v4126 = vsel %vm4003, %v3934, -inf
    %v4127 = vmax.f32 %v4125, %v4126
    %v4128 = vsel %vm4003, %v3935, -inf
    %v4129 = vmax.f32 %v4127, %v4128
    %v4130 = vsel %vm4003, %v3936, -inf
    %v4131 = vmax.f32 %v4129, %v4130
    %v4132 = vsel %vm4003, %v3937, -inf
    %v4133 = vmax.f32 %v4131, %v4132
    %v4134 = vsel %vm4003, %v3938, -inf
    %v4135 = vmax.f32 %v4133, %v4134
    %v4136 = vrot.slane %v4135, 4
    %v4137 = vmax.f32 %v4135, %v4136
    %v4138 = vrot.slane %v4137, 2
    %v4139 = vmax.f32 %v4137, %v4138
    %v4140 = vrot.slane %v4139, 1
    %v4141 = vmax.f32 %v4139, %v4140
    %v4142 = vsel %vm4003, %v3939, -inf
    %v4143 = vsel %vm4003, %v3940, -inf
    %v4144 = vmax.f32 %v4142, %v4143
    %v4145 = vsel %vm4003, %v3941, -inf
    %v4146 = vmax.f32 %v4144, %v4145
    %v4147 = vsel %vm4003, %v3942, -inf
    %v4148 = vmax.f32 %v4146, %v4147
    %v4149 = vsel %vm4003, %v3943, -inf
    %v4150 = vmax.f32 %v4148, %v4149
    %v4151 = vsel %vm4003, %v3944, -inf
    %v4152 = vmax.f32 %v4150, %v4151
    %v4153 = vsel %vm4003, %v3945, -inf
    %v4154 = vmax.f32 %v4152, %v4153
    %v4155 = vsel %vm4003, %v3946, -inf
    %v4156 = vmax.f32 %v4154, %v4155
    %v4157 = vsel %vm4003, %v3947, -inf
    %v4158 = vmax.f32 %v4156, %v4157
    %v4159 = vsel %vm4003, %v3948, -inf
    %v4160 = vmax.f32 %v4158, %v4159
    %v4161 = vsel %vm4003, %v3949, -inf
    %v4162 = vmax.f32 %v4160, %v4161
    %v4163 = vsel %vm4003, %v3950, -inf
    %v4164 = vmax.f32 %v4162, %v4163
    %v4165 = vsel %vm4003, %v3951, -inf
    %v4166 = vmax.f32 %v4164, %v4165
    %v4167 = vsel %vm4003, %v3952, -inf
    %v4168 = vmax.f32 %v4166, %v4167
    %v4169 = vsel %vm4003, %v3953, -inf
    %v4170 = vmax.f32 %v4168, %v4169
    %v4171 = vsel %vm4003, %v3954, -inf
    %v4172 = vmax.f32 %v4170, %v4171
    %v4173 = vsel %vm4003, %v3955, -inf
    %v4174 = vmax.f32 %v4172, %v4173
    %v4175 = vsel %vm4003, %v3956, -inf
    %v4176 = vmax.f32 %v4174, %v4175
    %v4177 = vsel %vm4003, %v3957, -inf
    %v4178 = vmax.f32 %v4176, %v4177
    %v4179 = vsel %vm4003, %v3958, -inf
    %v4180 = vmax.f32 %v4178, %v4179
    %v4181 = vsel %vm4003, %v3959, -inf
    %v4182 = vmax.f32 %v4180, %v4181
    %v4183 = vsel %vm4003, %v3960, -inf
    %v4184 = vmax.f32 %v4182, %v4183
    %v4185 = vsel %vm4003, %v3961, -inf
    %v4186 = vmax.f32 %v4184, %v4185
    %v4187 = vsel %vm4003, %v3962, -inf
    %v4188 = vmax.f32 %v4186, %v4187
    %v4189 = vsel %vm4003, %v3963, -inf
    %v4190 = vmax.f32 %v4188, %v4189
    %v4191 = vsel %vm4003, %v3964, -inf
    %v4192 = vmax.f32 %v4190, %v4191
    %v4193 = vsel %vm4003, %v3965, -inf
    %v4194 = vmax.f32 %v4192, %v4193
    %v4195 = vsel %vm4003, %v3966, -inf
    %v4196 = vmax.f32 %v4194, %v4195
    %v4197 = vsel %vm4003, %v3967, -inf
    %v4198 = vmax.f32 %v4196, %v4197
    %v4199 = vsel %vm4003, %v3968, -inf
    %v4200 = vmax.f32 %v4198, %v4199
    %v4201 = vsel %vm4003, %v3969, -inf
    %v4202 = vmax.f32 %v4200, %v4201
    %v4203 = vsel %vm4003, %v3970, -inf
    %v4204 = vmax.f32 %v4202, %v4203
    %v4205 = vrot.slane %v4204, 4
    %v4206 = vmax.f32 %v4204, %v4205
    %v4207 = vrot.slane %v4206, 2
    %v4208 = vmax.f32 %v4206, %v4207
    %v4209 = vrot.slane %v4208, 1
    %v4210 = vmax.f32 %v4208, %v4209
    %v4211 = vsel %vm4003, %v3971, -inf
    %v4212 = vsel %vm4003, %v3972, -inf
    %v4213 = vmax.f32 %v4211, %v4212
    %v4214 = vsel %vm4003, %v3973, -inf
    %v4215 = vmax.f32 %v4213, %v4214
    %v4216 = vsel %vm4003, %v3974, -inf
    %v4217 = vmax.f32 %v4215, %v4216
    %v4218 = vsel %vm4003, %v3975, -inf
    %v4219 = vmax.f32 %v4217, %v4218
    %v4220 = vsel %vm4003, %v3976, -inf
    %v4221 = vmax.f32 %v4219, %v4220
    %v4222 = vsel %vm4003, %v3977, -inf
    %v4223 = vmax.f32 %v4221, %v4222
    %v4224 = vsel %vm4003, %v3978, -inf
    %v4225 = vmax.f32 %v4223, %v4224
    %v4226 = vsel %vm4003, %v3979, -inf
    %v4227 = vmax.f32 %v4225, %v4226
    %v4228 = vsel %vm4003, %v3980, -inf
    %v4229 = vmax.f32 %v4227, %v4228
    %v4230 = vsel %vm4003, %v3981, -inf
    %v4231 = vmax.f32 %v4229, %v4230
    %v4232 = vsel %vm4003, %v3982, -inf
    %v4233 = vmax.f32 %v4231, %v4232
    %v4234 = vsel %vm4003, %v3983, -inf
    %v4235 = vmax.f32 %v4233, %v4234
    %v4236 = vsel %vm4003, %v3984, -inf
    %v4237 = vmax.f32 %v4235, %v4236
    %v4238 = vsel %vm4003, %v3985, -inf
    %v4239 = vmax.f32 %v4237, %v4238
    %v4240 = vsel %vm4003, %v3986, -inf
    %v4241 = vmax.f32 %v4239, %v4240
    %v4242 = vsel %vm4003, %v3987, -inf
    %v4243 = vmax.f32 %v4241, %v4242
    %v4244 = vsel %vm4003, %v3988, -inf
    %v4245 = vmax.f32 %v4243, %v4244
    %v4246 = vsel %vm4003, %v3989, -inf
    %v4247 = vmax.f32 %v4245, %v4246
    %v4248 = vsel %vm4003, %v3990, -inf
    %v4249 = vmax.f32 %v4247, %v4248
    %v4250 = vsel %vm4003, %v3991, -inf
    %v4251 = vmax.f32 %v4249, %v4250
    %v4252 = vsel %vm4003, %v3992, -inf
    %v4253 = vmax.f32 %v4251, %v4252
    %v4254 = vsel %vm4003, %v3993, -inf
    %v4255 = vmax.f32 %v4253, %v4254
    %v4256 = vsel %vm4003, %v3994, -inf
    %v4257 = vmax.f32 %v4255, %v4256
    %v4258 = vsel %vm4003, %v3995, -inf
    %v4259 = vmax.f32 %v4257, %v4258
    %v4260 = vsel %vm4003, %v3996, -inf
    %v4261 = vmax.f32 %v4259, %v4260
    %v4262 = vsel %vm4003, %v3997, -inf
    %v4263 = vmax.f32 %v4261, %v4262
    %v4264 = vsel %vm4003, %v3998, -inf
    %v4265 = vmax.f32 %v4263, %v4264
    %v4266 = vsel %vm4003, %v3999, -inf
    %v4267 = vmax.f32 %v4265, %v4266
    %v4268 = vsel %vm4003, %v4000, -inf
    %v4269 = vmax.f32 %v4267, %v4268
    %v4270 = vsel %vm4003, %v4001, -inf
    %v4271 = vmax.f32 %v4269, %v4270
    %v4272 = vsel %vm4003, %v4002, -inf
    %v4273 = vmax.f32 %v4271, %v4272
    %v4274 = vrot.slane %v4273, 4
    %v4275 = vmax.f32 %v4273, %v4274
    %v4276 = vrot.slane %v4275, 2
    %v4277 = vmax.f32 %v4275, %v4276
    %v4278 = vrot.slane %v4277, 1
    %v4279 = vmax.f32 %v4277, %v4278
    %p4280 = scmp.eq.s32.totalorder 0, 0
    // Predicated region
    $region54: #{tpu_custom_call.1} parent=1 // pred_check
      %p4281 = pneg %p4280
    $region55: #{tpu_custom_call.1} parent=1 // pred_check_branch
      %4283 = sbr.rel (%p4281) target = $region57
    $region56: #{tpu_custom_call.1} parent=1 // pred_region
      %vm4284 = vcmask 519168
      %4285 = vst.msk [vmem:[#allocation2] sm:$0xf] %vm4284, -inf
    $region57: #{tpu_custom_call.1} parent=1 // pred_fallthru
      _
    %v4286 = vld [vmem:[#allocation2] sm:$0xf]
    %vm4291 = vcmask 1041409
    %v4292 = vsel %vm4291, %v4141, %v4072
    %vm4293 = vcmask 1042434
    %v4294 = vsel %vm4293, %v4210, %v4292
    %vm4295 = vcmask 1043459
    %v4296 = vsel %vm4295, %v4279, %v4294
    %v4298 = vmax.f32 %v4286, %v4296
    %vm4299 = vcmask 519168
    %4300 = vst.msk [vmem:[#allocation2] sm:$0xf] %vm4299, %v4298
    // Predicated region
    $region58: #{tpu_custom_call.1} parent=1 // pred_check
      %p4301 = pneg %p4280
    $region59: #{tpu_custom_call.1} parent=1 // pred_check_branch
      %4303 = sbr.rel (%p4301) target = $region61
    $region60: #{tpu_custom_call.1} parent=1 // pred_region
      %v4304 = vld [vmem:[#allocation2] sm:$0xf]
      %v4305 = vld [vmem:[%s7] sm:$0xff]
      %v4306 = vld [vmem:[%s7 + $0x8] sm:$0xff]
      %v4307 = vld [vmem:[%s7 + $0x10] sm:$0xff]
      %v4308 = vld [vmem:[%s7 + $0x18] sm:$0xff]
      %v4309 = vld [vmem:[%s7 + $0x20] sm:$0xff]
      %v4310 = vld [vmem:[%s7 + $0x28] sm:$0xff]
      %v4311 = vld [vmem:[%s7 + $0x30] sm:$0xff]
      %v4312 = vld [vmem:[%s7 + $0x38] sm:$0xff]
      %v4313 = vld [vmem:[%s8] sm:$0x1]
      %v4315 = vlaneseq
      %v4316 = vshrl.u32 %v4315, 7
      %v4317 = vsub.s32 0, %v4316
      %v4318 = vrot.slane %v4313, %v4317
      %v4321 = vsel %vm4003, %v4304, 0
      %4323 = vmatprep.subr.mxu0 0.0
      %4324 = vmatpush1.msra.mxu0 0.0
      %4325 = vmatprep.subr.mxu0 0.0
      %4326 = vmatpush1.msra.mxu0 0.0
      %4327 = vmatprep.subr.mxu0 0.0
      %4328 = vmatpush1.msra.mxu0 0.0
      %4329 = vmatprep.subr.mxu0 0.0
      %4330 = vmatpush1.msra.mxu0 0.0
      %4331 = vmatprep.subr.mxu0 0.0
      %4332 = vmatpush1.msra.mxu0 0.0
      %4333 = vmatprep.subr.mxu0 0.0
      %4334 = vmatpush1.msra.mxu0 0.0
      %4335 = vmatprep.subr.mxu0 0.0
      %4336 = vmatpush1.msra.mxu0 0.0
      %4337 = vmatprep.subr.mxu0 0.0
      %4338 = vmatpush1.msra.mxu0 0.0
      %4339 = vmatprep.subr.mxu0 0.0
      %4340 = vmatpush1.msra.mxu0 %v4312
      %4341 = vmatprep.subr.mxu0 0.0
      %4342 = vmatpush1.msra.mxu0 %v4311
      %4343 = vmatprep.subr.mxu0 0.0
      %4344 = vmatpush1.msra.mxu0 %v4310
      %4345 = vmatprep.subr.mxu0 0.0
      %4346 = vmatpush1.msra.mxu0 %v4309
      %4347 = vmatprep.subr.mxu0 0.0
      %4348 = vmatpush1.msra.mxu0 %v4308
      %4349 = vmatprep.subr.mxu0 0.0
      %4350 = vmatpush1.msra.mxu0 %v4307
      %4351 = vmatprep.subr.mxu0 0.0
      %4352 = vmatpush1.msra.mxu0 %v4306
      %4353 = vmatprep.subr.mxu0 0.0
      %4354 = vmatpush1.msra.mxu0 %v4305
      %4355 = vmatprep.subr.mxu0 0.0
      %4356 = vmatpush2.msra.mxu0 0.0
      %4357 = vmatprep.subr.mxu0 0.0
      %4358 = vmatpush2.msra.mxu0 0.0
      %4359 = vmatprep.subr.mxu0 0.0
      %4360 = vmatpush2.msra.mxu0 0.0
      %4361 = vmatprep.subr.mxu0 0.0
      %4362 = vmatpush2.msra.mxu0 0.0
      %4363 = vmatprep.subr.mxu0 0.0
      %4364 = vmatpush2.msra.mxu0 0.0
      %4365 = vmatprep.subr.mxu0 0.0
      %4366 = vmatpush2.msra.mxu0 0.0
      %4367 = vmatprep.subr.mxu0 0.0
      %4368 = vmatpush2.msra.mxu0 0.0
      %4369 = vmatprep.subr.mxu0 0.0
      %4370 = vmatpush2.msra.mxu0 0.0
      %4371 = vmatprep.subr.mxu0 0.0
      %4372 = vmatpush2.msra.mxu0 0.0
      %4373 = vmatprep.subr.mxu0 0.0
      %4374 = vmatpush2.msra.mxu0 0.0
      %4375 = vmatprep.subr.mxu0 0.0
      %4376 = vmatpush2.msra.mxu0 0.0
      %4377 = vmatprep.subr.mxu0 0.0
      %4378 = vmatpush2.msra.mxu0 0.0
      %4379 = vmatprep.subr.mxu0 0.0
      %4380 = vmatpush2.msra.mxu0 0.0
      %4381 = vmatprep.subr.mxu0 0.0
      %4382 = vmatpush2.msra.mxu0 0.0
      %4383 = vmatprep.subr.mxu0 0.0
      %4384 = vmatpush2.msra.mxu0 0.0
      %4385 = vmatprep.subr.mxu0 0.0
      %4386 = vmatpush2.msra.mxu0 0.0
      %4387 = vmatprep.mubr.f32.mxu0 0.0
      %4388 = vmatmul.mubr.f32.gmra.mxu0 %v4321
      %v4389 = vpop.f32.mrf.mxu0
      %v4390 = vadd.f32 %v4318, %v4389
      %v4391 = vpop.f32.mrf.mxu0
      %4392 = vdwg.mxu0
      %v4393 = vmax.f32 %v4390, 0.0
      %v4394 = vld [vmem:[%s9] sm:$0xff]
      %v4395 = vld [vmem:[%s9 + $0x8] sm:$0xff]
      %v4396 = vld [vmem:[%s9 + $0x10] sm:$0xff]
      %v4397 = vld [vmem:[%s9 + $0x18] sm:$0xff]
      %v4398 = vld [vmem:[%s10] sm:$0x1]
      %v4400 = vlaneseq
      %v4401 = vshrl.u32 %v4400, 7
      %v4402 = vsub.s32 0, %v4401
      %v4403 = vrot.slane %v4398, %v4402
      %v4406 = vsel %vm2785, %v4393, 0
      %4408 = vmatprep.subr.mxu0 0.0
      %4409 = vmatpush1.msra.mxu0 0.0
      %4410 = vmatprep.subr.mxu0 0.0
      %4411 = vmatpush1.msra.mxu0 0.0
      %4412 = vmatprep.subr.mxu0 0.0
      %4413 = vmatpush1.msra.mxu0 0.0
      %4414 = vmatprep.subr.mxu0 0.0
      %4415 = vmatpush1.msra.mxu0 0.0
      %4416 = vmatprep.subr.mxu0 0.0
      %4417 = vmatpush1.msra.mxu0 0.0
      %4418 = vmatprep.subr.mxu0 0.0
      %4419 = vmatpush1.msra.mxu0 0.0
      %4420 = vmatprep.subr.mxu0 0.0
      %4421 = vmatpush1.msra.mxu0 0.0
      %4422 = vmatprep.subr.mxu0 0.0
      %4423 = vmatpush1.msra.mxu0 0.0
      %4424 = vmatprep.subr.mxu0 0.0
      %4425 = vmatpush1.msra.mxu0 0.0
      %4426 = vmatprep.subr.mxu0 0.0
      %4427 = vmatpush1.msra.mxu0 0.0
      %4428 = vmatprep.subr.mxu0 0.0
      %4429 = vmatpush1.msra.mxu0 0.0
      %4430 = vmatprep.subr.mxu0 0.0
      %4431 = vmatpush1.msra.mxu0 0.0
      %4432 = vmatprep.subr.mxu0 0.0
      %4433 = vmatpush1.msra.mxu0 %v4397
      %4434 = vmatprep.subr.mxu0 0.0
      %4435 = vmatpush1.msra.mxu0 %v4396
      %4436 = vmatprep.subr.mxu0 0.0
      %4437 = vmatpush1.msra.mxu0 %v4395
      %4438 = vmatprep.subr.mxu0 0.0
      %4439 = vmatpush1.msra.mxu0 %v4394
      %4440 = vmatprep.subr.mxu0 0.0
      %4441 = vmatpush2.msra.mxu0 0.0
      %4442 = vmatprep.subr.mxu0 0.0
      %4443 = vmatpush2.msra.mxu0 0.0
      %4444 = vmatprep.subr.mxu0 0.0
      %4445 = vmatpush2.msra.mxu0 0.0
      %4446 = vmatprep.subr.mxu0 0.0
      %4447 = vmatpush2.msra.mxu0 0.0
      %4448 = vmatprep.subr.mxu0 0.0
      %4449 = vmatpush2.msra.mxu0 0.0
      %4450 = vmatprep.subr.mxu0 0.0
      %4451 = vmatpush2.msra.mxu0 0.0
      %4452 = vmatprep.subr.mxu0 0.0
      %4453 = vmatpush2.msra.mxu0 0.0
      %4454 = vmatprep.subr.mxu0 0.0
      %4455 = vmatpush2.msra.mxu0 0.0
      %4456 = vmatprep.subr.mxu0 0.0
      %4457 = vmatpush2.msra.mxu0 0.0
      %4458 = vmatprep.subr.mxu0 0.0
      %4459 = vmatpush2.msra.mxu0 0.0
      %4460 = vmatprep.subr.mxu0 0.0
      %4461 = vmatpush2.msra.mxu0 0.0
      %4462 = vmatprep.subr.mxu0 0.0
      %4463 = vmatpush2.msra.mxu0 0.0
      %4464 = vmatprep.subr.mxu0 0.0
      %4465 = vmatpush2.msra.mxu0 0.0
      %4466 = vmatprep.subr.mxu0 0.0
      %4467 = vmatpush2.msra.mxu0 0.0
      %4468 = vmatprep.subr.mxu0 0.0
      %4469 = vmatpush2.msra.mxu0 0.0
      %4470 = vmatprep.subr.mxu0 0.0
      %4471 = vmatpush2.msra.mxu0 0.0
      %4472 = vmatprep.mubr.f32.mxu0 0.0
      %4473 = vmatmul.mubr.f32.gmra.mxu0 %v4406
      %v4474 = vpop.f32.mrf.mxu0
      %v4475 = vadd.f32 %v4403, %v4474
      %v4476 = vpop.f32.mrf.mxu0
      %4477 = vdwg.mxu0
      %v4478 = vmax.f32 %v4475, 0.0
      %v4479 = vld [vmem:[%s11] sm:$0xff]
      %v4480 = vld [vmem:[%s11 + $0x8] sm:$0xff]
      %v4481 = vld [vmem:[%s12] sm:$0x1]
      %v4483 = vlaneseq
      %v4484 = vshrl.u32 %v4483, 7
      %v4485 = vsub.s32 0, %v4484
      %v4486 = vrot.slane %v4481, %v4485
      %v4489 = vsel %vm1556, %v4478, 0
      %4491 = vmatprep.subr.mxu0 0.0
      %4492 = vmatpush1.msra.mxu0 0.0
      %4493 = vmatprep.subr.mxu0 0.0
      %4494 = vmatpush1.msra.mxu0 0.0
      %4495 = vmatprep.subr.mxu0 0.0
      %4496 = vmatpush1.msra.mxu0 0.0
      %4497 = vmatprep.subr.mxu0 0.0
      %4498 = vmatpush1.msra.mxu0 0.0
      %4499 = vmatprep.subr.mxu0 0.0
      %4500 = vmatpush1.msra.mxu0 0.0
      %4501 = vmatprep.subr.mxu0 0.0
      %4502 = vmatpush1.msra.mxu0 0.0
      %4503 = vmatprep.subr.mxu0 0.0
      %4504 = vmatpush1.msra.mxu0 0.0
      %4505 = vmatprep.subr.mxu0 0.0
      %4506 = vmatpush1.msra.mxu0 0.0
      %4507 = vmatprep.subr.mxu0 0.0
      %4508 = vmatpush1.msra.mxu0 0.0
      %4509 = vmatprep.subr.mxu0 0.0
      %4510 = vmatpush1.msra.mxu0 0.0
      %4511 = vmatprep.subr.mxu0 0.0
      %4512 = vmatpush1.msra.mxu0 0.0
      %4513 = vmatprep.subr.mxu0 0.0
      %4514 = vmatpush1.msra.mxu0 0.0
      %4515 = vmatprep.subr.mxu0 0.0
      %4516 = vmatpush1.msra.mxu0 0.0
      %4517 = vmatprep.subr.mxu0 0.0
      %4518 = vmatpush1.msra.mxu0 0.0
      %4519 = vmatprep.subr.mxu0 0.0
      %4520 = vmatpush1.msra.mxu0 %v4480
      %4521 = vmatprep.subr.mxu0 0.0
      %4522 = vmatpush1.msra.mxu0 %v4479
      %4523 = vmatprep.subr.mxu0 0.0
      %4524 = vmatpush2.msra.mxu0 0.0
      %4525 = vmatprep.subr.mxu0 0.0
      %4526 = vmatpush2.msra.mxu0 0.0
      %4527 = vmatprep.subr.mxu0 0.0
      %4528 = vmatpush2.msra.mxu0 0.0
      %4529 = vmatprep.subr.mxu0 0.0
      %4530 = vmatpush2.msra.mxu0 0.0
      %4531 = vmatprep.subr.mxu0 0.0
      %4532 = vmatpush2.msra.mxu0 0.0
      %4533 = vmatprep.subr.mxu0 0.0
      %4534 = vmatpush2.msra.mxu0 0.0
      %4535 = vmatprep.subr.mxu0 0.0
      %4536 = vmatpush2.msra.mxu0 0.0
      %4537 = vmatprep.subr.mxu0 0.0
      %4538 = vmatpush2.msra.mxu0 0.0
      %4539 = vmatprep.subr.mxu0 0.0
      %4540 = vmatpush2.msra.mxu0 0.0
      %4541 = vmatprep.subr.mxu0 0.0
      %4542 = vmatpush2.msra.mxu0 0.0
      %4543 = vmatprep.subr.mxu0 0.0
      %4544 = vmatpush2.msra.mxu0 0.0
      %4545 = vmatprep.subr.mxu0 0.0
      %4546 = vmatpush2.msra.mxu0 0.0
      %4547 = vmatprep.subr.mxu0 0.0
      %4548 = vmatpush2.msra.mxu0 0.0
      %4549 = vmatprep.subr.mxu0 0.0
      %4550 = vmatpush2.msra.mxu0 0.0
      %4551 = vmatprep.subr.mxu0 0.0
      %4552 = vmatpush2.msra.mxu0 0.0
      %4553 = vmatprep.subr.mxu0 0.0
      %4554 = vmatpush2.msra.mxu0 0.0
      %4555 = vmatprep.mubr.f32.mxu0 0.0
      %4556 = vmatmul.mubr.f32.gmra.mxu0 %v4489
      %v4557 = vpop.f32.mrf.mxu0
      %v4558 = vadd.f32 %v4486, %v4557
      %v4559 = vpop.f32.mrf.mxu0
      %4560 = vdwg.mxu0
      %4561 = vst [vmem:[#allocation3] sm:$0xf] %v4558
    $region61: #{tpu_custom_call.1} parent=1 // pred_fallthru
      _
    // Predicated region
    $region62: #{tpu_custom_call.1} parent=1 // pred_check
      _
    $region63: #{tpu_custom_call.1} parent=1 // pred_check_branch
      %4563 = sbr.rel (0) target = $region65
    $region64: #{tpu_custom_call.1} parent=1 // pred_region
      %s4565 = ssub.s32 64, 64
      %4566 = vsyncadd [#allocation4], %s4565
      %s4568 = sshll.u32 [#allocation3], 4
      %s4569 = int_to_ptr.vmem [resolvable:$true] %s4568
      %4571 = dma.vmem_to_hbm [thread:$0]  %s4569, 64, %s13, [#allocation4]
    $region65: #{tpu_custom_call.1} parent=1 // pred_fallthru
      _
    // Predicated region
    $region66: #{tpu_custom_call.1} parent=1 // pred_check
      _
    $region67: #{tpu_custom_call.1} parent=1 // pred_check_branch
      %4573 = sbr.rel (0) target = $region69
    $region68: #{tpu_custom_call.1} parent=1 // pred_region
      %4574 = dma.done [#allocation4], 64
    $region69: #{tpu_custom_call.1} parent=1 // pred_fallthru
      _
    %4575 = vsyncpa [#allocation4], 1

// kernel: tpu_custom_call.1
$region0: #{tpu_custom_call.1}
  #allocation0 [shape = 'u32[]', space=smem, size = 0x4, offset = 0x4, fixed_abs, tag = 'smem constant byte address 0x4 - core index']
  #allocation1 [shape = 'u32[144,128]{1,0:T(1,128)}', space=vmem, size = 0x12000, scoped, tag = 'internal scratch']
  #allocation2 [shape = 'f32[4,64]{1,0:T(4,128)}', space=vmem, size = 0x800, scoped, tag = 'scratch operand']
  %s0 = inlined_call_operand.vmem [shape: f32[4,3,256], index: 0, kind: input, shape index: {}]
  %s1 = inlined_call_operand.vmem [shape: f32[3,16], index: 1, kind: input, shape index: {}]
  %s2 = inlined_call_operand.vmem [shape: f32[1,16], index: 2, kind: input, shape index: {}]
  %s3 = inlined_call_operand.vmem [shape: f32[16,32], index: 3, kind: input, shape index: {}]
  %s4 = inlined_call_operand.vmem [shape: f32[1,32], index: 4, kind: input, shape index: {}]
  %s5 = inlined_call_operand.vmem [shape: f32[32,64], index: 5, kind: input, shape index: {}]
  %s6 = inlined_call_operand.vmem [shape: f32[1,64], index: 6, kind: input, shape index: {}]
  %s7 = inlined_call_operand.vmem [shape: f32[64,32], index: 7, kind: input, shape index: {}]
  %s8 = inlined_call_operand.vmem [shape: f32[1,32], index: 8, kind: input, shape index: {}]
  %s9 = inlined_call_operand.vmem [shape: f32[32,16], index: 9, kind: input, shape index: {}]
  %s10 = inlined_call_operand.vmem [shape: f32[1,16], index: 10, kind: input, shape index: {}]
  %s11 = inlined_call_operand.vmem [shape: f32[16,128], index: 11, kind: input, shape index: {}]
  %s12 = inlined_call_operand.vmem [shape: f32[1,128], index: 12, kind: input, shape index: {}]
  %s13 = inlined_call_operand.hbm [shape: f32[4,128], index: 13, kind: output, shape index: {}]
  %s14 = sld [smem:[#allocation0]]
  $region70: #{tpu_custom_call.1} parent=0
    _
  %s16 = ssub.s32 1, %s14
  %s17 = scalar_select 0, %s16, %s14
  $region1: #{tpu_custom_call.1} parent=0
    #allocation3 [shape = 'u8[2048]{0}', space=vmem, size = 0x800, scoped, tag = 'output window, operand 0, single buffered']
    #allocation4 [shape = 's32[1]{0}', space=sflag, size = 0x4, scoped, tag = 'scoped memory for tpu_custom_call.1']
    %18 = vsyncpa [#allocation4], 0
    // Predicated region
    $region2: #{tpu_custom_call.1} parent=1 // pred_check
      _
    $region3: #{tpu_custom_call.1} parent=1 // pred_check_branch
      %20 = sbr.rel (0) target = $region5
    $region4: #{tpu_custom_call.1} parent=1 // pred_region
      _
    $region5: #{tpu_custom_call.1} parent=1 // pred_fallthru
      _
    // Predicated region
    $region6: #{tpu_custom_call.1} parent=1 // pred_check
      _
    $region7: #{tpu_custom_call.1} parent=1 // pred_check_branch
      %22 = sbr.rel (0) target = $region9
    $region8: #{tpu_custom_call.1} parent=1 // pred_region
      _
    $region9: #{tpu_custom_call.1} parent=1 // pred_fallthru
      _
    // Predicated region
    $region10: #{tpu_custom_call.1} parent=1 // pred_check
      _
    $region11: #{tpu_custom_call.1} parent=1 // pred_check_branch
      %24 = sbr.rel (0) target = $region13
    $region12: #{tpu_custom_call.1} parent=1 // pred_region
      _
    $region13: #{tpu_custom_call.1} parent=1 // pred_fallthru
      _
    // Predicated region
    $region14: #{tpu_custom_call.1} parent=1 // pred_check
      _
    $region15: #{tpu_custom_call.1} parent=1 // pred_check_branch
      %26 = sbr.rel (0) target = $region17
    $region16: #{tpu_custom_call.1} parent=1 // pred_region
      _
    $region17: #{tpu_custom_call.1} parent=1 // pred_fallthru
      _
    // Predicated region
    $region18: #{tpu_custom_call.1} parent=1 // pred_check
      _
    $region19: #{tpu_custom_call.1} parent=1 // pred_check_branch
      %28 = sbr.rel (0) target = $region21
    $region20: #{tpu_custom_call.1} parent=1 // pred_region
      _
    $region21: #{tpu_custom_call.1} parent=1 // pred_fallthru
      _
    // Predicated region
    $region22: #{tpu_custom_call.1} parent=1 // pred_check
      _
    $region23: #{tpu_custom_call.1} parent=1 // pred_check_branch
      %30 = sbr.rel (0) target = $region25
    $region24: #{tpu_custom_call.1} parent=1 // pred_region
      _
    $region25: #{tpu_custom_call.1} parent=1 // pred_fallthru
      _
    // Predicated region
    $region26: #{tpu_custom_call.1} parent=1 // pred_check
      _
    $region27: #{tpu_custom_call.1} parent=1 // pred_check_branch
      %32 = sbr.rel (0) target = $region29
    $region28: #{tpu_custom_call.1} parent=1 // pred_region
      _
    $region29: #{tpu_custom_call.1} parent=1 // pred_fallthru
      _
    // Predicated region
    $region30: #{tpu_custom_call.1} parent=1 // pred_check
      _
    $region31: #{tpu_custom_call.1} parent=1 // pred_check_branch
      %34 = sbr.rel (0) target = $region33
    $region32: #{tpu_custom_call.1} parent=1 // pred_region
      _
    $region33: #{tpu_custom_call.1} parent=1 // pred_fallthru
      _
    // Predicated region
    $region34: #{tpu_custom_call.1} parent=1 // pred_check
      _
    $region35: #{tpu_custom_call.1} parent=1 // pred_check_branch
      %36 = sbr.rel (0) target = $region37
    $region36: #{tpu_custom_call.1} parent=1 // pred_region
      _
    $region37: #{tpu_custom_call.1} parent=1 // pred_fallthru
      _
    // Predicated region
    $region38: #{tpu_custom_call.1} parent=1 // pred_check
      _
    $region39: #{tpu_custom_call.1} parent=1 // pred_check_branch
      %38 = sbr.rel (0) target = $region41
    $region40: #{tpu_custom_call.1} parent=1 // pred_region
      _
    $region41: #{tpu_custom_call.1} parent=1 // pred_fallthru
      _
    // Predicated region
    $region42: #{tpu_custom_call.1} parent=1 // pred_check
      _
    $region43: #{tpu_custom_call.1} parent=1 // pred_check_branch
      %40 = sbr.rel (0) target = $region45
    $region44: #{tpu_custom_call.1} parent=1 // pred_region
      _
    $region45: #{tpu_custom_call.1} parent=1 // pred_fallthru
      _
    // Predicated region
    $region46: #{tpu_custom_call.1} parent=1 // pred_check
      _
    $region47: #{tpu_custom_call.1} parent=1 // pred_check_branch
      %42 = sbr.rel (0) target = $region49
    $region48: #{tpu_custom_call.1} parent=1 // pred_region
      _
    $region49: #{tpu_custom_call.1} parent=1 // pred_fallthru
      _
    // Predicated region
    $region50: #{tpu_custom_call.1} parent=1 // pred_check
      _
    $region51: #{tpu_custom_call.1} parent=1 // pred_check_branch
      %44 = sbr.rel (0) target = $region53
    $region52: #{tpu_custom_call.1} parent=1 // pred_region
      _
    $region53: #{tpu_custom_call.1} parent=1 // pred_fallthru
      _
    %v45 = vld [vmem:[%s0] sm:$0x77]
    %v46 = vld [vmem:[%s0 + $0x8] sm:$0x77]
    %v47 = vld [vmem:[%s0 + $0x10] sm:$0x77]
    %v48 = vld [vmem:[%s0 + $0x18] sm:$0x77]
    %v53 = vcombine.high %v45, %v45
    %v54 = vcombine.high %v46, %v46
    %v55 = vcombine.high %v47, %v47
    %v56 = vcombine.high %v48, %v48
    %61 = vxpose.xlu0.b32.start [1/16] %v45, 128
    %62 = vxpose.xlu0.b32.cont [2/16] 0.0, 128
    %63 = vxpose.xlu0.b32.cont [3/16] 0.0, 128
    %64 = vxpose.xlu0.b32.cont [4/16] 0.0, 128
    %65 = vxpose.xlu0.b32.cont [5/16] 0.0, 128
    %66 = vxpose.xlu0.b32.cont [6/16] 0.0, 128
    %67 = vxpose.xlu0.b32.cont [7/16] 0.0, 128
    %68 = vxpose.xlu0.b32.cont [8/16] 0.0, 128
    %69 = vxpose.xlu0.b32.cont [9/16] 0.0, 128
    %70 = vxpose.xlu0.b32.cont [10/16] 0.0, 128
    %71 = vxpose.xlu0.b32.cont [11/16] 0.0, 128
    %72 = vxpose.xlu0.b32.cont [12/16] 0.0, 128
    %73 = vxpose.xlu0.b32.cont [13/16] 0.0, 128
    %74 = vxpose.xlu0.b32.cont [14/16] 0.0, 128
    %75 = vxpose.xlu0.b32.cont [15/16] 0.0, 128
    %76 = vxpose.xlu0.b32.end [16/16] 0.0, 128
    %v77 = vpop.trf.xlu0
    %v78 = vpop.trf.xlu0
    %v79 = vpop.trf.xlu0
    %v80 = vpop.trf.xlu0
    %v81 = vpop.trf.xlu0
    %v82 = vpop.trf.xlu0
    %v83 = vpop.trf.xlu0
    %v84 = vpop.trf.xlu0
    %v85 = vpop.trf.xlu0
    %v86 = vpop.trf.xlu0
    %v87 = vpop.trf.xlu0
    %v88 = vpop.trf.xlu0
    %v89 = vpop.trf.xlu0
    %v90 = vpop.trf.xlu0
    %v91 = vpop.trf.xlu0
    %v92 = vpop.trf.xlu0
    %93 = vxpose.xlu0.b32.start [1/16] %v53, 128
    %94 = vxpose.xlu0.b32.cont [2/16] 0.0, 128
    %95 = vxpose.xlu0.b32.cont [3/16] 0.0, 128
    %96 = vxpose.xlu0.b32.cont [4/16] 0.0, 128
    %97 = vxpose.xlu0.b32.cont [5/16] 0.0, 128
    %98 = vxpose.xlu0.b32.cont [6/16] 0.0, 128
    %99 = vxpose.xlu0.b32.cont [7/16] 0.0, 128
    %100 = vxpose.xlu0.b32.cont [8/16] 0.0, 128
    %101 = vxpose.xlu0.b32.cont [9/16] 0.0, 128
    %102 = vxpose.xlu0.b32.cont [10/16] 0.0, 128
    %103 = vxpose.xlu0.b32.cont [11/16] 0.0, 128
    %104 = vxpose.xlu0.b32.cont [12/16] 0.0, 128
    %105 = vxpose.xlu0.b32.cont [13/16] 0.0, 128
    %106 = vxpose.xlu0.b32.cont [14/16] 0.0, 128
    %107 = vxpose.xlu0.b32.cont [15/16] 0.0, 128
    %108 = vxpose.xlu0.b32.end [16/16] 0.0, 128
    %v109 = vpop.trf.xlu0
    %v110 = vpop.trf.xlu0
    %v111 = vpop.trf.xlu0
    %v112 = vpop.trf.xlu0
    %v113 = vpop.trf.xlu0
    %v114 = vpop.trf.xlu0
    %v115 = vpop.trf.xlu0
    %v116 = vpop.trf.xlu0
    %v117 = vpop.trf.xlu0
    %v118 = vpop.trf.xlu0
    %v119 = vpop.trf.xlu0
    %v120 = vpop.trf.xlu0
    %v121 = vpop.trf.xlu0
    %v122 = vpop.trf.xlu0
    %v123 = vpop.trf.xlu0
    %v124 = vpop.trf.xlu0
    %125 = vxpose.xlu0.b32.start [1/16] %v46, 128
    %126 = vxpose.xlu0.b32.cont [2/16] 0.0, 128
    %127 = vxpose.xlu0.b32.cont [3/16] 0.0, 128
    %128 = vxpose.xlu0.b32.cont [4/16] 0.0, 128
    %129 = vxpose.xlu0.b32.cont [5/16] 0.0, 128
    %130 = vxpose.xlu0.b32.cont [6/16] 0.0, 128
    %131 = vxpose.xlu0.b32.cont [7/16] 0.0, 128
    %132 = vxpose.xlu0.b32.cont [8/16] 0.0, 128
    %133 = vxpose.xlu0.b32.cont [9/16] 0.0, 128
    %134 = vxpose.xlu0.b32.cont [10/16] 0.0, 128
    %135 = vxpose.xlu0.b32.cont [11/16] 0.0, 128
    %136 = vxpose.xlu0.b32.cont [12/16] 0.0, 128
    %137 = vxpose.xlu0.b32.cont [13/16] 0.0, 128
    %138 = vxpose.xlu0.b32.cont [14/16] 0.0, 128
    %139 = vxpose.xlu0.b32.cont [15/16] 0.0, 128
    %140 = vxpose.xlu0.b32.end [16/16] 0.0, 128
    %v141 = vpop.trf.xlu0
    %v142 = vpop.trf.xlu0
    %v143 = vpop.trf.xlu0
    %v144 = vpop.trf.xlu0
    %v145 = vpop.trf.xlu0
    %v146 = vpop.trf.xlu0
    %v147 = vpop.trf.xlu0
    %v148 = vpop.trf.xlu0
    %v149 = vpop.trf.xlu0
    %v150 = vpop.trf.xlu0
    %v151 = vpop.trf.xlu0
    %v152 = vpop.trf.xlu0
    %v153 = vpop.trf.xlu0
    %v154 = vpop.trf.xlu0
    %v155 = vpop.trf.xlu0
    %v156 = vpop.trf.xlu0
    %157 = vxpose.xlu0.b32.start [1/16] %v54, 128
    %158 = vxpose.xlu0.b32.cont [2/16] 0.0, 128
    %159 = vxpose.xlu0.b32.cont [3/16] 0.0, 128
    %160 = vxpose.xlu0.b32.cont [4/16] 0.0, 128
    %161 = vxpose.xlu0.b32.cont [5/16] 0.0, 128
    %162 = vxpose.xlu0.b32.cont [6/16] 0.0, 128
    %163 = vxpose.xlu0.b32.cont [7/16] 0.0, 128
    %164 = vxpose.xlu0.b32.cont [8/16] 0.0, 128
    %165 = vxpose.xlu0.b32.cont [9/16] 0.0, 128
    %166 = vxpose.xlu0.b32.cont [10/16] 0.0, 128
    %167 = vxpose.xlu0.b32.cont [11/16] 0.0, 128
    %168 = vxpose.xlu0.b32.cont [12/16] 0.0, 128
    %169 = vxpose.xlu0.b32.cont [13/16] 0.0, 128
    %170 = vxpose.xlu0.b32.cont [14/16] 0.0, 128
    %171 = vxpose.xlu0.b32.cont [15/16] 0.0, 128
    %172 = vxpose.xlu0.b32.end [16/16] 0.0, 128
    %v173 = vpop.trf.xlu0
    %v174 = vpop.trf.xlu0
    %v175 = vpop.trf.xlu0
    %v176 = vpop.trf.xlu0
    %v177 = vpop.trf.xlu0
    %v178 = vpop.trf.xlu0
    %v179 = vpop.trf.xlu0
    %v180 = vpop.trf.xlu0
    %v181 = vpop.trf.xlu0
    %v182 = vpop.trf.xlu0
    %v183 = vpop.trf.xlu0
    %v184 = vpop.trf.xlu0
    %v185 = vpop.trf.xlu0
    %v186 = vpop.trf.xlu0
    %v187 = vpop.trf.xlu0
    %v188 = vpop.trf.xlu0
    %189 = vxpose.xlu0.b32.start [1/16] %v47, 128
    %190 = vxpose.xlu0.b32.cont [2/16] 0.0, 128
    %191 = vxpose.xlu0.b32.cont [3/16] 0.0, 128
    %192 = vxpose.xlu0.b32.cont [4/16] 0.0, 128
    %193 = vxpose.xlu0.b32.cont [5/16] 0.0, 128
    %194 = vxpose.xlu0.b32.cont [6/16] 0.0, 128
    %195 = vxpose.xlu0.b32.cont [7/16] 0.0, 128
    %196 = vxpose.xlu0.b32.cont [8/16] 0.0, 128
    %197 = vxpose.xlu0.b32.cont [9/16] 0.0, 128
    %198 = vxpose.xlu0.b32.cont [10/16] 0.0, 128
    %199 = vxpose.xlu0.b32.cont [11/16] 0.0, 128
    %200 = vxpose.xlu0.b32.cont [12/16] 0.0, 128
    %201 = vxpose.xlu0.b32.cont [13/16] 0.0, 128
    %202 = vxpose.xlu0.b32.cont [14/16] 0.0, 128
    %203 = vxpose.xlu0.b32.cont [15/16] 0.0, 128
    %204 = vxpose.xlu0.b32.end [16/16] 0.0, 128
    %v205 = vpop.trf.xlu0
    %v206 = vpop.trf.xlu0
    %v207 = vpop.trf.xlu0
    %v208 = vpop.trf.xlu0
    %v209 = vpop.trf.xlu0
    %v210 = vpop.trf.xlu0
    %v211 = vpop.trf.xlu0
    %v212 = vpop.trf.xlu0
    %v213 = vpop.trf.xlu0
    %v214 = vpop.trf.xlu0
    %v215 = vpop.trf.xlu0
    %v216 = vpop.trf.xlu0
    %v217 = vpop.trf.xlu0
    %v218 = vpop.trf.xlu0
    %v219 = vpop.trf.xlu0
    %v220 = vpop.trf.xlu0
    %221 = vxpose.xlu0.b32.start [1/16] %v55, 128
    %222 = vxpose.xlu0.b32.cont [2/16] 0.0, 128
    %223 = vxpose.xlu0.b32.cont [3/16] 0.0, 128
    %224 = vxpose.xlu0.b32.cont [4/16] 0.0, 128
    %225 = vxpose.xlu0.b32.cont [5/16] 0.0, 128
    %226 = vxpose.xlu0.b32.cont [6/16] 0.0, 128
    %227 = vxpose.xlu0.b32.cont [7/16] 0.0, 128
    %228 = vxpose.xlu0.b32.cont [8/16] 0.0, 128
    %229 = vxpose.xlu0.b32.cont [9/16] 0.0, 128
    %230 = vxpose.xlu0.b32.cont [10/16] 0.0, 128
    %231 = vxpose.xlu0.b32.cont [11/16] 0.0, 128
    %232 = vxpose.xlu0.b32.cont [12/16] 0.0, 128
    %233 = vxpose.xlu0.b32.cont [13/16] 0.0, 128
    %234 = vxpose.xlu0.b32.cont [14/16] 0.0, 128
    %235 = vxpose.xlu0.b32.cont [15/16] 0.0, 128
    %236 = vxpose.xlu0.b32.end [16/16] 0.0, 128
    %v237 = vpop.trf.xlu0
    %v238 = vpop.trf.xlu0
    %v239 = vpop.trf.xlu0
    %v240 = vpop.trf.xlu0
    %v241 = vpop.trf.xlu0
    %v242 = vpop.trf.xlu0
    %v243 = vpop.trf.xlu0
    %v244 = vpop.trf.xlu0
    %v245 = vpop.trf.xlu0
    %v246 = vpop.trf.xlu0
    %v247 = vpop.trf.xlu0
    %v248 = vpop.trf.xlu0
    %v249 = vpop.trf.xlu0
    %v250 = vpop.trf.xlu0
    %v251 = vpop.trf.xlu0
    %v252 = vpop.trf.xlu0
    %253 = vxpose.xlu0.b32.start [1/16] %v48, 128
    %254 = vxpose.xlu0.b32.cont [2/16] 0.0, 128
    %255 = vxpose.xlu0.b32.cont [3/16] 0.0, 128
    %256 = vxpose.xlu0.b32.cont [4/16] 0.0, 128
    %257 = vxpose.xlu0.b32.cont [5/16] 0.0, 128
    %258 = vxpose.xlu0.b32.cont [6/16] 0.0, 128
    %259 = vxpose.xlu0.b32.cont [7/16] 0.0, 128
    %260 = vxpose.xlu0.b32.cont [8/16] 0.0, 128
    %261 = vxpose.xlu0.b32.cont [9/16] 0.0, 128
    %262 = vxpose.xlu0.b32.cont [10/16] 0.0, 128
    %263 = vxpose.xlu0.b32.cont [11/16] 0.0, 128
    %264 = vxpose.xlu0.b32.cont [12/16] 0.0, 128
    %265 = vxpose.xlu0.b32.cont [13/16] 0.0, 128
    %266 = vxpose.xlu0.b32.cont [14/16] 0.0, 128
    %267 = vxpose.xlu0.b32.cont [15/16] 0.0, 128
    %268 = vxpose.xlu0.b32.end [16/16] 0.0, 128
    %v269 = vpop.trf.xlu0
    %v270 = vpop.trf.xlu0
    %v271 = vpop.trf.xlu0
    %v272 = vpop.trf.xlu0
    %v273 = vpop.trf.xlu0
    %v274 = vpop.trf.xlu0
    %v275 = vpop.trf.xlu0
    %v276 = vpop.trf.xlu0
    %v277 = vpop.trf.xlu0
    %v278 = vpop.trf.xlu0
    %v279 = vpop.trf.xlu0
    %v280 = vpop.trf.xlu0
    %v281 = vpop.trf.xlu0
    %v282 = vpop.trf.xlu0
    %v283 = vpop.trf.xlu0
    %v284 = vpop.trf.xlu0
    %285 = vxpose.xlu0.b32.start [1/16] %v56, 128
    %286 = vxpose.xlu0.b32.cont [2/16] 0.0, 128
    %287 = vxpose.xlu0.b32.cont [3/16] 0.0, 128
    %288 = vxpose.xlu0.b32.cont [4/16] 0.0, 128
    %289 = vxpose.xlu0.b32.cont [5/16] 0.0, 128
    %290 = vxpose.xlu0.b32.cont [6/16] 0.0, 128
    %291 = vxpose.xlu0.b32.cont [7/16] 0.0, 128
    %292 = vxpose.xlu0.b32.cont [8/16] 0.0, 128
    %293 = vxpose.xlu0.b32.cont [9/16] 0.0, 128
    %294 = vxpose.xlu0.b32.cont [10/16] 0.0, 128
    %295 = vxpose.xlu0.b32.cont [11/16] 0.0, 128
    %296 = vxpose.xlu0.b32.cont [12/16] 0.0, 128
    %297 = vxpose.xlu0.b32.cont [13/16] 0.0, 128
    %298 = vxpose.xlu0.b32.cont [14/16] 0.0, 128
    %299 = vxpose.xlu0.b32.cont [15/16] 0.0, 128
    %300 = vxpose.xlu0.b32.end [16/16] 0.0, 128
    %v301 = vpop.trf.xlu0
    %v302 = vpop.trf.xlu0
    %v303 = vpop.trf.xlu0
    %v304 = vpop.trf.xlu0
    %v305 = vpop.trf.xlu0
    %v306 = vpop.trf.xlu0
    %v307 = vpop.trf.xlu0
    %v308 = vpop.trf.xlu0
    %v309 = vpop.trf.xlu0
    %v310 = vpop.trf.xlu0
    %v311 = vpop.trf.xlu0
    %v312 = vpop.trf.xlu0
    %v313 = vpop.trf.xlu0
    %v314 = vpop.trf.xlu0
    %v315 = vpop.trf.xlu0
    %v316 = vpop.trf.xlu0
    %v317 = vld [vmem:[%s1] sm:$0x7]
    %v318 = vld [vmem:[%s2] sm:$0x1]
    %v320 = vlaneseq
    %v321 = vshrl.u32 %v320, 7
    %v322 = vsub.s32 0, %v321
    %v323 = vrot.slane %v318, %v322
    %vm325 = vcmask 23552
    %v327 = vsel %vm325, %v77, 0
    %v330 = vsel %vm325, %v78, 0
    %v333 = vsel %vm325, %v79, 0
    %v336 = vsel %vm325, %v80, 0
    %v339 = vsel %vm325, %v81, 0
    %v342 = vsel %vm325, %v82, 0
    %v345 = vsel %vm325, %v83, 0
    %v348 = vsel %vm325, %v84, 0
    %v351 = vsel %vm325, %v85, 0
    %v354 = vsel %vm325, %v86, 0
    %v357 = vsel %vm325, %v87, 0
    %v360 = vsel %vm325, %v88, 0
    %v363 = vsel %vm325, %v89, 0
    %v366 = vsel %vm325, %v90, 0
    %v369 = vsel %vm325, %v91, 0
    %v372 = vsel %vm325, %v92, 0
    %v375 = vsel %vm325, %v109, 0
    %v378 = vsel %vm325, %v110, 0
    %v381 = vsel %vm325, %v111, 0
    %v384 = vsel %vm325, %v112, 0
    %v387 = vsel %vm325, %v113, 0
    %v390 = vsel %vm325, %v114, 0
    %v393 = vsel %vm325, %v115, 0
    %v396 = vsel %vm325, %v116, 0
    %v399 = vsel %vm325, %v117, 0
    %v402 = vsel %vm325, %v118, 0
    %v405 = vsel %vm325, %v119, 0
    %v408 = vsel %vm325, %v120, 0
    %v411 = vsel %vm325, %v121, 0
    %v414 = vsel %vm325, %v122, 0
    %v417 = vsel %vm325, %v123, 0
    %v420 = vsel %vm325, %v124, 0
    %v423 = vsel %vm325, %v141, 0
    %v426 = vsel %vm325, %v142, 0
    %v429 = vsel %vm325, %v143, 0
    %v432 = vsel %vm325, %v144, 0
    %v435 = vsel %vm325, %v145, 0
    %v438 = vsel %vm325, %v146, 0
    %v441 = vsel %vm325, %v147, 0
    %v444 = vsel %vm325, %v148, 0
    %v447 = vsel %vm325, %v149, 0
    %v450 = vsel %vm325, %v150, 0
    %v453 = vsel %vm325, %v151, 0
    %v456 = vsel %vm325, %v152, 0
    %v459 = vsel %vm325, %v153, 0
    %v462 = vsel %vm325, %v154, 0
    %v465 = vsel %vm325, %v155, 0
    %v468 = vsel %vm325, %v156, 0
    %v471 = vsel %vm325, %v173, 0
    %v474 = vsel %vm325, %v174, 0
    %v477 = vsel %vm325, %v175, 0
    %v480 = vsel %vm325, %v176, 0
    %v483 = vsel %vm325, %v177, 0
    %v486 = vsel %vm325, %v178, 0
    %v489 = vsel %vm325, %v179, 0
    %v492 = vsel %vm325, %v180, 0
    %v495 = vsel %vm325, %v181, 0
    %v498 = vsel %vm325, %v182, 0
    %v501 = vsel %vm325, %v183, 0
    %v504 = vsel %vm325, %v184, 0
    %v507 = vsel %vm325, %v185, 0
    %v510 = vsel %vm325, %v186, 0
    %v513 = vsel %vm325, %v187, 0
    %v516 = vsel %vm325, %v188, 0
    %v519 = vsel %vm325, %v205, 0
    %v522 = vsel %vm325, %v206, 0
    %v525 = vsel %vm325, %v207, 0
    %v528 = vsel %vm325, %v208, 0
    %v531 = vsel %vm325, %v209, 0
    %v534 = vsel %vm325, %v210, 0
    %v537 = vsel %vm325, %v211, 0
    %v540 = vsel %vm325, %v212, 0
    %v543 = vsel %vm325, %v213, 0
    %v546 = vsel %vm325, %v214, 0
    %v549 = vsel %vm325, %v215, 0
    %v552 = vsel %vm325, %v216, 0
    %v555 = vsel %vm325, %v217, 0
    %v558 = vsel %vm325, %v218, 0
    %v561 = vsel %vm325, %v219, 0
    %v564 = vsel %vm325, %v220, 0
    %v567 = vsel %vm325, %v237, 0
    %v570 = vsel %vm325, %v238, 0
    %v573 = vsel %vm325, %v239, 0
    %v576 = vsel %vm325, %v240, 0
    %v579 = vsel %vm325, %v241, 0
    %v582 = vsel %vm325, %v242, 0
    %v585 = vsel %vm325, %v243, 0
    %v588 = vsel %vm325, %v244, 0
    %v591 = vsel %vm325, %v245, 0
    %v594 = vsel %vm325, %v246, 0
    %v597 = vsel %vm325, %v247, 0
    %v600 = vsel %vm325, %v248, 0
    %v603 = vsel %vm325, %v249, 0
    %v606 = vsel %vm325, %v250, 0
    %v609 = vsel %vm325, %v251, 0
    %v612 = vsel %vm325, %v252, 0
    %v615 = vsel %vm325, %v269, 0
    %v618 = vsel %vm325, %v270, 0
    %v621 = vsel %vm325, %v271, 0
    %v624 = vsel %vm325, %v272, 0
    %v627 = vsel %vm325, %v273, 0
    %v630 = vsel %vm325, %v274, 0
    %v633 = vsel %vm325, %v275, 0
    %v636 = vsel %vm325, %v276, 0
    %v639 = vsel %vm325, %v277, 0
    %v642 = vsel %vm325, %v278, 0
    %v645 = vsel %vm325, %v279, 0
    %v648 = vsel %vm325, %v280, 0
    %v651 = vsel %vm325, %v281, 0
    %v654 = vsel %vm325, %v282, 0
    %v657 = vsel %vm325, %v283, 0
    %v660 = vsel %vm325, %v284, 0
    %v663 = vsel %vm325, %v301, 0
    %v666 = vsel %vm325, %v302, 0
    %v669 = vsel %vm325, %v303, 0
    %v672 = vsel %vm325, %v304, 0
    %v675 = vsel %vm325, %v305, 0
    %v678 = vsel %vm325, %v306, 0
    %v681 = vsel %vm325, %v307, 0
    %v684 = vsel %vm325, %v308, 0
    %v687 = vsel %vm325, %v309, 0
    %v690 = vsel %vm325, %v310, 0
    %v693 = vsel %vm325, %v311, 0
    %v696 = vsel %vm325, %v312, 0
    %v699 = vsel %vm325, %v313, 0
    %v702 = vsel %vm325, %v314, 0
    %v705 = vsel %vm325, %v315, 0
    %v708 = vsel %vm325, %v316, 0
    %vm710 = vcmask 1042432
    %v712 = vsel %vm710, %v317, 0
    %714 = vmatprep.subr.mxu0 0.0
    %715 = vmatpush1.msra.mxu0 0.0
    %716 = vmatprep.subr.mxu0 0.0
    %717 = vmatpush1.msra.mxu0 0.0
    %718 = vmatprep.subr.mxu0 0.0
    %719 = vmatpush1.msra.mxu0 0.0
    %720 = vmatprep.subr.mxu0 0.0
    %721 = vmatpush1.msra.mxu0 0.0
    %722 = vmatprep.subr.mxu0 0.0
    %723 = vmatpush1.msra.mxu0 0.0
    %724 = vmatprep.subr.mxu0 0.0
    %725 = vmatpush1.msra.mxu0 0.0
    %726 = vmatprep.subr.mxu0 0.0
    %727 = vmatpush1.msra.mxu0 0.0
    %728 = vmatprep.subr.mxu0 0.0
    %729 = vmatpush1.msra.mxu0 0.0
    %730 = vmatprep.subr.mxu0 0.0
    %731 = vmatpush1.msra.mxu0 0.0
    %732 = vmatprep.subr.mxu0 0.0
    %733 = vmatpush1.msra.mxu0 0.0
    %734 = vmatprep.subr.mxu0 0.0
    %735 = vmatpush1.msra.mxu0 0.0
    %736 = vmatprep.subr.mxu0 0.0
    %737 = vmatpush1.msra.mxu0 0.0
    %738 = vmatprep.subr.mxu0 0.0
    %739 = vmatpush1.msra.mxu0 0.0
    %740 = vmatprep.subr.mxu0 0.0
    %741 = vmatpush1.msra.mxu0 0.0
    %742 = vmatprep.subr.mxu0 0.0
    %743 = vmatpush1.msra.mxu0 0.0
    %744 = vmatprep.subr.mxu0 0.0
    %745 = vmatpush1.msra.mxu0 %v712
    %746 = vmatprep.subr.mxu0 0.0
    %747 = vmatpush2.msra.mxu0 0.0
    %748 = vmatprep.subr.mxu0 0.0
    %749 = vmatpush2.msra.mxu0 0.0
    %750 = vmatprep.subr.mxu0 0.0
    %751 = vmatpush2.msra.mxu0 0.0
    %752 = vmatprep.subr.mxu0 0.0
    %753 = vmatpush2.msra.mxu0 0.0
    %754 = vmatprep.subr.mxu0 0.0
    %755 = vmatpush2.msra.mxu0 0.0
    %756 = vmatprep.subr.mxu0 0.0
    %757 = vmatpush2.msra.mxu0 0.0
    %758 = vmatprep.subr.mxu0 0.0
    %759 = vmatpush2.msra.mxu0 0.0
    %760 = vmatprep.subr.mxu0 0.0
    %761 = vmatpush2.msra.mxu0 0.0
    %762 = vmatprep.subr.mxu0 0.0
    %763 = vmatpush2.msra.mxu0 0.0
    %764 = vmatprep.subr.mxu0 0.0
    %765 = vmatpush2.msra.mxu0 0.0
    %766 = vmatprep.subr.mxu0 0.0
    %767 = vmatpush2.msra.mxu0 0.0
    %768 = vmatprep.subr.mxu0 0.0
    %769 = vmatpush2.msra.mxu0 0.0
    %770 = vmatprep.subr.mxu0 0.0
    %771 = vmatpush2.msra.mxu0 0.0
    %772 = vmatprep.subr.mxu0 0.0
    %773 = vmatpush2.msra.mxu0 0.0
    %774 = vmatprep.subr.mxu0 0.0
    %775 = vmatpush2.msra.mxu0 0.0
    %776 = vmatprep.subr.mxu0 0.0
    %777 = vmatpush2.msra.mxu0 0.0
    %778 = vmatprep.mubr.f32.mxu0 0.0
    %779 = vmatmul.mubr.f32.gmra.mxu0 %v327
    %v780 = vpop.f32.mrf.mxu0
    %v781 = vadd.f32 %v323, %v780
    %v782 = vpop.f32.mrf.mxu0
    %783 = vmatprep.mubr.f32.mxu0 0.0
    %784 = vmatmul.mubr.f32.gmra.mxu0 %v330
    %v785 = vpop.f32.mrf.mxu0
    %v786 = vadd.f32 %v323, %v785
    %v787 = vpop.f32.mrf.mxu0
    %788 = vmatprep.mubr.f32.mxu0 0.0
    %789 = vmatmul.mubr.f32.gmra.mxu0 %v333
    %v790 = vpop.f32.mrf.mxu0
    %v791 = vadd.f32 %v323, %v790
    %v792 = vpop.f32.mrf.mxu0
    %793 = vmatprep.mubr.f32.mxu0 0.0
    %794 = vmatmul.mubr.f32.gmra.mxu0 %v336
    %v795 = vpop.f32.mrf.mxu0
    %v796 = vadd.f32 %v323, %v795
    %v797 = vpop.f32.mrf.mxu0
    %798 = vmatprep.mubr.f32.mxu0 0.0
    %799 = vmatmul.mubr.f32.gmra.mxu0 %v339
    %v800 = vpop.f32.mrf.mxu0
    %v801 = vadd.f32 %v323, %v800
    %v802 = vpop.f32.mrf.mxu0
    %803 = vmatprep.mubr.f32.mxu0 0.0
    %804 = vmatmul.mubr.f32.gmra.mxu0 %v342
    %v805 = vpop.f32.mrf.mxu0
    %v806 = vadd.f32 %v323, %v805
    %v807 = vpop.f32.mrf.mxu0
    %808 = vmatprep.mubr.f32.mxu0 0.0
    %809 = vmatmul.mubr.f32.gmra.mxu0 %v345
    %v810 = vpop.f32.mrf.mxu0
    %v811 = vadd.f32 %v323, %v810
    %v812 = vpop.f32.mrf.mxu0
    %813 = vmatprep.mubr.f32.mxu0 0.0
    %814 = vmatmul.mubr.f32.gmra.mxu0 %v348
    %v815 = vpop.f32.mrf.mxu0
    %v816 = vadd.f32 %v323, %v815
    %v817 = vpop.f32.mrf.mxu0
    %818 = vmatprep.mubr.f32.mxu0 0.0
    %819 = vmatmul.mubr.f32.gmra.mxu0 %v351
    %v820 = vpop.f32.mrf.mxu0
    %v821 = vadd.f32 %v323, %v820
    %v822 = vpop.f32.mrf.mxu0
    %823 = vmatprep.mubr.f32.mxu0 0.0
    %824 = vmatmul.mubr.f32.gmra.mxu0 %v354
    %v825 = vpop.f32.mrf.mxu0
    %v826 = vadd.f32 %v323, %v825
    %v827 = vpop.f32.mrf.mxu0
    %828 = vmatprep.mubr.f32.mxu0 0.0
    %829 = vmatmul.mubr.f32.gmra.mxu0 %v357
    %v830 = vpop.f32.mrf.mxu0
    %v831 = vadd.f32 %v323, %v830
    %v832 = vpop.f32.mrf.mxu0
    %833 = vmatprep.mubr.f32.mxu0 0.0
    %834 = vmatmul.mubr.f32.gmra.mxu0 %v360
    %v835 = vpop.f32.mrf.mxu0
    %v836 = vadd.f32 %v323, %v835
    %v837 = vpop.f32.mrf.mxu0
    %838 = vmatprep.mubr.f32.mxu0 0.0
    %839 = vmatmul.mubr.f32.gmra.mxu0 %v363
    %v840 = vpop.f32.mrf.mxu0
    %v841 = vadd.f32 %v323, %v840
    %v842 = vpop.f32.mrf.mxu0
    %843 = vmatprep.mubr.f32.mxu0 0.0
    %844 = vmatmul.mubr.f32.gmra.mxu0 %v366
    %v845 = vpop.f32.mrf.mxu0
    %v846 = vadd.f32 %v323, %v845
    %v847 = vpop.f32.mrf.mxu0
    %848 = vmatprep.mubr.f32.mxu0 0.0
    %849 = vmatmul.mubr.f32.gmra.mxu0 %v369
    %v850 = vpop.f32.mrf.mxu0
    %v851 = vadd.f32 %v323, %v850
    %v852 = vpop.f32.mrf.mxu0
    %853 = vmatprep.mubr.f32.mxu0 0.0
    %854 = vmatmul.mubr.f32.gmra.mxu0 %v372
    %v855 = vpop.f32.mrf.mxu0
    %v856 = vadd.f32 %v323, %v855
    %v857 = vpop.f32.mrf.mxu0
    %858 = vmatprep.mubr.f32.mxu0 0.0
    %859 = vmatmul.mubr.f32.gmra.mxu0 %v375
    %v860 = vpop.f32.mrf.mxu0
    %v861 = vadd.f32 %v323, %v860
    %v862 = vpop.f32.mrf.mxu0
    %863 = vmatprep.mubr.f32.mxu0 0.0
    %864 = vmatmul.mubr.f32.gmra.mxu0 %v378
    %v865 = vpop.f32.mrf.mxu0
    %v866 = vadd.f32 %v323, %v865
    %v867 = vpop.f32.mrf.mxu0
    %868 = vmatprep.mubr.f32.mxu0 0.0
    %869 = vmatmul.mubr.f32.gmra.mxu0 %v381
    %v870 = vpop.f32.mrf.mxu0
    %v871 = vadd.f32 %v323, %v870
    %v872 = vpop.f32.mrf.mxu0
    %873 = vmatprep.mubr.f32.mxu0 0.0
    %874 = vmatmul.mubr.f32.gmra.mxu0 %v384
    %v875 = vpop.f32.mrf.mxu0
    %v876 = vadd.f32 %v323, %v875
    %v877 = vpop.f32.mrf.mxu0
    %878 = vmatprep.mubr.f32.mxu0 0.0
    %879 = vmatmul.mubr.f32.gmra.mxu0 %v387
    %v880 = vpop.f32.mrf.mxu0
    %v881 = vadd.f32 %v323, %v880
    %v882 = vpop.f32.mrf.mxu0
    %883 = vmatprep.mubr.f32.mxu0 0.0
    %884 = vmatmul.mubr.f32.gmra.mxu0 %v390
    %v885 = vpop.f32.mrf.mxu0
    %v886 = vadd.f32 %v323, %v885
    %v887 = vpop.f32.mrf.mxu0
    %888 = vmatprep.mubr.f32.mxu0 0.0
    %889 = vmatmul.mubr.f32.gmra.mxu0 %v393
    %v890 = vpop.f32.mrf.mxu0
    %v891 = vadd.f32 %v323, %v890
    %v892 = vpop.f32.mrf.mxu0
    %893 = vmatprep.mubr.f32.mxu0 0.0
    %894 = vmatmul.mubr.f32.gmra.mxu0 %v396
    %v895 = vpop.f32.mrf.mxu0
    %v896 = vadd.f32 %v323, %v895
    %v897 = vpop.f32.mrf.mxu0
    %898 = vmatprep.mubr.f32.mxu0 0.0
    %899 = vmatmul.mubr.f32.gmra.mxu0 %v399
    %v900 = vpop.f32.mrf.mxu0
    %v901 = vadd.f32 %v323, %v900
    %v902 = vpop.f32.mrf.mxu0
    %903 = vmatprep.mubr.f32.mxu0 0.0
    %904 = vmatmul.mubr.f32.gmra.mxu0 %v402
    %v905 = vpop.f32.mrf.mxu0
    %v906 = vadd.f32 %v323, %v905
    %v907 = vpop.f32.mrf.mxu0
    %908 = vmatprep.mubr.f32.mxu0 0.0
    %909 = vmatmul.mubr.f32.gmra.mxu0 %v405
    %v910 = vpop.f32.mrf.mxu0
    %v911 = vadd.f32 %v323, %v910
    %v912 = vpop.f32.mrf.mxu0
    %913 = vmatprep.mubr.f32.mxu0 0.0
    %914 = vmatmul.mubr.f32.gmra.mxu0 %v408
    %v915 = vpop.f32.mrf.mxu0
    %v916 = vadd.f32 %v323, %v915
    %v917 = vpop.f32.mrf.mxu0
    %918 = vmatprep.mubr.f32.mxu0 0.0
    %919 = vmatmul.mubr.f32.gmra.mxu0 %v411
    %v920 = vpop.f32.mrf.mxu0
    %v921 = vadd.f32 %v323, %v920
    %v922 = vpop.f32.mrf.mxu0
    %923 = vmatprep.mubr.f32.mxu0 0.0
    %924 = vmatmul.mubr.f32.gmra.mxu0 %v414
    %v925 = vpop.f32.mrf.mxu0
    %v926 = vadd.f32 %v323, %v925
    %v927 = vpop.f32.mrf.mxu0
    %928 = vmatprep.mubr.f32.mxu0 0.0
    %929 = vmatmul.mubr.f32.gmra.mxu0 %v417
    %v930 = vpop.f32.mrf.mxu0
    %v931 = vadd.f32 %v323, %v930
    %v932 = vpop.f32.mrf.mxu0
    %933 = vmatprep.mubr.f32.mxu0 0.0
    %934 = vmatmul.mubr.f32.gmra.mxu0 %v420
    %v935 = vpop.f32.mrf.mxu0
    %v936 = vadd.f32 %v323, %v935
    %v937 = vpop.f32.mrf.mxu0
    %938 = vmatprep.mubr.f32.mxu0 0.0
    %939 = vmatmul.mubr.f32.gmra.mxu0 %v423
    %v940 = vpop.f32.mrf.mxu0
    %v941 = vadd.f32 %v323, %v940
    %v942 = vpop.f32.mrf.mxu0
    %943 = vmatprep.mubr.f32.mxu0 0.0
    %944 = vmatmul.mubr.f32.gmra.mxu0 %v426
    %v945 = vpop.f32.mrf.mxu0
    %v946 = vadd.f32 %v323, %v945
    %v947 = vpop.f32.mrf.mxu0
    %948 = vmatprep.mubr.f32.mxu0 0.0
    %949 = vmatmul.mubr.f32.gmra.mxu0 %v429
    %v950 = vpop.f32.mrf.mxu0
    %v951 = vadd.f32 %v323, %v950
    %v952 = vpop.f32.mrf.mxu0
    %953 = vmatprep.mubr.f32.mxu0 0.0
    %954 = vmatmul.mubr.f32.gmra.mxu0 %v432
    %v955 = vpop.f32.mrf.mxu0
    %v956 = vadd.f32 %v323, %v955
    %v957 = vpop.f32.mrf.mxu0
    %958 = vmatprep.mubr.f32.mxu0 0.0
    %959 = vmatmul.mubr.f32.gmra.mxu0 %v435
    %v960 = vpop.f32.mrf.mxu0
    %v961 = vadd.f32 %v323, %v960
    %v962 = vpop.f32.mrf.mxu0
    %963 = vmatprep.mubr.f32.mxu0 0.0
    %964 = vmatmul.mubr.f32.gmra.mxu0 %v438
    %v965 = vpop.f32.mrf.mxu0
    %v966 = vadd.f32 %v323, %v965
    %v967 = vpop.f32.mrf.mxu0
    %968 = vmatprep.mubr.f32.mxu0 0.0
    %969 = vmatmul.mubr.f32.gmra.mxu0 %v441
    %v970 = vpop.f32.mrf.mxu0
    %v971 = vadd.f32 %v323, %v970
    %v972 = vpop.f32.mrf.mxu0
    %973 = vmatprep.mubr.f32.mxu0 0.0
    %974 = vmatmul.mubr.f32.gmra.mxu0 %v444
    %v975 = vpop.f32.mrf.mxu0
    %v976 = vadd.f32 %v323, %v975
    %v977 = vpop.f32.mrf.mxu0
    %978 = vmatprep.mubr.f32.mxu0 0.0
    %979 = vmatmul.mubr.f32.gmra.mxu0 %v447
    %v980 = vpop.f32.mrf.mxu0
    %v981 = vadd.f32 %v323, %v980
    %v982 = vpop.f32.mrf.mxu0
    %983 = vmatprep.mubr.f32.mxu0 0.0
    %984 = vmatmul.mubr.f32.gmra.mxu0 %v450
    %v985 = vpop.f32.mrf.mxu0
    %v986 = vadd.f32 %v323, %v985
    %v987 = vpop.f32.mrf.mxu0
    %988 = vmatprep.mubr.f32.mxu0 0.0
    %989 = vmatmul.mubr.f32.gmra.mxu0 %v453
    %v990 = vpop.f32.mrf.mxu0
    %v991 = vadd.f32 %v323, %v990
    %v992 = vpop.f32.mrf.mxu0
    %993 = vmatprep.mubr.f32.mxu0 0.0
    %994 = vmatmul.mubr.f32.gmra.mxu0 %v456
    %v995 = vpop.f32.mrf.mxu0
    %v996 = vadd.f32 %v323, %v995
    %v997 = vpop.f32.mrf.mxu0
    %998 = vmatprep.mubr.f32.mxu0 0.0
    %999 = vmatmul.mubr.f32.gmra.mxu0 %v459
    %v1000 = vpop.f32.mrf.mxu0
    %v1001 = vadd.f32 %v323, %v1000
    %v1002 = vpop.f32.mrf.mxu0
    %1003 = vmatprep.mubr.f32.mxu0 0.0
    %1004 = vmatmul.mubr.f32.gmra.mxu0 %v462
    %v1005 = vpop.f32.mrf.mxu0
    %v1006 = vadd.f32 %v323, %v1005
    %v1007 = vpop.f32.mrf.mxu0
    %1008 = vmatprep.mubr.f32.mxu0 0.0
    %1009 = vmatmul.mubr.f32.gmra.mxu0 %v465
    %v1010 = vpop.f32.mrf.mxu0
    %v1011 = vadd.f32 %v323, %v1010
    %v1012 = vpop.f32.mrf.mxu0
    %1013 = vmatprep.mubr.f32.mxu0 0.0
    %1014 = vmatmul.mubr.f32.gmra.mxu0 %v468
    %v1015 = vpop.f32.mrf.mxu0
    %v1016 = vadd.f32 %v323, %v1015
    %v1017 = vpop.f32.mrf.mxu0
    %1018 = vmatprep.mubr.f32.mxu0 0.0
    %1019 = vmatmul.mubr.f32.gmra.mxu0 %v471
    %v1020 = vpop.f32.mrf.mxu0
    %v1021 = vadd.f32 %v323, %v1020
    %v1022 = vpop.f32.mrf.mxu0
    %1023 = vmatprep.mubr.f32.mxu0 0.0
    %1024 = vmatmul.mubr.f32.gmra.mxu0 %v474
    %v1025 = vpop.f32.mrf.mxu0
    %v1026 = vadd.f32 %v323, %v1025
    %v1027 = vpop.f32.mrf.mxu0
    %1028 = vmatprep.mubr.f32.mxu0 0.0
    %1029 = vmatmul.mubr.f32.gmra.mxu0 %v477
    %v1030 = vpop.f32.mrf.mxu0
    %v1031 = vadd.f32 %v323, %v1030
    %v1032 = vpop.f32.mrf.mxu0
    %1033 = vmatprep.mubr.f32.mxu0 0.0
    %1034 = vmatmul.mubr.f32.gmra.mxu0 %v480
    %v1035 = vpop.f32.mrf.mxu0
    %v1036 = vadd.f32 %v323, %v1035
    %v1037 = vpop.f32.mrf.mxu0
    %1038 = vmatprep.mubr.f32.mxu0 0.0
    %1039 = vmatmul.mubr.f32.gmra.mxu0 %v483
    %v1040 = vpop.f32.mrf.mxu0
    %v1041 = vadd.f32 %v323, %v1040
    %v1042 = vpop.f32.mrf.mxu0
    %1043 = vmatprep.mubr.f32.mxu0 0.0
    %1044 = vmatmul.mubr.f32.gmra.mxu0 %v486
    %v1045 = vpop.f32.mrf.mxu0
    %v1046 = vadd.f32 %v323, %v1045
    %v1047 = vpop.f32.mrf.mxu0
    %1048 = vmatprep.mubr.f32.mxu0 0.0
    %1049 = vmatmul.mubr.f32.gmra.mxu0 %v489
    %v1050 = vpop.f32.mrf.mxu0
    %v1051 = vadd.f32 %v323, %v1050
    %v1052 = vpop.f32.mrf.mxu0
    %1053 = vmatprep.mubr.f32.mxu0 0.0
    %1054 = vmatmul.mubr.f32.gmra.mxu0 %v492
    %v1055 = vpop.f32.mrf.mxu0
    %v1056 = vadd.f32 %v323, %v1055
    %v1057 = vpop.f32.mrf.mxu0
    %1058 = vmatprep.mubr.f32.mxu0 0.0
    %1059 = vmatmul.mubr.f32.gmra.mxu0 %v495
    %v1060 = vpop.f32.mrf.mxu0
    %v1061 = vadd.f32 %v323, %v1060
    %v1062 = vpop.f32.mrf.mxu0
    %1063 = vmatprep.mubr.f32.mxu0 0.0
    %1064 = vmatmul.mubr.f32.gmra.mxu0 %v498
    %v1065 = vpop.f32.mrf.mxu0
    %v1066 = vadd.f32 %v323, %v1065
    %v1067 = vpop.f32.mrf.mxu0
    %1068 = vmatprep.mubr.f32.mxu0 0.0
    %1069 = vmatmul.mubr.f32.gmra.mxu0 %v501
    %v1070 = vpop.f32.mrf.mxu0
    %v1071 = vadd.f32 %v323, %v1070
    %v1072 = vpop.f32.mrf.mxu0
    %1073 = vmatprep.mubr.f32.mxu0 0.0
    %1074 = vmatmul.mubr.f32.gmra.mxu0 %v504
    %v1075 = vpop.f32.mrf.mxu0
    %v1076 = vadd.f32 %v323, %v1075
    %v1077 = vpop.f32.mrf.mxu0
    %1078 = vmatprep.mubr.f32.mxu0 0.0
    %1079 = vmatmul.mubr.f32.gmra.mxu0 %v507
    %v1080 = vpop.f32.mrf.mxu0
    %v1081 = vadd.f32 %v323, %v1080
    %v1082 = vpop.f32.mrf.mxu0
    %1083 = vmatprep.mubr.f32.mxu0 0.0
    %1084 = vmatmul.mubr.f32.gmra.mxu0 %v510
    %v1085 = vpop.f32.mrf.mxu0
    %v1086 = vadd.f32 %v323, %v1085
    %v1087 = vpop.f32.mrf.mxu0
    %1088 = vmatprep.mubr.f32.mxu0 0.0
    %1089 = vmatmul.mubr.f32.gmra.mxu0 %v513
    %v1090 = vpop.f32.mrf.mxu0
    %v1091 = vadd.f32 %v323, %v1090
    %v1092 = vpop.f32.mrf.mxu0
    %1093 = vmatprep.mubr.f32.mxu0 0.0
    %1094 = vmatmul.mubr.f32.gmra.mxu0 %v516
    %v1095 = vpop.f32.mrf.mxu0
    %v1096 = vadd.f32 %v323, %v1095
    %v1097 = vpop.f32.mrf.mxu0
    %1098 = vmatprep.mubr.f32.mxu0 0.0
    %1099 = vmatmul.mubr.f32.gmra.mxu0 %v519
    %v1100 = vpop.f32.mrf.mxu0
    %v1101 = vadd.f32 %v323, %v1100
    %v1102 = vpop.f32.mrf.mxu0
    %1103 = vmatprep.mubr.f32.mxu0 0.0
    %1104 = vmatmul.mubr.f32.gmra.mxu0 %v522
    %v1105 = vpop.f32.mrf.mxu0
    %v1106 = vadd.f32 %v323, %v1105
    %v1107 = vpop.f32.mrf.mxu0
    %1108 = vmatprep.mubr.f32.mxu0 0.0
    %1109 = vmatmul.mubr.f32.gmra.mxu0 %v525
    %v1110 = vpop.f32.mrf.mxu0
    %v1111 = vadd.f32 %v323, %v1110
    %v1112 = vpop.f32.mrf.mxu0
    %1113 = vmatprep.mubr.f32.mxu0 0.0
    %1114 = vmatmul.mubr.f32.gmra.mxu0 %v528
    %v1115 = vpop.f32.mrf.mxu0
    %v1116 = vadd.f32 %v323, %v1115
    %v1117 = vpop.f32.mrf.mxu0
    %1118 = vmatprep.mubr.f32.mxu0 0.0
    %1119 = vmatmul.mubr.f32.gmra.mxu0 %v531
    %v1120 = vpop.f32.mrf.mxu0
    %v1121 = vadd.f32 %v323, %v1120
    %v1122 = vpop.f32.mrf.mxu0
    %1123 = vmatprep.mubr.f32.mxu0 0.0
    %1124 = vmatmul.mubr.f32.gmra.mxu0 %v534
    %v1125 = vpop.f32.mrf.mxu0
    %v1126 = vadd.f32 %v323, %v1125
    %v1127 = vpop.f32.mrf.mxu0
    %1128 = vmatprep.mubr.f32.mxu0 0.0
    %1129 = vmatmul.mubr.f32.gmra.mxu0 %v537
    %v1130 = vpop.f32.mrf.mxu0
    %v1131 = vadd.f32 %v323, %v1130
    %v1132 = vpop.f32.mrf.mxu0
    %1133 = vmatprep.mubr.f32.mxu0 0.0
    %1134 = vmatmul.mubr.f32.gmra.mxu0 %v540
    %v1135 = vpop.f32.mrf.mxu0
    %v1136 = vadd.f32 %v323, %v1135
    %v1137 = vpop.f32.mrf.mxu0
    %1138 = vmatprep.mubr.f32.mxu0 0.0
    %1139 = vmatmul.mubr.f32.gmra.mxu0 %v543
    %v1140 = vpop.f32.mrf.mxu0
    %v1141 = vadd.f32 %v323, %v1140
    %v1142 = vpop.f32.mrf.mxu0
    %1143 = vmatprep.mubr.f32.mxu0 0.0
    %1144 = vmatmul.mubr.f32.gmra.mxu0 %v546
    %v1145 = vpop.f32.mrf.mxu0
    %v1146 = vadd.f32 %v323, %v1145
    %v1147 = vpop.f32.mrf.mxu0
    %1148 = vmatprep.mubr.f32.mxu0 0.0
    %1149 = vmatmul.mubr.f32.gmra.mxu0 %v549
    %v1150 = vpop.f32.mrf.mxu0
    %v1151 = vadd.f32 %v323, %v1150
    %v1152 = vpop.f32.mrf.mxu0
    %1153 = vmatprep.mubr.f32.mxu0 0.0
    %1154 = vmatmul.mubr.f32.gmra.mxu0 %v552
    %v1155 = vpop.f32.mrf.mxu0
    %v1156 = vadd.f32 %v323, %v1155
    %v1157 = vpop.f32.mrf.mxu0
    %1158 = vmatprep.mubr.f32.mxu0 0.0
    %1159 = vmatmul.mubr.f32.gmra.mxu0 %v555
    %v1160 = vpop.f32.mrf.mxu0
    %v1161 = vadd.f32 %v323, %v1160
    %v1162 = vpop.f32.mrf.mxu0
    %1163 = vmatprep.mubr.f32.mxu0 0.0
    %1164 = vmatmul.mubr.f32.gmra.mxu0 %v558
    %v1165 = vpop.f32.mrf.mxu0
    %v1166 = vadd.f32 %v323, %v1165
    %v1167 = vpop.f32.mrf.mxu0
    %1168 = vmatprep.mubr.f32.mxu0 0.0
    %1169 = vmatmul.mubr.f32.gmra.mxu0 %v561
    %v1170 = vpop.f32.mrf.mxu0
    %v1171 = vadd.f32 %v323, %v1170
    %v1172 = vpop.f32.mrf.mxu0
    %1173 = vmatprep.mubr.f32.mxu0 0.0
    %1174 = vmatmul.mubr.f32.gmra.mxu0 %v564
    %v1175 = vpop.f32.mrf.mxu0
    %v1176 = vadd.f32 %v323, %v1175
    %v1177 = vpop.f32.mrf.mxu0
    %1178 = vmatprep.mubr.f32.mxu0 0.0
    %1179 = vmatmul.mubr.f32.gmra.mxu0 %v567
    %v1180 = vpop.f32.mrf.mxu0
    %v1181 = vadd.f32 %v323, %v1180
    %v1182 = vpop.f32.mrf.mxu0
    %1183 = vmatprep.mubr.f32.mxu0 0.0
    %1184 = vmatmul.mubr.f32.gmra.mxu0 %v570
    %v1185 = vpop.f32.mrf.mxu0
    %v1186 = vadd.f32 %v323, %v1185
    %v1187 = vpop.f32.mrf.mxu0
    %1188 = vmatprep.mubr.f32.mxu0 0.0
    %1189 = vmatmul.mubr.f32.gmra.mxu0 %v573
    %v1190 = vpop.f32.mrf.mxu0
    %v1191 = vadd.f32 %v323, %v1190
    %v1192 = vpop.f32.mrf.mxu0
    %1193 = vmatprep.mubr.f32.mxu0 0.0
    %1194 = vmatmul.mubr.f32.gmra.mxu0 %v576
    %v1195 = vpop.f32.mrf.mxu0
    %v1196 = vadd.f32 %v323, %v1195
    %v1197 = vpop.f32.mrf.mxu0
    %1198 = vmatprep.mubr.f32.mxu0 0.0
    %1199 = vmatmul.mubr.f32.gmra.mxu0 %v579
    %v1200 = vpop.f32.mrf.mxu0
    %v1201 = vadd.f32 %v323, %v1200
    %v1202 = vpop.f32.mrf.mxu0
    %1203 = vmatprep.mubr.f32.mxu0 0.0
    %1204 = vmatmul.mubr.f32.gmra.mxu0 %v582
    %v1205 = vpop.f32.mrf.mxu0
    %v1206 = vadd.f32 %v323, %v1205
    %v1207 = vpop.f32.mrf.mxu0
    %1208 = vmatprep.mubr.f32.mxu0 0.0
    %1209 = vmatmul.mubr.f32.gmra.mxu0 %v585
    %v1210 = vpop.f32.mrf.mxu0
    %v1211 = vadd.f32 %v323, %v1210
    %v1212 = vpop.f32.mrf.mxu0
    %1213 = vmatprep.mubr.f32.mxu0 0.0
    %1214 = vmatmul.mubr.f32.gmra.mxu0 %v588
    %v1215 = vpop.f32.mrf.mxu0
    %v1216 = vadd.f32 %v323, %v1215
    %v1217 = vpop.f32.mrf.mxu0
    %1218 = vmatprep.mubr.f32.mxu0 0.0
    %1219 = vmatmul.mubr.f32.gmra.mxu0 %v591
    %v1220 = vpop.f32.mrf.mxu0
    %v1221 = vadd.f32 %v323, %v1220
    %v1222 = vpop.f32.mrf.mxu0
    %1223 = vmatprep.mubr.f32.mxu0 0.0
    %1224 = vmatmul.mubr.f32.gmra.mxu0 %v594
    %v1225 = vpop.f32.mrf.mxu0
    %v1226 = vadd.f32 %v323, %v1225
    %v1227 = vpop.f32.mrf.mxu0
    %1228 = vmatprep.mubr.f32.mxu0 0.0
    %1229 = vmatmul.mubr.f32.gmra.mxu0 %v597
    %v1230 = vpop.f32.mrf.mxu0
    %v1231 = vadd.f32 %v323, %v1230
    %v1232 = vpop.f32.mrf.mxu0
    %1233 = vmatprep.mubr.f32.mxu0 0.0
    %1234 = vmatmul.mubr.f32.gmra.mxu0 %v600
    %v1235 = vpop.f32.mrf.mxu0
    %v1236 = vadd.f32 %v323, %v1235
    %v1237 = vpop.f32.mrf.mxu0
    %1238 = vmatprep.mubr.f32.mxu0 0.0
    %1239 = vmatmul.mubr.f32.gmra.mxu0 %v603
    %v1240 = vpop.f32.mrf.mxu0
    %v1241 = vadd.f32 %v323, %v1240
    %v1242 = vpop.f32.mrf.mxu0
    %1243 = vmatprep.mubr.f32.mxu0 0.0
    %1244 = vmatmul.mubr.f32.gmra.mxu0 %v606
    %v1245 = vpop.f32.mrf.mxu0
    %v1246 = vadd.f32 %v323, %v1245
    %v1247 = vpop.f32.mrf.mxu0
    %1248 = vmatprep.mubr.f32.mxu0 0.0
    %1249 = vmatmul.mubr.f32.gmra.mxu0 %v609
    %v1250 = vpop.f32.mrf.mxu0
    %v1251 = vadd.f32 %v323, %v1250
    %v1252 = vpop.f32.mrf.mxu0
    %1253 = vmatprep.mubr.f32.mxu0 0.0
    %1254 = vmatmul.mubr.f32.gmra.mxu0 %v612
    %v1255 = vpop.f32.mrf.mxu0
    %v1256 = vadd.f32 %v323, %v1255
    %v1257 = vpop.f32.mrf.mxu0
    %1258 = vmatprep.mubr.f32.mxu0 0.0
    %1259 = vmatmul.mubr.f32.gmra.mxu0 %v615
    %v1260 = vpop.f32.mrf.mxu0
    %v1261 = vadd.f32 %v323, %v1260
    %v1262 = vpop.f32.mrf.mxu0
    %1263 = vmatprep.mubr.f32.mxu0 0.0
    %1264 = vmatmul.mubr.f32.gmra.mxu0 %v618
    %v1265 = vpop.f32.mrf.mxu0
    %v1266 = vadd.f32 %v323, %v1265
    %v1267 = vpop.f32.mrf.mxu0
    %1268 = vmatprep.mubr.f32.mxu0 0.0
    %1269 = vmatmul.mubr.f32.gmra.mxu0 %v621
    %v1270 = vpop.f32.mrf.mxu0
    %v1271 = vadd.f32 %v323, %v1270
    %v1272 = vpop.f32.mrf.mxu0
    %1273 = vmatprep.mubr.f32.mxu0 0.0
    %1274 = vmatmul.mubr.f32.gmra.mxu0 %v624
    %v1275 = vpop.f32.mrf.mxu0
    %v1276 = vadd.f32 %v323, %v1275
    %v1277 = vpop.f32.mrf.mxu0
    %1278 = vmatprep.mubr.f32.mxu0 0.0
    %1279 = vmatmul.mubr.f32.gmra.mxu0 %v627
    %v1280 = vpop.f32.mrf.mxu0
    %v1281 = vadd.f32 %v323, %v1280
    %v1282 = vpop.f32.mrf.mxu0
    %1283 = vmatprep.mubr.f32.mxu0 0.0
    %1284 = vmatmul.mubr.f32.gmra.mxu0 %v630
    %v1285 = vpop.f32.mrf.mxu0
    %v1286 = vadd.f32 %v323, %v1285
    %v1287 = vpop.f32.mrf.mxu0
    %1288 = vmatprep.mubr.f32.mxu0 0.0
    %1289 = vmatmul.mubr.f32.gmra.mxu0 %v633
    %v1290 = vpop.f32.mrf.mxu0
    %v1291 = vadd.f32 %v323, %v1290
    %v1292 = vpop.f32.mrf.mxu0
    %1293 = vmatprep.mubr.f32.mxu0 0.0
    %1294 = vmatmul.mubr.f32.gmra.mxu0 %v636
    %v1295 = vpop.f32.mrf.mxu0
    %v1296 = vadd.f32 %v323, %v1295
    %v1297 = vpop.f32.mrf.mxu0
    %1298 = vmatprep.mubr.f32.mxu0 0.0
    %1299 = vmatmul.mubr.f32.gmra.mxu0 %v639
    %v1300 = vpop.f32.mrf.mxu0
    %v1301 = vadd.f32 %v323, %v1300
    %v1302 = vpop.f32.mrf.mxu0
    %1303 = vmatprep.mubr.f32.mxu0 0.0
    %1304 = vmatmul.mubr.f32.gmra.mxu0 %v642
    %v1305 = vpop.f32.mrf.mxu0
    %v1306 = vadd.f32 %v323, %v1305
    %v1307 = vpop.f32.mrf.mxu0
    %1308 = vmatprep.mubr.f32.mxu0 0.0
    %1309 = vmatmul.mubr.f32.gmra.mxu0 %v645
    %v1310 = vpop.f32.mrf.mxu0
    %v1311 = vadd.f32 %v323, %v1310
    %v1312 = vpop.f32.mrf.mxu0
    %1313 = vmatprep.mubr.f32.mxu0 0.0
    %1314 = vmatmul.mubr.f32.gmra.mxu0 %v648
    %v1315 = vpop.f32.mrf.mxu0
    %v1316 = vadd.f32 %v323, %v1315
    %v1317 = vpop.f32.mrf.mxu0
    %1318 = vmatprep.mubr.f32.mxu0 0.0
    %1319 = vmatmul.mubr.f32.gmra.mxu0 %v651
    %v1320 = vpop.f32.mrf.mxu0
    %v1321 = vadd.f32 %v323, %v1320
    %v1322 = vpop.f32.mrf.mxu0
    %1323 = vmatprep.mubr.f32.mxu0 0.0
    %1324 = vmatmul.mubr.f32.gmra.mxu0 %v654
    %v1325 = vpop.f32.mrf.mxu0
    %v1326 = vadd.f32 %v323, %v1325
    %v1327 = vpop.f32.mrf.mxu0
    %1328 = vmatprep.mubr.f32.mxu0 0.0
    %1329 = vmatmul.mubr.f32.gmra.mxu0 %v657
    %v1330 = vpop.f32.mrf.mxu0
    %v1331 = vadd.f32 %v323, %v1330
    %v1332 = vpop.f32.mrf.mxu0
    %1333 = vmatprep.mubr.f32.mxu0 0.0
    %1334 = vmatmul.mubr.f32.gmra.mxu0 %v660
    %v1335 = vpop.f32.mrf.mxu0
    %v1336 = vadd.f32 %v323, %v1335
    %v1337 = vpop.f32.mrf.mxu0
    %1338 = vmatprep.mubr.f32.mxu0 0.0
    %1339 = vmatmul.mubr.f32.gmra.mxu0 %v663
    %v1340 = vpop.f32.mrf.mxu0
    %v1341 = vadd.f32 %v323, %v1340
    %v1342 = vpop.f32.mrf.mxu0
    %1343 = vmatprep.mubr.f32.mxu0 0.0
    %1344 = vmatmul.mubr.f32.gmra.mxu0 %v666
    %v1345 = vpop.f32.mrf.mxu0
    %v1346 = vadd.f32 %v323, %v1345
    %v1347 = vpop.f32.mrf.mxu0
    %1348 = vmatprep.mubr.f32.mxu0 0.0
    %1349 = vmatmul.mubr.f32.gmra.mxu0 %v669
    %v1350 = vpop.f32.mrf.mxu0
    %v1351 = vadd.f32 %v323, %v1350
    %v1352 = vpop.f32.mrf.mxu0
    %1353 = vmatprep.mubr.f32.mxu0 0.0
    %1354 = vmatmul.mubr.f32.gmra.mxu0 %v672
    %v1355 = vpop.f32.mrf.mxu0
    %v1356 = vadd.f32 %v323, %v1355
    %v1357 = vpop.f32.mrf.mxu0
    %1358 = vmatprep.mubr.f32.mxu0 0.0
    %1359 = vmatmul.mubr.f32.gmra.mxu0 %v675
    %v1360 = vpop.f32.mrf.mxu0
    %v1361 = vadd.f32 %v323, %v1360
    %v1362 = vpop.f32.mrf.mxu0
    %1363 = vmatprep.mubr.f32.mxu0 0.0
    %1364 = vmatmul.mubr.f32.gmra.mxu0 %v678
    %v1365 = vpop.f32.mrf.mxu0
    %v1366 = vadd.f32 %v323, %v1365
    %v1367 = vpop.f32.mrf.mxu0
    %1368 = vmatprep.mubr.f32.mxu0 0.0
    %1369 = vmatmul.mubr.f32.gmra.mxu0 %v681
    %v1370 = vpop.f32.mrf.mxu0
    %v1371 = vadd.f32 %v323, %v1370
    %v1372 = vpop.f32.mrf.mxu0
    %1373 = vmatprep.mubr.f32.mxu0 0.0
    %1374 = vmatmul.mubr.f32.gmra.mxu0 %v684
    %v1375 = vpop.f32.mrf.mxu0
    %v1376 = vadd.f32 %v323, %v1375
    %v1377 = vpop.f32.mrf.mxu0
    %1378 = vmatprep.mubr.f32.mxu0 0.0
    %1379 = vmatmul.mubr.f32.gmra.mxu0 %v687
    %v1380 = vpop.f32.mrf.mxu0
    %v1381 = vadd.f32 %v323, %v1380
    %v1382 = vpop.f32.mrf.mxu0
    %1383 = vmatprep.mubr.f32.mxu0 0.0
    %1384 = vmatmul.mubr.f32.gmra.mxu0 %v690
    %v1385 = vpop.f32.mrf.mxu0
    %v1386 = vadd.f32 %v323, %v1385
    %v1387 = vpop.f32.mrf.mxu0
    %1388 = vmatprep.mubr.f32.mxu0 0.0
    %1389 = vmatmul.mubr.f32.gmra.mxu0 %v693
    %v1390 = vpop.f32.mrf.mxu0
    %v1391 = vadd.f32 %v323, %v1390
    %v1392 = vpop.f32.mrf.mxu0
    %1393 = vmatprep.mubr.f32.mxu0 0.0
    %1394 = vmatmul.mubr.f32.gmra.mxu0 %v696
    %v1395 = vpop.f32.mrf.mxu0
    %v1396 = vadd.f32 %v323, %v1395
    %v1397 = vpop.f32.mrf.mxu0
    %1398 = vmatprep.mubr.f32.mxu0 0.0
    %1399 = vmatmul.mubr.f32.gmra.mxu0 %v699
    %v1400 = vpop.f32.mrf.mxu0
    %v1401 = vadd.f32 %v323, %v1400
    %v1402 = vpop.f32.mrf.mxu0
    %1403 = vmatprep.mubr.f32.mxu0 0.0
    %1404 = vmatmul.mubr.f32.gmra.mxu0 %v702
    %v1405 = vpop.f32.mrf.mxu0
    %v1406 = vadd.f32 %v323, %v1405
    %v1407 = vpop.f32.mrf.mxu0
    %1408 = vmatprep.mubr.f32.mxu0 0.0
    %1409 = vmatmul.mubr.f32.gmra.mxu0 %v705
    %v1410 = vpop.f32.mrf.mxu0
    %v1411 = vadd.f32 %v323, %v1410
    %v1412 = vpop.f32.mrf.mxu0
    %1413 = vmatprep.mubr.f32.mxu0 0.0
    %1414 = vmatmul.mubr.f32.gmra.mxu0 %v708
    %v1415 = vpop.f32.mrf.mxu0
    %v1416 = vadd.f32 %v323, %v1415
    %v1417 = vpop.f32.mrf.mxu0
    %1418 = vdwg.mxu0
    %v1419 = vmax.f32 %v781, 0.0
    %v1420 = vmax.f32 %v786, 0.0
    %v1421 = vmax.f32 %v791, 0.0
    %v1422 = vmax.f32 %v796, 0.0
    %v1423 = vmax.f32 %v801, 0.0
    %v1424 = vmax.f32 %v806, 0.0
    %v1425 = vmax.f32 %v811, 0.0
    %v1426 = vmax.f32 %v816, 0.0
    %v1427 = vmax.f32 %v821, 0.0
    %v1428 = vmax.f32 %v826, 0.0
    %v1429 = vmax.f32 %v831, 0.0
    %v1430 = vmax.f32 %v836, 0.0
    %v1431 = vmax.f32 %v841, 0.0
    %v1432 = vmax.f32 %v846, 0.0
    %v1433 = vmax.f32 %v851, 0.0
    %v1434 = vmax.f32 %v856, 0.0
    %v1435 = vmax.f32 %v861, 0.0
    %v1436 = vmax.f32 %v866, 0.0
    %v1437 = vmax.f32 %v871, 0.0
    %v1438 = vmax.f32 %v876, 0.0
    %v1439 = vmax.f32 %v881, 0.0
    %v1440 = vmax.f32 %v886, 0.0
    %v1441 = vmax.f32 %v891, 0.0
    %v1442 = vmax.f32 %v896, 0.0
    %v1443 = vmax.f32 %v901, 0.0
    %v1444 = vmax.f32 %v906, 0.0
    %v1445 = vmax.f32 %v911, 0.0
    %v1446 = vmax.f32 %v916, 0.0
    %v1447 = vmax.f32 %v921, 0.0
    %v1448 = vmax.f32 %v926, 0.0
    %v1449 = vmax.f32 %v931, 0.0
    %v1450 = vmax.f32 %v936, 0.0
    %v1451 = vmax.f32 %v941, 0.0
    %v1452 = vmax.f32 %v946, 0.0
    %v1453 = vmax.f32 %v951, 0.0
    %v1454 = vmax.f32 %v956, 0.0
    %v1455 = vmax.f32 %v961, 0.0
    %v1456 = vmax.f32 %v966, 0.0
    %v1457 = vmax.f32 %v971, 0.0
    %v1458 = vmax.f32 %v976, 0.0
    %v1459 = vmax.f32 %v981, 0.0
    %v1460 = vmax.f32 %v986, 0.0
    %v1461 = vmax.f32 %v991, 0.0
    %v1462 = vmax.f32 %v996, 0.0
    %v1463 = vmax.f32 %v1001, 0.0
    %v1464 = vmax.f32 %v1006, 0.0
    %v1465 = vmax.f32 %v1011, 0.0
    %v1466 = vmax.f32 %v1016, 0.0
    %v1467 = vmax.f32 %v1021, 0.0
    %v1468 = vmax.f32 %v1026, 0.0
    %v1469 = vmax.f32 %v1031, 0.0
    %v1470 = vmax.f32 %v1036, 0.0
    %v1471 = vmax.f32 %v1041, 0.0
    %v1472 = vmax.f32 %v1046, 0.0
    %v1473 = vmax.f32 %v1051, 0.0
    %v1474 = vmax.f32 %v1056, 0.0
    %v1475 = vmax.f32 %v1061, 0.0
    %v1476 = vmax.f32 %v1066, 0.0
    %v1477 = vmax.f32 %v1071, 0.0
    %v1478 = vmax.f32 %v1076, 0.0
    %v1479 = vmax.f32 %v1081, 0.0
    %v1480 = vmax.f32 %v1086, 0.0
    %v1481 = vmax.f32 %v1091, 0.0
    %v1482 = vmax.f32 %v1096, 0.0
    %v1483 = vmax.f32 %v1101, 0.0
    %v1484 = vmax.f32 %v1106, 0.0
    %v1485 = vmax.f32 %v1111, 0.0
    %v1486 = vmax.f32 %v1116, 0.0
    %v1487 = vmax.f32 %v1121, 0.0
    %v1488 = vmax.f32 %v1126, 0.0
    %v1489 = vmax.f32 %v1131, 0.0
    %v1490 = vmax.f32 %v1136, 0.0
    %v1491 = vmax.f32 %v1141, 0.0
    %v1492 = vmax.f32 %v1146, 0.0
    %v1493 = vmax.f32 %v1151, 0.0
    %v1494 = vmax.f32 %v1156, 0.0
    %v1495 = vmax.f32 %v1161, 0.0
    %v1496 = vmax.f32 %v1166, 0.0
    %v1497 = vmax.f32 %v1171, 0.0
    %v1498 = vmax.f32 %v1176, 0.0
    %v1499 = vmax.f32 %v1181, 0.0
    %v1500 = vmax.f32 %v1186, 0.0
    %v1501 = vmax.f32 %v1191, 0.0
    %v1502 = vmax.f32 %v1196, 0.0
    %v1503 = vmax.f32 %v1201, 0.0
    %v1504 = vmax.f32 %v1206, 0.0
    %v1505 = vmax.f32 %v1211, 0.0
    %v1506 = vmax.f32 %v1216, 0.0
    %v1507 = vmax.f32 %v1221, 0.0
    %v1508 = vmax.f32 %v1226, 0.0
    %v1509 = vmax.f32 %v1231, 0.0
    %v1510 = vmax.f32 %v1236, 0.0
    %v1511 = vmax.f32 %v1241, 0.0
    %v1512 = vmax.f32 %v1246, 0.0
    %v1513 = vmax.f32 %v1251, 0.0
    %v1514 = vmax.f32 %v1256, 0.0
    %v1515 = vmax.f32 %v1261, 0.0
    %v1516 = vmax.f32 %v1266, 0.0
    %v1517 = vmax.f32 %v1271, 0.0
    %v1518 = vmax.f32 %v1276, 0.0
    %v1519 = vmax.f32 %v1281, 0.0
    %v1520 = vmax.f32 %v1286, 0.0
    %v1521 = vmax.f32 %v1291, 0.0
    %v1522 = vmax.f32 %v1296, 0.0
    %v1523 = vmax.f32 %v1301, 0.0
    %v1524 = vmax.f32 %v1306, 0.0
    %v1525 = vmax.f32 %v1311, 0.0
    %v1526 = vmax.f32 %v1316, 0.0
    %v1527 = vmax.f32 %v1321, 0.0
    %v1528 = vmax.f32 %v1326, 0.0
    %v1529 = vmax.f32 %v1331, 0.0
    %v1530 = vmax.f32 %v1336, 0.0
    %v1531 = vmax.f32 %v1341, 0.0
    %v1532 = vmax.f32 %v1346, 0.0
    %v1533 = vmax.f32 %v1351, 0.0
    %v1534 = vmax.f32 %v1356, 0.0
    %v1535 = vmax.f32 %v1361, 0.0
    %v1536 = vmax.f32 %v1366, 0.0
    %v1537 = vmax.f32 %v1371, 0.0
    %v1538 = vmax.f32 %v1376, 0.0
    %v1539 = vmax.f32 %v1381, 0.0
    %v1540 = vmax.f32 %v1386, 0.0
    %v1541 = vmax.f32 %v1391, 0.0
    %v1542 = vmax.f32 %v1396, 0.0
    %v1543 = vmax.f32 %v1401, 0.0
    %v1544 = vmax.f32 %v1406, 0.0
    %v1545 = vmax.f32 %v1411, 0.0
    %v1546 = vmax.f32 %v1416, 0.0
    %v1547 = vld [vmem:[%s3] sm:$0xff]
    %v1548 = vld [vmem:[%s3 + $0x8] sm:$0xff]
    %v1549 = vld [vmem:[%s4] sm:$0x1]
    %v1551 = vlaneseq
    %v1552 = vshrl.u32 %v1551, 7
    %v1553 = vsub.s32 0, %v1552
    %v1554 = vrot.slane %v1549, %v1553
    %vm1556 = vcmask 130048
    %v1558 = vsel %vm1556, %v1419, 0
    %v1561 = vsel %vm1556, %v1420, 0
    %v1564 = vsel %vm1556, %v1421, 0
    %v1567 = vsel %vm1556, %v1422, 0
    %v1570 = vsel %vm1556, %v1423, 0
    %v1573 = vsel %vm1556, %v1424, 0
    %v1576 = vsel %vm1556, %v1425, 0
    %v1579 = vsel %vm1556, %v1426, 0
    %v1582 = vsel %vm1556, %v1427, 0
    %v1585 = vsel %vm1556, %v1428, 0
    %v1588 = vsel %vm1556, %v1429, 0
    %v1591 = vsel %vm1556, %v1430, 0
    %v1594 = vsel %vm1556, %v1431, 0
    %v1597 = vsel %vm1556, %v1432, 0
    %v1600 = vsel %vm1556, %v1433, 0
    %v1603 = vsel %vm1556, %v1434, 0
    %v1606 = vsel %vm1556, %v1435, 0
    %v1609 = vsel %vm1556, %v1436, 0
    %v1612 = vsel %vm1556, %v1437, 0
    %v1615 = vsel %vm1556, %v1438, 0
    %v1618 = vsel %vm1556, %v1439, 0
    %v1621 = vsel %vm1556, %v1440, 0
    %v1624 = vsel %vm1556, %v1441, 0
    %v1627 = vsel %vm1556, %v1442, 0
    %v1630 = vsel %vm1556, %v1443, 0
    %v1633 = vsel %vm1556, %v1444, 0
    %v1636 = vsel %vm1556, %v1445, 0
    %v1639 = vsel %vm1556, %v1446, 0
    %v1642 = vsel %vm1556, %v1447, 0
    %v1645 = vsel %vm1556, %v1448, 0
    %v1648 = vsel %vm1556, %v1449, 0
    %v1651 = vsel %vm1556, %v1450, 0
    %v1654 = vsel %vm1556, %v1451, 0
    %v1657 = vsel %vm1556, %v1452, 0
    %v1660 = vsel %vm1556, %v1453, 0
    %v1663 = vsel %vm1556, %v1454, 0
    %v1666 = vsel %vm1556, %v1455, 0
    %v1669 = vsel %vm1556, %v1456, 0
    %v1672 = vsel %vm1556, %v1457, 0
    %v1675 = vsel %vm1556, %v1458, 0
    %v1678 = vsel %vm1556, %v1459, 0
    %v1681 = vsel %vm1556, %v1460, 0
    %v1684 = vsel %vm1556, %v1461, 0
    %v1687 = vsel %vm1556, %v1462, 0
    %v1690 = vsel %vm1556, %v1463, 0
    %v1693 = vsel %vm1556, %v1464, 0
    %v1696 = vsel %vm1556, %v1465, 0
    %v1699 = vsel %vm1556, %v1466, 0
    %v1702 = vsel %vm1556, %v1467, 0
    %v1705 = vsel %vm1556, %v1468, 0
    %v1708 = vsel %vm1556, %v1469, 0
    %v1711 = vsel %vm1556, %v1470, 0
    %v1714 = vsel %vm1556, %v1471, 0
    %v1717 = vsel %vm1556, %v1472, 0
    %v1720 = vsel %vm1556, %v1473, 0
    %v1723 = vsel %vm1556, %v1474, 0
    %v1726 = vsel %vm1556, %v1475, 0
    %v1729 = vsel %vm1556, %v1476, 0
    %v1732 = vsel %vm1556, %v1477, 0
    %v1735 = vsel %vm1556, %v1478, 0
    %v1738 = vsel %vm1556, %v1479, 0
    %v1741 = vsel %vm1556, %v1480, 0
    %v1744 = vsel %vm1556, %v1481, 0
    %v1747 = vsel %vm1556, %v1482, 0
    %v1750 = vsel %vm1556, %v1483, 0
    %v1753 = vsel %vm1556, %v1484, 0
    %v1756 = vsel %vm1556, %v1485, 0
    %v1759 = vsel %vm1556, %v1486, 0
    %v1762 = vsel %vm1556, %v1487, 0
    %v1765 = vsel %vm1556, %v1488, 0
    %v1768 = vsel %vm1556, %v1489, 0
    %v1771 = vsel %vm1556, %v1490, 0
    %v1774 = vsel %vm1556, %v1491, 0
    %v1777 = vsel %vm1556, %v1492, 0
    %v1780 = vsel %vm1556, %v1493, 0
    %v1783 = vsel %vm1556, %v1494, 0
    %v1786 = vsel %vm1556, %v1495, 0
    %v1789 = vsel %vm1556, %v1496, 0
    %v1792 = vsel %vm1556, %v1497, 0
    %v1795 = vsel %vm1556, %v1498, 0
    %v1798 = vsel %vm1556, %v1499, 0
    %v1801 = vsel %vm1556, %v1500, 0
    %v1804 = vsel %vm1556, %v1501, 0
    %v1807 = vsel %vm1556, %v1502, 0
    %v1810 = vsel %vm1556, %v1503, 0
    %v1813 = vsel %vm1556, %v1504, 0
    %v1816 = vsel %vm1556, %v1505, 0
    %v1819 = vsel %vm1556, %v1506, 0
    %v1822 = vsel %vm1556, %v1507, 0
    %v1825 = vsel %vm1556, %v1508, 0
    %v1828 = vsel %vm1556, %v1509, 0
    %v1831 = vsel %vm1556, %v1510, 0
    %v1834 = vsel %vm1556, %v1511, 0
    %v1837 = vsel %vm1556, %v1512, 0
    %v1840 = vsel %vm1556, %v1513, 0
    %v1843 = vsel %vm1556, %v1514, 0
    %v1846 = vsel %vm1556, %v1515, 0
    %v1849 = vsel %vm1556, %v1516, 0
    %v1852 = vsel %vm1556, %v1517, 0
    %v1855 = vsel %vm1556, %v1518, 0
    %v1858 = vsel %vm1556, %v1519, 0
    %v1861 = vsel %vm1556, %v1520, 0
    %v1864 = vsel %vm1556, %v1521, 0
    %v1867 = vsel %vm1556, %v1522, 0
    %v1870 = vsel %vm1556, %v1523, 0
    %v1873 = vsel %vm1556, %v1524, 0
    %v1876 = vsel %vm1556, %v1525, 0
    %v1879 = vsel %vm1556, %v1526, 0
    %v1882 = vsel %vm1556, %v1527, 0
    %v1885 = vsel %vm1556, %v1528, 0
    %v1888 = vsel %vm1556, %v1529, 0
    %v1891 = vsel %vm1556, %v1530, 0
    %v1894 = vsel %vm1556, %v1531, 0
    %v1897 = vsel %vm1556, %v1532, 0
    %v1900 = vsel %vm1556, %v1533, 0
    %v1903 = vsel %vm1556, %v1534, 0
    %v1906 = vsel %vm1556, %v1535, 0
    %v1909 = vsel %vm1556, %v1536, 0
    %v1912 = vsel %vm1556, %v1537, 0
    %v1915 = vsel %vm1556, %v1538, 0
    %v1918 = vsel %vm1556, %v1539, 0
    %v1921 = vsel %vm1556, %v1540, 0
    %v1924 = vsel %vm1556, %v1541, 0
    %v1927 = vsel %vm1556, %v1542, 0
    %v1930 = vsel %vm1556, %v1543, 0
    %v1933 = vsel %vm1556, %v1544, 0
    %v1936 = vsel %vm1556, %v1545, 0
    %v1939 = vsel %vm1556, %v1546, 0
    %1941 = vmatprep.subr.mxu0 0.0
    %1942 = vmatpush1.msra.mxu0 0.0
    %1943 = vmatprep.subr.mxu0 0.0
    %1944 = vmatpush1.msra.mxu0 0.0
    %1945 = vmatprep.subr.mxu0 0.0
    %1946 = vmatpush1.msra.mxu0 0.0
    %1947 = vmatprep.subr.mxu0 0.0
    %1948 = vmatpush1.msra.mxu0 0.0
    %1949 = vmatprep.subr.mxu0 0.0
    %1950 = vmatpush1.msra.mxu0 0.0
    %1951 = vmatprep.subr.mxu0 0.0
    %1952 = vmatpush1.msra.mxu0 0.0
    %1953 = vmatprep.subr.mxu0 0.0
    %1954 = vmatpush1.msra.mxu0 0.0
    %1955 = vmatprep.subr.mxu0 0.0
    %1956 = vmatpush1.msra.mxu0 0.0
    %1957 = vmatprep.subr.mxu0 0.0
    %1958 = vmatpush1.msra.mxu0 0.0
    %1959 = vmatprep.subr.mxu0 0.0
    %1960 = vmatpush1.msra.mxu0 0.0
    %1961 = vmatprep.subr.mxu0 0.0
    %1962 = vmatpush1.msra.mxu0 0.0
    %1963 = vmatprep.subr.mxu0 0.0
    %1964 = vmatpush1.msra.mxu0 0.0
    %1965 = vmatprep.subr.mxu0 0.0
    %1966 = vmatpush1.msra.mxu0 0.0
    %1967 = vmatprep.subr.mxu0 0.0
    %1968 = vmatpush1.msra.mxu0 0.0
    %1969 = vmatprep.subr.mxu0 0.0
    %1970 = vmatpush1.msra.mxu0 %v1548
    %1971 = vmatprep.subr.mxu0 0.0
    %1972 = vmatpush1.msra.mxu0 %v1547
    %1973 = vmatprep.subr.mxu0 0.0
    %1974 = vmatpush2.msra.mxu0 0.0
    %1975 = vmatprep.subr.mxu0 0.0
    %1976 = vmatpush2.msra.mxu0 0.0
    %1977 = vmatprep.subr.mxu0 0.0
    %1978 = vmatpush2.msra.mxu0 0.0
    %1979 = vmatprep.subr.mxu0 0.0
    %1980 = vmatpush2.msra.mxu0 0.0
    %1981 = vmatprep.subr.mxu0 0.0
    %1982 = vmatpush2.msra.mxu0 0.0
    %1983 = vmatprep.subr.mxu0 0.0
    %1984 = vmatpush2.msra.mxu0 0.0
    %1985 = vmatprep.subr.mxu0 0.0
    %1986 = vmatpush2.msra.mxu0 0.0
    %1987 = vmatprep.subr.mxu0 0.0
    %1988 = vmatpush2.msra.mxu0 0.0
    %1989 = vmatprep.subr.mxu0 0.0
    %1990 = vmatpush2.msra.mxu0 0.0
    %1991 = vmatprep.subr.mxu0 0.0
    %1992 = vmatpush2.msra.mxu0 0.0
    %1993 = vmatprep.subr.mxu0 0.0
    %1994 = vmatpush2.msra.mxu0 0.0
    %1995 = vmatprep.subr.mxu0 0.0
    %1996 = vmatpush2.msra.mxu0 0.0
    %1997 = vmatprep.subr.mxu0 0.0
    %1998 = vmatpush2.msra.mxu0 0.0
    %1999 = vmatprep.subr.mxu0 0.0
    %2000 = vmatpush2.msra.mxu0 0.0
    %2001 = vmatprep.subr.mxu0 0.0
    %2002 = vmatpush2.msra.mxu0 0.0
    %2003 = vmatprep.subr.mxu0 0.0
    %2004 = vmatpush2.msra.mxu0 0.0
    %2005 = vmatprep.mubr.f32.mxu0 0.0
    %2006 = vmatmul.mubr.f32.gmra.mxu0 %v1558
    %v2007 = vpop.f32.mrf.mxu0
    %v2008 = vadd.f32 %v1554, %v2007
    %v2009 = vpop.f32.mrf.mxu0
    %2010 = vmatprep.mubr.f32.mxu0 0.0
    %2011 = vmatmul.mubr.f32.gmra.mxu0 %v1561
    %v2012 = vpop.f32.mrf.mxu0
    %v2013 = vadd.f32 %v1554, %v2012
    %v2014 = vpop.f32.mrf.mxu0
    %2015 = vmatprep.mubr.f32.mxu0 0.0
    %2016 = vmatmul.mubr.f32.gmra.mxu0 %v1564
    %v2017 = vpop.f32.mrf.mxu0
    %v2018 = vadd.f32 %v1554, %v2017
    %v2019 = vpop.f32.mrf.mxu0
    %2020 = vmatprep.mubr.f32.mxu0 0.0
    %2021 = vmatmul.mubr.f32.gmra.mxu0 %v1567
    %v2022 = vpop.f32.mrf.mxu0
    %v2023 = vadd.f32 %v1554, %v2022
    %v2024 = vpop.f32.mrf.mxu0
    %2025 = vmatprep.mubr.f32.mxu0 0.0
    %2026 = vmatmul.mubr.f32.gmra.mxu0 %v1570
    %v2027 = vpop.f32.mrf.mxu0
    %v2028 = vadd.f32 %v1554, %v2027
    %v2029 = vpop.f32.mrf.mxu0
    %2030 = vmatprep.mubr.f32.mxu0 0.0
    %2031 = vmatmul.mubr.f32.gmra.mxu0 %v1573
    %v2032 = vpop.f32.mrf.mxu0
    %v2033 = vadd.f32 %v1554, %v2032
    %v2034 = vpop.f32.mrf.mxu0
    %2035 = vmatprep.mubr.f32.mxu0 0.0
    %2036 = vmatmul.mubr.f32.gmra.mxu0 %v1576
    %v2037 = vpop.f32.mrf.mxu0
    %v2038 = vadd.f32 %v1554, %v2037
    %v2039 = vpop.f32.mrf.mxu0
    %2040 = vmatprep.mubr.f32.mxu0 0.0
    %2041 = vmatmul.mubr.f32.gmra.mxu0 %v1579
    %v2042 = vpop.f32.mrf.mxu0
    %v2043 = vadd.f32 %v1554, %v2042
    %v2044 = vpop.f32.mrf.mxu0
    %2045 = vmatprep.mubr.f32.mxu0 0.0
    %2046 = vmatmul.mubr.f32.gmra.mxu0 %v1582
    %v2047 = vpop.f32.mrf.mxu0
    %v2048 = vadd.f32 %v1554, %v2047
    %v2049 = vpop.f32.mrf.mxu0
    %2050 = vmatprep.mubr.f32.mxu0 0.0
    %2051 = vmatmul.mubr.f32.gmra.mxu0 %v1585
    %v2052 = vpop.f32.mrf.mxu0
    %v2053 = vadd.f32 %v1554, %v2052
    %v2054 = vpop.f32.mrf.mxu0
    %2055 = vmatprep.mubr.f32.mxu0 0.0
    %2056 = vmatmul.mubr.f32.gmra.mxu0 %v1588
    %v2057 = vpop.f32.mrf.mxu0
    %v2058 = vadd.f32 %v1554, %v2057
    %v2059 = vpop.f32.mrf.mxu0
    %2060 = vmatprep.mubr.f32.mxu0 0.0
    %2061 = vmatmul.mubr.f32.gmra.mxu0 %v1591
    %v2062 = vpop.f32.mrf.mxu0
    %v2063 = vadd.f32 %v1554, %v2062
    %v2064 = vpop.f32.mrf.mxu0
    %2065 = vmatprep.mubr.f32.mxu0 0.0
    %2066 = vmatmul.mubr.f32.gmra.mxu0 %v1594
    %v2067 = vpop.f32.mrf.mxu0
    %v2068 = vadd.f32 %v1554, %v2067
    %v2069 = vpop.f32.mrf.mxu0
    %2070 = vmatprep.mubr.f32.mxu0 0.0
    %2071 = vmatmul.mubr.f32.gmra.mxu0 %v1597
    %v2072 = vpop.f32.mrf.mxu0
    %v2073 = vadd.f32 %v1554, %v2072
    %v2074 = vpop.f32.mrf.mxu0
    %2075 = vmatprep.mubr.f32.mxu0 0.0
    %2076 = vmatmul.mubr.f32.gmra.mxu0 %v1600
    %v2077 = vpop.f32.mrf.mxu0
    %v2078 = vadd.f32 %v1554, %v2077
    %v2079 = vpop.f32.mrf.mxu0
    %2080 = vmatprep.mubr.f32.mxu0 0.0
    %2081 = vmatmul.mubr.f32.gmra.mxu0 %v1603
    %v2082 = vpop.f32.mrf.mxu0
    %v2083 = vadd.f32 %v1554, %v2082
    %v2084 = vpop.f32.mrf.mxu0
    %2085 = vmatprep.mubr.f32.mxu0 0.0
    %2086 = vmatmul.mubr.f32.gmra.mxu0 %v1606
    %v2087 = vpop.f32.mrf.mxu0
    %v2088 = vadd.f32 %v1554, %v2087
    %v2089 = vpop.f32.mrf.mxu0
    %2090 = vmatprep.mubr.f32.mxu0 0.0
    %2091 = vmatmul.mubr.f32.gmra.mxu0 %v1609
    %v2092 = vpop.f32.mrf.mxu0
    %v2093 = vadd.f32 %v1554, %v2092
    %v2094 = vpop.f32.mrf.mxu0
    %2095 = vmatprep.mubr.f32.mxu0 0.0
    %2096 = vmatmul.mubr.f32.gmra.mxu0 %v1612
    %v2097 = vpop.f32.mrf.mxu0
    %v2098 = vadd.f32 %v1554, %v2097
    %v2099 = vpop.f32.mrf.mxu0
    %2100 = vmatprep.mubr.f32.mxu0 0.0
    %2101 = vmatmul.mubr.f32.gmra.mxu0 %v1615
    %v2102 = vpop.f32.mrf.mxu0
    %v2103 = vadd.f32 %v1554, %v2102
    %v2104 = vpop.f32.mrf.mxu0
    %2105 = vmatprep.mubr.f32.mxu0 0.0
    %2106 = vmatmul.mubr.f32.gmra.mxu0 %v1618
    %v2107 = vpop.f32.mrf.mxu0
    %v2108 = vadd.f32 %v1554, %v2107
    %v2109 = vpop.f32.mrf.mxu0
    %2110 = vmatprep.mubr.f32.mxu0 0.0
    %2111 = vmatmul.mubr.f32.gmra.mxu0 %v1621
    %v2112 = vpop.f32.mrf.mxu0
    %v2113 = vadd.f32 %v1554, %v2112
    %v2114 = vpop.f32.mrf.mxu0
    %2115 = vmatprep.mubr.f32.mxu0 0.0
    %2116 = vmatmul.mubr.f32.gmra.mxu0 %v1624
    %v2117 = vpop.f32.mrf.mxu0
    %v2118 = vadd.f32 %v1554, %v2117
    %v2119 = vpop.f32.mrf.mxu0
    %2120 = vmatprep.mubr.f32.mxu0 0.0
    %2121 = vmatmul.mubr.f32.gmra.mxu0 %v1627
    %v2122 = vpop.f32.mrf.mxu0
    %v2123 = vadd.f32 %v1554, %v2122
    %v2124 = vpop.f32.mrf.mxu0
    %2125 = vmatprep.mubr.f32.mxu0 0.0
    %2126 = vmatmul.mubr.f32.gmra.mxu0 %v1630
    %v2127 = vpop.f32.mrf.mxu0
    %v2128 = vadd.f32 %v1554, %v2127
    %v2129 = vpop.f32.mrf.mxu0
    %2130 = vmatprep.mubr.f32.mxu0 0.0
    %2131 = vmatmul.mubr.f32.gmra.mxu0 %v1633
    %v2132 = vpop.f32.mrf.mxu0
    %v2133 = vadd.f32 %v1554, %v2132
    %v2134 = vpop.f32.mrf.mxu0
    %2135 = vmatprep.mubr.f32.mxu0 0.0
    %2136 = vmatmul.mubr.f32.gmra.mxu0 %v1636
    %v2137 = vpop.f32.mrf.mxu0
    %v2138 = vadd.f32 %v1554, %v2137
    %v2139 = vpop.f32.mrf.mxu0
    %2140 = vmatprep.mubr.f32.mxu0 0.0
    %2141 = vmatmul.mubr.f32.gmra.mxu0 %v1639
    %v2142 = vpop.f32.mrf.mxu0
    %v2143 = vadd.f32 %v1554, %v2142
    %v2144 = vpop.f32.mrf.mxu0
    %2145 = vmatprep.mubr.f32.mxu0 0.0
    %2146 = vmatmul.mubr.f32.gmra.mxu0 %v1642
    %v2147 = vpop.f32.mrf.mxu0
    %v2148 = vadd.f32 %v1554, %v2147
    %v2149 = vpop.f32.mrf.mxu0
    %2150 = vmatprep.mubr.f32.mxu0 0.0
    %2151 = vmatmul.mubr.f32.gmra.mxu0 %v1645
    %v2152 = vpop.f32.mrf.mxu0
    %v2153 = vadd.f32 %v1554, %v2152
    %v2154 = vpop.f32.mrf.mxu0
    %2155 = vmatprep.mubr.f32.mxu0 0.0
    %2156 = vmatmul.mubr.f32.gmra.mxu0 %v1648
    %v2157 = vpop.f32.mrf.mxu0
    %v2158 = vadd.f32 %v1554, %v2157
    %v2159 = vpop.f32.mrf.mxu0
    %2160 = vmatprep.mubr.f32.mxu0 0.0
    %2161 = vmatmul.mubr.f32.gmra.mxu0 %v1651
    %v2162 = vpop.f32.mrf.mxu0
    %v2163 = vadd.f32 %v1554, %v2162
    %v2164 = vpop.f32.mrf.mxu0
    %2165 = vmatprep.mubr.f32.mxu0 0.0
    %2166 = vmatmul.mubr.f32.gmra.mxu0 %v1654
    %v2167 = vpop.f32.mrf.mxu0
    %v2168 = vadd.f32 %v1554, %v2167
    %v2169 = vpop.f32.mrf.mxu0
    %2170 = vmatprep.mubr.f32.mxu0 0.0
    %2171 = vmatmul.mubr.f32.gmra.mxu0 %v1657
    %v2172 = vpop.f32.mrf.mxu0
    %v2173 = vadd.f32 %v1554, %v2172
    %v2174 = vpop.f32.mrf.mxu0
    %2175 = vmatprep.mubr.f32.mxu0 0.0
    %2176 = vmatmul.mubr.f32.gmra.mxu0 %v1660
    %v2177 = vpop.f32.mrf.mxu0
    %v2178 = vadd.f32 %v1554, %v2177
    %v2179 = vpop.f32.mrf.mxu0
    %2180 = vmatprep.mubr.f32.mxu0 0.0
    %2181 = vmatmul.mubr.f32.gmra.mxu0 %v1663
    %v2182 = vpop.f32.mrf.mxu0
    %v2183 = vadd.f32 %v1554, %v2182
    %v2184 = vpop.f32.mrf.mxu0
    %2185 = vmatprep.mubr.f32.mxu0 0.0
    %2186 = vmatmul.mubr.f32.gmra.mxu0 %v1666
    %v2187 = vpop.f32.mrf.mxu0
    %v2188 = vadd.f32 %v1554, %v2187
    %v2189 = vpop.f32.mrf.mxu0
    %2190 = vmatprep.mubr.f32.mxu0 0.0
    %2191 = vmatmul.mubr.f32.gmra.mxu0 %v1669
    %v2192 = vpop.f32.mrf.mxu0
    %v2193 = vadd.f32 %v1554, %v2192
    %v2194 = vpop.f32.mrf.mxu0
    %2195 = vmatprep.mubr.f32.mxu0 0.0
    %2196 = vmatmul.mubr.f32.gmra.mxu0 %v1672
    %v2197 = vpop.f32.mrf.mxu0
    %v2198 = vadd.f32 %v1554, %v2197
    %v2199 = vpop.f32.mrf.mxu0
    %2200 = vmatprep.mubr.f32.mxu0 0.0
    %2201 = vmatmul.mubr.f32.gmra.mxu0 %v1675
    %v2202 = vpop.f32.mrf.mxu0
    %v2203 = vadd.f32 %v1554, %v2202
    %v2204 = vpop.f32.mrf.mxu0
    %2205 = vmatprep.mubr.f32.mxu0 0.0
    %2206 = vmatmul.mubr.f32.gmra.mxu0 %v1678
    %v2207 = vpop.f32.mrf.mxu0
    %v2208 = vadd.f32 %v1554, %v2207
    %v2209 = vpop.f32.mrf.mxu0
    %2210 = vmatprep.mubr.f32.mxu0 0.0
    %2211 = vmatmul.mubr.f32.gmra.mxu0 %v1681
    %v2212 = vpop.f32.mrf.mxu0
    %v2213 = vadd.f32 %v1554, %v2212
    %v2214 = vpop.f32.mrf.mxu0
    %2215 = vmatprep.mubr.f32.mxu0 0.0
    %2216 = vmatmul.mubr.f32.gmra.mxu0 %v1684
    %v2217 = vpop.f32.mrf.mxu0
    %v2218 = vadd.f32 %v1554, %v2217
    %v2219 = vpop.f32.mrf.mxu0
    %2220 = vmatprep.mubr.f32.mxu0 0.0
    %2221 = vmatmul.mubr.f32.gmra.mxu0 %v1687
    %v2222 = vpop.f32.mrf.mxu0
    %v2223 = vadd.f32 %v1554, %v2222
    %v2224 = vpop.f32.mrf.mxu0
    %2225 = vmatprep.mubr.f32.mxu0 0.0
    %2226 = vmatmul.mubr.f32.gmra.mxu0 %v1690
    %v2227 = vpop.f32.mrf.mxu0
    %v2228 = vadd.f32 %v1554, %v2227
    %v2229 = vpop.f32.mrf.mxu0
    %2230 = vmatprep.mubr.f32.mxu0 0.0
    %2231 = vmatmul.mubr.f32.gmra.mxu0 %v1693
    %v2232 = vpop.f32.mrf.mxu0
    %v2233 = vadd.f32 %v1554, %v2232
    %v2234 = vpop.f32.mrf.mxu0
    %2235 = vmatprep.mubr.f32.mxu0 0.0
    %2236 = vmatmul.mubr.f32.gmra.mxu0 %v1696
    %v2237 = vpop.f32.mrf.mxu0
    %v2238 = vadd.f32 %v1554, %v2237
    %v2239 = vpop.f32.mrf.mxu0
    %2240 = vmatprep.mubr.f32.mxu0 0.0
    %2241 = vmatmul.mubr.f32.gmra.mxu0 %v1699
    %v2242 = vpop.f32.mrf.mxu0
    %v2243 = vadd.f32 %v1554, %v2242
    %v2244 = vpop.f32.mrf.mxu0
    %2245 = vmatprep.mubr.f32.mxu0 0.0
    %2246 = vmatmul.mubr.f32.gmra.mxu0 %v1702
    %v2247 = vpop.f32.mrf.mxu0
    %v2248 = vadd.f32 %v1554, %v2247
    %v2249 = vpop.f32.mrf.mxu0
    %2250 = vmatprep.mubr.f32.mxu0 0.0
    %2251 = vmatmul.mubr.f32.gmra.mxu0 %v1705
    %v2252 = vpop.f32.mrf.mxu0
    %v2253 = vadd.f32 %v1554, %v2252
    %v2254 = vpop.f32.mrf.mxu0
    %2255 = vmatprep.mubr.f32.mxu0 0.0
    %2256 = vmatmul.mubr.f32.gmra.mxu0 %v1708
    %v2257 = vpop.f32.mrf.mxu0
    %v2258 = vadd.f32 %v1554, %v2257
    %v2259 = vpop.f32.mrf.mxu0
    %2260 = vmatprep.mubr.f32.mxu0 0.0
    %2261 = vmatmul.mubr.f32.gmra.mxu0 %v1711
    %v2262 = vpop.f32.mrf.mxu0
    %v2263 = vadd.f32 %v1554, %v2262
    %v2264 = vpop.f32.mrf.mxu0
    %2265 = vmatprep.mubr.f32.mxu0 0.0
    %2266 = vmatmul.mubr.f32.gmra.mxu0 %v1714
    %v2267 = vpop.f32.mrf.mxu0
    %v2268 = vadd.f32 %v1554, %v2267
    %v2269 = vpop.f32.mrf.mxu0
    %2270 = vmatprep.mubr.f32.mxu0 0.0
    %2271 = vmatmul.mubr.f32.gmra.mxu0 %v1717
    %v2272 = vpop.f32.mrf.mxu0
    %v2273 = vadd.f32 %v1554, %v2272
    %v2274 = vpop.f32.mrf.mxu0
    %2275 = vmatprep.mubr.f32.mxu0 0.0
    %2276 = vmatmul.mubr.f32.gmra.mxu0 %v1720
    %v2277 = vpop.f32.mrf.mxu0
    %v2278 = vadd.f32 %v1554, %v2277
    %v2279 = vpop.f32.mrf.mxu0
    %2280 = vmatprep.mubr.f32.mxu0 0.0
    %2281 = vmatmul.mubr.f32.gmra.mxu0 %v1723
    %v2282 = vpop.f32.mrf.mxu0
    %v2283 = vadd.f32 %v1554, %v2282
    %v2284 = vpop.f32.mrf.mxu0
    %2285 = vmatprep.mubr.f32.mxu0 0.0
    %2286 = vmatmul.mubr.f32.gmra.mxu0 %v1726
    %v2287 = vpop.f32.mrf.mxu0
    %v2288 = vadd.f32 %v1554, %v2287
    %v2289 = vpop.f32.mrf.mxu0
    %2290 = vmatprep.mubr.f32.mxu0 0.0
    %2291 = vmatmul.mubr.f32.gmra.mxu0 %v1729
    %v2292 = vpop.f32.mrf.mxu0
    %v2293 = vadd.f32 %v1554, %v2292
    %v2294 = vpop.f32.mrf.mxu0
    %2295 = vmatprep.mubr.f32.mxu0 0.0
    %2296 = vmatmul.mubr.f32.gmra.mxu0 %v1732
    %v2297 = vpop.f32.mrf.mxu0
    %v2298 = vadd.f32 %v1554, %v2297
    %v2299 = vpop.f32.mrf.mxu0
    %2300 = vmatprep.mubr.f32.mxu0 0.0
    %2301 = vmatmul.mubr.f32.gmra.mxu0 %v1735
    %v2302 = vpop.f32.mrf.mxu0
    %v2303 = vadd.f32 %v1554, %v2302
    %v2304 = vpop.f32.mrf.mxu0
    %2305 = vmatprep.mubr.f32.mxu0 0.0
    %2306 = vmatmul.mubr.f32.gmra.mxu0 %v1738
    %v2307 = vpop.f32.mrf.mxu0
    %v2308 = vadd.f32 %v1554, %v2307
    %v2309 = vpop.f32.mrf.mxu0
    %2310 = vmatprep.mubr.f32.mxu0 0.0
    %2311 = vmatmul.mubr.f32.gmra.mxu0 %v1741
    %v2312 = vpop.f32.mrf.mxu0
    %v2313 = vadd.f32 %v1554, %v2312
    %v2314 = vpop.f32.mrf.mxu0
    %2315 = vmatprep.mubr.f32.mxu0 0.0
    %2316 = vmatmul.mubr.f32.gmra.mxu0 %v1744
    %v2317 = vpop.f32.mrf.mxu0
    %v2318 = vadd.f32 %v1554, %v2317
    %v2319 = vpop.f32.mrf.mxu0
    %2320 = vmatprep.mubr.f32.mxu0 0.0
    %2321 = vmatmul.mubr.f32.gmra.mxu0 %v1747
    %v2322 = vpop.f32.mrf.mxu0
    %v2323 = vadd.f32 %v1554, %v2322
    %v2324 = vpop.f32.mrf.mxu0
    %2325 = vmatprep.mubr.f32.mxu0 0.0
    %2326 = vmatmul.mubr.f32.gmra.mxu0 %v1750
    %v2327 = vpop.f32.mrf.mxu0
    %v2328 = vadd.f32 %v1554, %v2327
    %v2329 = vpop.f32.mrf.mxu0
    %2330 = vmatprep.mubr.f32.mxu0 0.0
    %2331 = vmatmul.mubr.f32.gmra.mxu0 %v1753
    %v2332 = vpop.f32.mrf.mxu0
    %v2333 = vadd.f32 %v1554, %v2332
    %v2334 = vpop.f32.mrf.mxu0
    %2335 = vmatprep.mubr.f32.mxu0 0.0
    %2336 = vmatmul.mubr.f32.gmra.mxu0 %v1756
    %v2337 = vpop.f32.mrf.mxu0
    %v2338 = vadd.f32 %v1554, %v2337
    %v2339 = vpop.f32.mrf.mxu0
    %2340 = vmatprep.mubr.f32.mxu0 0.0
    %2341 = vmatmul.mubr.f32.gmra.mxu0 %v1759
    %v2342 = vpop.f32.mrf.mxu0
    %v2343 = vadd.f32 %v1554, %v2342
    %v2344 = vpop.f32.mrf.mxu0
    %2345 = vmatprep.mubr.f32.mxu0 0.0
    %2346 = vmatmul.mubr.f32.gmra.mxu0 %v1762
    %v2347 = vpop.f32.mrf.mxu0
    %v2348 = vadd.f32 %v1554, %v2347
    %v2349 = vpop.f32.mrf.mxu0
    %2350 = vmatprep.mubr.f32.mxu0 0.0
    %2351 = vmatmul.mubr.f32.gmra.mxu0 %v1765
    %v2352 = vpop.f32.mrf.mxu0
    %v2353 = vadd.f32 %v1554, %v2352
    %v2354 = vpop.f32.mrf.mxu0
    %2355 = vmatprep.mubr.f32.mxu0 0.0
    %2356 = vmatmul.mubr.f32.gmra.mxu0 %v1768
    %v2357 = vpop.f32.mrf.mxu0
    %v2358 = vadd.f32 %v1554, %v2357
    %v2359 = vpop.f32.mrf.mxu0
    %2360 = vmatprep.mubr.f32.mxu0 0.0
    %2361 = vmatmul.mubr.f32.gmra.mxu0 %v1771
    %v2362 = vpop.f32.mrf.mxu0
    %v2363 = vadd.f32 %v1554, %v2362
    %v2364 = vpop.f32.mrf.mxu0
    %2365 = vmatprep.mubr.f32.mxu0 0.0
    %2366 = vmatmul.mubr.f32.gmra.mxu0 %v1774
    %v2367 = vpop.f32.mrf.mxu0
    %v2368 = vadd.f32 %v1554, %v2367
    %v2369 = vpop.f32.mrf.mxu0
    %2370 = vmatprep.mubr.f32.mxu0 0.0
    %2371 = vmatmul.mubr.f32.gmra.mxu0 %v1777
    %v2372 = vpop.f32.mrf.mxu0
    %v2373 = vadd.f32 %v1554, %v2372
    %v2374 = vpop.f32.mrf.mxu0
    %2375 = vmatprep.mubr.f32.mxu0 0.0
    %2376 = vmatmul.mubr.f32.gmra.mxu0 %v1780
    %v2377 = vpop.f32.mrf.mxu0
    %v2378 = vadd.f32 %v1554, %v2377
    %v2379 = vpop.f32.mrf.mxu0
    %2380 = vmatprep.mubr.f32.mxu0 0.0
    %2381 = vmatmul.mubr.f32.gmra.mxu0 %v1783
    %v2382 = vpop.f32.mrf.mxu0
    %v2383 = vadd.f32 %v1554, %v2382
    %v2384 = vpop.f32.mrf.mxu0
    %2385 = vmatprep.mubr.f32.mxu0 0.0
    %2386 = vmatmul.mubr.f32.gmra.mxu0 %v1786
    %v2387 = vpop.f32.mrf.mxu0
    %v2388 = vadd.f32 %v1554, %v2387
    %v2389 = vpop.f32.mrf.mxu0
    %2390 = vmatprep.mubr.f32.mxu0 0.0
    %2391 = vmatmul.mubr.f32.gmra.mxu0 %v1789
    %v2392 = vpop.f32.mrf.mxu0
    %v2393 = vadd.f32 %v1554, %v2392
    %v2394 = vpop.f32.mrf.mxu0
    %2395 = vmatprep.mubr.f32.mxu0 0.0
    %2396 = vmatmul.mubr.f32.gmra.mxu0 %v1792
    %v2397 = vpop.f32.mrf.mxu0
    %v2398 = vadd.f32 %v1554, %v2397
    %v2399 = vpop.f32.mrf.mxu0
    %2400 = vmatprep.mubr.f32.mxu0 0.0
    %2401 = vmatmul.mubr.f32.gmra.mxu0 %v1795
    %v2402 = vpop.f32.mrf.mxu0
    %v2403 = vadd.f32 %v1554, %v2402
    %v2404 = vpop.f32.mrf.mxu0
    %2405 = vmatprep.mubr.f32.mxu0 0.0
    %2406 = vmatmul.mubr.f32.gmra.mxu0 %v1798
    %v2407 = vpop.f32.mrf.mxu0
    %v2408 = vadd.f32 %v1554, %v2407
    %v2409 = vpop.f32.mrf.mxu0
    %2410 = vmatprep.mubr.f32.mxu0 0.0
    %2411 = vmatmul.mubr.f32.gmra.mxu0 %v1801
    %v2412 = vpop.f32.mrf.mxu0
    %v2413 = vadd.f32 %v1554, %v2412
    %v2414 = vpop.f32.mrf.mxu0
    %2415 = vmatprep.mubr.f32.mxu0 0.0
    %2416 = vmatmul.mubr.f32.gmra.mxu0 %v1804
    %v2417 = vpop.f32.mrf.mxu0
    %v2418 = vadd.f32 %v1554, %v2417
    %v2419 = vpop.f32.mrf.mxu0
    %2420 = vmatprep.mubr.f32.mxu0 0.0
    %2421 = vmatmul.mubr.f32.gmra.mxu0 %v1807
    %v2422 = vpop.f32.mrf.mxu0
    %v2423 = vadd.f32 %v1554, %v2422
    %v2424 = vpop.f32.mrf.mxu0
    %2425 = vmatprep.mubr.f32.mxu0 0.0
    %2426 = vmatmul.mubr.f32.gmra.mxu0 %v1810
    %v2427 = vpop.f32.mrf.mxu0
    %v2428 = vadd.f32 %v1554, %v2427
    %v2429 = vpop.f32.mrf.mxu0
    %2430 = vmatprep.mubr.f32.mxu0 0.0
    %2431 = vmatmul.mubr.f32.gmra.mxu0 %v1813
    %v2432 = vpop.f32.mrf.mxu0
    %v2433 = vadd.f32 %v1554, %v2432
    %v2434 = vpop.f32.mrf.mxu0
    %2435 = vmatprep.mubr.f32.mxu0 0.0
    %2436 = vmatmul.mubr.f32.gmra.mxu0 %v1816
    %v2437 = vpop.f32.mrf.mxu0
    %v2438 = vadd.f32 %v1554, %v2437
    %v2439 = vpop.f32.mrf.mxu0
    %2440 = vmatprep.mubr.f32.mxu0 0.0
    %2441 = vmatmul.mubr.f32.gmra.mxu0 %v1819
    %v2442 = vpop.f32.mrf.mxu0
    %v2443 = vadd.f32 %v1554, %v2442
    %v2444 = vpop.f32.mrf.mxu0
    %2445 = vmatprep.mubr.f32.mxu0 0.0
    %2446 = vmatmul.mubr.f32.gmra.mxu0 %v1822
    %v2447 = vpop.f32.mrf.mxu0
    %v2448 = vadd.f32 %v1554, %v2447
    %v2449 = vpop.f32.mrf.mxu0
    %2450 = vmatprep.mubr.f32.mxu0 0.0
    %2451 = vmatmul.mubr.f32.gmra.mxu0 %v1825
    %v2452 = vpop.f32.mrf.mxu0
    %v2453 = vadd.f32 %v1554, %v2452
    %v2454 = vpop.f32.mrf.mxu0
    %2455 = vmatprep.mubr.f32.mxu0 0.0
    %2456 = vmatmul.mubr.f32.gmra.mxu0 %v1828
    %v2457 = vpop.f32.mrf.mxu0
    %v2458 = vadd.f32 %v1554, %v2457
    %v2459 = vpop.f32.mrf.mxu0
    %2460 = vmatprep.mubr.f32.mxu0 0.0
    %2461 = vmatmul.mubr.f32.gmra.mxu0 %v1831
    %v2462 = vpop.f32.mrf.mxu0
    %v2463 = vadd.f32 %v1554, %v2462
    %v2464 = vpop.f32.mrf.mxu0
    %2465 = vmatprep.mubr.f32.mxu0 0.0
    %2466 = vmatmul.mubr.f32.gmra.mxu0 %v1834
    %v2467 = vpop.f32.mrf.mxu0
    %v2468 = vadd.f32 %v1554, %v2467
    %v2469 = vpop.f32.mrf.mxu0
    %2470 = vmatprep.mubr.f32.mxu0 0.0
    %2471 = vmatmul.mubr.f32.gmra.mxu0 %v1837
    %v2472 = vpop.f32.mrf.mxu0
    %v2473 = vadd.f32 %v1554, %v2472
    %v2474 = vpop.f32.mrf.mxu0
    %2475 = vmatprep.mubr.f32.mxu0 0.0
    %2476 = vmatmul.mubr.f32.gmra.mxu0 %v1840
    %v2477 = vpop.f32.mrf.mxu0
    %v2478 = vadd.f32 %v1554, %v2477
    %v2479 = vpop.f32.mrf.mxu0
    %2480 = vmatprep.mubr.f32.mxu0 0.0
    %2481 = vmatmul.mubr.f32.gmra.mxu0 %v1843
    %v2482 = vpop.f32.mrf.mxu0
    %v2483 = vadd.f32 %v1554, %v2482
    %v2484 = vpop.f32.mrf.mxu0
    %2485 = vmatprep.mubr.f32.mxu0 0.0
    %2486 = vmatmul.mubr.f32.gmra.mxu0 %v1846
    %v2487 = vpop.f32.mrf.mxu0
    %v2488 = vadd.f32 %v1554, %v2487
    %v2489 = vpop.f32.mrf.mxu0
    %2490 = vmatprep.mubr.f32.mxu0 0.0
    %2491 = vmatmul.mubr.f32.gmra.mxu0 %v1849
    %v2492 = vpop.f32.mrf.mxu0
    %v2493 = vadd.f32 %v1554, %v2492
    %v2494 = vpop.f32.mrf.mxu0
    %2495 = vmatprep.mubr.f32.mxu0 0.0
    %2496 = vmatmul.mubr.f32.gmra.mxu0 %v1852
    %v2497 = vpop.f32.mrf.mxu0
    %v2498 = vadd.f32 %v1554, %v2497
    %v2499 = vpop.f32.mrf.mxu0
    %2500 = vmatprep.mubr.f32.mxu0 0.0
    %2501 = vmatmul.mubr.f32.gmra.mxu0 %v1855
    %v2502 = vpop.f32.mrf.mxu0
    %v2503 = vadd.f32 %v1554, %v2502
    %v2504 = vpop.f32.mrf.mxu0
    %2505 = vmatprep.mubr.f32.mxu0 0.0
    %2506 = vmatmul.mubr.f32.gmra.mxu0 %v1858
    %v2507 = vpop.f32.mrf.mxu0
    %v2508 = vadd.f32 %v1554, %v2507
    %v2509 = vpop.f32.mrf.mxu0
    %2510 = vmatprep.mubr.f32.mxu0 0.0
    %2511 = vmatmul.mubr.f32.gmra.mxu0 %v1861
    %v2512 = vpop.f32.mrf.mxu0
    %v2513 = vadd.f32 %v1554, %v2512
    %v2514 = vpop.f32.mrf.mxu0
    %2515 = vmatprep.mubr.f32.mxu0 0.0
    %2516 = vmatmul.mubr.f32.gmra.mxu0 %v1864
    %v2517 = vpop.f32.mrf.mxu0
    %v2518 = vadd.f32 %v1554, %v2517
    %v2519 = vpop.f32.mrf.mxu0
    %2520 = vmatprep.mubr.f32.mxu0 0.0
    %2521 = vmatmul.mubr.f32.gmra.mxu0 %v1867
    %v2522 = vpop.f32.mrf.mxu0
    %v2523 = vadd.f32 %v1554, %v2522
    %v2524 = vpop.f32.mrf.mxu0
    %2525 = vmatprep.mubr.f32.mxu0 0.0
    %2526 = vmatmul.mubr.f32.gmra.mxu0 %v1870
    %v2527 = vpop.f32.mrf.mxu0
    %v2528 = vadd.f32 %v1554, %v2527
    %v2529 = vpop.f32.mrf.mxu0
    %2530 = vmatprep.mubr.f32.mxu0 0.0
    %2531 = vmatmul.mubr.f32.gmra.mxu0 %v1873
    %v2532 = vpop.f32.mrf.mxu0
    %v2533 = vadd.f32 %v1554, %v2532
    %v2534 = vpop.f32.mrf.mxu0
    %2535 = vmatprep.mubr.f32.mxu0 0.0
    %2536 = vmatmul.mubr.f32.gmra.mxu0 %v1876
    %v2537 = vpop.f32.mrf.mxu0
    %v2538 = vadd.f32 %v1554, %v2537
    %v2539 = vpop.f32.mrf.mxu0
    %2540 = vmatprep.mubr.f32.mxu0 0.0
    %2541 = vmatmul.mubr.f32.gmra.mxu0 %v1879
    %v2542 = vpop.f32.mrf.mxu0
    %v2543 = vadd.f32 %v1554, %v2542
    %v2544 = vpop.f32.mrf.mxu0
    %2545 = vmatprep.mubr.f32.mxu0 0.0
    %2546 = vmatmul.mubr.f32.gmra.mxu0 %v1882
    %v2547 = vpop.f32.mrf.mxu0
    %v2548 = vadd.f32 %v1554, %v2547
    %v2549 = vpop.f32.mrf.mxu0
    %2550 = vmatprep.mubr.f32.mxu0 0.0
    %2551 = vmatmul.mubr.f32.gmra.mxu0 %v1885
    %v2552 = vpop.f32.mrf.mxu0
    %v2553 = vadd.f32 %v1554, %v2552
    %v2554 = vpop.f32.mrf.mxu0
    %2555 = vmatprep.mubr.f32.mxu0 0.0
    %2556 = vmatmul.mubr.f32.gmra.mxu0 %v1888
    %v2557 = vpop.f32.mrf.mxu0
    %v2558 = vadd.f32 %v1554, %v2557
    %v2559 = vpop.f32.mrf.mxu0
    %2560 = vmatprep.mubr.f32.mxu0 0.0
    %2561 = vmatmul.mubr.f32.gmra.mxu0 %v1891
    %v2562 = vpop.f32.mrf.mxu0
    %v2563 = vadd.f32 %v1554, %v2562
    %v2564 = vpop.f32.mrf.mxu0
    %2565 = vmatprep.mubr.f32.mxu0 0.0
    %2566 = vmatmul.mubr.f32.gmra.mxu0 %v1894
    %v2567 = vpop.f32.mrf.mxu0
    %v2568 = vadd.f32 %v1554, %v2567
    %v2569 = vpop.f32.mrf.mxu0
    %2570 = vmatprep.mubr.f32.mxu0 0.0
    %2571 = vmatmul.mubr.f32.gmra.mxu0 %v1897
    %v2572 = vpop.f32.mrf.mxu0
    %v2573 = vadd.f32 %v1554, %v2572
    %v2574 = vpop.f32.mrf.mxu0
    %2575 = vmatprep.mubr.f32.mxu0 0.0
    %2576 = vmatmul.mubr.f32.gmra.mxu0 %v1900
    %v2577 = vpop.f32.mrf.mxu0
    %v2578 = vadd.f32 %v1554, %v2577
    %v2579 = vpop.f32.mrf.mxu0
    %2580 = vmatprep.mubr.f32.mxu0 0.0
    %2581 = vmatmul.mubr.f32.gmra.mxu0 %v1903
    %v2582 = vpop.f32.mrf.mxu0
    %v2583 = vadd.f32 %v1554, %v2582
    %v2584 = vpop.f32.mrf.mxu0
    %2585 = vmatprep.mubr.f32.mxu0 0.0
    %2586 = vmatmul.mubr.f32.gmra.mxu0 %v1906
    %v2587 = vpop.f32.mrf.mxu0
    %v2588 = vadd.f32 %v1554, %v2587
    %v2589 = vpop.f32.mrf.mxu0
    %2590 = vmatprep.mubr.f32.mxu0 0.0
    %2591 = vmatmul.mubr.f32.gmra.mxu0 %v1909
    %v2592 = vpop.f32.mrf.mxu0
    %v2593 = vadd.f32 %v1554, %v2592
    %v2594 = vpop.f32.mrf.mxu0
    %2595 = vmatprep.mubr.f32.mxu0 0.0
    %2596 = vmatmul.mubr.f32.gmra.mxu0 %v1912
    %v2597 = vpop.f32.mrf.mxu0
    %v2598 = vadd.f32 %v1554, %v2597
    %v2599 = vpop.f32.mrf.mxu0
    %2600 = vmatprep.mubr.f32.mxu0 0.0
    %2601 = vmatmul.mubr.f32.gmra.mxu0 %v1915
    %v2602 = vpop.f32.mrf.mxu0
    %v2603 = vadd.f32 %v1554, %v2602
    %v2604 = vpop.f32.mrf.mxu0
    %2605 = vmatprep.mubr.f32.mxu0 0.0
    %2606 = vmatmul.mubr.f32.gmra.mxu0 %v1918
    %v2607 = vpop.f32.mrf.mxu0
    %v2608 = vadd.f32 %v1554, %v2607
    %v2609 = vpop.f32.mrf.mxu0
    %2610 = vmatprep.mubr.f32.mxu0 0.0
    %2611 = vmatmul.mubr.f32.gmra.mxu0 %v1921
    %v2612 = vpop.f32.mrf.mxu0
    %v2613 = vadd.f32 %v1554, %v2612
    %v2614 = vpop.f32.mrf.mxu0
    %2615 = vmatprep.mubr.f32.mxu0 0.0
    %2616 = vmatmul.mubr.f32.gmra.mxu0 %v1924
    %v2617 = vpop.f32.mrf.mxu0
    %v2618 = vadd.f32 %v1554, %v2617
    %v2619 = vpop.f32.mrf.mxu0
    %2620 = vmatprep.mubr.f32.mxu0 0.0
    %2621 = vmatmul.mubr.f32.gmra.mxu0 %v1927
    %v2622 = vpop.f32.mrf.mxu0
    %v2623 = vadd.f32 %v1554, %v2622
    %v2624 = vpop.f32.mrf.mxu0
    %2625 = vmatprep.mubr.f32.mxu0 0.0
    %2626 = vmatmul.mubr.f32.gmra.mxu0 %v1930
    %v2627 = vpop.f32.mrf.mxu0
    %v2628 = vadd.f32 %v1554, %v2627
    %v2629 = vpop.f32.mrf.mxu0
    %2630 = vmatprep.mubr.f32.mxu0 0.0
    %2631 = vmatmul.mubr.f32.gmra.mxu0 %v1933
    %v2632 = vpop.f32.mrf.mxu0
    %v2633 = vadd.f32 %v1554, %v2632
    %v2634 = vpop.f32.mrf.mxu0
    %2635 = vmatprep.mubr.f32.mxu0 0.0
    %2636 = vmatmul.mubr.f32.gmra.mxu0 %v1936
    %v2637 = vpop.f32.mrf.mxu0
    %v2638 = vadd.f32 %v1554, %v2637
    %v2639 = vpop.f32.mrf.mxu0
    %2640 = vmatprep.mubr.f32.mxu0 0.0
    %2641 = vmatmul.mubr.f32.gmra.mxu0 %v1939
    %v2642 = vpop.f32.mrf.mxu0
    %v2643 = vadd.f32 %v1554, %v2642
    %v2644 = vpop.f32.mrf.mxu0
    %2645 = vdwg.mxu0
    %v2646 = vmax.f32 %v2008, 0.0
    %v2647 = vmax.f32 %v2013, 0.0
    %v2648 = vmax.f32 %v2018, 0.0
    %v2649 = vmax.f32 %v2023, 0.0
    %v2650 = vmax.f32 %v2028, 0.0
    %v2651 = vmax.f32 %v2033, 0.0
    %v2652 = vmax.f32 %v2038, 0.0
    %v2653 = vmax.f32 %v2043, 0.0
    %v2654 = vmax.f32 %v2048, 0.0
    %v2655 = vmax.f32 %v2053, 0.0
    %v2656 = vmax.f32 %v2058, 0.0
    %v2657 = vmax.f32 %v2063, 0.0
    %v2658 = vmax.f32 %v2068, 0.0
    %v2659 = vmax.f32 %v2073, 0.0
    %v2660 = vmax.f32 %v2078, 0.0
    %v2661 = vmax.f32 %v2083, 0.0
    %v2662 = vmax.f32 %v2088, 0.0
    %v2663 = vmax.f32 %v2093, 0.0
    %v2664 = vmax.f32 %v2098, 0.0
    %v2665 = vmax.f32 %v2103, 0.0
    %v2666 = vmax.f32 %v2108, 0.0
    %v2667 = vmax.f32 %v2113, 0.0
    %v2668 = vmax.f32 %v2118, 0.0
    %v2669 = vmax.f32 %v2123, 0.0
    %v2670 = vmax.f32 %v2128, 0.0
    %v2671 = vmax.f32 %v2133, 0.0
    %v2672 = vmax.f32 %v2138, 0.0
    %v2673 = vmax.f32 %v2143, 0.0
    %v2674 = vmax.f32 %v2148, 0.0
    %v2675 = vmax.f32 %v2153, 0.0
    %v2676 = vmax.f32 %v2158, 0.0
    %v2677 = vmax.f32 %v2163, 0.0
    %v2678 = vmax.f32 %v2168, 0.0
    %v2679 = vmax.f32 %v2173, 0.0
    %v2680 = vmax.f32 %v2178, 0.0
    %v2681 = vmax.f32 %v2183, 0.0
    %v2682 = vmax.f32 %v2188, 0.0
    %v2683 = vmax.f32 %v2193, 0.0
    %v2684 = vmax.f32 %v2198, 0.0
    %v2685 = vmax.f32 %v2203, 0.0
    %v2686 = vmax.f32 %v2208, 0.0
    %v2687 = vmax.f32 %v2213, 0.0
    %v2688 = vmax.f32 %v2218, 0.0
    %v2689 = vmax.f32 %v2223, 0.0
    %v2690 = vmax.f32 %v2228, 0.0
    %v2691 = vmax.f32 %v2233, 0.0
    %v2692 = vmax.f32 %v2238, 0.0
    %v2693 = vmax.f32 %v2243, 0.0
    %v2694 = vmax.f32 %v2248, 0.0
    %v2695 = vmax.f32 %v2253, 0.0
    %v2696 = vmax.f32 %v2258, 0.0
    %v2697 = vmax.f32 %v2263, 0.0
    %v2698 = vmax.f32 %v2268, 0.0
    %v2699 = vmax.f32 %v2273, 0.0
    %v2700 = vmax.f32 %v2278, 0.0
    %v2701 = vmax.f32 %v2283, 0.0
    %v2702 = vmax.f32 %v2288, 0.0
    %v2703 = vmax.f32 %v2293, 0.0
    %v2704 = vmax.f32 %v2298, 0.0
    %v2705 = vmax.f32 %v2303, 0.0
    %v2706 = vmax.f32 %v2308, 0.0
    %v2707 = vmax.f32 %v2313, 0.0
    %v2708 = vmax.f32 %v2318, 0.0
    %v2709 = vmax.f32 %v2323, 0.0
    %v2710 = vmax.f32 %v2328, 0.0
    %v2711 = vmax.f32 %v2333, 0.0
    %v2712 = vmax.f32 %v2338, 0.0
    %v2713 = vmax.f32 %v2343, 0.0
    %v2714 = vmax.f32 %v2348, 0.0
    %v2715 = vmax.f32 %v2353, 0.0
    %v2716 = vmax.f32 %v2358, 0.0
    %v2717 = vmax.f32 %v2363, 0.0
    %v2718 = vmax.f32 %v2368, 0.0
    %v2719 = vmax.f32 %v2373, 0.0
    %v2720 = vmax.f32 %v2378, 0.0
    %v2721 = vmax.f32 %v2383, 0.0
    %v2722 = vmax.f32 %v2388, 0.0
    %v2723 = vmax.f32 %v2393, 0.0
    %v2724 = vmax.f32 %v2398, 0.0
    %v2725 = vmax.f32 %v2403, 0.0
    %v2726 = vmax.f32 %v2408, 0.0
    %v2727 = vmax.f32 %v2413, 0.0
    %v2728 = vmax.f32 %v2418, 0.0
    %v2729 = vmax.f32 %v2423, 0.0
    %v2730 = vmax.f32 %v2428, 0.0
    %v2731 = vmax.f32 %v2433, 0.0
    %v2732 = vmax.f32 %v2438, 0.0
    %v2733 = vmax.f32 %v2443, 0.0
    %v2734 = vmax.f32 %v2448, 0.0
    %v2735 = vmax.f32 %v2453, 0.0
    %v2736 = vmax.f32 %v2458, 0.0
    %v2737 = vmax.f32 %v2463, 0.0
    %v2738 = vmax.f32 %v2468, 0.0
    %v2739 = vmax.f32 %v2473, 0.0
    %v2740 = vmax.f32 %v2478, 0.0
    %v2741 = vmax.f32 %v2483, 0.0
    %v2742 = vmax.f32 %v2488, 0.0
    %v2743 = vmax.f32 %v2493, 0.0
    %v2744 = vmax.f32 %v2498, 0.0
    %v2745 = vmax.f32 %v2503, 0.0
    %v2746 = vmax.f32 %v2508, 0.0
    %v2747 = vmax.f32 %v2513, 0.0
    %v2748 = vmax.f32 %v2518, 0.0
    %v2749 = vmax.f32 %v2523, 0.0
    %v2750 = vmax.f32 %v2528, 0.0
    %v2751 = vmax.f32 %v2533, 0.0
    %v2752 = vmax.f32 %v2538, 0.0
    %v2753 = vmax.f32 %v2543, 0.0
    %v2754 = vmax.f32 %v2548, 0.0
    %v2755 = vmax.f32 %v2553, 0.0
    %v2756 = vmax.f32 %v2558, 0.0
    %v2757 = vmax.f32 %v2563, 0.0
    %v2758 = vmax.f32 %v2568, 0.0
    %v2759 = vmax.f32 %v2573, 0.0
    %v2760 = vmax.f32 %v2578, 0.0
    %v2761 = vmax.f32 %v2583, 0.0
    %v2762 = vmax.f32 %v2588, 0.0
    %v2763 = vmax.f32 %v2593, 0.0
    %v2764 = vmax.f32 %v2598, 0.0
    %v2765 = vmax.f32 %v2603, 0.0
    %v2766 = vmax.f32 %v2608, 0.0
    %v2767 = vmax.f32 %v2613, 0.0
    %v2768 = vmax.f32 %v2618, 0.0
    %v2769 = vmax.f32 %v2623, 0.0
    %v2770 = vmax.f32 %v2628, 0.0
    %v2771 = vmax.f32 %v2633, 0.0
    %v2772 = vmax.f32 %v2638, 0.0
    %v2773 = vmax.f32 %v2643, 0.0
    %v2774 = vld [vmem:[%s5] sm:$0xff]
    %v2775 = vld [vmem:[%s5 + $0x8] sm:$0xff]
    %v2776 = vld [vmem:[%s5 + $0x10] sm:$0xff]
    %v2777 = vld [vmem:[%s5 + $0x18] sm:$0xff]
    %v2778 = vld [vmem:[%s6] sm:$0x1]
    %v2780 = vlaneseq
    %v2781 = vshrl.u32 %v2780, 7
    %v2782 = vsub.s32 0, %v2781
    %v2783 = vrot.slane %v2778, %v2782
    %vm2785 = vcmask 261120
    %v2787 = vsel %vm2785, %v2646, 0
    %v2790 = vsel %vm2785, %v2647, 0
    %v2793 = vsel %vm2785, %v2648, 0
    %v2796 = vsel %vm2785, %v2649, 0
    %v2799 = vsel %vm2785, %v2650, 0
    %v2802 = vsel %vm2785, %v2651, 0
    %v2805 = vsel %vm2785, %v2652, 0
    %v2808 = vsel %vm2785, %v2653, 0
    %v2811 = vsel %vm2785, %v2654, 0
    %v2814 = vsel %vm2785, %v2655, 0
    %v2817 = vsel %vm2785, %v2656, 0
    %v2820 = vsel %vm2785, %v2657, 0
    %v2823 = vsel %vm2785, %v2658, 0
    %v2826 = vsel %vm2785, %v2659, 0
    %v2829 = vsel %vm2785, %v2660, 0
    %v2832 = vsel %vm2785, %v2661, 0
    %v2835 = vsel %vm2785, %v2662, 0
    %v2838 = vsel %vm2785, %v2663, 0
    %v2841 = vsel %vm2785, %v2664, 0
    %v2844 = vsel %vm2785, %v2665, 0
    %v2847 = vsel %vm2785, %v2666, 0
    %v2850 = vsel %vm2785, %v2667, 0
    %v2853 = vsel %vm2785, %v2668, 0
    %v2856 = vsel %vm2785, %v2669, 0
    %v2859 = vsel %vm2785, %v2670, 0
    %v2862 = vsel %vm2785, %v2671, 0
    %v2865 = vsel %vm2785, %v2672, 0
    %v2868 = vsel %vm2785, %v2673, 0
    %v2871 = vsel %vm2785, %v2674, 0
    %v2874 = vsel %vm2785, %v2675, 0
    %v2877 = vsel %vm2785, %v2676, 0
    %v2880 = vsel %vm2785, %v2677, 0
    %v2883 = vsel %vm2785, %v2678, 0
    %v2886 = vsel %vm2785, %v2679, 0
    %v2889 = vsel %vm2785, %v2680, 0
    %v2892 = vsel %vm2785, %v2681, 0
    %v2895 = vsel %vm2785, %v2682, 0
    %v2898 = vsel %vm2785, %v2683, 0
    %v2901 = vsel %vm2785, %v2684, 0
    %v2904 = vsel %vm2785, %v2685, 0
    %v2907 = vsel %vm2785, %v2686, 0
    %v2910 = vsel %vm2785, %v2687, 0
    %v2913 = vsel %vm2785, %v2688, 0
    %v2916 = vsel %vm2785, %v2689, 0
    %v2919 = vsel %vm2785, %v2690, 0
    %v2922 = vsel %vm2785, %v2691, 0
    %v2925 = vsel %vm2785, %v2692, 0
    %v2928 = vsel %vm2785, %v2693, 0
    %v2931 = vsel %vm2785, %v2694, 0
    %v2934 = vsel %vm2785, %v2695, 0
    %v2937 = vsel %vm2785, %v2696, 0
    %v2940 = vsel %vm2785, %v2697, 0
    %v2943 = vsel %vm2785, %v2698, 0
    %v2946 = vsel %vm2785, %v2699, 0
    %v2949 = vsel %vm2785, %v2700, 0
    %v2952 = vsel %vm2785, %v2701, 0
    %v2955 = vsel %vm2785, %v2702, 0
    %v2958 = vsel %vm2785, %v2703, 0
    %v2961 = vsel %vm2785, %v2704, 0
    %v2964 = vsel %vm2785, %v2705, 0
    %v2967 = vsel %vm2785, %v2706, 0
    %v2970 = vsel %vm2785, %v2707, 0
    %v2973 = vsel %vm2785, %v2708, 0
    %v2976 = vsel %vm2785, %v2709, 0
    %v2979 = vsel %vm2785, %v2710, 0
    %v2982 = vsel %vm2785, %v2711, 0
    %v2985 = vsel %vm2785, %v2712, 0
    %v2988 = vsel %vm2785, %v2713, 0
    %v2991 = vsel %vm2785, %v2714, 0
    %v2994 = vsel %vm2785, %v2715, 0
    %v2997 = vsel %vm2785, %v2716, 0
    %v3000 = vsel %vm2785, %v2717, 0
    %v3003 = vsel %vm2785, %v2718, 0
    %v3006 = vsel %vm2785, %v2719, 0
    %v3009 = vsel %vm2785, %v2720, 0
    %v3012 = vsel %vm2785, %v2721, 0
    %v3015 = vsel %vm2785, %v2722, 0
    %v3018 = vsel %vm2785, %v2723, 0
    %v3021 = vsel %vm2785, %v2724, 0
    %v3024 = vsel %vm2785, %v2725, 0
    %v3027 = vsel %vm2785, %v2726, 0
    %v3030 = vsel %vm2785, %v2727, 0
    %v3033 = vsel %vm2785, %v2728, 0
    %v3036 = vsel %vm2785, %v2729, 0
    %v3039 = vsel %vm2785, %v2730, 0
    %v3042 = vsel %vm2785, %v2731, 0
    %v3045 = vsel %vm2785, %v2732, 0
    %v3048 = vsel %vm2785, %v2733, 0
    %v3051 = vsel %vm2785, %v2734, 0
    %v3054 = vsel %vm2785, %v2735, 0
    %v3057 = vsel %vm2785, %v2736, 0
    %v3060 = vsel %vm2785, %v2737, 0
    %v3063 = vsel %vm2785, %v2738, 0
    %v3066 = vsel %vm2785, %v2739, 0
    %v3069 = vsel %vm2785, %v2740, 0
    %v3072 = vsel %vm2785, %v2741, 0
    %v3075 = vsel %vm2785, %v2742, 0
    %v3078 = vsel %vm2785, %v2743, 0
    %v3081 = vsel %vm2785, %v2744, 0
    %v3084 = vsel %vm2785, %v2745, 0
    %v3087 = vsel %vm2785, %v2746, 0
    %v3090 = vsel %vm2785, %v2747, 0
    %v3093 = vsel %vm2785, %v2748, 0
    %v3096 = vsel %vm2785, %v2749, 0
    %v3099 = vsel %vm2785, %v2750, 0
    %v3102 = vsel %vm2785, %v2751, 0
    %v3105 = vsel %vm2785, %v2752, 0
    %v3108 = vsel %vm2785, %v2753, 0
    %v3111 = vsel %vm2785, %v2754, 0
    %v3114 = vsel %vm2785, %v2755, 0
    %v3117 = vsel %vm2785, %v2756, 0
    %v3120 = vsel %vm2785, %v2757, 0
    %v3123 = vsel %vm2785, %v2758, 0
    %v3126 = vsel %vm2785, %v2759, 0
    %v3129 = vsel %vm2785, %v2760, 0
    %v3132 = vsel %vm2785, %v2761, 0
    %v3135 = vsel %vm2785, %v2762, 0
    %v3138 = vsel %vm2785, %v2763, 0
    %v3141 = vsel %vm2785, %v2764, 0
    %v3144 = vsel %vm2785, %v2765, 0
    %v3147 = vsel %vm2785, %v2766, 0
    %v3150 = vsel %vm2785, %v2767, 0
    %v3153 = vsel %vm2785, %v2768, 0
    %v3156 = vsel %vm2785, %v2769, 0
    %v3159 = vsel %vm2785, %v2770, 0
    %v3162 = vsel %vm2785, %v2771, 0
    %v3165 = vsel %vm2785, %v2772, 0
    %v3168 = vsel %vm2785, %v2773, 0
    %3170 = vmatprep.subr.mxu0 0.0
    %3171 = vmatpush1.msra.mxu0 0.0
    %3172 = vmatprep.subr.mxu0 0.0
    %3173 = vmatpush1.msra.mxu0 0.0
    %3174 = vmatprep.subr.mxu0 0.0
    %3175 = vmatpush1.msra.mxu0 0.0
    %3176 = vmatprep.subr.mxu0 0.0
    %3177 = vmatpush1.msra.mxu0 0.0
    %3178 = vmatprep.subr.mxu0 0.0
    %3179 = vmatpush1.msra.mxu0 0.0
    %3180 = vmatprep.subr.mxu0 0.0
    %3181 = vmatpush1.msra.mxu0 0.0
    %3182 = vmatprep.subr.mxu0 0.0
    %3183 = vmatpush1.msra.mxu0 0.0
    %3184 = vmatprep.subr.mxu0 0.0
    %3185 = vmatpush1.msra.mxu0 0.0
    %3186 = vmatprep.subr.mxu0 0.0
    %3187 = vmatpush1.msra.mxu0 0.0
    %3188 = vmatprep.subr.mxu0 0.0
    %3189 = vmatpush1.msra.mxu0 0.0
    %3190 = vmatprep.subr.mxu0 0.0
    %3191 = vmatpush1.msra.mxu0 0.0
    %3192 = vmatprep.subr.mxu0 0.0
    %3193 = vmatpush1.msra.mxu0 0.0
    %3194 = vmatprep.subr.mxu0 0.0
    %3195 = vmatpush1.msra.mxu0 %v2777
    %3196 = vmatprep.subr.mxu0 0.0
    %3197 = vmatpush1.msra.mxu0 %v2776
    %3198 = vmatprep.subr.mxu0 0.0
    %3199 = vmatpush1.msra.mxu0 %v2775
    %3200 = vmatprep.subr.mxu0 0.0
    %3201 = vmatpush1.msra.mxu0 %v2774
    %3202 = vmatprep.subr.mxu0 0.0
    %3203 = vmatpush2.msra.mxu0 0.0
    %3204 = vmatprep.subr.mxu0 0.0
    %3205 = vmatpush2.msra.mxu0 0.0
    %3206 = vmatprep.subr.mxu0 0.0
    %3207 = vmatpush2.msra.mxu0 0.0
    %3208 = vmatprep.subr.mxu0 0.0
    %3209 = vmatpush2.msra.mxu0 0.0
    %3210 = vmatprep.subr.mxu0 0.0
    %3211 = vmatpush2.msra.mxu0 0.0
    %3212 = vmatprep.subr.mxu0 0.0
    %3213 = vmatpush2.msra.mxu0 0.0
    %3214 = vmatprep.subr.mxu0 0.0
    %3215 = vmatpush2.msra.mxu0 0.0
    %3216 = vmatprep.subr.mxu0 0.0
    %3217 = vmatpush2.msra.mxu0 0.0
    %3218 = vmatprep.subr.mxu0 0.0
    %3219 = vmatpush2.msra.mxu0 0.0
    %3220 = vmatprep.subr.mxu0 0.0
    %3221 = vmatpush2.msra.mxu0 0.0
    %3222 = vmatprep.subr.mxu0 0.0
    %3223 = vmatpush2.msra.mxu0 0.0
    %3224 = vmatprep.subr.mxu0 0.0
    %3225 = vmatpush2.msra.mxu0 0.0
    %3226 = vmatprep.subr.mxu0 0.0
    %3227 = vmatpush2.msra.mxu0 0.0
    %3228 = vmatprep.subr.mxu0 0.0
    %3229 = vmatpush2.msra.mxu0 0.0
    %3230 = vmatprep.subr.mxu0 0.0
    %3231 = vmatpush2.msra.mxu0 0.0
    %3232 = vmatprep.subr.mxu0 0.0
    %3233 = vmatpush2.msra.mxu0 0.0
    %3234 = vmatprep.mubr.f32.mxu0 0.0
    %3235 = vmatmul.mubr.f32.gmra.mxu0 %v2787
    %v3236 = vpop.f32.mrf.mxu0
    %v3237 = vadd.f32 %v2783, %v3236
    %v3238 = vpop.f32.mrf.mxu0
    %3239 = vmatprep.mubr.f32.mxu0 0.0
    %3240 = vmatmul.mubr.f32.gmra.mxu0 %v2790
    %v3241 = vpop.f32.mrf.mxu0
    %v3242 = vadd.f32 %v2783, %v3241
    %v3243 = vpop.f32.mrf.mxu0
    %3244 = vmatprep.mubr.f32.mxu0 0.0
    %3245 = vmatmul.mubr.f32.gmra.mxu0 %v2793
    %v3246 = vpop.f32.mrf.mxu0
    %v3247 = vadd.f32 %v2783, %v3246
    %v3248 = vpop.f32.mrf.mxu0
    %3249 = vmatprep.mubr.f32.mxu0 0.0
    %3250 = vmatmul.mubr.f32.gmra.mxu0 %v2796
    %v3251 = vpop.f32.mrf.mxu0
    %v3252 = vadd.f32 %v2783, %v3251
    %v3253 = vpop.f32.mrf.mxu0
    %3254 = vmatprep.mubr.f32.mxu0 0.0
    %3255 = vmatmul.mubr.f32.gmra.mxu0 %v2799
    %v3256 = vpop.f32.mrf.mxu0
    %v3257 = vadd.f32 %v2783, %v3256
    %v3258 = vpop.f32.mrf.mxu0
    %3259 = vmatprep.mubr.f32.mxu0 0.0
    %3260 = vmatmul.mubr.f32.gmra.mxu0 %v2802
    %v3261 = vpop.f32.mrf.mxu0
    %v3262 = vadd.f32 %v2783, %v3261
    %v3263 = vpop.f32.mrf.mxu0
    %3264 = vmatprep.mubr.f32.mxu0 0.0
    %3265 = vmatmul.mubr.f32.gmra.mxu0 %v2805
    %v3266 = vpop.f32.mrf.mxu0
    %v3267 = vadd.f32 %v2783, %v3266
    %v3268 = vpop.f32.mrf.mxu0
    %3269 = vmatprep.mubr.f32.mxu0 0.0
    %3270 = vmatmul.mubr.f32.gmra.mxu0 %v2808
    %v3271 = vpop.f32.mrf.mxu0
    %v3272 = vadd.f32 %v2783, %v3271
    %v3273 = vpop.f32.mrf.mxu0
    %3274 = vmatprep.mubr.f32.mxu0 0.0
    %3275 = vmatmul.mubr.f32.gmra.mxu0 %v2811
    %v3276 = vpop.f32.mrf.mxu0
    %v3277 = vadd.f32 %v2783, %v3276
    %v3278 = vpop.f32.mrf.mxu0
    %3279 = vmatprep.mubr.f32.mxu0 0.0
    %3280 = vmatmul.mubr.f32.gmra.mxu0 %v2814
    %v3281 = vpop.f32.mrf.mxu0
    %v3282 = vadd.f32 %v2783, %v3281
    %v3283 = vpop.f32.mrf.mxu0
    %3284 = vmatprep.mubr.f32.mxu0 0.0
    %3285 = vmatmul.mubr.f32.gmra.mxu0 %v2817
    %v3286 = vpop.f32.mrf.mxu0
    %v3287 = vadd.f32 %v2783, %v3286
    %v3288 = vpop.f32.mrf.mxu0
    %3289 = vmatprep.mubr.f32.mxu0 0.0
    %3290 = vmatmul.mubr.f32.gmra.mxu0 %v2820
    %v3291 = vpop.f32.mrf.mxu0
    %v3292 = vadd.f32 %v2783, %v3291
    %v3293 = vpop.f32.mrf.mxu0
    %3294 = vmatprep.mubr.f32.mxu0 0.0
    %3295 = vmatmul.mubr.f32.gmra.mxu0 %v2823
    %v3296 = vpop.f32.mrf.mxu0
    %v3297 = vadd.f32 %v2783, %v3296
    %v3298 = vpop.f32.mrf.mxu0
    %3299 = vmatprep.mubr.f32.mxu0 0.0
    %3300 = vmatmul.mubr.f32.gmra.mxu0 %v2826
    %v3301 = vpop.f32.mrf.mxu0
    %v3302 = vadd.f32 %v2783, %v3301
    %v3303 = vpop.f32.mrf.mxu0
    %3304 = vmatprep.mubr.f32.mxu0 0.0
    %3305 = vmatmul.mubr.f32.gmra.mxu0 %v2829
    %v3306 = vpop.f32.mrf.mxu0
    %v3307 = vadd.f32 %v2783, %v3306
    %v3308 = vpop.f32.mrf.mxu0
    %3309 = vmatprep.mubr.f32.mxu0 0.0
    %3310 = vmatmul.mubr.f32.gmra.mxu0 %v2832
    %v3311 = vpop.f32.mrf.mxu0
    %v3312 = vadd.f32 %v2783, %v3311
    %v3313 = vpop.f32.mrf.mxu0
    %3314 = vmatprep.mubr.f32.mxu0 0.0
    %3315 = vmatmul.mubr.f32.gmra.mxu0 %v2835
    %v3316 = vpop.f32.mrf.mxu0
    %v3317 = vadd.f32 %v2783, %v3316
    %v3318 = vpop.f32.mrf.mxu0
    %3319 = vmatprep.mubr.f32.mxu0 0.0
    %3320 = vmatmul.mubr.f32.gmra.mxu0 %v2838
    %v3321 = vpop.f32.mrf.mxu0
    %v3322 = vadd.f32 %v2783, %v3321
    %v3323 = vpop.f32.mrf.mxu0
    %3324 = vmatprep.mubr.f32.mxu0 0.0
    %3325 = vmatmul.mubr.f32.gmra.mxu0 %v2841
    %v3326 = vpop.f32.mrf.mxu0
    %v3327 = vadd.f32 %v2783, %v3326
    %v3328 = vpop.f32.mrf.mxu0
    %3329 = vmatprep.mubr.f32.mxu0 0.0
    %3330 = vmatmul.mubr.f32.gmra.mxu0 %v2844
    %v3331 = vpop.f32.mrf.mxu0
    %v3332 = vadd.f32 %v2783, %v3331
    %v3333 = vpop.f32.mrf.mxu0
    %3334 = vmatprep.mubr.f32.mxu0 0.0
    %3335 = vmatmul.mubr.f32.gmra.mxu0 %v2847
    %v3336 = vpop.f32.mrf.mxu0
    %v3337 = vadd.f32 %v2783, %v3336
    %v3338 = vpop.f32.mrf.mxu0
    %3339 = vmatprep.mubr.f32.mxu0 0.0
    %3340 = vmatmul.mubr.f32.gmra.mxu0 %v2850
    %v3341 = vpop.f32.mrf.mxu0
    %v3342 = vadd.f32 %v2783, %v3341
    %v3343 = vpop.f32.mrf.mxu0
    %3344 = vmatprep.mubr.f32.mxu0 0.0
    %3345 = vmatmul.mubr.f32.gmra.mxu0 %v2853
    %v3346 = vpop.f32.mrf.mxu0
    %v3347 = vadd.f32 %v2783, %v3346
    %v3348 = vpop.f32.mrf.mxu0
    %3349 = vmatprep.mubr.f32.mxu0 0.0
    %3350 = vmatmul.mubr.f32.gmra.mxu0 %v2856
    %v3351 = vpop.f32.mrf.mxu0
    %v3352 = vadd.f32 %v2783, %v3351
    %v3353 = vpop.f32.mrf.mxu0
    %3354 = vmatprep.mubr.f32.mxu0 0.0
    %3355 = vmatmul.mubr.f32.gmra.mxu0 %v2859
    %v3356 = vpop.f32.mrf.mxu0
    %v3357 = vadd.f32 %v2783, %v3356
    %v3358 = vpop.f32.mrf.mxu0
    %3359 = vmatprep.mubr.f32.mxu0 0.0
    %3360 = vmatmul.mubr.f32.gmra.mxu0 %v2862
    %v3361 = vpop.f32.mrf.mxu0
    %v3362 = vadd.f32 %v2783, %v3361
    %v3363 = vpop.f32.mrf.mxu0
    %3364 = vmatprep.mubr.f32.mxu0 0.0
    %3365 = vmatmul.mubr.f32.gmra.mxu0 %v2865
    %v3366 = vpop.f32.mrf.mxu0
    %v3367 = vadd.f32 %v2783, %v3366
    %v3368 = vpop.f32.mrf.mxu0
    %3369 = vmatprep.mubr.f32.mxu0 0.0
    %3370 = vmatmul.mubr.f32.gmra.mxu0 %v2868
    %v3371 = vpop.f32.mrf.mxu0
    %v3372 = vadd.f32 %v2783, %v3371
    %v3373 = vpop.f32.mrf.mxu0
    %3374 = vmatprep.mubr.f32.mxu0 0.0
    %3375 = vmatmul.mubr.f32.gmra.mxu0 %v2871
    %v3376 = vpop.f32.mrf.mxu0
    %v3377 = vadd.f32 %v2783, %v3376
    %v3378 = vpop.f32.mrf.mxu0
    %3379 = vmatprep.mubr.f32.mxu0 0.0
    %3380 = vmatmul.mubr.f32.gmra.mxu0 %v2874
    %v3381 = vpop.f32.mrf.mxu0
    %v3382 = vadd.f32 %v2783, %v3381
    %v3383 = vpop.f32.mrf.mxu0
    %3384 = vmatprep.mubr.f32.mxu0 0.0
    %3385 = vmatmul.mubr.f32.gmra.mxu0 %v2877
    %v3386 = vpop.f32.mrf.mxu0
    %v3387 = vadd.f32 %v2783, %v3386
    %v3388 = vpop.f32.mrf.mxu0
    %3389 = vmatprep.mubr.f32.mxu0 0.0
    %3390 = vmatmul.mubr.f32.gmra.mxu0 %v2880
    %v3391 = vpop.f32.mrf.mxu0
    %v3392 = vadd.f32 %v2783, %v3391
    %v3393 = vpop.f32.mrf.mxu0
    %3394 = vmatprep.mubr.f32.mxu0 0.0
    %3395 = vmatmul.mubr.f32.gmra.mxu0 %v2883
    %v3396 = vpop.f32.mrf.mxu0
    %v3397 = vadd.f32 %v2783, %v3396
    %v3398 = vpop.f32.mrf.mxu0
    %3399 = vmatprep.mubr.f32.mxu0 0.0
    %3400 = vmatmul.mubr.f32.gmra.mxu0 %v2886
    %v3401 = vpop.f32.mrf.mxu0
    %v3402 = vadd.f32 %v2783, %v3401
    %v3403 = vpop.f32.mrf.mxu0
    %3404 = vmatprep.mubr.f32.mxu0 0.0
    %3405 = vmatmul.mubr.f32.gmra.mxu0 %v2889
    %v3406 = vpop.f32.mrf.mxu0
    %v3407 = vadd.f32 %v2783, %v3406
    %v3408 = vpop.f32.mrf.mxu0
    %3409 = vmatprep.mubr.f32.mxu0 0.0
    %3410 = vmatmul.mubr.f32.gmra.mxu0 %v2892
    %v3411 = vpop.f32.mrf.mxu0
    %v3412 = vadd.f32 %v2783, %v3411
    %v3413 = vpop.f32.mrf.mxu0
    %3414 = vmatprep.mubr.f32.mxu0 0.0
    %3415 = vmatmul.mubr.f32.gmra.mxu0 %v2895
    %v3416 = vpop.f32.mrf.mxu0
    %v3417 = vadd.f32 %v2783, %v3416
    %v3418 = vpop.f32.mrf.mxu0
    %3419 = vmatprep.mubr.f32.mxu0 0.0
    %3420 = vmatmul.mubr.f32.gmra.mxu0 %v2898
    %v3421 = vpop.f32.mrf.mxu0
    %v3422 = vadd.f32 %v2783, %v3421
    %v3423 = vpop.f32.mrf.mxu0
    %3424 = vmatprep.mubr.f32.mxu0 0.0
    %3425 = vmatmul.mubr.f32.gmra.mxu0 %v2901
    %v3426 = vpop.f32.mrf.mxu0
    %v3427 = vadd.f32 %v2783, %v3426
    %v3428 = vpop.f32.mrf.mxu0
    %3429 = vmatprep.mubr.f32.mxu0 0.0
    %3430 = vmatmul.mubr.f32.gmra.mxu0 %v2904
    %v3431 = vpop.f32.mrf.mxu0
    %v3432 = vadd.f32 %v2783, %v3431
    %v3433 = vpop.f32.mrf.mxu0
    %3434 = vmatprep.mubr.f32.mxu0 0.0
    %3435 = vmatmul.mubr.f32.gmra.mxu0 %v2907
    %v3436 = vpop.f32.mrf.mxu0
    %v3437 = vadd.f32 %v2783, %v3436
    %v3438 = vpop.f32.mrf.mxu0
    %3439 = vmatprep.mubr.f32.mxu0 0.0
    %3440 = vmatmul.mubr.f32.gmra.mxu0 %v2910
    %v3441 = vpop.f32.mrf.mxu0
    %v3442 = vadd.f32 %v2783, %v3441
    %v3443 = vpop.f32.mrf.mxu0
    %3444 = vmatprep.mubr.f32.mxu0 0.0
    %3445 = vmatmul.mubr.f32.gmra.mxu0 %v2913
    %v3446 = vpop.f32.mrf.mxu0
    %v3447 = vadd.f32 %v2783, %v3446
    %v3448 = vpop.f32.mrf.mxu0
    %3449 = vmatprep.mubr.f32.mxu0 0.0
    %3450 = vmatmul.mubr.f32.gmra.mxu0 %v2916
    %v3451 = vpop.f32.mrf.mxu0
    %v3452 = vadd.f32 %v2783, %v3451
    %v3453 = vpop.f32.mrf.mxu0
    %3454 = vmatprep.mubr.f32.mxu0 0.0
    %3455 = vmatmul.mubr.f32.gmra.mxu0 %v2919
    %v3456 = vpop.f32.mrf.mxu0
    %v3457 = vadd.f32 %v2783, %v3456
    %v3458 = vpop.f32.mrf.mxu0
    %3459 = vmatprep.mubr.f32.mxu0 0.0
    %3460 = vmatmul.mubr.f32.gmra.mxu0 %v2922
    %v3461 = vpop.f32.mrf.mxu0
    %v3462 = vadd.f32 %v2783, %v3461
    %v3463 = vpop.f32.mrf.mxu0
    %3464 = vmatprep.mubr.f32.mxu0 0.0
    %3465 = vmatmul.mubr.f32.gmra.mxu0 %v2925
    %v3466 = vpop.f32.mrf.mxu0
    %v3467 = vadd.f32 %v2783, %v3466
    %v3468 = vpop.f32.mrf.mxu0
    %3469 = vmatprep.mubr.f32.mxu0 0.0
    %3470 = vmatmul.mubr.f32.gmra.mxu0 %v2928
    %v3471 = vpop.f32.mrf.mxu0
    %v3472 = vadd.f32 %v2783, %v3471
    %v3473 = vpop.f32.mrf.mxu0
    %3474 = vmatprep.mubr.f32.mxu0 0.0
    %3475 = vmatmul.mubr.f32.gmra.mxu0 %v2931
    %v3476 = vpop.f32.mrf.mxu0
    %v3477 = vadd.f32 %v2783, %v3476
    %v3478 = vpop.f32.mrf.mxu0
    %3479 = vmatprep.mubr.f32.mxu0 0.0
    %3480 = vmatmul.mubr.f32.gmra.mxu0 %v2934
    %v3481 = vpop.f32.mrf.mxu0
    %v3482 = vadd.f32 %v2783, %v3481
    %v3483 = vpop.f32.mrf.mxu0
    %3484 = vmatprep.mubr.f32.mxu0 0.0
    %3485 = vmatmul.mubr.f32.gmra.mxu0 %v2937
    %v3486 = vpop.f32.mrf.mxu0
    %v3487 = vadd.f32 %v2783, %v3486
    %v3488 = vpop.f32.mrf.mxu0
    %3489 = vmatprep.mubr.f32.mxu0 0.0
    %3490 = vmatmul.mubr.f32.gmra.mxu0 %v2940
    %v3491 = vpop.f32.mrf.mxu0
    %v3492 = vadd.f32 %v2783, %v3491
    %v3493 = vpop.f32.mrf.mxu0
    %3494 = vmatprep.mubr.f32.mxu0 0.0
    %3495 = vmatmul.mubr.f32.gmra.mxu0 %v2943
    %v3496 = vpop.f32.mrf.mxu0
    %v3497 = vadd.f32 %v2783, %v3496
    %v3498 = vpop.f32.mrf.mxu0
    %3499 = vmatprep.mubr.f32.mxu0 0.0
    %3500 = vmatmul.mubr.f32.gmra.mxu0 %v2946
    %v3501 = vpop.f32.mrf.mxu0
    %v3502 = vadd.f32 %v2783, %v3501
    %v3503 = vpop.f32.mrf.mxu0
    %3504 = vmatprep.mubr.f32.mxu0 0.0
    %3505 = vmatmul.mubr.f32.gmra.mxu0 %v2949
    %v3506 = vpop.f32.mrf.mxu0
    %v3507 = vadd.f32 %v2783, %v3506
    %v3508 = vpop.f32.mrf.mxu0
    %3509 = vmatprep.mubr.f32.mxu0 0.0
    %3510 = vmatmul.mubr.f32.gmra.mxu0 %v2952
    %v3511 = vpop.f32.mrf.mxu0
    %v3512 = vadd.f32 %v2783, %v3511
    %v3513 = vpop.f32.mrf.mxu0
    %3514 = vmatprep.mubr.f32.mxu0 0.0
    %3515 = vmatmul.mubr.f32.gmra.mxu0 %v2955
    %v3516 = vpop.f32.mrf.mxu0
    %v3517 = vadd.f32 %v2783, %v3516
    %v3518 = vpop.f32.mrf.mxu0
    %3519 = vmatprep.mubr.f32.mxu0 0.0
    %3520 = vmatmul.mubr.f32.gmra.mxu0 %v2958
    %v3521 = vpop.f32.mrf.mxu0
    %v3522 = vadd.f32 %v2783, %v3521
    %v3523 = vpop.f32.mrf.mxu0
    %3524 = vmatprep.mubr.f32.mxu0 0.0
    %3525 = vmatmul.mubr.f32.gmra.mxu0 %v2961
    %v3526 = vpop.f32.mrf.mxu0
    %v3527 = vadd.f32 %v2783, %v3526
    %v3528 = vpop.f32.mrf.mxu0
    %3529 = vmatprep.mubr.f32.mxu0 0.0
    %3530 = vmatmul.mubr.f32.gmra.mxu0 %v2964
    %v3531 = vpop.f32.mrf.mxu0
    %v3532 = vadd.f32 %v2783, %v3531
    %v3533 = vpop.f32.mrf.mxu0
    %3534 = vmatprep.mubr.f32.mxu0 0.0
    %3535 = vmatmul.mubr.f32.gmra.mxu0 %v2967
    %v3536 = vpop.f32.mrf.mxu0
    %v3537 = vadd.f32 %v2783, %v3536
    %v3538 = vpop.f32.mrf.mxu0
    %3539 = vmatprep.mubr.f32.mxu0 0.0
    %3540 = vmatmul.mubr.f32.gmra.mxu0 %v2970
    %v3541 = vpop.f32.mrf.mxu0
    %v3542 = vadd.f32 %v2783, %v3541
    %v3543 = vpop.f32.mrf.mxu0
    %3544 = vmatprep.mubr.f32.mxu0 0.0
    %3545 = vmatmul.mubr.f32.gmra.mxu0 %v2973
    %v3546 = vpop.f32.mrf.mxu0
    %v3547 = vadd.f32 %v2783, %v3546
    %v3548 = vpop.f32.mrf.mxu0
    %3549 = vmatprep.mubr.f32.mxu0 0.0
    %3550 = vmatmul.mubr.f32.gmra.mxu0 %v2976
    %v3551 = vpop.f32.mrf.mxu0
    %v3552 = vadd.f32 %v2783, %v3551
    %v3553 = vpop.f32.mrf.mxu0
    %3554 = vmatprep.mubr.f32.mxu0 0.0
    %3555 = vmatmul.mubr.f32.gmra.mxu0 %v2979
    %v3556 = vpop.f32.mrf.mxu0
    %v3557 = vadd.f32 %v2783, %v3556
    %v3558 = vpop.f32.mrf.mxu0
    %3559 = vmatprep.mubr.f32.mxu0 0.0
    %3560 = vmatmul.mubr.f32.gmra.mxu0 %v2982
    %v3561 = vpop.f32.mrf.mxu0
    %v3562 = vadd.f32 %v2783, %v3561
    %v3563 = vpop.f32.mrf.mxu0
    %3564 = vmatprep.mubr.f32.mxu0 0.0
    %3565 = vmatmul.mubr.f32.gmra.mxu0 %v2985
    %v3566 = vpop.f32.mrf.mxu0
    %v3567 = vadd.f32 %v2783, %v3566
    %v3568 = vpop.f32.mrf.mxu0
    %3569 = vmatprep.mubr.f32.mxu0 0.0
    %3570 = vmatmul.mubr.f32.gmra.mxu0 %v2988
    %v3571 = vpop.f32.mrf.mxu0
    %v3572 = vadd.f32 %v2783, %v3571
    %v3573 = vpop.f32.mrf.mxu0
    %3574 = vmatprep.mubr.f32.mxu0 0.0
    %3575 = vmatmul.mubr.f32.gmra.mxu0 %v2991
    %v3576 = vpop.f32.mrf.mxu0
    %v3577 = vadd.f32 %v2783, %v3576
    %v3578 = vpop.f32.mrf.mxu0
    %3579 = vmatprep.mubr.f32.mxu0 0.0
    %3580 = vmatmul.mubr.f32.gmra.mxu0 %v2994
    %v3581 = vpop.f32.mrf.mxu0
    %v3582 = vadd.f32 %v2783, %v3581
    %v3583 = vpop.f32.mrf.mxu0
    %3584 = vmatprep.mubr.f32.mxu0 0.0
    %3585 = vmatmul.mubr.f32.gmra.mxu0 %v2997
    %v3586 = vpop.f32.mrf.mxu0
    %v3587 = vadd.f32 %v2783, %v3586
    %v3588 = vpop.f32.mrf.mxu0
    %3589 = vmatprep.mubr.f32.mxu0 0.0
    %3590 = vmatmul.mubr.f32.gmra.mxu0 %v3000
    %v3591 = vpop.f32.mrf.mxu0
    %v3592 = vadd.f32 %v2783, %v3591
    %v3593 = vpop.f32.mrf.mxu0
    %3594 = vmatprep.mubr.f32.mxu0 0.0
    %3595 = vmatmul.mubr.f32.gmra.mxu0 %v3003
    %v3596 = vpop.f32.mrf.mxu0
    %v3597 = vadd.f32 %v2783, %v3596
    %v3598 = vpop.f32.mrf.mxu0
    %3599 = vmatprep.mubr.f32.mxu0 0.0
    %3600 = vmatmul.mubr.f32.gmra.mxu0 %v3006
    %v3601 = vpop.f32.mrf.mxu0
    %v3602 = vadd.f32 %v2783, %v3601
    %v3603 = vpop.f32.mrf.mxu0
    %3604 = vmatprep.mubr.f32.mxu0 0.0
    %3605 = vmatmul.mubr.f32.gmra.mxu0 %v3009
    %v3606 = vpop.f32.mrf.mxu0
    %v3607 = vadd.f32 %v2783, %v3606
    %v3608 = vpop.f32.mrf.mxu0
    %3609 = vmatprep.mubr.f32.mxu0 0.0
    %3610 = vmatmul.mubr.f32.gmra.mxu0 %v3012
    %v3611 = vpop.f32.mrf.mxu0
    %v3612 = vadd.f32 %v2783, %v3611
    %v3613 = vpop.f32.mrf.mxu0
    %3614 = vmatprep.mubr.f32.mxu0 0.0
    %3615 = vmatmul.mubr.f32.gmra.mxu0 %v3015
    %v3616 = vpop.f32.mrf.mxu0
    %v3617 = vadd.f32 %v2783, %v3616
    %v3618 = vpop.f32.mrf.mxu0
    %3619 = vmatprep.mubr.f32.mxu0 0.0
    %3620 = vmatmul.mubr.f32.gmra.mxu0 %v3018
    %v3621 = vpop.f32.mrf.mxu0
    %v3622 = vadd.f32 %v2783, %v3621
    %v3623 = vpop.f32.mrf.mxu0
    %3624 = vmatprep.mubr.f32.mxu0 0.0
    %3625 = vmatmul.mubr.f32.gmra.mxu0 %v3021
    %v3626 = vpop.f32.mrf.mxu0
    %v3627 = vadd.f32 %v2783, %v3626
    %v3628 = vpop.f32.mrf.mxu0
    %3629 = vmatprep.mubr.f32.mxu0 0.0
    %3630 = vmatmul.mubr.f32.gmra.mxu0 %v3024
    %v3631 = vpop.f32.mrf.mxu0
    %v3632 = vadd.f32 %v2783, %v3631
    %v3633 = vpop.f32.mrf.mxu0
    %3634 = vmatprep.mubr.f32.mxu0 0.0
    %3635 = vmatmul.mubr.f32.gmra.mxu0 %v3027
    %v3636 = vpop.f32.mrf.mxu0
    %v3637 = vadd.f32 %v2783, %v3636
    %v3638 = vpop.f32.mrf.mxu0
    %3639 = vmatprep.mubr.f32.mxu0 0.0
    %3640 = vmatmul.mubr.f32.gmra.mxu0 %v3030
    %v3641 = vpop.f32.mrf.mxu0
    %v3642 = vadd.f32 %v2783, %v3641
    %v3643 = vpop.f32.mrf.mxu0
    %3644 = vmatprep.mubr.f32.mxu0 0.0
    %3645 = vmatmul.mubr.f32.gmra.mxu0 %v3033
    %v3646 = vpop.f32.mrf.mxu0
    %v3647 = vadd.f32 %v2783, %v3646
    %v3648 = vpop.f32.mrf.mxu0
    %3649 = vmatprep.mubr.f32.mxu0 0.0
    %3650 = vmatmul.mubr.f32.gmra.mxu0 %v3036
    %v3651 = vpop.f32.mrf.mxu0
    %v3652 = vadd.f32 %v2783, %v3651
    %v3653 = vpop.f32.mrf.mxu0
    %3654 = vmatprep.mubr.f32.mxu0 0.0
    %3655 = vmatmul.mubr.f32.gmra.mxu0 %v3039
    %v3656 = vpop.f32.mrf.mxu0
    %v3657 = vadd.f32 %v2783, %v3656
    %v3658 = vpop.f32.mrf.mxu0
    %3659 = vmatprep.mubr.f32.mxu0 0.0
    %3660 = vmatmul.mubr.f32.gmra.mxu0 %v3042
    %v3661 = vpop.f32.mrf.mxu0
    %v3662 = vadd.f32 %v2783, %v3661
    %v3663 = vpop.f32.mrf.mxu0
    %3664 = vmatprep.mubr.f32.mxu0 0.0
    %3665 = vmatmul.mubr.f32.gmra.mxu0 %v3045
    %v3666 = vpop.f32.mrf.mxu0
    %v3667 = vadd.f32 %v2783, %v3666
    %v3668 = vpop.f32.mrf.mxu0
    %3669 = vmatprep.mubr.f32.mxu0 0.0
    %3670 = vmatmul.mubr.f32.gmra.mxu0 %v3048
    %v3671 = vpop.f32.mrf.mxu0
    %v3672 = vadd.f32 %v2783, %v3671
    %v3673 = vpop.f32.mrf.mxu0
    %3674 = vmatprep.mubr.f32.mxu0 0.0
    %3675 = vmatmul.mubr.f32.gmra.mxu0 %v3051
    %v3676 = vpop.f32.mrf.mxu0
    %v3677 = vadd.f32 %v2783, %v3676
    %v3678 = vpop.f32.mrf.mxu0
    %3679 = vmatprep.mubr.f32.mxu0 0.0
    %3680 = vmatmul.mubr.f32.gmra.mxu0 %v3054
    %v3681 = vpop.f32.mrf.mxu0
    %v3682 = vadd.f32 %v2783, %v3681
    %v3683 = vpop.f32.mrf.mxu0
    %3684 = vmatprep.mubr.f32.mxu0 0.0
    %3685 = vmatmul.mubr.f32.gmra.mxu0 %v3057
    %v3686 = vpop.f32.mrf.mxu0
    %v3687 = vadd.f32 %v2783, %v3686
    %v3688 = vpop.f32.mrf.mxu0
    %3689 = vmatprep.mubr.f32.mxu0 0.0
    %3690 = vmatmul.mubr.f32.gmra.mxu0 %v3060
    %v3691 = vpop.f32.mrf.mxu0
    %v3692 = vadd.f32 %v2783, %v3691
    %v3693 = vpop.f32.mrf.mxu0
    %3694 = vmatprep.mubr.f32.mxu0 0.0
    %3695 = vmatmul.mubr.f32.gmra.mxu0 %v3063
    %v3696 = vpop.f32.mrf.mxu0
    %v3697 = vadd.f32 %v2783, %v3696
    %v3698 = vpop.f32.mrf.mxu0
    %3699 = vmatprep.mubr.f32.mxu0 0.0
    %3700 = vmatmul.mubr.f32.gmra.mxu0 %v3066
    %v3701 = vpop.f32.mrf.mxu0
    %v3702 = vadd.f32 %v2783, %v3701
    %v3703 = vpop.f32.mrf.mxu0
    %3704 = vmatprep.mubr.f32.mxu0 0.0
    %3705 = vmatmul.mubr.f32.gmra.mxu0 %v3069
    %v3706 = vpop.f32.mrf.mxu0
    %v3707 = vadd.f32 %v2783, %v3706
    %v3708 = vpop.f32.mrf.mxu0
    %3709 = vmatprep.mubr.f32.mxu0 0.0
    %3710 = vmatmul.mubr.f32.gmra.mxu0 %v3072
    %v3711 = vpop.f32.mrf.mxu0
    %v3712 = vadd.f32 %v2783, %v3711
    %v3713 = vpop.f32.mrf.mxu0
    %3714 = vmatprep.mubr.f32.mxu0 0.0
    %3715 = vmatmul.mubr.f32.gmra.mxu0 %v3075
    %v3716 = vpop.f32.mrf.mxu0
    %v3717 = vadd.f32 %v2783, %v3716
    %v3718 = vpop.f32.mrf.mxu0
    %3719 = vmatprep.mubr.f32.mxu0 0.0
    %3720 = vmatmul.mubr.f32.gmra.mxu0 %v3078
    %v3721 = vpop.f32.mrf.mxu0
    %v3722 = vadd.f32 %v2783, %v3721
    %v3723 = vpop.f32.mrf.mxu0
    %3724 = vmatprep.mubr.f32.mxu0 0.0
    %3725 = vmatmul.mubr.f32.gmra.mxu0 %v3081
    %v3726 = vpop.f32.mrf.mxu0
    %v3727 = vadd.f32 %v2783, %v3726
    %v3728 = vpop.f32.mrf.mxu0
    %3729 = vmatprep.mubr.f32.mxu0 0.0
    %3730 = vmatmul.mubr.f32.gmra.mxu0 %v3084
    %v3731 = vpop.f32.mrf.mxu0
    %v3732 = vadd.f32 %v2783, %v3731
    %v3733 = vpop.f32.mrf.mxu0
    %3734 = vmatprep.mubr.f32.mxu0 0.0
    %3735 = vmatmul.mubr.f32.gmra.mxu0 %v3087
    %v3736 = vpop.f32.mrf.mxu0
    %v3737 = vadd.f32 %v2783, %v3736
    %v3738 = vpop.f32.mrf.mxu0
    %3739 = vmatprep.mubr.f32.mxu0 0.0
    %3740 = vmatmul.mubr.f32.gmra.mxu0 %v3090
    %v3741 = vpop.f32.mrf.mxu0
    %v3742 = vadd.f32 %v2783, %v3741
    %v3743 = vpop.f32.mrf.mxu0
    %3744 = vmatprep.mubr.f32.mxu0 0.0
    %3745 = vmatmul.mubr.f32.gmra.mxu0 %v3093
    %v3746 = vpop.f32.mrf.mxu0
    %v3747 = vadd.f32 %v2783, %v3746
    %v3748 = vpop.f32.mrf.mxu0
    %3749 = vmatprep.mubr.f32.mxu0 0.0
    %3750 = vmatmul.mubr.f32.gmra.mxu0 %v3096
    %v3751 = vpop.f32.mrf.mxu0
    %v3752 = vadd.f32 %v2783, %v3751
    %v3753 = vpop.f32.mrf.mxu0
    %3754 = vmatprep.mubr.f32.mxu0 0.0
    %3755 = vmatmul.mubr.f32.gmra.mxu0 %v3099
    %v3756 = vpop.f32.mrf.mxu0
    %v3757 = vadd.f32 %v2783, %v3756
    %v3758 = vpop.f32.mrf.mxu0
    %3759 = vmatprep.mubr.f32.mxu0 0.0
    %3760 = vmatmul.mubr.f32.gmra.mxu0 %v3102
    %v3761 = vpop.f32.mrf.mxu0
    %v3762 = vadd.f32 %v2783, %v3761
    %v3763 = vpop.f32.mrf.mxu0
    %3764 = vmatprep.mubr.f32.mxu0 0.0
    %3765 = vmatmul.mubr.f32.gmra.mxu0 %v3105
    %v3766 = vpop.f32.mrf.mxu0
    %v3767 = vadd.f32 %v2783, %v3766
    %v3768 = vpop.f32.mrf.mxu0
    %3769 = vmatprep.mubr.f32.mxu0 0.0
    %3770 = vmatmul.mubr.f32.gmra.mxu0 %v3108
    %v3771 = vpop.f32.mrf.mxu0
    %v3772 = vadd.f32 %v2783, %v3771
    %v3773 = vpop.f32.mrf.mxu0
    %3774 = vmatprep.mubr.f32.mxu0 0.0
    %3775 = vmatmul.mubr.f32.gmra.mxu0 %v3111
    %v3776 = vpop.f32.mrf.mxu0
    %v3777 = vadd.f32 %v2783, %v3776
    %v3778 = vpop.f32.mrf.mxu0
    %3779 = vmatprep.mubr.f32.mxu0 0.0
    %3780 = vmatmul.mubr.f32.gmra.mxu0 %v3114
    %v3781 = vpop.f32.mrf.mxu0
    %v3782 = vadd.f32 %v2783, %v3781
    %v3783 = vpop.f32.mrf.mxu0
    %3784 = vmatprep.mubr.f32.mxu0 0.0
    %3785 = vmatmul.mubr.f32.gmra.mxu0 %v3117
    %v3786 = vpop.f32.mrf.mxu0
    %v3787 = vadd.f32 %v2783, %v3786
    %v3788 = vpop.f32.mrf.mxu0
    %3789 = vmatprep.mubr.f32.mxu0 0.0
    %3790 = vmatmul.mubr.f32.gmra.mxu0 %v3120
    %v3791 = vpop.f32.mrf.mxu0
    %v3792 = vadd.f32 %v2783, %v3791
    %v3793 = vpop.f32.mrf.mxu0
    %3794 = vmatprep.mubr.f32.mxu0 0.0
    %3795 = vmatmul.mubr.f32.gmra.mxu0 %v3123
    %v3796 = vpop.f32.mrf.mxu0
    %v3797 = vadd.f32 %v2783, %v3796
    %v3798 = vpop.f32.mrf.mxu0
    %3799 = vmatprep.mubr.f32.mxu0 0.0
    %3800 = vmatmul.mubr.f32.gmra.mxu0 %v3126
    %v3801 = vpop.f32.mrf.mxu0
    %v3802 = vadd.f32 %v2783, %v3801
    %v3803 = vpop.f32.mrf.mxu0
    %3804 = vmatprep.mubr.f32.mxu0 0.0
    %3805 = vmatmul.mubr.f32.gmra.mxu0 %v3129
    %v3806 = vpop.f32.mrf.mxu0
    %v3807 = vadd.f32 %v2783, %v3806
    %v3808 = vpop.f32.mrf.mxu0
    %3809 = vmatprep.mubr.f32.mxu0 0.0
    %3810 = vmatmul.mubr.f32.gmra.mxu0 %v3132
    %v3811 = vpop.f32.mrf.mxu0
    %v3812 = vadd.f32 %v2783, %v3811
    %v3813 = vpop.f32.mrf.mxu0
    %3814 = vmatprep.mubr.f32.mxu0 0.0
    %3815 = vmatmul.mubr.f32.gmra.mxu0 %v3135
    %v3816 = vpop.f32.mrf.mxu0
    %v3817 = vadd.f32 %v2783, %v3816
    %v3818 = vpop.f32.mrf.mxu0
    %3819 = vmatprep.mubr.f32.mxu0 0.0
    %3820 = vmatmul.mubr.f32.gmra.mxu0 %v3138
    %v3821 = vpop.f32.mrf.mxu0
    %v3822 = vadd.f32 %v2783, %v3821
    %v3823 = vpop.f32.mrf.mxu0
    %3824 = vmatprep.mubr.f32.mxu0 0.0
    %3825 = vmatmul.mubr.f32.gmra.mxu0 %v3141
    %v3826 = vpop.f32.mrf.mxu0
    %v3827 = vadd.f32 %v2783, %v3826
    %v3828 = vpop.f32.mrf.mxu0
    %3829 = vmatprep.mubr.f32.mxu0 0.0
    %3830 = vmatmul.mubr.f32.gmra.mxu0 %v3144
    %v3831 = vpop.f32.mrf.mxu0
    %v3832 = vadd.f32 %v2783, %v3831
    %v3833 = vpop.f32.mrf.mxu0
    %3834 = vmatprep.mubr.f32.mxu0 0.0
    %3835 = vmatmul.mubr.f32.gmra.mxu0 %v3147
    %v3836 = vpop.f32.mrf.mxu0
    %v3837 = vadd.f32 %v2783, %v3836
    %v3838 = vpop.f32.mrf.mxu0
    %3839 = vmatprep.mubr.f32.mxu0 0.0
    %3840 = vmatmul.mubr.f32.gmra.mxu0 %v3150
    %v3841 = vpop.f32.mrf.mxu0
    %v3842 = vadd.f32 %v2783, %v3841
    %v3843 = vpop.f32.mrf.mxu0
    %3844 = vmatprep.mubr.f32.mxu0 0.0
    %3845 = vmatmul.mubr.f32.gmra.mxu0 %v3153
    %v3846 = vpop.f32.mrf.mxu0
    %v3847 = vadd.f32 %v2783, %v3846
    %v3848 = vpop.f32.mrf.mxu0
    %3849 = vmatprep.mubr.f32.mxu0 0.0
    %3850 = vmatmul.mubr.f32.gmra.mxu0 %v3156
    %v3851 = vpop.f32.mrf.mxu0
    %v3852 = vadd.f32 %v2783, %v3851
    %v3853 = vpop.f32.mrf.mxu0
    %3854 = vmatprep.mubr.f32.mxu0 0.0
    %3855 = vmatmul.mubr.f32.gmra.mxu0 %v3159
    %v3856 = vpop.f32.mrf.mxu0
    %v3857 = vadd.f32 %v2783, %v3856
    %v3858 = vpop.f32.mrf.mxu0
    %3859 = vmatprep.mubr.f32.mxu0 0.0
    %3860 = vmatmul.mubr.f32.gmra.mxu0 %v3162
    %v3861 = vpop.f32.mrf.mxu0
    %v3862 = vadd.f32 %v2783, %v3861
    %v3863 = vpop.f32.mrf.mxu0
    %3864 = vmatprep.mubr.f32.mxu0 0.0
    %3865 = vmatmul.mubr.f32.gmra.mxu0 %v3165
    %v3866 = vpop.f32.mrf.mxu0
    %v3867 = vadd.f32 %v2783, %v3866
    %v3868 = vpop.f32.mrf.mxu0
    %3869 = vmatprep.mubr.f32.mxu0 0.0
    %3870 = vmatmul.mubr.f32.gmra.mxu0 %v3168
    %v3871 = vpop.f32.mrf.mxu0
    %v3872 = vadd.f32 %v2783, %v3871
    %v3873 = vpop.f32.mrf.mxu0
    %3874 = vdwg.mxu0
    %v3875 = vmax.f32 %v3237, 0.0
    %v3876 = vmax.f32 %v3242, 0.0
    %v3877 = vmax.f32 %v3247, 0.0
    %v3878 = vmax.f32 %v3252, 0.0
    %v3879 = vmax.f32 %v3257, 0.0
    %v3880 = vmax.f32 %v3262, 0.0
    %v3881 = vmax.f32 %v3267, 0.0
    %v3882 = vmax.f32 %v3272, 0.0
    %v3883 = vmax.f32 %v3277, 0.0
    %v3884 = vmax.f32 %v3282, 0.0
    %v3885 = vmax.f32 %v3287, 0.0
    %v3886 = vmax.f32 %v3292, 0.0
    %v3887 = vmax.f32 %v3297, 0.0
    %v3888 = vmax.f32 %v3302, 0.0
    %v3889 = vmax.f32 %v3307, 0.0
    %v3890 = vmax.f32 %v3312, 0.0
    %v3891 = vmax.f32 %v3317, 0.0
    %v3892 = vmax.f32 %v3322, 0.0
    %v3893 = vmax.f32 %v3327, 0.0
    %v3894 = vmax.f32 %v3332, 0.0
    %v3895 = vmax.f32 %v3337, 0.0
    %v3896 = vmax.f32 %v3342, 0.0
    %v3897 = vmax.f32 %v3347, 0.0
    %v3898 = vmax.f32 %v3352, 0.0
    %v3899 = vmax.f32 %v3357, 0.0
    %v3900 = vmax.f32 %v3362, 0.0
    %v3901 = vmax.f32 %v3367, 0.0
    %v3902 = vmax.f32 %v3372, 0.0
    %v3903 = vmax.f32 %v3377, 0.0
    %v3904 = vmax.f32 %v3382, 0.0
    %v3905 = vmax.f32 %v3387, 0.0
    %v3906 = vmax.f32 %v3392, 0.0
    %v3907 = vmax.f32 %v3397, 0.0
    %v3908 = vmax.f32 %v3402, 0.0
    %v3909 = vmax.f32 %v3407, 0.0
    %v3910 = vmax.f32 %v3412, 0.0
    %v3911 = vmax.f32 %v3417, 0.0
    %v3912 = vmax.f32 %v3422, 0.0
    %v3913 = vmax.f32 %v3427, 0.0
    %v3914 = vmax.f32 %v3432, 0.0
    %v3915 = vmax.f32 %v3437, 0.0
    %v3916 = vmax.f32 %v3442, 0.0
    %v3917 = vmax.f32 %v3447, 0.0
    %v3918 = vmax.f32 %v3452, 0.0
    %v3919 = vmax.f32 %v3457, 0.0
    %v3920 = vmax.f32 %v3462, 0.0
    %v3921 = vmax.f32 %v3467, 0.0
    %v3922 = vmax.f32 %v3472, 0.0
    %v3923 = vmax.f32 %v3477, 0.0
    %v3924 = vmax.f32 %v3482, 0.0
    %v3925 = vmax.f32 %v3487, 0.0
    %v3926 = vmax.f32 %v3492, 0.0
    %v3927 = vmax.f32 %v3497, 0.0
    %v3928 = vmax.f32 %v3502, 0.0
    %v3929 = vmax.f32 %v3507, 0.0
    %v3930 = vmax.f32 %v3512, 0.0
    %v3931 = vmax.f32 %v3517, 0.0
    %v3932 = vmax.f32 %v3522, 0.0
    %v3933 = vmax.f32 %v3527, 0.0
    %v3934 = vmax.f32 %v3532, 0.0
    %v3935 = vmax.f32 %v3537, 0.0
    %v3936 = vmax.f32 %v3542, 0.0
    %v3937 = vmax.f32 %v3547, 0.0
    %v3938 = vmax.f32 %v3552, 0.0
    %v3939 = vmax.f32 %v3557, 0.0
    %v3940 = vmax.f32 %v3562, 0.0
    %v3941 = vmax.f32 %v3567, 0.0
    %v3942 = vmax.f32 %v3572, 0.0
    %v3943 = vmax.f32 %v3577, 0.0
    %v3944 = vmax.f32 %v3582, 0.0
    %v3945 = vmax.f32 %v3587, 0.0
    %v3946 = vmax.f32 %v3592, 0.0
    %v3947 = vmax.f32 %v3597, 0.0
    %v3948 = vmax.f32 %v3602, 0.0
    %v3949 = vmax.f32 %v3607, 0.0
    %v3950 = vmax.f32 %v3612, 0.0
    %v3951 = vmax.f32 %v3617, 0.0
    %v3952 = vmax.f32 %v3622, 0.0
    %v3953 = vmax.f32 %v3627, 0.0
    %v3954 = vmax.f32 %v3632, 0.0
    %v3955 = vmax.f32 %v3637, 0.0
    %v3956 = vmax.f32 %v3642, 0.0
    %v3957 = vmax.f32 %v3647, 0.0
    %v3958 = vmax.f32 %v3652, 0.0
    %v3959 = vmax.f32 %v3657, 0.0
    %v3960 = vmax.f32 %v3662, 0.0
    %v3961 = vmax.f32 %v3667, 0.0
    %v3962 = vmax.f32 %v3672, 0.0
    %v3963 = vmax.f32 %v3677, 0.0
    %v3964 = vmax.f32 %v3682, 0.0
    %v3965 = vmax.f32 %v3687, 0.0
    %v3966 = vmax.f32 %v3692, 0.0
    %v3967 = vmax.f32 %v3697, 0.0
    %v3968 = vmax.f32 %v3702, 0.0
    %v3969 = vmax.f32 %v3707, 0.0
    %v3970 = vmax.f32 %v3712, 0.0
    %v3971 = vmax.f32 %v3717, 0.0
    %v3972 = vmax.f32 %v3722, 0.0
    %v3973 = vmax.f32 %v3727, 0.0
    %v3974 = vmax.f32 %v3732, 0.0
    %v3975 = vmax.f32 %v3737, 0.0
    %v3976 = vmax.f32 %v3742, 0.0
    %v3977 = vmax.f32 %v3747, 0.0
    %v3978 = vmax.f32 %v3752, 0.0
    %v3979 = vmax.f32 %v3757, 0.0
    %v3980 = vmax.f32 %v3762, 0.0
    %v3981 = vmax.f32 %v3767, 0.0
    %v3982 = vmax.f32 %v3772, 0.0
    %v3983 = vmax.f32 %v3777, 0.0
    %v3984 = vmax.f32 %v3782, 0.0
    %v3985 = vmax.f32 %v3787, 0.0
    %v3986 = vmax.f32 %v3792, 0.0
    %v3987 = vmax.f32 %v3797, 0.0
    %v3988 = vmax.f32 %v3802, 0.0
    %v3989 = vmax.f32 %v3807, 0.0
    %v3990 = vmax.f32 %v3812, 0.0
    %v3991 = vmax.f32 %v3817, 0.0
    %v3992 = vmax.f32 %v3822, 0.0
    %v3993 = vmax.f32 %v3827, 0.0
    %v3994 = vmax.f32 %v3832, 0.0
    %v3995 = vmax.f32 %v3837, 0.0
    %v3996 = vmax.f32 %v3842, 0.0
    %v3997 = vmax.f32 %v3847, 0.0
    %v3998 = vmax.f32 %v3852, 0.0
    %v3999 = vmax.f32 %v3857, 0.0
    %v4000 = vmax.f32 %v3862, 0.0
    %v4001 = vmax.f32 %v3867, 0.0
    %v4002 = vmax.f32 %v3872, 0.0
    %vm4003 = vcmask 523264
    %v4004 = vsel %vm4003, %v3875, -inf
    %v4005 = vsel %vm4003, %v3876, -inf
    %v4006 = vmax.f32 %v4004, %v4005
    %v4007 = vsel %vm4003, %v3877, -inf
    %v4008 = vmax.f32 %v4006, %v4007
    %v4009 = vsel %vm4003, %v3878, -inf
    %v4010 = vmax.f32 %v4008, %v4009
    %v4011 = vsel %vm4003, %v3879, -inf
    %v4012 = vmax.f32 %v4010, %v4011
    %v4013 = vsel %vm4003, %v3880, -inf
    %v4014 = vmax.f32 %v4012, %v4013
    %v4015 = vsel %vm4003, %v3881, -inf
    %v4016 = vmax.f32 %v4014, %v4015
    %v4017 = vsel %vm4003, %v3882, -inf
    %v4018 = vmax.f32 %v4016, %v4017
    %v4019 = vsel %vm4003, %v3883, -inf
    %v4020 = vmax.f32 %v4018, %v4019
    %v4021 = vsel %vm4003, %v3884, -inf
    %v4022 = vmax.f32 %v4020, %v4021
    %v4023 = vsel %vm4003, %v3885, -inf
    %v4024 = vmax.f32 %v4022, %v4023
    %v4025 = vsel %vm4003, %v3886, -inf
    %v4026 = vmax.f32 %v4024, %v4025
    %v4027 = vsel %vm4003, %v3887, -inf
    %v4028 = vmax.f32 %v4026, %v4027
    %v4029 = vsel %vm4003, %v3888, -inf
    %v4030 = vmax.f32 %v4028, %v4029
    %v4031 = vsel %vm4003, %v3889, -inf
    %v4032 = vmax.f32 %v4030, %v4031
    %v4033 = vsel %vm4003, %v3890, -inf
    %v4034 = vmax.f32 %v4032, %v4033
    %v4035 = vsel %vm4003, %v3891, -inf
    %v4036 = vmax.f32 %v4034, %v4035
    %v4037 = vsel %vm4003, %v3892, -inf
    %v4038 = vmax.f32 %v4036, %v4037
    %v4039 = vsel %vm4003, %v3893, -inf
    %v4040 = vmax.f32 %v4038, %v4039
    %v4041 = vsel %vm4003, %v3894, -inf
    %v4042 = vmax.f32 %v4040, %v4041
    %v4043 = vsel %vm4003, %v3895, -inf
    %v4044 = vmax.f32 %v4042, %v4043
    %v4045 = vsel %vm4003, %v3896, -inf
    %v4046 = vmax.f32 %v4044, %v4045
    %v4047 = vsel %vm4003, %v3897, -inf
    %v4048 = vmax.f32 %v4046, %v4047
    %v4049 = vsel %vm4003, %v3898, -inf
    %v4050 = vmax.f32 %v4048, %v4049
    %v4051 = vsel %vm4003, %v3899, -inf
    %v4052 = vmax.f32 %v4050, %v4051
    %v4053 = vsel %vm4003, %v3900, -inf
    %v4054 = vmax.f32 %v4052, %v4053
    %v4055 = vsel %vm4003, %v3901, -inf
    %v4056 = vmax.f32 %v4054, %v4055
    %v4057 = vsel %vm4003, %v3902, -inf
    %v4058 = vmax.f32 %v4056, %v4057
    %v4059 = vsel %vm4003, %v3903, -inf
    %v4060 = vmax.f32 %v4058, %v4059
    %v4061 = vsel %vm4003, %v3904, -inf
    %v4062 = vmax.f32 %v4060, %v4061
    %v4063 = vsel %vm4003, %v3905, -inf
    %v4064 = vmax.f32 %v4062, %v4063
    %v4065 = vsel %vm4003, %v3906, -inf
    %v4066 = vmax.f32 %v4064, %v4065
    %v4067 = vrot.slane %v4066, 4
    %v4068 = vmax.f32 %v4066, %v4067
    %v4069 = vrot.slane %v4068, 2
    %v4070 = vmax.f32 %v4068, %v4069
    %v4071 = vrot.slane %v4070, 1
    %v4072 = vmax.f32 %v4070, %v4071
    %v4073 = vsel %vm4003, %v3907, -inf
    %v4074 = vsel %vm4003, %v3908, -inf
    %v4075 = vmax.f32 %v4073, %v4074
    %v4076 = vsel %vm4003, %v3909, -inf
    %v4077 = vmax.f32 %v4075, %v4076
    %v4078 = vsel %vm4003, %v3910, -inf
    %v4079 = vmax.f32 %v4077, %v4078
    %v4080 = vsel %vm4003, %v3911, -inf
    %v4081 = vmax.f32 %v4079, %v4080
    %v4082 = vsel %vm4003, %v3912, -inf
    %v4083 = vmax.f32 %v4081, %v4082
    %v4084 = vsel %vm4003, %v3913, -inf
    %v4085 = vmax.f32 %v4083, %v4084
    %v4086 = vsel %vm4003, %v3914, -inf
    %v4087 = vmax.f32 %v4085, %v4086
    %v4088 = vsel %vm4003, %v3915, -inf
    %v4089 = vmax.f32 %v4087, %v4088
    %v4090 = vsel %vm4003, %v3916, -inf
    %v4091 = vmax.f32 %v4089, %v4090
    %v4092 = vsel %vm4003, %v3917, -inf
    %v4093 = vmax.f32 %v4091, %v4092
    %v4094 = vsel %vm4003, %v3918, -inf
    %v4095 = vmax.f32 %v4093, %v4094
    %v4096 = vsel %vm4003, %v3919, -inf
    %v4097 = vmax.f32 %v4095, %v4096
    %v4098 = vsel %vm4003, %v3920, -inf
    %v4099 = vmax.f32 %v4097, %v4098
    %v4100 = vsel %vm4003, %v3921, -inf
    %v4101 = vmax.f32 %v4099, %v4100
    %v4102 = vsel %vm4003, %v3922, -inf
    %v4103 = vmax.f32 %v4101, %v4102
    %v4104 = vsel %vm4003, %v3923, -inf
    %v4105 = vmax.f32 %v4103, %v4104
    %v4106 = vsel %vm4003, %v3924, -inf
    %v4107 = vmax.f32 %v4105, %v4106
    %v4108 = vsel %vm4003, %v3925, -inf
    %v4109 = vmax.f32 %v4107, %v4108
    %v4110 = vsel %vm4003, %v3926, -inf
    %v4111 = vmax.f32 %v4109, %v4110
    %v4112 = vsel %vm4003, %v3927, -inf
    %v4113 = vmax.f32 %v4111, %v4112
    %v4114 = vsel %vm4003, %v3928, -inf
    %v4115 = vmax.f32 %v4113, %v4114
    %v4116 = vsel %vm4003, %v3929, -inf
    %v4117 = vmax.f32 %v4115, %v4116
    %v4118 = vsel %vm4003, %v3930, -inf
    %v4119 = vmax.f32 %v4117, %v4118
    %v4120 = vsel %vm4003, %v3931, -inf
    %v4121 = vmax.f32 %v4119, %v4120
    %v4122 = vsel %vm4003, %v3932, -inf
    %v4123 = vmax.f32 %v4121, %v4122
    %v4124 = vsel %vm4003, %v3933, -inf
    %v4125 = vmax.f32 %v4123, %v4124
    %v4126 = vsel %vm4003, %v3934, -inf
    %v4127 = vmax.f32 %v4125, %v4126
    %v4128 = vsel %vm4003, %v3935, -inf
    %v4129 = vmax.f32 %v4127, %v4128
    %v4130 = vsel %vm4003, %v3936, -inf
    %v4131 = vmax.f32 %v4129, %v4130
    %v4132 = vsel %vm4003, %v3937, -inf
    %v4133 = vmax.f32 %v4131, %v4132
    %v4134 = vsel %vm4003, %v3938, -inf
    %v4135 = vmax.f32 %v4133, %v4134
    %v4136 = vrot.slane %v4135, 4
    %v4137 = vmax.f32 %v4135, %v4136
    %v4138 = vrot.slane %v4137, 2
    %v4139 = vmax.f32 %v4137, %v4138
    %v4140 = vrot.slane %v4139, 1
    %v4141 = vmax.f32 %v4139, %v4140
    %v4142 = vsel %vm4003, %v3939, -inf
    %v4143 = vsel %vm4003, %v3940, -inf
    %v4144 = vmax.f32 %v4142, %v4143
    %v4145 = vsel %vm4003, %v3941, -inf
    %v4146 = vmax.f32 %v4144, %v4145
    %v4147 = vsel %vm4003, %v3942, -inf
    %v4148 = vmax.f32 %v4146, %v4147
    %v4149 = vsel %vm4003, %v3943, -inf
    %v4150 = vmax.f32 %v4148, %v4149
    %v4151 = vsel %vm4003, %v3944, -inf
    %v4152 = vmax.f32 %v4150, %v4151
    %v4153 = vsel %vm4003, %v3945, -inf
    %v4154 = vmax.f32 %v4152, %v4153
    %v4155 = vsel %vm4003, %v3946, -inf
    %v4156 = vmax.f32 %v4154, %v4155
    %v4157 = vsel %vm4003, %v3947, -inf
    %v4158 = vmax.f32 %v4156, %v4157
    %v4159 = vsel %vm4003, %v3948, -inf
    %v4160 = vmax.f32 %v4158, %v4159
    %v4161 = vsel %vm4003, %v3949, -inf
    %v4162 = vmax.f32 %v4160, %v4161
    %v4163 = vsel %vm4003, %v3950, -inf
    %v4164 = vmax.f32 %v4162, %v4163
    %v4165 = vsel %vm4003, %v3951, -inf
    %v4166 = vmax.f32 %v4164, %v4165
    %v4167 = vsel %vm4003, %v3952, -inf
    %v4168 = vmax.f32 %v4166, %v4167
    %v4169 = vsel %vm4003, %v3953, -inf
    %v4170 = vmax.f32 %v4168, %v4169
    %v4171 = vsel %vm4003, %v3954, -inf
    %v4172 = vmax.f32 %v4170, %v4171
    %v4173 = vsel %vm4003, %v3955, -inf
    %v4174 = vmax.f32 %v4172, %v4173
    %v4175 = vsel %vm4003, %v3956, -inf
    %v4176 = vmax.f32 %v4174, %v4175
    %v4177 = vsel %vm4003, %v3957, -inf
    %v4178 = vmax.f32 %v4176, %v4177
    %v4179 = vsel %vm4003, %v3958, -inf
    %v4180 = vmax.f32 %v4178, %v4179
    %v4181 = vsel %vm4003, %v3959, -inf
    %v4182 = vmax.f32 %v4180, %v4181
    %v4183 = vsel %vm4003, %v3960, -inf
    %v4184 = vmax.f32 %v4182, %v4183
    %v4185 = vsel %vm4003, %v3961, -inf
    %v4186 = vmax.f32 %v4184, %v4185
    %v4187 = vsel %vm4003, %v3962, -inf
    %v4188 = vmax.f32 %v4186, %v4187
    %v4189 = vsel %vm4003, %v3963, -inf
    %v4190 = vmax.f32 %v4188, %v4189
    %v4191 = vsel %vm4003, %v3964, -inf
    %v4192 = vmax.f32 %v4190, %v4191
    %v4193 = vsel %vm4003, %v3965, -inf
    %v4194 = vmax.f32 %v4192, %v4193
    %v4195 = vsel %vm4003, %v3966, -inf
    %v4196 = vmax.f32 %v4194, %v4195
    %v4197 = vsel %vm4003, %v3967, -inf
    %v4198 = vmax.f32 %v4196, %v4197
    %v4199 = vsel %vm4003, %v3968, -inf
    %v4200 = vmax.f32 %v4198, %v4199
    %v4201 = vsel %vm4003, %v3969, -inf
    %v4202 = vmax.f32 %v4200, %v4201
    %v4203 = vsel %vm4003, %v3970, -inf
    %v4204 = vmax.f32 %v4202, %v4203
    %v4205 = vrot.slane %v4204, 4
    %v4206 = vmax.f32 %v4204, %v4205
    %v4207 = vrot.slane %v4206, 2
    %v4208 = vmax.f32 %v4206, %v4207
    %v4209 = vrot.slane %v4208, 1
    %v4210 = vmax.f32 %v4208, %v4209
    %v4211 = vsel %vm4003, %v3971, -inf
    %v4212 = vsel %vm4003, %v3972, -inf
    %v4213 = vmax.f32 %v4211, %v4212
    %v4214 = vsel %vm4003, %v3973, -inf
    %v4215 = vmax.f32 %v4213, %v4214
    %v4216 = vsel %vm4003, %v3974, -inf
    %v4217 = vmax.f32 %v4215, %v4216
    %v4218 = vsel %vm4003, %v3975, -inf
    %v4219 = vmax.f32 %v4217, %v4218
    %v4220 = vsel %vm4003, %v3976, -inf
    %v4221 = vmax.f32 %v4219, %v4220
    %v4222 = vsel %vm4003, %v3977, -inf
    %v4223 = vmax.f32 %v4221, %v4222
    %v4224 = vsel %vm4003, %v3978, -inf
    %v4225 = vmax.f32 %v4223, %v4224
    %v4226 = vsel %vm4003, %v3979, -inf
    %v4227 = vmax.f32 %v4225, %v4226
    %v4228 = vsel %vm4003, %v3980, -inf
    %v4229 = vmax.f32 %v4227, %v4228
    %v4230 = vsel %vm4003, %v3981, -inf
    %v4231 = vmax.f32 %v4229, %v4230
    %v4232 = vsel %vm4003, %v3982, -inf
    %v4233 = vmax.f32 %v4231, %v4232
    %v4234 = vsel %vm4003, %v3983, -inf
    %v4235 = vmax.f32 %v4233, %v4234
    %v4236 = vsel %vm4003, %v3984, -inf
    %v4237 = vmax.f32 %v4235, %v4236
    %v4238 = vsel %vm4003, %v3985, -inf
    %v4239 = vmax.f32 %v4237, %v4238
    %v4240 = vsel %vm4003, %v3986, -inf
    %v4241 = vmax.f32 %v4239, %v4240
    %v4242 = vsel %vm4003, %v3987, -inf
    %v4243 = vmax.f32 %v4241, %v4242
    %v4244 = vsel %vm4003, %v3988, -inf
    %v4245 = vmax.f32 %v4243, %v4244
    %v4246 = vsel %vm4003, %v3989, -inf
    %v4247 = vmax.f32 %v4245, %v4246
    %v4248 = vsel %vm4003, %v3990, -inf
    %v4249 = vmax.f32 %v4247, %v4248
    %v4250 = vsel %vm4003, %v3991, -inf
    %v4251 = vmax.f32 %v4249, %v4250
    %v4252 = vsel %vm4003, %v3992, -inf
    %v4253 = vmax.f32 %v4251, %v4252
    %v4254 = vsel %vm4003, %v3993, -inf
    %v4255 = vmax.f32 %v4253, %v4254
    %v4256 = vsel %vm4003, %v3994, -inf
    %v4257 = vmax.f32 %v4255, %v4256
    %v4258 = vsel %vm4003, %v3995, -inf
    %v4259 = vmax.f32 %v4257, %v4258
    %v4260 = vsel %vm4003, %v3996, -inf
    %v4261 = vmax.f32 %v4259, %v4260
    %v4262 = vsel %vm4003, %v3997, -inf
    %v4263 = vmax.f32 %v4261, %v4262
    %v4264 = vsel %vm4003, %v3998, -inf
    %v4265 = vmax.f32 %v4263, %v4264
    %v4266 = vsel %vm4003, %v3999, -inf
    %v4267 = vmax.f32 %v4265, %v4266
    %v4268 = vsel %vm4003, %v4000, -inf
    %v4269 = vmax.f32 %v4267, %v4268
    %v4270 = vsel %vm4003, %v4001, -inf
    %v4271 = vmax.f32 %v4269, %v4270
    %v4272 = vsel %vm4003, %v4002, -inf
    %v4273 = vmax.f32 %v4271, %v4272
    %v4274 = vrot.slane %v4273, 4
    %v4275 = vmax.f32 %v4273, %v4274
    %v4276 = vrot.slane %v4275, 2
    %v4277 = vmax.f32 %v4275, %v4276
    %v4278 = vrot.slane %v4277, 1
    %v4279 = vmax.f32 %v4277, %v4278
    %p4280 = scmp.eq.s32.totalorder 0, 0
    // Predicated region
    $region54: #{tpu_custom_call.1} parent=1 // pred_check
      %p4281 = pneg %p4280
    $region55: #{tpu_custom_call.1} parent=1 // pred_check_branch
      %4283 = sbr.rel (%p4281) target = $region57
    $region56: #{tpu_custom_call.1} parent=1 // pred_region
      %vm4284 = vcmask 519168
      %4285 = vst.msk [vmem:[#allocation2] sm:$0xf] %vm4284, -inf
    $region57: #{tpu_custom_call.1} parent=1 // pred_fallthru
      _
    %v4286 = vld [vmem:[#allocation2] sm:$0xf]
    %vm4291 = vcmask 1041409
    %v4292 = vsel %vm4291, %v4141, %v4072
    %vm4293 = vcmask 1042434
    %v4294 = vsel %vm4293, %v4210, %v4292
    %vm4295 = vcmask 1043459
    %v4296 = vsel %vm4295, %v4279, %v4294
    %v4298 = vmax.f32 %v4286, %v4296
    %vm4299 = vcmask 519168
    %4300 = vst.msk [vmem:[#allocation2] sm:$0xf] %vm4299, %v4298
    // Predicated region
    $region58: #{tpu_custom_call.1} parent=1 // pred_check
      %p4301 = pneg %p4280
    $region59: #{tpu_custom_call.1} parent=1 // pred_check_branch
      %4303 = sbr.rel (%p4301) target = $region61
    $region60: #{tpu_custom_call.1} parent=1 // pred_region
      %v4304 = vld [vmem:[#allocation2] sm:$0xf]
      %v4305 = vld [vmem:[%s7] sm:$0xff]
      %v4306 = vld [vmem:[%s7 + $0x8] sm:$0xff]
      %v4307 = vld [vmem:[%s7 + $0x10] sm:$0xff]
      %v4308 = vld [vmem:[%s7 + $0x18] sm:$0xff]
      %v4309 = vld [vmem:[%s7 + $0x20] sm:$0xff]
      %v4310 = vld [vmem:[%s7 + $0x28] sm:$0xff]
      %v4311 = vld [vmem:[%s7 + $0x30] sm:$0xff]
      %v4312 = vld [vmem:[%s7 + $0x38] sm:$0xff]
      %v4313 = vld [vmem:[%s8] sm:$0x1]
      %v4315 = vlaneseq
      %v4316 = vshrl.u32 %v4315, 7
      %v4317 = vsub.s32 0, %v4316
      %v4318 = vrot.slane %v4313, %v4317
      %v4321 = vsel %vm4003, %v4304, 0
      %4323 = vmatprep.subr.mxu0 0.0
      %4324 = vmatpush1.msra.mxu0 0.0
      %4325 = vmatprep.subr.mxu0 0.0
      %4326 = vmatpush1.msra.mxu0 0.0
      %4327 = vmatprep.subr.mxu0 0.0
      %4328 = vmatpush1.msra.mxu0 0.0
      %4329 = vmatprep.subr.mxu0 0.0
      %4330 = vmatpush1.msra.mxu0 0.0
      %4331 = vmatprep.subr.mxu0 0.0
      %4332 = vmatpush1.msra.mxu0 0.0
      %4333 = vmatprep.subr.mxu0 0.0
      %4334 = vmatpush1.msra.mxu0 0.0
      %4335 = vmatprep.subr.mxu0 0.0
      %4336 = vmatpush1.msra.mxu0 0.0
      %4337 = vmatprep.subr.mxu0 0.0
      %4338 = vmatpush1.msra.mxu0 0.0
      %4339 = vmatprep.subr.mxu0 0.0
      %4340 = vmatpush1.msra.mxu0 %v4312
      %4341 = vmatprep.subr.mxu0 0.0
      %4342 = vmatpush1.msra.mxu0 %v4311
      %4343 = vmatprep.subr.mxu0 0.0
      %4344 = vmatpush1.msra.mxu0 %v4310
      %4345 = vmatprep.subr.mxu0 0.0
      %4346 = vmatpush1.msra.mxu0 %v4309
      %4347 = vmatprep.subr.mxu0 0.0
      %4348 = vmatpush1.msra.mxu0 %v4308
      %4349 = vmatprep.subr.mxu0 0.0
      %4350 = vmatpush1.msra.mxu0 %v4307
      %4351 = vmatprep.subr.mxu0 0.0
      %4352 = vmatpush1.msra.mxu0 %v4306
      %4353 = vmatprep.subr.mxu0 0.0
      %4354 = vmatpush1.msra.mxu0 %v4305
      %4355 = vmatprep.subr.mxu0 0.0
      %4356 = vmatpush2.msra.mxu0 0.0
      %4357 = vmatprep.subr.mxu0 0.0
      %4358 = vmatpush2.msra.mxu0 0.0
      %4359 = vmatprep.subr.mxu0 0.0
      %4360 = vmatpush2.msra.mxu0 0.0
      %4361 = vmatprep.subr.mxu0 0.0
      %4362 = vmatpush2.msra.mxu0 0.0
      %4363 = vmatprep.subr.mxu0 0.0
      %4364 = vmatpush2.msra.mxu0 0.0
      %4365 = vmatprep.subr.mxu0 0.0
      %4366 = vmatpush2.msra.mxu0 0.0
      %4367 = vmatprep.subr.mxu0 0.0
      %4368 = vmatpush2.msra.mxu0 0.0
      %4369 = vmatprep.subr.mxu0 0.0
      %4370 = vmatpush2.msra.mxu0 0.0
      %4371 = vmatprep.subr.mxu0 0.0
      %4372 = vmatpush2.msra.mxu0 0.0
      %4373 = vmatprep.subr.mxu0 0.0
      %4374 = vmatpush2.msra.mxu0 0.0
      %4375 = vmatprep.subr.mxu0 0.0
      %4376 = vmatpush2.msra.mxu0 0.0
      %4377 = vmatprep.subr.mxu0 0.0
      %4378 = vmatpush2.msra.mxu0 0.0
      %4379 = vmatprep.subr.mxu0 0.0
      %4380 = vmatpush2.msra.mxu0 0.0
      %4381 = vmatprep.subr.mxu0 0.0
      %4382 = vmatpush2.msra.mxu0 0.0
      %4383 = vmatprep.subr.mxu0 0.0
      %4384 = vmatpush2.msra.mxu0 0.0
      %4385 = vmatprep.subr.mxu0 0.0
      %4386 = vmatpush2.msra.mxu0 0.0
      %4387 = vmatprep.mubr.f32.mxu0 0.0
      %4388 = vmatmul.mubr.f32.gmra.mxu0 %v4321
      %v4389 = vpop.f32.mrf.mxu0
      %v4390 = vadd.f32 %v4318, %v4389
      %v4391 = vpop.f32.mrf.mxu0
      %4392 = vdwg.mxu0
      %v4393 = vmax.f32 %v4390, 0.0
      %v4394 = vld [vmem:[%s9] sm:$0xff]
      %v4395 = vld [vmem:[%s9 + $0x8] sm:$0xff]
      %v4396 = vld [vmem:[%s9 + $0x10] sm:$0xff]
      %v4397 = vld [vmem:[%s9 + $0x18] sm:$0xff]
      %v4398 = vld [vmem:[%s10] sm:$0x1]
      %v4400 = vlaneseq
      %v4401 = vshrl.u32 %v4400, 7
      %v4402 = vsub.s32 0, %v4401
      %v4403 = vrot.slane %v4398, %v4402
      %v4406 = vsel %vm2785, %v4393, 0
      %4408 = vmatprep.subr.mxu0 0.0
      %4409 = vmatpush1.msra.mxu0 0.0
      %4410 = vmatprep.subr.mxu0 0.0
      %4411 = vmatpush1.msra.mxu0 0.0
      %4412 = vmatprep.subr.mxu0 0.0
      %4413 = vmatpush1.msra.mxu0 0.0
      %4414 = vmatprep.subr.mxu0 0.0
      %4415 = vmatpush1.msra.mxu0 0.0
      %4416 = vmatprep.subr.mxu0 0.0
      %4417 = vmatpush1.msra.mxu0 0.0
      %4418 = vmatprep.subr.mxu0 0.0
      %4419 = vmatpush1.msra.mxu0 0.0
      %4420 = vmatprep.subr.mxu0 0.0
      %4421 = vmatpush1.msra.mxu0 0.0
      %4422 = vmatprep.subr.mxu0 0.0
      %4423 = vmatpush1.msra.mxu0 0.0
      %4424 = vmatprep.subr.mxu0 0.0
      %4425 = vmatpush1.msra.mxu0 0.0
      %4426 = vmatprep.subr.mxu0 0.0
      %4427 = vmatpush1.msra.mxu0 0.0
      %4428 = vmatprep.subr.mxu0 0.0
      %4429 = vmatpush1.msra.mxu0 0.0
      %4430 = vmatprep.subr.mxu0 0.0
      %4431 = vmatpush1.msra.mxu0 0.0
      %4432 = vmatprep.subr.mxu0 0.0
      %4433 = vmatpush1.msra.mxu0 %v4397
      %4434 = vmatprep.subr.mxu0 0.0
      %4435 = vmatpush1.msra.mxu0 %v4396
      %4436 = vmatprep.subr.mxu0 0.0
      %4437 = vmatpush1.msra.mxu0 %v4395
      %4438 = vmatprep.subr.mxu0 0.0
      %4439 = vmatpush1.msra.mxu0 %v4394
      %4440 = vmatprep.subr.mxu0 0.0
      %4441 = vmatpush2.msra.mxu0 0.0
      %4442 = vmatprep.subr.mxu0 0.0
      %4443 = vmatpush2.msra.mxu0 0.0
      %4444 = vmatprep.subr.mxu0 0.0
      %4445 = vmatpush2.msra.mxu0 0.0
      %4446 = vmatprep.subr.mxu0 0.0
      %4447 = vmatpush2.msra.mxu0 0.0
      %4448 = vmatprep.subr.mxu0 0.0
      %4449 = vmatpush2.msra.mxu0 0.0
      %4450 = vmatprep.subr.mxu0 0.0
      %4451 = vmatpush2.msra.mxu0 0.0
      %4452 = vmatprep.subr.mxu0 0.0
      %4453 = vmatpush2.msra.mxu0 0.0
      %4454 = vmatprep.subr.mxu0 0.0
      %4455 = vmatpush2.msra.mxu0 0.0
      %4456 = vmatprep.subr.mxu0 0.0
      %4457 = vmatpush2.msra.mxu0 0.0
      %4458 = vmatprep.subr.mxu0 0.0
      %4459 = vmatpush2.msra.mxu0 0.0
      %4460 = vmatprep.subr.mxu0 0.0
      %4461 = vmatpush2.msra.mxu0 0.0
      %4462 = vmatprep.subr.mxu0 0.0
      %4463 = vmatpush2.msra.mxu0 0.0
      %4464 = vmatprep.subr.mxu0 0.0
      %4465 = vmatpush2.msra.mxu0 0.0
      %4466 = vmatprep.subr.mxu0 0.0
      %4467 = vmatpush2.msra.mxu0 0.0
      %4468 = vmatprep.subr.mxu0 0.0
      %4469 = vmatpush2.msra.mxu0 0.0
      %4470 = vmatprep.subr.mxu0 0.0
      %4471 = vmatpush2.msra.mxu0 0.0
      %4472 = vmatprep.mubr.f32.mxu0 0.0
      %4473 = vmatmul.mubr.f32.gmra.mxu0 %v4406
      %v4474 = vpop.f32.mrf.mxu0
      %v4475 = vadd.f32 %v4403, %v4474
      %v4476 = vpop.f32.mrf.mxu0
      %4477 = vdwg.mxu0
      %v4478 = vmax.f32 %v4475, 0.0
      %v4479 = vld [vmem:[%s11] sm:$0xff]
      %v4480 = vld [vmem:[%s11 + $0x8] sm:$0xff]
      %v4481 = vld [vmem:[%s12] sm:$0x1]
      %v4483 = vlaneseq
      %v4484 = vshrl.u32 %v4483, 7
      %v4485 = vsub.s32 0, %v4484
      %v4486 = vrot.slane %v4481, %v4485
      %v4489 = vsel %vm1556, %v4478, 0
      %4491 = vmatprep.subr.mxu0 0.0
      %4492 = vmatpush1.msra.mxu0 0.0
      %4493 = vmatprep.subr.mxu0 0.0
      %4494 = vmatpush1.msra.mxu0 0.0
      %4495 = vmatprep.subr.mxu0 0.0
      %4496 = vmatpush1.msra.mxu0 0.0
      %4497 = vmatprep.subr.mxu0 0.0
      %4498 = vmatpush1.msra.mxu0 0.0
      %4499 = vmatprep.subr.mxu0 0.0
      %4500 = vmatpush1.msra.mxu0 0.0
      %4501 = vmatprep.subr.mxu0 0.0
      %4502 = vmatpush1.msra.mxu0 0.0
      %4503 = vmatprep.subr.mxu0 0.0
      %4504 = vmatpush1.msra.mxu0 0.0
      %4505 = vmatprep.subr.mxu0 0.0
      %4506 = vmatpush1.msra.mxu0 0.0
      %4507 = vmatprep.subr.mxu0 0.0
      %4508 = vmatpush1.msra.mxu0 0.0
      %4509 = vmatprep.subr.mxu0 0.0
      %4510 = vmatpush1.msra.mxu0 0.0
      %4511 = vmatprep.subr.mxu0 0.0
      %4512 = vmatpush1.msra.mxu0 0.0
      %4513 = vmatprep.subr.mxu0 0.0
      %4514 = vmatpush1.msra.mxu0 0.0
      %4515 = vmatprep.subr.mxu0 0.0
      %4516 = vmatpush1.msra.mxu0 0.0
      %4517 = vmatprep.subr.mxu0 0.0
      %4518 = vmatpush1.msra.mxu0 0.0
      %4519 = vmatprep.subr.mxu0 0.0
      %4520 = vmatpush1.msra.mxu0 %v4480
      %4521 = vmatprep.subr.mxu0 0.0
      %4522 = vmatpush1.msra.mxu0 %v4479
      %4523 = vmatprep.subr.mxu0 0.0
      %4524 = vmatpush2.msra.mxu0 0.0
      %4525 = vmatprep.subr.mxu0 0.0
      %4526 = vmatpush2.msra.mxu0 0.0
      %4527 = vmatprep.subr.mxu0 0.0
      %4528 = vmatpush2.msra.mxu0 0.0
      %4529 = vmatprep.subr.mxu0 0.0
      %4530 = vmatpush2.msra.mxu0 0.0
      %4531 = vmatprep.subr.mxu0 0.0
      %4532 = vmatpush2.msra.mxu0 0.0
      %4533 = vmatprep.subr.mxu0 0.0
      %4534 = vmatpush2.msra.mxu0 0.0
      %4535 = vmatprep.subr.mxu0 0.0
      %4536 = vmatpush2.msra.mxu0 0.0
      %4537 = vmatprep.subr.mxu0 0.0
      %4538 = vmatpush2.msra.mxu0 0.0
      %4539 = vmatprep.subr.mxu0 0.0
      %4540 = vmatpush2.msra.mxu0 0.0
      %4541 = vmatprep.subr.mxu0 0.0
      %4542 = vmatpush2.msra.mxu0 0.0
      %4543 = vmatprep.subr.mxu0 0.0
      %4544 = vmatpush2.msra.mxu0 0.0
      %4545 = vmatprep.subr.mxu0 0.0
      %4546 = vmatpush2.msra.mxu0 0.0
      %4547 = vmatprep.subr.mxu0 0.0
      %4548 = vmatpush2.msra.mxu0 0.0
      %4549 = vmatprep.subr.mxu0 0.0
      %4550 = vmatpush2.msra.mxu0 0.0
      %4551 = vmatprep.subr.mxu0 0.0
      %4552 = vmatpush2.msra.mxu0 0.0
      %4553 = vmatprep.subr.mxu0 0.0
      %4554 = vmatpush2.msra.mxu0 0.0
      %4555 = vmatprep.mubr.f32.mxu0 0.0
      %4556 = vmatmul.mubr.f32.gmra.mxu0 %v4489
      %v4557 = vpop.f32.mrf.mxu0
      %v4558 = vadd.f32 %v4486, %v4557
      %v4559 = vpop.f32.mrf.mxu0
      %4560 = vdwg.mxu0
      %4561 = vst [vmem:[#allocation3] sm:$0xf] %v4558
    $region61: #{tpu_custom_call.1} parent=1 // pred_fallthru
      _
    // Predicated region
    $region62: #{tpu_custom_call.1} parent=1 // pred_check
      _
    $region63: #{tpu_custom_call.1} parent=1 // pred_check_branch
      %4563 = sbr.rel (0) target = $region65
    $region64: #{tpu_custom_call.1} parent=1 // pred_region
      %s4565 = ssub.s32 64, 64
      %4566 = vsyncadd [#allocation4], %s4565
      %s4568 = sshll.u32 [#allocation3], 4
      %s4569 = int_to_ptr.vmem [resolvable:$true] %s4568
      %4571 = dma.vmem_to_hbm [thread:$0]  %s4569, 64, %s13, [#allocation4]
    $region65: #{tpu_custom_call.1} parent=1 // pred_fallthru
      _
    // Predicated region
    $region66: #{tpu_custom_call.1} parent=1 // pred_check
      _
    $region67: #{tpu_custom_call.1} parent=1 // pred_check_branch
      %4573 = sbr.rel (0) target = $region69
    $region68: #{tpu_custom_call.1} parent=1 // pred_region
      %4574 = dma.done [#allocation4], 64
    $region69: #{tpu_custom_call.1} parent=1 // pred_fallthru
      _
    %4575 = vsyncpa [#allocation4], 1

</llo_original>
